<compile_context>
chip_gen: v7x
topology: tpu7x:2x2x1
jax: 0.10.0
libtpu: 0.0.40
codegen_flags: <defaults>
</compile_context>

<pallas_src>
import numpy as np
import jax
import jax.numpy as jnp
from jax.experimental import pallas as pl
from jax.experimental.pallas import tpu as pltpu

LRELU_SLOPE = 0.2
_HIGH = jax.lax.Precision.HIGHEST  # used only by the pure-JAX reference


def get_padding(kernel_size, dilation=1):
    return int((kernel_size * dilation - dilation) / 2)


# --------------------------------------------------------------------------
# In-kernel helpers (all shapes/offsets are static Python)
# --------------------------------------------------------------------------
def _leaky(x):
    # 0 < slope < 1  =>  leaky_relu(x) == max(x, slope*x): one vmax instead of cmp+sel.
    return jnp.maximum(x, LRELU_SLOPE * x)


def _dot(a, b):
    # Default MXU precision (single bf16 pass, f32 accumulate) per the perf review.
    return jnp.dot(a, b, preferred_element_type=jnp.float32)


def _pad_lanes(x, pad):
    """Zero-pad a (R, L) value along the lane (length) axis."""
    if pad == 0:
        return x
    z = jnp.zeros((x.shape[0], pad), jnp.float32)
    return jnp.concatenate([z, x, z], axis=1)


# --------------------------------------------------------------------------
# PQMF analysis filters + full linear-map matrices (host precompute)
# --------------------------------------------------------------------------
def make_pqmf_analysis_filter(N, taps, cutoff):
    # TODO(synk): deterministic Hann-windowed sinc prototype instead of the scipy
    # kaiser firwin used by the torch/Avocodo reference (keeps the script self-contained).
    n = np.arange(taps + 1, dtype=np.float64)
    m = n - taps / 2.0
    safe_m = np.where(m == 0, 1.0, m)
    sinc = np.where(m == 0, 2.0 * cutoff,
                    np.sin(2.0 * np.pi * cutoff * m) / (np.pi * safe_m))
    window = 0.5 - 0.5 * np.cos(2.0 * np.pi * n / taps)
    proto = sinc * window
    rows = []
    for k in range(N):
        const = (2 * k + 1) * (np.pi / (2.0 * N)) * (n - (taps - 1) / 2.0)
        phase = ((-1.0) ** k) * np.pi / 4.0
        rows.append(2.0 * proto * np.cos(const + phase))
    return np.stack(rows).astype(np.float32)               # (N, taps+1)


def build_pqmf_matrix(H, N, T, out_pad, t_major):
    """Fold (strided conv + band layout + downstream first-layer zero padding) into a
    single (T + 2*pad, n_cols) matrix so PQMF analysis is one lane-dense matmul.

    t_major=False: column = band * slot + out_pad + time   (slot = L_out + 2*out_pad)
    t_major=True : column = time * slot + out_pad + band   (slot = n_bands + 2*out_pad)
                   i.e. already the transposed view the 'fsbd' discriminator wants.
    """
    nb, K = H.shape
    pad = (K - 1) // 2
    Tp = T + 2 * pad
    L_out = (Tp - K) // N + 1
    slot = (nb if t_major else L_out) + 2 * out_pad
    ncol = (L_out if t_major else nb) * slot
    M = np.zeros((Tp, ncol), np.float32)
    for n in range(nb):
        for l in range(L_out):
            col = (l * slot + out_pad + n) if t_major else (n * slot + out_pad + l)
            M[l * N: l * N + K, col] = H[n]
    return M, L_out, slot, pad


# --------------------------------------------------------------------------
# Parameter init (deterministic; weight_norm at init == plain weight)
# --------------------------------------------------------------------------
def _conv_init(key, out_ch, in_ch, k):
    k1, k2 = jax.random.split(key)
    scale = 1.0 / ((in_ch * k) ** 0.5)
    w = jax.random.uniform(k1, (out_ch, in_ch, k), minval=-scale, maxval=scale)
    b = jax.random.uniform(k2, (out_ch,), minval=-scale, maxval=scale)
    return w.astype(jnp.float32), b.astype(jnp.float32)


def init_mdc(key, in_ch, out_ch, strides, kernel_sizes, dilations):
    branches = []
    _k = _d = None
    for _k, _d in zip(kernel_sizes, dilations):
        key, sk = jax.random.split(key)
        w, b = _conv_init(sk, out_ch, in_ch, _k)
        branches.append({"w": w, "b": b, "d": _d, "p": get_padding(_k, _d)})
    key, sk = jax.random.split(key)
    pw, pb = _conv_init(sk, out_ch, out_ch, 3)
    # NOTE: post_conv padding reuses the *last* (_k, _d) pair -- same quirk as torch ref.
    post = {"w": pw, "b": pb, "d": 1, "p": get_padding(_k, _d), "s": strides}
    return {"branches": branches, "post": post}


def init_sbd_block(key, segment_dim, strides, filters, kernel_size, dilations):
    mdcs = []
    filters_in_out = [(segment_dim, filters[0])]
    for i in range(len(filters) - 1):
        filters_in_out.append((filters[i], filters[i + 1]))
    for _s, _f, _k, _d in zip(strides, filters_in_out, kernel_size, dilations):
        key, sk = jax.random.split(key)
        mdcs.append(init_mdc(sk, _f[0], _f[1], _s, _k, _d))
    key, sk = jax.random.split(key)
    pw, pb = _conv_init(sk, 1, filters_in_out[-1][1], 3)
    return {"mdcs": mdcs, "post": (pw, pb)}


CONFIG = {
    "segment_size": 256,
    "pqmf_config": {"sbd": (4, 16, 0.125, 9.0), "fsbd": (16, 16, 0.03, 9.0)},
    "sbd_filters": [[8, 16, 16], [8, 16, 16], [8, 16, 16]],
    "sbd_kernel_sizes": [[[3, 5], [3, 5], [3, 5]]] * 3,
    "sbd_dilations": [[[1, 2], [1, 2], [1, 2]]] * 3,
    "sbd_strides": [[1, 1, 2]] * 3,
    "sbd_band_ranges": [[0, 2], [2, 4], [0, 16]],
    "sbd_transpose": [False, False, True],
}


def init_sbd(key, cfg):
    params = {"discriminators": []}
    n_s, taps_s, cut_s, _ = cfg["pqmf_config"]["sbd"]
    params["pqmf_H"] = jnp.asarray(make_pqmf_analysis_filter(n_s, taps_s, cut_s))[:, None, :]
    if True in cfg["sbd_transpose"]:
        n_f, taps_f, cut_f, _ = cfg["pqmf_config"]["fsbd"]
        params["f_pqmf_H"] = jnp.asarray(make_pqmf_analysis_filter(n_f, taps_f, cut_f))[:, None, :]
    else:
        params["f_pqmf_H"] = None
    for _f, _k, _d, _s, _br, _tr in zip(cfg["sbd_filters"], cfg["sbd_kernel_sizes"],
                                        cfg["sbd_dilations"], cfg["sbd_strides"],
                                        cfg["sbd_band_ranges"], cfg["sbd_transpose"]):
        if _tr:
            segment_dim = cfg["segment_size"] // _br[1] - _br[0]
        else:
            segment_dim = _br[1] - _br[0]
        key, sk = jax.random.split(key)
        params["discriminators"].append(init_sbd_block(sk, segment_dim, _s, _f, _k, _d))
    return params


# --------------------------------------------------------------------------
# Host-side packing: block-diagonal (batch x branch) im2col weights + bias fold
# --------------------------------------------------------------------------
def _pack_mdc_branch_weight(branches, C_in, C_out, BB, order_scib):
    """Both dilated branches in one matmul.  Rows: br*(BB*C_out) + b*C_out + co.
    Columns index the stacked im2col slices (+1 ones-row for the bias)."""
    n_s = sum(int(np.asarray(br["w"]).shape[2]) for br in branches)
    W = np.zeros((len(branches) * BB * C_out, n_s * BB * C_in + 1), np.float32)
    s_base = 0
    for bri, br in enumerate(branches):
        w = np.asarray(br["w"], np.float32)
        bias = np.asarray(br["b"], np.float32)
        K = w.shape[2]
        for k in range(K):
            s = s_base + k
            for ci in range(C_in):
                for b in range(BB):
                    col = (s * C_in + ci) * BB + b if order_scib \
                        else s * BB * C_in + b * C_in + ci
                    r0 = bri * BB * C_out + b * C_out
                    W[r0:r0 + C_out, col] = w[:, ci, k]
        for b in range(BB):
            r0 = bri * BB * C_out + b * C_out
            W[r0:r0 + C_out, -1] = bias
        s_base += K
    return W


def _pack_single_conv_weight(w, bias, C_in, C_out, BB):
    w = np.asarray(w, np.float32)
    bias = np.asarray(bias, np.float32)
    K = w.shape[2]
    W = np.zeros((BB * C_out, K * BB * C_in + 1), np.float32)
    for k in range(K):
        for ci in range(C_in):
            for b in range(BB):
                col = k * BB * C_in + b * C_in + ci
                W[b * C_out:(b + 1) * C_out, col] = w[:, ci, k]
    for b in range(BB):
        W[b * C_out:(b + 1) * C_out, -1] = bias
    return W


def pack_block(bp, C0, L0, BB, first_3d):
    """Static plan + packed weights for one SBDBlock.  Layer-1 input is pre-padded
    (padding folded into the PQMF matrix), later layers pad in-kernel."""
    layers, weights, sels = [], [], []
    L, C = L0, C0
    for li, mdc in enumerate(bp["mdcs"]):
        branches, post = mdc["branches"], mdc["post"]
        C_out = int(np.asarray(branches[0]["w"]).shape[0])
        max_pad = max(br["p"] for br in branches)
        offsets = []
        for br in branches:
            K = int(np.asarray(br["w"]).shape[2])
            off0 = max_pad - br["p"]
            offsets += [off0 + k * br["d"] for k in range(K)]
        order_scib = first_3d and li == 0
        weights.append(_pack_mdc_branch_weight(branches, C, C_out, BB, order_scib))

        pw, pb = post["w"], post["b"]
        Kp = int(np.asarray(pw).shape[2])
        pp, pd, stride = post["p"], post["d"], post["s"]
        weights.append(_pack_single_conv_weight(pw, pb, C_out, C_out, BB))
        L_dense = L + 2 * pp - pd * (Kp - 1)
        L_out = (L_dense - 1) // stride + 1
        sel_idx = None
        if stride > 1:
            S = np.zeros((L_dense, L_out), np.float32)
            S[np.arange(L_out) * stride, np.arange(L_out)] = 1.0
            sel_idx = len(sels)
            sels.append(S)
        layers.append(dict(L_in=L, C_in=C, C_out=C_out, n_br=len(branches),
                           max_pad=max_pad, offsets=tuple(offsets),
                           post_offsets=tuple(k * pd for k in range(Kp)),
                           post_pad=pp, L_dense=L_dense, stride=stride,
                           L_out=L_out, sel_idx=sel_idx))
        L, C = L_out, C_out

    fw, fb = bp["post"]
    Kf = int(np.asarray(fw).shape[2])
    pad_f = Kf // 2
    weights.append(_pack_single_conv_weight(fw, fb, C, 1, BB))
    L_f = L + 2 * pad_f - (Kf - 1)
    plan = dict(layers=layers, L_f=L_f, C_f=C, BB=BB, first_3d=first_3d,
                final_K=Kf, final_pad=pad_f)
    return plan, weights, sels


def pack_sbd(params, cfg, B):
    """Specialized to CONFIG: discs 0/1 are non-transposed adjacent 2-band slices of
    the sbd PQMF with identical plans (fused, grid over disc); disc 2 is transposed
    and consumes all fsbd bands."""
    # TODO(synk): generalize the disc-fusion grouping for arbitrary band_ranges/transpose.
    BB = 2 * B
    T = cfg["segment_size"]
    n_s, taps_s = cfg["pqmf_config"]["sbd"][:2]
    n_f, taps_f = cfg["pqmf_config"]["fsbd"][:2]
    brs, trs = cfg["sbd_band_ranges"], cfg["sbd_transpose"]
    assert list(trs) == [False, False, True]
    assert list(brs[0]) == [0, 2] and list(brs[1]) == [2, 4]
    assert brs[2][0] == 0 and brs[2][1] == n_f
    assert taps_s == taps_f  # lets both filter banks share one host-padded input

    H_s = np.asarray(params["pqmf_H"][:, 0, :])
    H_f = np.asarray(params["f_pqmf_H"][:, 0, :])
    d_all = params["discriminators"]
    pad0_01 = max(br["p"] for br in d_all[0]["mdcs"][0]["branches"])
    pad0_2 = max(br["p"] for br in d_all[2]["mdcs"][0]["branches"])

    M_s, Lout_s, slot_s, pqmf_pad = build_pqmf_matrix(H_s, n_s, T, pad0_01, t_major=False)
    M_f, Lout_f, slot_f, pqmf_pad_f = build_pqmf_matrix(H_f, n_f, T, pad0_2, t_major=True)
    assert pqmf_pad == pqmf_pad_f
    assert Lout_f == cfg["segment_size"] // brs[2][1] - brs[2][0]

    # fused discriminators 0 + 1
    plan01, sel01_np, w01_per_disc = None, None, []
    for d in range(2):
        plan, ws, sels = pack_block(d_all[d], C0=2, L0=Lout_s, BB=BB, first_3d=True)
        if plan01 is None:
            plan01, sel01_np = plan, sels
        w01_per_disc.append(ws)
    assert all(a.shape == b.shape for a, b in zip(*w01_per_disc))
    w01 = [jnp.asarray(np.stack([w01_per_disc[0][i], w01_per_disc[1][i]]))
           for i in range(len(w01_per_disc[0]))]
    assert len(sel01_np) == 1
    sel01 = jnp.asarray(sel01_np[0])

    # transposed discriminator 2
    plan2, w2_np, sels2 = pack_block(d_all[2], C0=Lout_f, L0=n_f, BB=BB, first_3d=False)
    w2 = [jnp.asarray(w) for w in w2_np]
    assert len(sels2) == 1
    sel2 = jnp.asarray(sels2[0])

    return dict(BB=BB, pqmf_pad=pqmf_pad,
                M_s=jnp.asarray(M_s), M_f=jnp.asarray(M_f),
                n_fused=2, nb_s=n_s, slot_s=slot_s,
                nt_f=Lout_f, slot_f=slot_f,
                plan01=plan01, w01=w01, sel01=sel01,
                plan2=plan2, w2=w2, sel2=sel2)


# --------------------------------------------------------------------------
# Pallas kernels
# --------------------------------------------------------------------------
def pqmf_call(xp, M_s, M_f):
    """Both PQMF analyses in one pallas_call (shared input, two lane-dense outputs)."""
    BB, Tp = xp.shape
    ns, nf = M_s.shape[1], M_f.shape[1]

    def kernel(x_ref, ms_ref, mf_ref, rs_ref, rf_ref):
        x = x_ref[...]
        rs_ref[...] = _dot(x, ms_ref[...])
        rf_ref[...] = _dot(x, mf_ref[...])

    return pl.pallas_call(
        kernel,
        grid=(1,),
        in_specs=[pl.BlockSpec((BB, Tp), lambda i: (0, 0)),
                  pl.BlockSpec(M_s.shape, lambda i: (0, 0)),
                  pl.BlockSpec(M_f.shape, lambda i: (0, 0))],
        out_specs=[pl.BlockSpec((BB, ns), lambda i: (0, 0)),
                   pl.BlockSpec((BB, nf), lambda i: (0, 0))],
        out_shape=[jax.ShapeDtypeStruct((BB, ns), jnp.float32),
                   jax.ShapeDtypeStruct((BB, nf), jnp.float32)],
    )(xp, M_s, M_f)


def _make_block_kernel(plan, n_w, n_sel, n_fmap):
    layers = plan["layers"]
    BB = plan["BB"]
    first_3d = plan["first_3d"]
    L_f, final_K, final_pad = plan["L_f"], plan["final_K"], plan["final_pad"]

    def kernel(x_ref, *refs):
        w_refs = refs[:n_w]
        sel_refs = refs[n_w:n_w + n_sel]
        fmap_refs = refs[n_w + n_sel:n_w + n_sel + n_fmap]
        out_ref = refs[n_w + n_sel + n_fmap]
        wi = 0
        h = None
        for li, lp in enumerate(layers):
            L = lp["L_in"]
            if li == 0 and first_3d:
                src3 = x_ref[...][:, 0]                       # (BB, C0, L0 + 2*pad0)
                pieces = [src3[:, ci, a:a + L]
                          for a in lp["offsets"] for ci in range(lp["C_in"])]
            else:
                # layer-1 input arrives pre-padded (folded into the PQMF matrix)
                src = x_ref[...] if li == 0 else _pad_lanes(h, lp["max_pad"])
                pieces = [src[:, a:a + L] for a in lp["offsets"]]
            pieces.append(jnp.ones((1, L), jnp.float32))      # bias fold
            xcol = jnp.concatenate(pieces, axis=0)
            z = _dot(w_refs[wi][...], xcol)                   # all branches, one matmul
            wi += 1
            half = BB * lp["C_out"]
            acc = _leaky(z[:half])
            for bri in range(1, lp["n_br"]):
                acc = acc + _leaky(z[bri * half:(bri + 1) * half])
            # post conv (stride handled with a precomputed 0/1 selection matmul)
            accp = _pad_lanes(acc, lp["post_pad"])
            Ld = lp["L_dense"]
            pieces = [accp[:, a:a + Ld] for a in lp["post_offsets"]]
            pieces.append(jnp.ones((1, Ld), jnp.float32))
            dense = _dot(w_refs[wi][...], jnp.concatenate(pieces, axis=0))
            wi += 1
            if lp["stride"] > 1:
                dense = _dot(dense, sel_refs[lp["sel_idx"]][...])
            h = _leaky(dense)
            fmap_refs[li][...] = h
        # final 1-channel conv (no activation)
        hp = _pad_lanes(h, final_pad)
        pieces = [hp[:, a:a + L_f] for a in range(final_K)]
        pieces.append(jnp.ones((1, L_f), jnp.float32))
        out_ref[...] = _dot(w_refs[wi][...], jnp.concatenate(pieces, axis=0))

    return kernel


def fused_disc01_call(plan, x4, weights, sel):
    """Discriminators 0 and 1 in one pallas_call; grid=(n_disc,) marked parallel."""
    BB = plan["BB"]
    layers = plan["layers"]
    n_w, n_fmap = len(weights), len(layers)
    n_disc = x4.shape[1]
    assert all(int(w.shape[0]) == n_disc for w in weights)
    kernel = _make_block_kernel(plan, n_w, 1, n_fmap)
    C0 = layers[0]["C_in"]
    Lp0 = x4.shape[-1]

    in_specs = [pl.BlockSpec((BB, 1, C0, Lp0), lambda d: (0, d, 0, 0))]
    for w in weights:
        in_specs.append(pl.BlockSpec((None,) + tuple(w.shape[1:]), lambda d: (d, 0, 0)))
    in_specs.append(pl.BlockSpec(tuple(sel.shape), lambda d: (0, 0)))

    out_shapes, out_specs = [], []
    for lp in layers:
        shp = (n_disc, BB * lp["C_out"], lp["L_out"])
        out_shapes.append(jax.ShapeDtypeStruct(shp, jnp.float32))
        out_specs.append(pl.BlockSpec((None, shp[1], shp[2]), lambda d: (d, 0, 0)))
    shp = (n_disc, BB, plan["L_f"])
    out_shapes.append(jax.ShapeDtypeStruct(shp, jnp.float32))
    out_specs.append(pl.BlockSpec((None, shp[1], shp[2]), lambda d: (d, 0, 0)))

    return pl.pallas_call(
        kernel,
        grid=(n_disc,),
        in_specs=in_specs,
        out_specs=out_specs,
        out_shape=out_shapes,
        compiler_params=pltpu.CompilerParams(dimension_semantics=("parallel",)),
    )(x4, *weights, sel)


def disc_block_call(plan, x2, weights, sel):
    """Single SBDBlock (transposed discriminator) in one pallas_call, one grid step."""
    BB = plan["BB"]
    layers = plan["layers"]
    n_w, n_fmap = len(weights), len(layers)
    kernel = _make_block_kernel(plan, n_w, 1, n_fmap)

    in_specs = [pl.BlockSpec(tuple(x2.shape), lambda i: (0, 0))]
    for w in weights:
        in_specs.append(pl.BlockSpec(tuple(w.shape), lambda i: (0, 0)))
    in_specs.append(pl.BlockSpec(tuple(sel.shape), lambda i: (0, 0)))

    out_shapes, out_specs = [], []
    for lp in layers:
        shp = (BB * lp["C_out"], lp["L_out"])
        out_shapes.append(jax.ShapeDtypeStruct(shp, jnp.float32))
        out_specs.append(pl.BlockSpec(shp, lambda i: (0, 0)))
    shp = (BB, plan["L_f"])
    out_shapes.append(jax.ShapeDtypeStruct(shp, jnp.float32))
    out_specs.append(pl.BlockSpec(shp, lambda i: (0, 0)))

    return pl.pallas_call(
        kernel,
        grid=(1,),
        in_specs=in_specs,
        out_specs=out_specs,
        out_shape=out_shapes,
    )(x2, *weights, sel)


# --------------------------------------------------------------------------
# SBD forward (y and y_hat batch-concatenated so each kernel runs once)
# --------------------------------------------------------------------------
def sbd_forward(packed, y, y_hat):
    B = y.shape[0]
    BB = packed["BB"]
    assert BB == 2 * B
    yy = jnp.concatenate([y, y_hat], axis=0).reshape(BB, -1).astype(jnp.float32)
    pad = packed["pqmf_pad"]
    xp = jnp.pad(yy, ((0, 0), (pad, pad)))                        # one host-side pad

    R_s, R_f = pqmf_call(xp, packed["M_s"], packed["M_f"])        # pallas_call #1
    # Free (contiguity-preserving) reshapes into the layouts the disc kernels expect.
    x4 = R_s.reshape(BB, packed["n_fused"], packed["nb_s"] // packed["n_fused"],
                     packed["slot_s"])                            # (BB, disc, 2, slot)
    x2 = R_f.reshape(BB * packed["nt_f"], packed["slot_f"])       # (BB*16, slot)

    outs01 = fused_disc01_call(packed["plan01"], x4, packed["w01"], packed["sel01"])
    outs2 = disc_block_call(packed["plan2"], x2, packed["w2"], packed["sel2"])

    y_d_rs, y_d_gs, fmap_rs, fmap_gs = [], [], [], []
    layers01 = packed["plan01"]["layers"]
    n_l01 = len(layers01)
    for d in range(packed["n_fused"]):
        fr, fg = [], []
        for li, lp in enumerate(layers01):
            fm = outs01[li][d].reshape(BB, lp["C_out"], lp["L_out"])
            fr.append(fm[:B])
            fg.append(fm[B:])
        o = outs01[n_l01][d].reshape(BB, 1, -1)
        y_d_rs.append(o[:B])
        y_d_gs.append(o[B:])
        fmap_rs.append(fr)
        fmap_gs.append(fg)

    layers2 = packed["plan2"]["layers"]
    fr, fg = [], []
    for li, lp in enumerate(layers2):
        fm = outs2[li].reshape(BB, lp["C_out"], lp["L_out"])
        fr.append(fm[:B])
        fg.append(fm[B:])
    o = outs2[len(layers2)].reshape(BB, 1, -1)
    y_d_rs.append(o[:B])
    y_d_gs.append(o[B:])
    fmap_rs.append(fr)
    fmap_gs.append(fg)
    return y_d_rs, y_d_gs, fmap_rs, fmap_gs


# --------------------------------------------------------------------------
# Pure-JAX reference (lax.conv, f32 HIGHEST) with identical torch semantics
# --------------------------------------------------------------------------
def conv1d_ref(x, w, b, stride=1, dilation=1, padding=0):
    out = jax.lax.conv_general_dilated(
        x.astype(jnp.float32), w.astype(jnp.float32),
        window_strides=(stride,), padding=[(padding, padding)],
        rhs_dilation=(dilation,), dimension_numbers=("NCH", "OIH", "NCH"),
        precision=_HIGH)
    return out + b.reshape(1, -1, 1)


def _mdc_ref(mdc, x):
    acc = None
    for br in mdc["branches"]:
        z = jnp.where(conv1d_ref(x, br["w"], br["b"], dilation=br["d"], padding=br["p"]) >= 0,
                      conv1d_ref(x, br["w"], br["b"], dilation=br["d"], padding=br["p"]),
                      LRELU_SLOPE * conv1d_ref(x, br["w"], br["b"], dilation=br["d"], padding=br["p"]))
        acc = z if acc is None else acc + z
    post = mdc["post"]
    y = conv1d_ref(acc, post["w"], post["b"], stride=post["s"], padding=post["p"])
    return jnp.where(y >= 0, y, LRELU_SLOPE * y)


def _block_ref(p, x):
    fmap = []
    for mdc in p["mdcs"]:
        x = _mdc_ref(mdc, x)
        fmap.append(x)
    fw, fb = p["post"]
    return conv1d_ref(x, fw, fb, stride=1, padding=1), fmap


def sbd_forward_ref(params, cfg, y, y_hat):
    n_s, taps_s = cfg["pqmf_config"]["sbd"][:2]
    n_f, taps_f = cfg["pqmf_config"]["fsbd"][:2]

    def pqmf(x, Hf, N, taps):
        return conv1d_ref(x, Hf, jnp.zeros((Hf.shape[0],), jnp.float32),
                          stride=N, padding=taps // 2)

    y_in = pqmf(y, params["pqmf_H"], n_s, taps_s)
    y_hat_in = pqmf(y_hat, params["pqmf_H"], n_s, taps_s)
    y_in_f = y_hat_in_f = None
    if params["f_pqmf_H"] is not None:
        y_in_f = pqmf(y, params["f_pqmf_H"], n_f, taps_f)
        y_hat_in_f = pqmf(y_hat, params["f_pqmf_H"], n_f, taps_f)

    y_d_rs, y_d_gs, fmap_rs, fmap_gs = [], [], [], []
    for dparams, br, tr in zip(params["discriminators"], cfg["sbd_band_ranges"],
                               cfg["sbd_transpose"]):
        if tr:
            _y = jnp.transpose(y_in_f[:, br[0]:br[1], :], (0, 2, 1))
            _yh = jnp.transpose(y_hat_in_f[:, br[0]:br[1], :], (0, 2, 1))
        else:
            _y = y_in[:, br[0]:br[1], :]
            _yh = y_hat_in[:, br[0]:br[1], :]
        y_d_r, fmap_r = _block_ref(dparams, _y)
        y_d_g, fmap_g = _block_ref(dparams, _yh)
        y_d_rs.append(y_d_r)
        fmap_rs.append(fmap_r)
        y_d_gs.append(y_d_g)
        fmap_gs.append(fmap_g)
    return y_d_rs, y_d_gs, fmap_rs, fmap_gs


if __name__ == "__main__":
    key = jax.random.PRNGKey(0)
    kp, ky, kg = jax.random.split(key, 3)
    cfg = CONFIG
    params = init_sbd(kp, cfg)

    B, T = 2, cfg["segment_size"]
    packed = pack_sbd(params, cfg, B)

    y = jax.random.normal(ky, (B, 1, T), dtype=jnp.float32)
    y_hat = jax.random.normal(kg, (B, 1, T), dtype=jnp.float32)

    fwd = jax.jit(lambda a, b: sbd_forward(packed, a, b))
    outs = jax.block_until_ready(fwd(y, y_hat))
    y_d_rs, y_d_gs, fmap_rs, fmap_gs = outs

    # structural checks
    assert len(y_d_rs) == len(y_d_gs) == len(cfg["sbd_band_ranges"])
    for o in y_d_rs + y_d_gs:
        assert o.ndim == 3 and o.shape[0] == B and o.shape[1] == 1
    for fm in fmap_rs + fmap_gs:
        assert len(fm) == 3  # one fmap per MDC layer

    # numerical check vs the pure-JAX lax.conv reference (f32 HIGHEST).  The Pallas
    # kernels drive the MXU at default (bf16-input) precision per the perf review,
    # so tolerances allow bf16-scale accumulated noise while still catching real bugs.
    refs = sbd_forward_ref(params, cfg, y, y_hat)
    for a, r in zip(jax.tree_util.tree_leaves(outs), jax.tree_util.tree_leaves(refs)):
        assert a.shape == r.shape, (a.shape, r.shape)
        abs_err = float(jnp.max(jnp.abs(a - r)))
        rel_err = float(jnp.linalg.norm(a - r) /
                        jnp.maximum(jnp.linalg.norm(r), 1e-3))
        assert abs_err < 0.15 and rel_err < 0.08, (a.shape, abs_err, rel_err)

    print("KERNEL_OK")
</pallas_src>

<mosaic_0001>
module attributes {stable_mosaic.version = 11 : i64} {
  func.func @kernel(%arg0: i32, %arg1: memref<4x272xf32, #tpu.memory_space<vmem>>, %arg2: memref<272x288xf32, #tpu.memory_space<vmem>>, %arg3: memref<272x384xf32, #tpu.memory_space<vmem>>, %arg4: memref<4x288xf32, #tpu.memory_space<vmem>>, %arg5: memref<4x384xf32, #tpu.memory_space<vmem>>) attributes {dimension_semantics = [#tpu.dimension_semantics<arbitrary>], iteration_bounds = array<i64: 1>, scalar_prefetch = 0 : i64, scratch_operands = 0 : i64, tpu.core_type = #tpu.core_type<tc>, window_params = [{pipeline_mode = #tpu.pipeline_mode<synchronous>, transform_indices = @transform_0, window_bounds = array<i64: 4, 272>}, {pipeline_mode = #tpu.pipeline_mode<synchronous>, transform_indices = @transform_1, window_bounds = array<i64: 272, 288>}, {pipeline_mode = #tpu.pipeline_mode<synchronous>, transform_indices = @transform_2, window_bounds = array<i64: 272, 384>}, {pipeline_mode = #tpu.pipeline_mode<synchronous>, transform_indices = @transform_3, window_bounds = array<i64: 4, 288>}, {pipeline_mode = #tpu.pipeline_mode<synchronous>, transform_indices = @transform_4, window_bounds = array<i64: 4, 384>}]} {
    %c0 = arith.constant 0 : index
    %c0_0 = arith.constant 0 : index
    %0 = vector.load %arg1[%c0, %c0_0] : memref<4x272xf32, #tpu.memory_space<vmem>>, vector<4x272xf32>
    %c0_1 = arith.constant 0 : index
    %c0_2 = arith.constant 0 : index
    %1 = vector.load %arg2[%c0_1, %c0_2] : memref<272x288xf32, #tpu.memory_space<vmem>>, vector<272x288xf32>
    %cst = arith.constant dense<0.000000e+00> : vector<4x288xf32>
    %2 = tpu.matmul %0, %1, %cst {dimension_numbers = #tpu.dot_dimension_numbers<[1], [0], [0], [1], [0, 0, 1, 1], [], []>} : vector<4x272xf32>, vector<272x288xf32>, vector<4x288xf32> -> vector<4x288xf32>
    %c0_3 = arith.constant 0 : index
    %c0_4 = arith.constant 0 : index
    %3 = vector.load %arg4[%c0_3, %c0_4] : memref<4x288xf32, #tpu.memory_space<vmem>>, vector<4x288xf32>
    tpu.vector_store %arg4[%c0_3, %c0_4], %2 {strides = array<i32>} : memref<4x288xf32, #tpu.memory_space<vmem>>, vector<4x288xf32>,
    %c0_5 = arith.constant 0 : index
    %c0_6 = arith.constant 0 : index
    %4 = vector.load %arg3[%c0_5, %c0_6] : memref<272x384xf32, #tpu.memory_space<vmem>>, vector<272x384xf32>
    %cst_7 = arith.constant dense<0.000000e+00> : vector<4x384xf32>
    %5 = tpu.matmul %0, %4, %cst_7 {dimension_numbers = #tpu.dot_dimension_numbers<[1], [0], [0], [1], [0, 0, 1, 1], [], []>} : vector<4x272xf32>, vector<272x384xf32>, vector<4x384xf32> -> vector<4x384xf32>
    %c0_8 = arith.constant 0 : index
    %c0_9 = arith.constant 0 : index
    %6 = vector.load %arg5[%c0_8, %c0_9] : memref<4x384xf32, #tpu.memory_space<vmem>>, vector<4x384xf32>
    tpu.vector_store %arg5[%c0_8, %c0_9], %5 {strides = array<i32>} : memref<4x384xf32, #tpu.memory_space<vmem>>, vector<4x384xf32>,
    return
  }
  func.func @transform_0(%arg0: i32) -> (i32, i32) {
    %c0_i32 = arith.constant 0 : i32
    %c0_i32_0 = arith.constant 0 : i32
    %c0_i32_1 = arith.constant 0 : i32
    return %c0_i32, %c0_i32_0 : i32, i32
  }
  func.func @transform_1(%arg0: i32) -> (i32, i32) {
    %c0_i32 = arith.constant 0 : i32
    %c0_i32_0 = arith.constant 0 : i32
    %c0_i32_1 = arith.constant 0 : i32
    return %c0_i32, %c0_i32_0 : i32, i32
  }
  func.func @transform_2(%arg0: i32) -> (i32, i32) {
    %c0_i32 = arith.constant 0 : i32
    %c0_i32_0 = arith.constant 0 : i32
    %c0_i32_1 = arith.constant 0 : i32
    return %c0_i32, %c0_i32_0 : i32, i32
  }
  func.func @transform_3(%arg0: i32) -> (i32, i32) {
    %c0_i32 = arith.constant 0 : i32
    %c0_i32_0 = arith.constant 0 : i32
    %c0_i32_1 = arith.constant 0 : i32
    return %c0_i32, %c0_i32_0 : i32, i32
  }
  func.func @transform_4(%arg0: i32) -> (i32, i32) {
    %c0_i32 = arith.constant 0 : i32
    %c0_i32_0 = arith.constant 0 : i32
    %c0_i32_1 = arith.constant 0 : i32
    return %c0_i32, %c0_i32_0 : i32, i32
  }
}

module attributes {stable_mosaic.version = 11 : i64} {
  func.func @kernel(%arg0: i32, %arg1: memref<4x1x2x72xf32, #tpu.memory_space<vmem>>, %arg2: memref<1x64x65xf32, #tpu.memory_space<vmem>>, %arg3: memref<1x32x97xf32, #tpu.memory_space<vmem>>, %arg4: memref<1x128x257xf32, #tpu.memory_space<vmem>>, %arg5: memref<1x64x193xf32, #tpu.memory_space<vmem>>, %arg6: memref<1x128x513xf32, #tpu.memory_space<vmem>>, %arg7: memref<1x64x193xf32, #tpu.memory_space<vmem>>, %arg8: memref<1x4x193xf32, #tpu.memory_space<vmem>>, %arg9: memref<82x41xf32, #tpu.memory_space<vmem>>, %arg10: memref<1x32x70xf32, #tpu.memory_space<vmem>>, %arg11: memref<1x64x76xf32, #tpu.memory_space<vmem>>, %arg12: memref<1x64x41xf32, #tpu.memory_space<vmem>>, %arg13: memref<1x4x41xf32, #tpu.memory_space<vmem>>) attributes {dimension_semantics = [#tpu.dimension_semantics<parallel>], iteration_bounds = array<i64: 2>, scalar_prefetch = 0 : i64, scratch_operands = 0 : i64, tpu.core_type = #tpu.core_type<tc>, window_params = [{transform_indices = @transform_0, window_bounds = array<i64: 4, 1, 2, 72>}, {transform_indices = @transform_1, window_bounds = array<i64: 1, 64, 65>}, {transform_indices = @transform_2, window_bounds = array<i64: 1, 32, 97>}, {transform_indices = @transform_3, window_bounds = array<i64: 1, 128, 257>}, {transform_indices = @transform_4, window_bounds = array<i64: 1, 64, 193>}, {transform_indices = @transform_5, window_bounds = array<i64: 1, 128, 513>}, {transform_indices = @transform_6, window_bounds = array<i64: 1, 64, 193>}, {transform_indices = @transform_7, window_bounds = array<i64: 1, 4, 193>}, {pipeline_mode = #tpu.pipeline_mode<synchronous>, transform_indices = @transform_8, window_bounds = array<i64: 82, 41>}, {transform_indices = @transform_9, window_bounds = array<i64: 1, 32, 70>}, {transform_indices = @transform_10, window_bounds = array<i64: 1, 64, 76>}, {transform_indices = @transform_11, window_bounds = array<i64: 1, 64, 41>}, {transform_indices = @transform_12, window_bounds = array<i64: 1, 4, 41>}]} {
    %c0 = arith.constant 0 : index
    %c0_0 = arith.constant 0 : index
    %c0_1 = arith.constant 0 : index
    %c0_2 = arith.constant 0 : index
    %0 = vector.load %arg1[%c0, %c0_0, %c0_1, %c0_2] : memref<4x1x2x72xf32, #tpu.memory_space<vmem>>, vector<4x1x2x72xf32>
    %1 = vector.shape_cast %0 : vector<4x1x2x72xf32> to vector<4x2x72xf32>
    %2 = vector.extract_strided_slice %1 {offsets = [0, 0, 3], sizes = [4, 1, 64], strides = [1, 1, 1]} : vector<4x2x72xf32> to vector<4x1x64xf32>
    %3 = vector.shape_cast %2 : vector<4x1x64xf32> to vector<4x64xf32>
    %4 = vector.extract_strided_slice %1 {offsets = [0, 1, 3], sizes = [4, 1, 64], strides = [1, 1, 1]} : vector<4x2x72xf32> to vector<4x1x64xf32>
    %5 = vector.shape_cast %4 : vector<4x1x64xf32> to vector<4x64xf32>
    %6 = vector.extract_strided_slice %1 {offsets = [0, 0, 4], sizes = [4, 1, 64], strides = [1, 1, 1]} : vector<4x2x72xf32> to vector<4x1x64xf32>
    %7 = vector.shape_cast %6 : vector<4x1x64xf32> to vector<4x64xf32>
    %8 = vector.extract_strided_slice %1 {offsets = [0, 1, 4], sizes = [4, 1, 64], strides = [1, 1, 1]} : vector<4x2x72xf32> to vector<4x1x64xf32>
    %9 = vector.shape_cast %8 : vector<4x1x64xf32> to vector<4x64xf32>
    %10 = vector.extract_strided_slice %1 {offsets = [0, 0, 5], sizes = [4, 1, 64], strides = [1, 1, 1]} : vector<4x2x72xf32> to vector<4x1x64xf32>
    %11 = vector.shape_cast %10 : vector<4x1x64xf32> to vector<4x64xf32>
    %12 = vector.extract_strided_slice %1 {offsets = [0, 1, 5], sizes = [4, 1, 64], strides = [1, 1, 1]} : vector<4x2x72xf32> to vector<4x1x64xf32>
    %13 = vector.shape_cast %12 : vector<4x1x64xf32> to vector<4x64xf32>
    %14 = vector.extract_strided_slice %1 {offsets = [0, 0, 0], sizes = [4, 1, 64], strides = [1, 1, 1]} : vector<4x2x72xf32> to vector<4x1x64xf32>
    %15 = vector.shape_cast %14 : vector<4x1x64xf32> to vector<4x64xf32>
    %16 = vector.extract_strided_slice %1 {offsets = [0, 1, 0], sizes = [4, 1, 64], strides = [1, 1, 1]} : vector<4x2x72xf32> to vector<4x1x64xf32>
    %17 = vector.shape_cast %16 : vector<4x1x64xf32> to vector<4x64xf32>
    %18 = vector.extract_strided_slice %1 {offsets = [0, 0, 2], sizes = [4, 1, 64], strides = [1, 1, 1]} : vector<4x2x72xf32> to vector<4x1x64xf32>
    %19 = vector.shape_cast %18 : vector<4x1x64xf32> to vector<4x64xf32>
    %20 = vector.extract_strided_slice %1 {offsets = [0, 1, 2], sizes = [4, 1, 64], strides = [1, 1, 1]} : vector<4x2x72xf32> to vector<4x1x64xf32>
    %21 = vector.shape_cast %20 : vector<4x1x64xf32> to vector<4x64xf32>
    %22 = vector.extract_strided_slice %1 {offsets = [0, 0, 4], sizes = [4, 1, 64], strides = [1, 1, 1]} : vector<4x2x72xf32> to vector<4x1x64xf32>
    %23 = vector.shape_cast %22 : vector<4x1x64xf32> to vector<4x64xf32>
    %24 = vector.extract_strided_slice %1 {offsets = [0, 1, 4], sizes = [4, 1, 64], strides = [1, 1, 1]} : vector<4x2x72xf32> to vector<4x1x64xf32>
    %25 = vector.shape_cast %24 : vector<4x1x64xf32> to vector<4x64xf32>
    %26 = vector.extract_strided_slice %1 {offsets = [0, 0, 6], sizes = [4, 1, 64], strides = [1, 1, 1]} : vector<4x2x72xf32> to vector<4x1x64xf32>
    %27 = vector.shape_cast %26 : vector<4x1x64xf32> to vector<4x64xf32>
    %28 = vector.extract_strided_slice %1 {offsets = [0, 1, 6], sizes = [4, 1, 64], strides = [1, 1, 1]} : vector<4x2x72xf32> to vector<4x1x64xf32>
    %29 = vector.shape_cast %28 : vector<4x1x64xf32> to vector<4x64xf32>
    %30 = vector.extract_strided_slice %1 {offsets = [0, 0, 8], sizes = [4, 1, 64], strides = [1, 1, 1]} : vector<4x2x72xf32> to vector<4x1x64xf32>
    %31 = vector.shape_cast %30 : vector<4x1x64xf32> to vector<4x64xf32>
    %32 = vector.extract_strided_slice %1 {offsets = [0, 1, 8], sizes = [4, 1, 64], strides = [1, 1, 1]} : vector<4x2x72xf32> to vector<4x1x64xf32>
    %33 = vector.shape_cast %32 : vector<4x1x64xf32> to vector<4x64xf32>
    %cst = arith.constant 1.000000e+00 : f32
    %34 = vector.broadcast %cst : f32 to vector<1x64xf32>
    %35 = tpu.concatenate %3, %5, %7, %9, %11, %13, %15, %17, %19, %21, %23, %25, %27, %29, %31, %33 in 0 : vector<4x64xf32>, vector<4x64xf32>, vector<4x64xf32>, vector<4x64xf32>, vector<4x64xf32>, vector<4x64xf32>, vector<4x64xf32>, vector<4x64xf32>, vector<4x64xf32>, vector<4x64xf32>, vector<4x64xf32>, vector<4x64xf32>, vector<4x64xf32>, vector<4x64xf32>, vector<4x64xf32>, vector<4x64xf32> -> vector<64x64xf32>
    %36 = tpu.concatenate %35, %34 in 0 : vector<64x64xf32>, vector<1x64xf32> -> vector<65x64xf32>
    %c0_3 = arith.constant 0 : index
    %c0_4 = arith.constant 0 : index
    %c0_5 = arith.constant 0 : index
    %37 = vector.load %arg2[%c0_3, %c0_4, %c0_5] : memref<1x64x65xf32, #tpu.memory_space<vmem>>, vector<1x64x65xf32>
    %38 = vector.shape_cast %37 : vector<1x64x65xf32> to vector<64x65xf32>
    %cst_6 = arith.constant dense<0.000000e+00> : vector<64x64xf32>
    %39 = tpu.matmul %38, %36, %cst_6 {dimension_numbers = #tpu.dot_dimension_numbers<[1], [0], [0], [1], [0, 0, 1, 1], [], []>} : vector<64x65xf32>, vector<65x64xf32>, vector<64x64xf32> -> vector<64x64xf32>
    %40 = vector.extract_strided_slice %39 {offsets = [0, 0], sizes = [32, 64], strides = [1, 1]} : vector<64x64xf32> to vector<32x64xf32>
    %cst_7 = arith.constant 2.000000e-01 : f32
    %41 = vector.broadcast %cst_7 : f32 to vector<32x64xf32>
    %42 = arith.mulf %41, %40 : vector<32x64xf32>
    %43 = arith.maximumf %40, %42 : vector<32x64xf32>
    %44 = vector.extract_strided_slice %39 {offsets = [32, 0], sizes = [32, 64], strides = [1, 1]} : vector<64x64xf32> to vector<32x64xf32>
    %cst_8 = arith.constant 2.000000e-01 : f32
    %45 = vector.broadcast %cst_8 : f32 to vector<32x64xf32>
    %46 = arith.mulf %45, %44 : vector<32x64xf32>
    %47 = arith.maximumf %44, %46 : vector<32x64xf32>
    %48 = arith.addf %43, %47 : vector<32x64xf32>
    %cst_9 = arith.constant 0.000000e+00 : f32
    %49 = vector.broadcast %cst_9 : f32 to vector<32x4xf32>
    %50 = tpu.concatenate %49, %48, %49 in 1 : vector<32x4xf32>, vector<32x64xf32>, vector<32x4xf32> -> vector<32x72xf32>
    %51 = vector.extract_strided_slice %50 {offsets = [0, 0], sizes = [32, 70], strides = [1, 1]} : vector<32x72xf32> to vector<32x70xf32>
    %52 = vector.extract_strided_slice %50 {offsets = [0, 1], sizes = [32, 70], strides = [1, 1]} : vector<32x72xf32> to vector<32x70xf32>
    %53 = vector.extract_strided_slice %50 {offsets = [0, 2], sizes = [32, 70], strides = [1, 1]} : vector<32x72xf32> to vector<32x70xf32>
    %cst_10 = arith.constant 1.000000e+00 : f32
    %54 = vector.broadcast %cst_10 : f32 to vector<1x70xf32>
    %c0_11 = arith.constant 0 : index
    %c0_12 = arith.constant 0 : index
    %c0_13 = arith.constant 0 : index
    %55 = vector.load %arg3[%c0_11, %c0_12, %c0_13] : memref<1x32x97xf32, #tpu.memory_space<vmem>>, vector<1x32x97xf32>
    %56 = vector.shape_cast %55 : vector<1x32x97xf32> to vector<32x97xf32>
    %57 = tpu.concatenate %51, %52, %53, %54 in 0 : vector<32x70xf32>, vector<32x70xf32>, vector<32x70xf32>, vector<1x70xf32> -> vector<97x70xf32>
    %cst_14 = arith.constant dense<0.000000e+00> : vector<32x70xf32>
    %58 = tpu.matmul %56, %57, %cst_14 {dimension_numbers = #tpu.dot_dimension_numbers<[1], [0], [0], [1], [0, 0, 1, 1], [], []>} : vector<32x97xf32>, vector<97x70xf32>, vector<32x70xf32> -> vector<32x70xf32>
    %cst_15 = arith.constant 2.000000e-01 : f32
    %59 = vector.broadcast %cst_15 : f32 to vector<32x70xf32>
    %60 = arith.mulf %59, %58 : vector<32x70xf32>
    %61 = arith.maximumf %58, %60 : vector<32x70xf32>
    %c0_16 = arith.constant 0 : index
    %c0_17 = arith.constant 0 : index
    %c0_18 = arith.constant 0 : index
    %62 = vector.load %arg10[%c0_16, %c0_17, %c0_18] : memref<1x32x70xf32, #tpu.memory_space<vmem>>, vector<1x32x70xf32>
    %63 = vector.shape_cast %62 : vector<1x32x70xf32> to vector<32x70xf32>
    %64 = vector.shape_cast %61 : vector<32x70xf32> to vector<1x32x70xf32>
    tpu.vector_store %arg10[%c0_16, %c0_17, %c0_18], %64 {strides = array<i32>} : memref<1x32x70xf32, #tpu.memory_space<vmem>>, vector<1x32x70xf32>,
    %cst_19 = arith.constant 0.000000e+00 : f32
    %65 = vector.broadcast %cst_19 : f32 to vector<32x4xf32>
    %66 = tpu.concatenate %65, %61, %65 in 1 : vector<32x4xf32>, vector<32x70xf32>, vector<32x4xf32> -> vector<32x78xf32>
    %67 = vector.extract_strided_slice %66 {offsets = [0, 3], sizes = [32, 70], strides = [1, 1]} : vector<32x78xf32> to vector<32x70xf32>
    %68 = vector.extract_strided_slice %66 {offsets = [0, 4], sizes = [32, 70], strides = [1, 1]} : vector<32x78xf32> to vector<32x70xf32>
    %69 = vector.extract_strided_slice %66 {offsets = [0, 5], sizes = [32, 70], strides = [1, 1]} : vector<32x78xf32> to vector<32x70xf32>
    %70 = vector.extract_strided_slice %66 {offsets = [0, 0], sizes = [32, 70], strides = [1, 1]} : vector<32x78xf32> to vector<32x70xf32>
    %71 = vector.extract_strided_slice %66 {offsets = [0, 2], sizes = [32, 70], strides = [1, 1]} : vector<32x78xf32> to vector<32x70xf32>
    %72 = vector.extract_strided_slice %66 {offsets = [0, 4], sizes = [32, 70], strides = [1, 1]} : vector<32x78xf32> to vector<32x70xf32>
    %73 = vector.extract_strided_slice %66 {offsets = [0, 6], sizes = [32, 70], strides = [1, 1]} : vector<32x78xf32> to vector<32x70xf32>
    %74 = vector.extract_strided_slice %66 {offsets = [0, 8], sizes = [32, 70], strides = [1, 1]} : vector<32x78xf32> to vector<32x70xf32>
    %cst_20 = arith.constant 1.000000e+00 : f32
    %75 = vector.broadcast %cst_20 : f32 to vector<1x70xf32>
    %76 = tpu.concatenate %67, %68, %69, %70, %71, %72, %73, %74, %75 in 0 : vector<32x70xf32>, vector<32x70xf32>, vector<32x70xf32>, vector<32x70xf32>, vector<32x70xf32>, vector<32x70xf32>, vector<32x70xf32>, vector<32x70xf32>, vector<1x70xf32> -> vector<257x70xf32>
    %c0_21 = arith.constant 0 : index
    %c0_22 = arith.constant 0 : index
    %c0_23 = arith.constant 0 : index
    %77 = vector.load %arg4[%c0_21, %c0_22, %c0_23] : memref<1x128x257xf32, #tpu.memory_space<vmem>>, vector<1x128x257xf32>
    %78 = vector.shape_cast %77 : vector<1x128x257xf32> to vector<128x257xf32>
    %cst_24 = arith.constant dense<0.000000e+00> : vector<128x70xf32>
    %79 = tpu.matmul %78, %76, %cst_24 {dimension_numbers = #tpu.dot_dimension_numbers<[1], [0], [0], [1], [0, 0, 1, 1], [], []>} : vector<128x257xf32>, vector<257x70xf32>, vector<128x70xf32> -> vector<128x70xf32>
    %80 = vector.extract_strided_slice %79 {offsets = [0, 0], sizes = [64, 70], strides = [1, 1]} : vector<128x70xf32> to vector<64x70xf32>
    %cst_25 = arith.constant 2.000000e-01 : f32
    %81 = vector.broadcast %cst_25 : f32 to vector<64x70xf32>
    %82 = arith.mulf %81, %80 : vector<64x70xf32>
    %83 = arith.maximumf %80, %82 : vector<64x70xf32>
    %84 = vector.extract_strided_slice %79 {offsets = [64, 0], sizes = [64, 70], strides = [1, 1]} : vector<128x70xf32> to vector<64x70xf32>
    %cst_26 = arith.constant 2.000000e-01 : f32
    %85 = vector.broadcast %cst_26 : f32 to vector<64x70xf32>
    %86 = arith.mulf %85, %84 : vector<64x70xf32>
    %87 = arith.maximumf %84, %86 : vector<64x70xf32>
    %88 = arith.addf %83, %87 : vector<64x70xf32>
    %cst_27 = arith.constant 0.000000e+00 : f32
    %89 = vector.broadcast %cst_27 : f32 to vector<64x4xf32>
    %90 = tpu.concatenate %89, %88, %89 in 1 : vector<64x4xf32>, vector<64x70xf32>, vector<64x4xf32> -> vector<64x78xf32>
    %91 = vector.extract_strided_slice %90 {offsets = [0, 0], sizes = [64, 76], strides = [1, 1]} : vector<64x78xf32> to vector<64x76xf32>
    %92 = vector.extract_strided_slice %90 {offsets = [0, 1], sizes = [64, 76], strides = [1, 1]} : vector<64x78xf32> to vector<64x76xf32>
    %93 = vector.extract_strided_slice %90 {offsets = [0, 2], sizes = [64, 76], strides = [1, 1]} : vector<64x78xf32> to vector<64x76xf32>
    %cst_28 = arith.constant 1.000000e+00 : f32
    %94 = vector.broadcast %cst_28 : f32 to vector<1x76xf32>
    %c0_29 = arith.constant 0 : index
    %c0_30 = arith.constant 0 : index
    %c0_31 = arith.constant 0 : index
    %95 = vector.load %arg5[%c0_29, %c0_30, %c0_31] : memref<1x64x193xf32, #tpu.memory_space<vmem>>, vector<1x64x193xf32>
    %96 = vector.shape_cast %95 : vector<1x64x193xf32> to vector<64x193xf32>
    %97 = tpu.concatenate %91, %92, %93, %94 in 0 : vector<64x76xf32>, vector<64x76xf32>, vector<64x76xf32>, vector<1x76xf32> -> vector<193x76xf32>
    %cst_32 = arith.constant dense<0.000000e+00> : vector<64x76xf32>
    %98 = tpu.matmul %96, %97, %cst_32 {dimension_numbers = #tpu.dot_dimension_numbers<[1], [0], [0], [1], [0, 0, 1, 1], [], []>} : vector<64x193xf32>, vector<193x76xf32>, vector<64x76xf32> -> vector<64x76xf32>
    %cst_33 = arith.constant 2.000000e-01 : f32
    %99 = vector.broadcast %cst_33 : f32 to vector<64x76xf32>
    %100 = arith.mulf %99, %98 : vector<64x76xf32>
    %101 = arith.maximumf %98, %100 : vector<64x76xf32>
    %c0_34 = arith.constant 0 : index
    %c0_35 = arith.constant 0 : index
    %c0_36 = arith.constant 0 : index
    %102 = vector.load %arg11[%c0_34, %c0_35, %c0_36] : memref<1x64x76xf32, #tpu.memory_space<vmem>>, vector<1x64x76xf32>
    %103 = vector.shape_cast %102 : vector<1x64x76xf32> to vector<64x76xf32>
    %104 = vector.shape_cast %101 : vector<64x76xf32> to vector<1x64x76xf32>
    tpu.vector_store %arg11[%c0_34, %c0_35, %c0_36], %104 {strides = array<i32>} : memref<1x64x76xf32, #tpu.memory_space<vmem>>, vector<1x64x76xf32>,
    %cst_37 = arith.constant 0.000000e+00 : f32
    %105 = vector.broadcast %cst_37 : f32 to vector<64x4xf32>
    %106 = tpu.concatenate %105, %101, %105 in 1 : vector<64x4xf32>, vector<64x76xf32>, vector<64x4xf32> -> vector<64x84xf32>
    %107 = vector.extract_strided_slice %106 {offsets = [0, 3], sizes = [64, 76], strides = [1, 1]} : vector<64x84xf32> to vector<64x76xf32>
    %108 = vector.extract_strided_slice %106 {offsets = [0, 4], sizes = [64, 76], strides = [1, 1]} : vector<64x84xf32> to vector<64x76xf32>
    %109 = vector.extract_strided_slice %106 {offsets = [0, 5], sizes = [64, 76], strides = [1, 1]} : vector<64x84xf32> to vector<64x76xf32>
    %110 = vector.extract_strided_slice %106 {offsets = [0, 0], sizes = [64, 76], strides = [1, 1]} : vector<64x84xf32> to vector<64x76xf32>
    %111 = vector.extract_strided_slice %106 {offsets = [0, 2], sizes = [64, 76], strides = [1, 1]} : vector<64x84xf32> to vector<64x76xf32>
    %112 = vector.extract_strided_slice %106 {offsets = [0, 4], sizes = [64, 76], strides = [1, 1]} : vector<64x84xf32> to vector<64x76xf32>
    %113 = vector.extract_strided_slice %106 {offsets = [0, 6], sizes = [64, 76], strides = [1, 1]} : vector<64x84xf32> to vector<64x76xf32>
    %114 = vector.extract_strided_slice %106 {offsets = [0, 8], sizes = [64, 76], strides = [1, 1]} : vector<64x84xf32> to vector<64x76xf32>
    %cst_38 = arith.constant 1.000000e+00 : f32
    %115 = vector.broadcast %cst_38 : f32 to vector<1x76xf32>
    %116 = tpu.concatenate %107, %108, %109, %110, %111, %112, %113, %114, %115 in 0 : vector<64x76xf32>, vector<64x76xf32>, vector<64x76xf32>, vector<64x76xf32>, vector<64x76xf32>, vector<64x76xf32>, vector<64x76xf32>, vector<64x76xf32>, vector<1x76xf32> -> vector<513x76xf32>
    %c0_39 = arith.constant 0 : index
    %c0_40 = arith.constant 0 : index
    %c0_41 = arith.constant 0 : index
    %117 = vector.load %arg6[%c0_39, %c0_40, %c0_41] : memref<1x128x513xf32, #tpu.memory_space<vmem>>, vector<1x128x513xf32>
    %118 = vector.shape_cast %117 : vector<1x128x513xf32> to vector<128x513xf32>
    %cst_42 = arith.constant dense<0.000000e+00> : vector<128x76xf32>
    %119 = tpu.matmul %118, %116, %cst_42 {dimension_numbers = #tpu.dot_dimension_numbers<[1], [0], [0], [1], [0, 0, 1, 1], [], []>} : vector<128x513xf32>, vector<513x76xf32>, vector<128x76xf32> -> vector<128x76xf32>
    %120 = vector.extract_strided_slice %119 {offsets = [0, 0], sizes = [64, 76], strides = [1, 1]} : vector<128x76xf32> to vector<64x76xf32>
    %cst_43 = arith.constant 2.000000e-01 : f32
    %121 = vector.broadcast %cst_43 : f32 to vector<64x76xf32>
    %122 = arith.mulf %121, %120 : vector<64x76xf32>
    %123 = arith.maximumf %120, %122 : vector<64x76xf32>
    %124 = vector.extract_strided_slice %119 {offsets = [64, 0], sizes = [64, 76], strides = [1, 1]} : vector<128x76xf32> to vector<64x76xf32>
    %cst_44 = arith.constant 2.000000e-01 : f32
    %125 = vector.broadcast %cst_44 : f32 to vector<64x76xf32>
    %126 = arith.mulf %125, %124 : vector<64x76xf32>
    %127 = arith.maximumf %124, %126 : vector<64x76xf32>
    %128 = arith.addf %123, %127 : vector<64x76xf32>
    %cst_45 = arith.constant 0.000000e+00 : f32
    %129 = vector.broadcast %cst_45 : f32 to vector<64x4xf32>
    %130 = tpu.concatenate %129, %128, %129 in 1 : vector<64x4xf32>, vector<64x76xf32>, vector<64x4xf32> -> vector<64x84xf32>
    %131 = vector.extract_strided_slice %130 {offsets = [0, 0], sizes = [64, 82], strides = [1, 1]} : vector<64x84xf32> to vector<64x82xf32>
    %132 = vector.extract_strided_slice %130 {offsets = [0, 1], sizes = [64, 82], strides = [1, 1]} : vector<64x84xf32> to vector<64x82xf32>
    %133 = vector.extract_strided_slice %130 {offsets = [0, 2], sizes = [64, 82], strides = [1, 1]} : vector<64x84xf32> to vector<64x82xf32>
    %cst_46 = arith.constant 1.000000e+00 : f32
    %134 = vector.broadcast %cst_46 : f32 to vector<1x82xf32>
    %c0_47 = arith.constant 0 : index
    %c0_48 = arith.constant 0 : index
    %c0_49 = arith.constant 0 : index
    %135 = vector.load %arg7[%c0_47, %c0_48, %c0_49] : memref<1x64x193xf32, #tpu.memory_space<vmem>>, vector<1x64x193xf32>
    %136 = vector.shape_cast %135 : vector<1x64x193xf32> to vector<64x193xf32>
    %137 = tpu.concatenate %131, %132, %133, %134 in 0 : vector<64x82xf32>, vector<64x82xf32>, vector<64x82xf32>, vector<1x82xf32> -> vector<193x82xf32>
    %cst_50 = arith.constant dense<0.000000e+00> : vector<64x82xf32>
    %138 = tpu.matmul %136, %137, %cst_50 {dimension_numbers = #tpu.dot_dimension_numbers<[1], [0], [0], [1], [0, 0, 1, 1], [], []>} : vector<64x193xf32>, vector<193x82xf32>, vector<64x82xf32> -> vector<64x82xf32>
    %c0_51 = arith.constant 0 : index
    %c0_52 = arith.constant 0 : index
    %139 = vector.load %arg9[%c0_51, %c0_52] : memref<82x41xf32, #tpu.memory_space<vmem>>, vector<82x41xf32>
    %cst_53 = arith.constant dense<0.000000e+00> : vector<64x41xf32>
    %140 = tpu.matmul %138, %139, %cst_53 {dimension_numbers = #tpu.dot_dimension_numbers<[1], [0], [0], [1], [0, 0, 1, 1], [], []>} : vector<64x82xf32>, vector<82x41xf32>, vector<64x41xf32> -> vector<64x41xf32>
    %cst_54 = arith.constant 2.000000e-01 : f32
    %141 = vector.broadcast %cst_54 : f32 to vector<64x41xf32>
    %142 = arith.mulf %141, %140 : vector<64x41xf32>
    %143 = arith.maximumf %140, %142 : vector<64x41xf32>
    %c0_55 = arith.constant 0 : index
    %c0_56 = arith.constant 0 : index
    %c0_57 = arith.constant 0 : index
    %144 = vector.load %arg12[%c0_55, %c0_56, %c0_57] : memref<1x64x41xf32, #tpu.memory_space<vmem>>, vector<1x64x41xf32>
    %145 = vector.shape_cast %144 : vector<1x64x41xf32> to vector<64x41xf32>
    %146 = vector.shape_cast %143 : vector<64x41xf32> to vector<1x64x41xf32>
    tpu.vector_store %arg12[%c0_55, %c0_56, %c0_57], %146 {strides = array<i32>} : memref<1x64x41xf32, #tpu.memory_space<vmem>>, vector<1x64x41xf32>,
    %cst_58 = arith.constant 0.000000e+00 : f32
    %147 = vector.broadcast %cst_58 : f32 to vector<64x1xf32>
    %148 = tpu.concatenate %147, %143, %147 in 1 : vector<64x1xf32>, vector<64x41xf32>, vector<64x1xf32> -> vector<64x43xf32>
    %149 = vector.extract_strided_slice %148 {offsets = [0, 0], sizes = [64, 41], strides = [1, 1]} : vector<64x43xf32> to vector<64x41xf32>
    %150 = vector.extract_strided_slice %148 {offsets = [0, 1], sizes = [64, 41], strides = [1, 1]} : vector<64x43xf32> to vector<64x41xf32>
    %151 = vector.extract_strided_slice %148 {offsets = [0, 2], sizes = [64, 41], strides = [1, 1]} : vector<64x43xf32> to vector<64x41xf32>
    %cst_59 = arith.constant 1.000000e+00 : f32
    %152 = vector.broadcast %cst_59 : f32 to vector<1x41xf32>
    %c0_60 = arith.constant 0 : index
    %c0_61 = arith.constant 0 : index
    %c0_62 = arith.constant 0 : index
    %153 = vector.load %arg8[%c0_60, %c0_61, %c0_62] : memref<1x4x193xf32, #tpu.memory_space<vmem>>, vector<1x4x193xf32>
    %154 = vector.shape_cast %153 : vector<1x4x193xf32> to vector<4x193xf32>
    %155 = tpu.concatenate %149, %150, %151, %152 in 0 : vector<64x41xf32>, vector<64x41xf32>, vector<64x41xf32>, vector<1x41xf32> -> vector<193x41xf32>
    %cst_63 = arith.constant dense<0.000000e+00> : vector<4x41xf32>
    %156 = tpu.matmul %154, %155, %cst_63 {dimension_numbers = #tpu.dot_dimension_numbers<[1], [0], [0], [1], [0, 0, 1, 1], [], []>} : vector<4x193xf32>, vector<193x41xf32>, vector<4x41xf32> -> vector<4x41xf32>
    %c0_64 = arith.constant 0 : index
    %c0_65 = arith.constant 0 : index
    %c0_66 = arith.constant 0 : index
    %157 = vector.load %arg13[%c0_64, %c0_65, %c0_66] : memref<1x4x41xf32, #tpu.memory_space<vmem>>, vector<1x4x41xf32>
    %158 = vector.shape_cast %157 : vector<1x4x41xf32> to vector<4x41xf32>
    %159 = vector.shape_cast %156 : vector<4x41xf32> to vector<1x4x41xf32>
    tpu.vector_store %arg13[%c0_64, %c0_65, %c0_66], %159 {strides = array<i32>} : memref<1x4x41xf32, #tpu.memory_space<vmem>>, vector<1x4x41xf32>,
    return
  }
  func.func @transform_0(%arg0: i32) -> (i32, i32, i32, i32) {
    %c0_i32 = arith.constant 0 : i32
    %c0_i32_0 = arith.constant 0 : i32
    %c0_i32_1 = arith.constant 0 : i32
    %c0_i32_2 = arith.constant 0 : i32
    return %c0_i32, %arg0, %c0_i32_0, %c0_i32_1 : i32, i32, i32, i32
  }
  func.func @transform_1(%arg0: i32) -> (i32, i32, i32) {
    %c0_i32 = arith.constant 0 : i32
    %c0_i32_0 = arith.constant 0 : i32
    %c0_i32_1 = arith.constant 0 : i32
    return %arg0, %c0_i32, %c0_i32_0 : i32, i32, i32
  }
  func.func @transform_2(%arg0: i32) -> (i32, i32, i32) {
    %c0_i32 = arith.constant 0 : i32
    %c0_i32_0 = arith.constant 0 : i32
    %c0_i32_1 = arith.constant 0 : i32
    return %arg0, %c0_i32, %c0_i32_0 : i32, i32, i32
  }
  func.func @transform_3(%arg0: i32) -> (i32, i32, i32) {
    %c0_i32 = arith.constant 0 : i32
    %c0_i32_0 = arith.constant 0 : i32
    %c0_i32_1 = arith.constant 0 : i32
    return %arg0, %c0_i32, %c0_i32_0 : i32, i32, i32
  }
  func.func @transform_4(%arg0: i32) -> (i32, i32, i32) {
    %c0_i32 = arith.constant 0 : i32
    %c0_i32_0 = arith.constant 0 : i32
    %c0_i32_1 = arith.constant 0 : i32
    return %arg0, %c0_i32, %c0_i32_0 : i32, i32, i32
  }
  func.func @transform_5(%arg0: i32) -> (i32, i32, i32) {
    %c0_i32 = arith.constant 0 : i32
    %c0_i32_0 = arith.constant 0 : i32
    %c0_i32_1 = arith.constant 0 : i32
    return %arg0, %c0_i32, %c0_i32_0 : i32, i32, i32
  }
  func.func @transform_6(%arg0: i32) -> (i32, i32, i32) {
    %c0_i32 = arith.constant 0 : i32
    %c0_i32_0 = arith.constant 0 : i32
    %c0_i32_1 = arith.constant 0 : i32
    return %arg0, %c0_i32, %c0_i32_0 : i32, i32, i32
  }
  func.func @transform_7(%arg0: i32) -> (i32, i32, i32) {
    %c0_i32 = arith.constant 0 : i32
    %c0_i32_0 = arith.constant 0 : i32
    %c0_i32_1 = arith.constant 0 : i32
    return %arg0, %c0_i32, %c0_i32_0 : i32, i32, i32
  }
  func.func @transform_8(%arg0: i32) -> (i32, i32) {
    %c0_i32 = arith.constant 0 : i32
    %c0_i32_0 = arith.constant 0 : i32
    %c0_i32_1 = arith.constant 0 : i32
    return %c0_i32, %c0_i32_0 : i32, i32
  }
  func.func @transform_9(%arg0: i32) -> (i32, i32, i32) {
    %c0_i32 = arith.constant 0 : i32
    %c0_i32_0 = arith.constant 0 : i32
    %c0_i32_1 = arith.constant 0 : i32
    return %arg0, %c0_i32, %c0_i32_0 : i32, i32, i32
  }
  func.func @transform_10(%arg0: i32) -> (i32, i32, i32) {
    %c0_i32 = arith.constant 0 : i32
    %c0_i32_0 = arith.constant 0 : i32
    %c0_i32_1 = arith.constant 0 : i32
    return %arg0, %c0_i32, %c0_i32_0 : i32, i32, i32
  }
  func.func @transform_11(%arg0: i32) -> (i32, i32, i32) {
    %c0_i32 = arith.constant 0 : i32
    %c0_i32_0 = arith.constant 0 : i32
    %c0_i32_1 = arith.constant 0 : i32
    return %arg0, %c0_i32, %c0_i32_0 : i32, i32, i32
  }
  func.func @transform_12(%arg0: i32) -> (i32, i32, i32) {
    %c0_i32 = arith.constant 0 : i32
    %c0_i32_0 = arith.constant 0 : i32
    %c0_i32_1 = arith.constant 0 : i32
    return %arg0, %c0_i32, %c0_i32_0 : i32, i32, i32
  }
}

module attributes {stable_mosaic.version = 11 : i64} {
  func.func @kernel(%arg0: i32, %arg1: memref<64x24xf32, #tpu.memory_space<vmem>>, %arg2: memref<64x513xf32, #tpu.memory_space<vmem>>, %arg3: memref<32x97xf32, #tpu.memory_space<vmem>>, %arg4: memref<128x257xf32, #tpu.memory_space<vmem>>, %arg5: memref<64x193xf32, #tpu.memory_space<vmem>>, %arg6: memref<128x513xf32, #tpu.memory_space<vmem>>, %arg7: memref<64x193xf32, #tpu.memory_space<vmem>>, %arg8: memref<4x193xf32, #tpu.memory_space<vmem>>, %arg9: memref<34x17xf32, #tpu.memory_space<vmem>>, %arg10: memref<32x22xf32, #tpu.memory_space<vmem>>, %arg11: memref<64x28xf32, #tpu.memory_space<vmem>>, %arg12: memref<64x17xf32, #tpu.memory_space<vmem>>, %arg13: memref<4x17xf32, #tpu.memory_space<vmem>>) attributes {dimension_semantics = [#tpu.dimension_semantics<arbitrary>], iteration_bounds = array<i64: 1>, scalar_prefetch = 0 : i64, scratch_operands = 0 : i64, tpu.core_type = #tpu.core_type<tc>, window_params = [{pipeline_mode = #tpu.pipeline_mode<synchronous>, transform_indices = @transform_0, window_bounds = array<i64: 64, 24>}, {pipeline_mode = #tpu.pipeline_mode<synchronous>, transform_indices = @transform_1, window_bounds = array<i64: 64, 513>}, {pipeline_mode = #tpu.pipeline_mode<synchronous>, transform_indices = @transform_2, window_bounds = array<i64: 32, 97>}, {pipeline_mode = #tpu.pipeline_mode<synchronous>, transform_indices = @transform_3, window_bounds = array<i64: 128, 257>}, {pipeline_mode = #tpu.pipeline_mode<synchronous>, transform_indices = @transform_4, window_bounds = array<i64: 64, 193>}, {pipeline_mode = #tpu.pipeline_mode<synchronous>, transform_indices = @transform_5, window_bounds = array<i64: 128, 513>}, {pipeline_mode = #tpu.pipeline_mode<synchronous>, transform_indices = @transform_6, window_bounds = array<i64: 64, 193>}, {pipeline_mode = #tpu.pipeline_mode<synchronous>, transform_indices = @transform_7, window_bounds = array<i64: 4, 193>}, {pipeline_mode = #tpu.pipeline_mode<synchronous>, transform_indices = @transform_8, window_bounds = array<i64: 34, 17>}, {pipeline_mode = #tpu.pipeline_mode<synchronous>, transform_indices = @transform_9, window_bounds = array<i64: 32, 22>}, {pipeline_mode = #tpu.pipeline_mode<synchronous>, transform_indices = @transform_10, window_bounds = array<i64: 64, 28>}, {pipeline_mode = #tpu.pipeline_mode<synchronous>, transform_indices = @transform_11, window_bounds = array<i64: 64, 17>}, {pipeline_mode = #tpu.pipeline_mode<synchronous>, transform_indices = @transform_12, window_bounds = array<i64: 4, 17>}]} {
    %c0 = arith.constant 0 : index
    %c0_0 = arith.constant 0 : index
    %0 = vector.load %arg1[%c0, %c0_0] : memref<64x24xf32, #tpu.memory_space<vmem>>, vector<64x24xf32>
    %1 = vector.extract_strided_slice %0 {offsets = [0, 3], sizes = [64, 16], strides = [1, 1]} : vector<64x24xf32> to vector<64x16xf32>
    %2 = vector.extract_strided_slice %0 {offsets = [0, 4], sizes = [64, 16], strides = [1, 1]} : vector<64x24xf32> to vector<64x16xf32>
    %3 = vector.extract_strided_slice %0 {offsets = [0, 5], sizes = [64, 16], strides = [1, 1]} : vector<64x24xf32> to vector<64x16xf32>
    %4 = vector.extract_strided_slice %0 {offsets = [0, 0], sizes = [64, 16], strides = [1, 1]} : vector<64x24xf32> to vector<64x16xf32>
    %5 = vector.extract_strided_slice %0 {offsets = [0, 2], sizes = [64, 16], strides = [1, 1]} : vector<64x24xf32> to vector<64x16xf32>
    %6 = vector.extract_strided_slice %0 {offsets = [0, 4], sizes = [64, 16], strides = [1, 1]} : vector<64x24xf32> to vector<64x16xf32>
    %7 = vector.extract_strided_slice %0 {offsets = [0, 6], sizes = [64, 16], strides = [1, 1]} : vector<64x24xf32> to vector<64x16xf32>
    %8 = vector.extract_strided_slice %0 {offsets = [0, 8], sizes = [64, 16], strides = [1, 1]} : vector<64x24xf32> to vector<64x16xf32>
    %cst = arith.constant 1.000000e+00 : f32
    %9 = vector.broadcast %cst : f32 to vector<1x16xf32>
    %10 = tpu.concatenate %1, %2, %3, %4, %5, %6, %7, %8, %9 in 0 : vector<64x16xf32>, vector<64x16xf32>, vector<64x16xf32>, vector<64x16xf32>, vector<64x16xf32>, vector<64x16xf32>, vector<64x16xf32>, vector<64x16xf32>, vector<1x16xf32> -> vector<513x16xf32>
    %c0_1 = arith.constant 0 : index
    %c0_2 = arith.constant 0 : index
    %11 = vector.load %arg2[%c0_1, %c0_2] : memref<64x513xf32, #tpu.memory_space<vmem>>, vector<64x513xf32>
    %cst_3 = arith.constant dense<0.000000e+00> : vector<64x16xf32>
    %12 = tpu.matmul %11, %10, %cst_3 {dimension_numbers = #tpu.dot_dimension_numbers<[1], [0], [0], [1], [0, 0, 1, 1], [], []>} : vector<64x513xf32>, vector<513x16xf32>, vector<64x16xf32> -> vector<64x16xf32>
    %13 = vector.extract_strided_slice %12 {offsets = [0, 0], sizes = [32, 16], strides = [1, 1]} : vector<64x16xf32> to vector<32x16xf32>
    %cst_4 = arith.constant 2.000000e-01 : f32
    %14 = vector.broadcast %cst_4 : f32 to vector<32x16xf32>
    %15 = arith.mulf %14, %13 : vector<32x16xf32>
    %16 = arith.maximumf %13, %15 : vector<32x16xf32>
    %17 = vector.extract_strided_slice %12 {offsets = [32, 0], sizes = [32, 16], strides = [1, 1]} : vector<64x16xf32> to vector<32x16xf32>
    %cst_5 = arith.constant 2.000000e-01 : f32
    %18 = vector.broadcast %cst_5 : f32 to vector<32x16xf32>
    %19 = arith.mulf %18, %17 : vector<32x16xf32>
    %20 = arith.maximumf %17, %19 : vector<32x16xf32>
    %21 = arith.addf %16, %20 : vector<32x16xf32>
    %cst_6 = arith.constant 0.000000e+00 : f32
    %22 = vector.broadcast %cst_6 : f32 to vector<32x4xf32>
    %23 = tpu.concatenate %22, %21, %22 in 1 : vector<32x4xf32>, vector<32x16xf32>, vector<32x4xf32> -> vector<32x24xf32>
    %24 = vector.extract_strided_slice %23 {offsets = [0, 0], sizes = [32, 22], strides = [1, 1]} : vector<32x24xf32> to vector<32x22xf32>
    %25 = vector.extract_strided_slice %23 {offsets = [0, 1], sizes = [32, 22], strides = [1, 1]} : vector<32x24xf32> to vector<32x22xf32>
    %26 = vector.extract_strided_slice %23 {offsets = [0, 2], sizes = [32, 22], strides = [1, 1]} : vector<32x24xf32> to vector<32x22xf32>
    %cst_7 = arith.constant 1.000000e+00 : f32
    %27 = vector.broadcast %cst_7 : f32 to vector<1x22xf32>
    %c0_8 = arith.constant 0 : index
    %c0_9 = arith.constant 0 : index
    %28 = vector.load %arg3[%c0_8, %c0_9] : memref<32x97xf32, #tpu.memory_space<vmem>>, vector<32x97xf32>
    %29 = tpu.concatenate %24, %25, %26, %27 in 0 : vector<32x22xf32>, vector<32x22xf32>, vector<32x22xf32>, vector<1x22xf32> -> vector<97x22xf32>
    %cst_10 = arith.constant dense<0.000000e+00> : vector<32x22xf32>
    %30 = tpu.matmul %28, %29, %cst_10 {dimension_numbers = #tpu.dot_dimension_numbers<[1], [0], [0], [1], [0, 0, 1, 1], [], []>} : vector<32x97xf32>, vector<97x22xf32>, vector<32x22xf32> -> vector<32x22xf32>
    %cst_11 = arith.constant 2.000000e-01 : f32
    %31 = vector.broadcast %cst_11 : f32 to vector<32x22xf32>
    %32 = arith.mulf %31, %30 : vector<32x22xf32>
    %33 = arith.maximumf %30, %32 : vector<32x22xf32>
    %c0_12 = arith.constant 0 : index
    %c0_13 = arith.constant 0 : index
    %34 = vector.load %arg10[%c0_12, %c0_13] : memref<32x22xf32, #tpu.memory_space<vmem>>, vector<32x22xf32>
    tpu.vector_store %arg10[%c0_12, %c0_13], %33 {strides = array<i32>} : memref<32x22xf32, #tpu.memory_space<vmem>>, vector<32x22xf32>,
    %cst_14 = arith.constant 0.000000e+00 : f32
    %35 = vector.broadcast %cst_14 : f32 to vector<32x4xf32>
    %36 = tpu.concatenate %35, %33, %35 in 1 : vector<32x4xf32>, vector<32x22xf32>, vector<32x4xf32> -> vector<32x30xf32>
    %37 = vector.extract_strided_slice %36 {offsets = [0, 3], sizes = [32, 22], strides = [1, 1]} : vector<32x30xf32> to vector<32x22xf32>
    %38 = vector.extract_strided_slice %36 {offsets = [0, 4], sizes = [32, 22], strides = [1, 1]} : vector<32x30xf32> to vector<32x22xf32>
    %39 = vector.extract_strided_slice %36 {offsets = [0, 5], sizes = [32, 22], strides = [1, 1]} : vector<32x30xf32> to vector<32x22xf32>
    %40 = vector.extract_strided_slice %36 {offsets = [0, 0], sizes = [32, 22], strides = [1, 1]} : vector<32x30xf32> to vector<32x22xf32>
    %41 = vector.extract_strided_slice %36 {offsets = [0, 2], sizes = [32, 22], strides = [1, 1]} : vector<32x30xf32> to vector<32x22xf32>
    %42 = vector.extract_strided_slice %36 {offsets = [0, 4], sizes = [32, 22], strides = [1, 1]} : vector<32x30xf32> to vector<32x22xf32>
    %43 = vector.extract_strided_slice %36 {offsets = [0, 6], sizes = [32, 22], strides = [1, 1]} : vector<32x30xf32> to vector<32x22xf32>
    %44 = vector.extract_strided_slice %36 {offsets = [0, 8], sizes = [32, 22], strides = [1, 1]} : vector<32x30xf32> to vector<32x22xf32>
    %cst_15 = arith.constant 1.000000e+00 : f32
    %45 = vector.broadcast %cst_15 : f32 to vector<1x22xf32>
    %46 = tpu.concatenate %37, %38, %39, %40, %41, %42, %43, %44, %45 in 0 : vector<32x22xf32>, vector<32x22xf32>, vector<32x22xf32>, vector<32x22xf32>, vector<32x22xf32>, vector<32x22xf32>, vector<32x22xf32>, vector<32x22xf32>, vector<1x22xf32> -> vector<257x22xf32>
    %c0_16 = arith.constant 0 : index
    %c0_17 = arith.constant 0 : index
    %47 = vector.load %arg4[%c0_16, %c0_17] : memref<128x257xf32, #tpu.memory_space<vmem>>, vector<128x257xf32>
    %cst_18 = arith.constant dense<0.000000e+00> : vector<128x22xf32>
    %48 = tpu.matmul %47, %46, %cst_18 {dimension_numbers = #tpu.dot_dimension_numbers<[1], [0], [0], [1], [0, 0, 1, 1], [], []>} : vector<128x257xf32>, vector<257x22xf32>, vector<128x22xf32> -> vector<128x22xf32>
    %49 = vector.extract_strided_slice %48 {offsets = [0, 0], sizes = [64, 22], strides = [1, 1]} : vector<128x22xf32> to vector<64x22xf32>
    %cst_19 = arith.constant 2.000000e-01 : f32
    %50 = vector.broadcast %cst_19 : f32 to vector<64x22xf32>
    %51 = arith.mulf %50, %49 : vector<64x22xf32>
    %52 = arith.maximumf %49, %51 : vector<64x22xf32>
    %53 = vector.extract_strided_slice %48 {offsets = [64, 0], sizes = [64, 22], strides = [1, 1]} : vector<128x22xf32> to vector<64x22xf32>
    %cst_20 = arith.constant 2.000000e-01 : f32
    %54 = vector.broadcast %cst_20 : f32 to vector<64x22xf32>
    %55 = arith.mulf %54, %53 : vector<64x22xf32>
    %56 = arith.maximumf %53, %55 : vector<64x22xf32>
    %57 = arith.addf %52, %56 : vector<64x22xf32>
    %cst_21 = arith.constant 0.000000e+00 : f32
    %58 = vector.broadcast %cst_21 : f32 to vector<64x4xf32>
    %59 = tpu.concatenate %58, %57, %58 in 1 : vector<64x4xf32>, vector<64x22xf32>, vector<64x4xf32> -> vector<64x30xf32>
    %60 = vector.extract_strided_slice %59 {offsets = [0, 0], sizes = [64, 28], strides = [1, 1]} : vector<64x30xf32> to vector<64x28xf32>
    %61 = vector.extract_strided_slice %59 {offsets = [0, 1], sizes = [64, 28], strides = [1, 1]} : vector<64x30xf32> to vector<64x28xf32>
    %62 = vector.extract_strided_slice %59 {offsets = [0, 2], sizes = [64, 28], strides = [1, 1]} : vector<64x30xf32> to vector<64x28xf32>
    %cst_22 = arith.constant 1.000000e+00 : f32
    %63 = vector.broadcast %cst_22 : f32 to vector<1x28xf32>
    %c0_23 = arith.constant 0 : index
    %c0_24 = arith.constant 0 : index
    %64 = vector.load %arg5[%c0_23, %c0_24] : memref<64x193xf32, #tpu.memory_space<vmem>>, vector<64x193xf32>
    %65 = tpu.concatenate %60, %61, %62, %63 in 0 : vector<64x28xf32>, vector<64x28xf32>, vector<64x28xf32>, vector<1x28xf32> -> vector<193x28xf32>
    %cst_25 = arith.constant dense<0.000000e+00> : vector<64x28xf32>
    %66 = tpu.matmul %64, %65, %cst_25 {dimension_numbers = #tpu.dot_dimension_numbers<[1], [0], [0], [1], [0, 0, 1, 1], [], []>} : vector<64x193xf32>, vector<193x28xf32>, vector<64x28xf32> -> vector<64x28xf32>
    %cst_26 = arith.constant 2.000000e-01 : f32
    %67 = vector.broadcast %cst_26 : f32 to vector<64x28xf32>
    %68 = arith.mulf %67, %66 : vector<64x28xf32>
    %69 = arith.maximumf %66, %68 : vector<64x28xf32>
    %c0_27 = arith.constant 0 : index
    %c0_28 = arith.constant 0 : index
    %70 = vector.load %arg11[%c0_27, %c0_28] : memref<64x28xf32, #tpu.memory_space<vmem>>, vector<64x28xf32>
    tpu.vector_store %arg11[%c0_27, %c0_28], %69 {strides = array<i32>} : memref<64x28xf32, #tpu.memory_space<vmem>>, vector<64x28xf32>,
    %cst_29 = arith.constant 0.000000e+00 : f32
    %71 = vector.broadcast %cst_29 : f32 to vector<64x4xf32>
    %72 = tpu.concatenate %71, %69, %71 in 1 : vector<64x4xf32>, vector<64x28xf32>, vector<64x4xf32> -> vector<64x36xf32>
    %73 = vector.extract_strided_slice %72 {offsets = [0, 3], sizes = [64, 28], strides = [1, 1]} : vector<64x36xf32> to vector<64x28xf32>
    %74 = vector.extract_strided_slice %72 {offsets = [0, 4], sizes = [64, 28], strides = [1, 1]} : vector<64x36xf32> to vector<64x28xf32>
    %75 = vector.extract_strided_slice %72 {offsets = [0, 5], sizes = [64, 28], strides = [1, 1]} : vector<64x36xf32> to vector<64x28xf32>
    %76 = vector.extract_strided_slice %72 {offsets = [0, 0], sizes = [64, 28], strides = [1, 1]} : vector<64x36xf32> to vector<64x28xf32>
    %77 = vector.extract_strided_slice %72 {offsets = [0, 2], sizes = [64, 28], strides = [1, 1]} : vector<64x36xf32> to vector<64x28xf32>
    %78 = vector.extract_strided_slice %72 {offsets = [0, 4], sizes = [64, 28], strides = [1, 1]} : vector<64x36xf32> to vector<64x28xf32>
    %79 = vector.extract_strided_slice %72 {offsets = [0, 6], sizes = [64, 28], strides = [1, 1]} : vector<64x36xf32> to vector<64x28xf32>
    %80 = vector.extract_strided_slice %72 {offsets = [0, 8], sizes = [64, 28], strides = [1, 1]} : vector<64x36xf32> to vector<64x28xf32>
    %cst_30 = arith.constant 1.000000e+00 : f32
    %81 = vector.broadcast %cst_30 : f32 to vector<1x28xf32>
    %82 = tpu.concatenate %73, %74, %75, %76, %77, %78, %79, %80, %81 in 0 : vector<64x28xf32>, vector<64x28xf32>, vector<64x28xf32>, vector<64x28xf32>, vector<64x28xf32>, vector<64x28xf32>, vector<64x28xf32>, vector<64x28xf32>, vector<1x28xf32> -> vector<513x28xf32>
    %c0_31 = arith.constant 0 : index
    %c0_32 = arith.constant 0 : index
    %83 = vector.load %arg6[%c0_31, %c0_32] : memref<128x513xf32, #tpu.memory_space<vmem>>, vector<128x513xf32>
    %cst_33 = arith.constant dense<0.000000e+00> : vector<128x28xf32>
    %84 = tpu.matmul %83, %82, %cst_33 {dimension_numbers = #tpu.dot_dimension_numbers<[1], [0], [0], [1], [0, 0, 1, 1], [], []>} : vector<128x513xf32>, vector<513x28xf32>, vector<128x28xf32> -> vector<128x28xf32>
    %85 = vector.extract_strided_slice %84 {offsets = [0, 0], sizes = [64, 28], strides = [1, 1]} : vector<128x28xf32> to vector<64x28xf32>
    %cst_34 = arith.constant 2.000000e-01 : f32
    %86 = vector.broadcast %cst_34 : f32 to vector<64x28xf32>
    %87 = arith.mulf %86, %85 : vector<64x28xf32>
    %88 = arith.maximumf %85, %87 : vector<64x28xf32>
    %89 = vector.extract_strided_slice %84 {offsets = [64, 0], sizes = [64, 28], strides = [1, 1]} : vector<128x28xf32> to vector<64x28xf32>
    %cst_35 = arith.constant 2.000000e-01 : f32
    %90 = vector.broadcast %cst_35 : f32 to vector<64x28xf32>
    %91 = arith.mulf %90, %89 : vector<64x28xf32>
    %92 = arith.maximumf %89, %91 : vector<64x28xf32>
    %93 = arith.addf %88, %92 : vector<64x28xf32>
    %cst_36 = arith.constant 0.000000e+00 : f32
    %94 = vector.broadcast %cst_36 : f32 to vector<64x4xf32>
    %95 = tpu.concatenate %94, %93, %94 in 1 : vector<64x4xf32>, vector<64x28xf32>, vector<64x4xf32> -> vector<64x36xf32>
    %96 = vector.extract_strided_slice %95 {offsets = [0, 0], sizes = [64, 34], strides = [1, 1]} : vector<64x36xf32> to vector<64x34xf32>
    %97 = vector.extract_strided_slice %95 {offsets = [0, 1], sizes = [64, 34], strides = [1, 1]} : vector<64x36xf32> to vector<64x34xf32>
    %98 = vector.extract_strided_slice %95 {offsets = [0, 2], sizes = [64, 34], strides = [1, 1]} : vector<64x36xf32> to vector<64x34xf32>
    %cst_37 = arith.constant 1.000000e+00 : f32
    %99 = vector.broadcast %cst_37 : f32 to vector<1x34xf32>
    %c0_38 = arith.constant 0 : index
    %c0_39 = arith.constant 0 : index
    %100 = vector.load %arg7[%c0_38, %c0_39] : memref<64x193xf32, #tpu.memory_space<vmem>>, vector<64x193xf32>
    %101 = tpu.concatenate %96, %97, %98, %99 in 0 : vector<64x34xf32>, vector<64x34xf32>, vector<64x34xf32>, vector<1x34xf32> -> vector<193x34xf32>
    %cst_40 = arith.constant dense<0.000000e+00> : vector<64x34xf32>
    %102 = tpu.matmul %100, %101, %cst_40 {dimension_numbers = #tpu.dot_dimension_numbers<[1], [0], [0], [1], [0, 0, 1, 1], [], []>} : vector<64x193xf32>, vector<193x34xf32>, vector<64x34xf32> -> vector<64x34xf32>
    %c0_41 = arith.constant 0 : index
    %c0_42 = arith.constant 0 : index
    %103 = vector.load %arg9[%c0_41, %c0_42] : memref<34x17xf32, #tpu.memory_space<vmem>>, vector<34x17xf32>
    %cst_43 = arith.constant dense<0.000000e+00> : vector<64x17xf32>
    %104 = tpu.matmul %102, %103, %cst_43 {dimension_numbers = #tpu.dot_dimension_numbers<[1], [0], [0], [1], [0, 0, 1, 1], [], []>} : vector<64x34xf32>, vector<34x17xf32>, vector<64x17xf32> -> vector<64x17xf32>
    %cst_44 = arith.constant 2.000000e-01 : f32
    %105 = vector.broadcast %cst_44 : f32 to vector<64x17xf32>
    %106 = arith.mulf %105, %104 : vector<64x17xf32>
    %107 = arith.maximumf %104, %106 : vector<64x17xf32>
    %c0_45 = arith.constant 0 : index
    %c0_46 = arith.constant 0 : index
    %108 = vector.load %arg12[%c0_45, %c0_46] : memref<64x17xf32, #tpu.memory_space<vmem>>, vector<64x17xf32>
    tpu.vector_store %arg12[%c0_45, %c0_46], %107 {strides = array<i32>} : memref<64x17xf32, #tpu.memory_space<vmem>>, vector<64x17xf32>,
    %cst_47 = arith.constant 0.000000e+00 : f32
    %109 = vector.broadcast %cst_47 : f32 to vector<64x1xf32>
    %110 = tpu.concatenate %109, %107, %109 in 1 : vector<64x1xf32>, vector<64x17xf32>, vector<64x1xf32> -> vector<64x19xf32>
    %111 = vector.extract_strided_slice %110 {offsets = [0, 0], sizes = [64, 17], strides = [1, 1]} : vector<64x19xf32> to vector<64x17xf32>
    %112 = vector.extract_strided_slice %110 {offsets = [0, 1], sizes = [64, 17], strides = [1, 1]} : vector<64x19xf32> to vector<64x17xf32>
    %113 = vector.extract_strided_slice %110 {offsets = [0, 2], sizes = [64, 17], strides = [1, 1]} : vector<64x19xf32> to vector<64x17xf32>
    %cst_48 = arith.constant 1.000000e+00 : f32
    %114 = vector.broadcast %cst_48 : f32 to vector<1x17xf32>
    %c0_49 = arith.constant 0 : index
    %c0_50 = arith.constant 0 : index
    %115 = vector.load %arg8[%c0_49, %c0_50] : memref<4x193xf32, #tpu.memory_space<vmem>>, vector<4x193xf32>
    %116 = tpu.concatenate %111, %112, %113, %114 in 0 : vector<64x17xf32>, vector<64x17xf32>, vector<64x17xf32>, vector<1x17xf32> -> vector<193x17xf32>
    %cst_51 = arith.constant dense<0.000000e+00> : vector<4x17xf32>
    %117 = tpu.matmul %115, %116, %cst_51 {dimension_numbers = #tpu.dot_dimension_numbers<[1], [0], [0], [1], [0, 0, 1, 1], [], []>} : vector<4x193xf32>, vector<193x17xf32>, vector<4x17xf32> -> vector<4x17xf32>
    %c0_52 = arith.constant 0 : index
    %c0_53 = arith.constant 0 : index
    %118 = vector.load %arg13[%c0_52, %c0_53] : memref<4x17xf32, #tpu.memory_space<vmem>>, vector<4x17xf32>
    tpu.vector_store %arg13[%c0_52, %c0_53], %117 {strides = array<i32>} : memref<4x17xf32, #tpu.memory_space<vmem>>, vector<4x17xf32>,
    return
  }
  func.func @transform_0(%arg0: i32) -> (i32, i32) {
    %c0_i32 = arith.constant 0 : i32
    %c0_i32_0 = arith.constant 0 : i32
    %c0_i32_1 = arith.constant 0 : i32
    return %c0_i32, %c0_i32_0 : i32, i32
  }
  func.func @transform_1(%arg0: i32) -> (i32, i32) {
    %c0_i32 = arith.constant 0 : i32
    %c0_i32_0 = arith.constant 0 : i32
    %c0_i32_1 = arith.constant 0 : i32
    return %c0_i32, %c0_i32_0 : i32, i32
  }
  func.func @transform_2(%arg0: i32) -> (i32, i32) {
    %c0_i32 = arith.constant 0 : i32
    %c0_i32_0 = arith.constant 0 : i32
    %c0_i32_1 = arith.constant 0 : i32
    return %c0_i32, %c0_i32_0 : i32, i32
  }
  func.func @transform_3(%arg0: i32) -> (i32, i32) {
    %c0_i32 = arith.constant 0 : i32
    %c0_i32_0 = arith.constant 0 : i32
    %c0_i32_1 = arith.constant 0 : i32
    return %c0_i32, %c0_i32_0 : i32, i32
  }
  func.func @transform_4(%arg0: i32) -> (i32, i32) {
    %c0_i32 = arith.constant 0 : i32
    %c0_i32_0 = arith.constant 0 : i32
    %c0_i32_1 = arith.constant 0 : i32
    return %c0_i32, %c0_i32_0 : i32, i32
  }
  func.func @transform_5(%arg0: i32) -> (i32, i32) {
    %c0_i32 = arith.constant 0 : i32
    %c0_i32_0 = arith.constant 0 : i32
    %c0_i32_1 = arith.constant 0 : i32
    return %c0_i32, %c0_i32_0 : i32, i32
  }
  func.func @transform_6(%arg0: i32) -> (i32, i32) {
    %c0_i32 = arith.constant 0 : i32
    %c0_i32_0 = arith.constant 0 : i32
    %c0_i32_1 = arith.constant 0 : i32
    return %c0_i32, %c0_i32_0 : i32, i32
  }
  func.func @transform_7(%arg0: i32) -> (i32, i32) {
    %c0_i32 = arith.constant 0 : i32
    %c0_i32_0 = arith.constant 0 : i32
    %c0_i32_1 = arith.constant 0 : i32
    return %c0_i32, %c0_i32_0 : i32, i32
  }
  func.func @transform_8(%arg0: i32) -> (i32, i32) {
    %c0_i32 = arith.constant 0 : i32
    %c0_i32_0 = arith.constant 0 : i32
    %c0_i32_1 = arith.constant 0 : i32
    return %c0_i32, %c0_i32_0 : i32, i32
  }
  func.func @transform_9(%arg0: i32) -> (i32, i32) {
    %c0_i32 = arith.constant 0 : i32
    %c0_i32_0 = arith.constant 0 : i32
    %c0_i32_1 = arith.constant 0 : i32
    return %c0_i32, %c0_i32_0 : i32, i32
  }
  func.func @transform_10(%arg0: i32) -> (i32, i32) {
    %c0_i32 = arith.constant 0 : i32
    %c0_i32_0 = arith.constant 0 : i32
    %c0_i32_1 = arith.constant 0 : i32
    return %c0_i32, %c0_i32_0 : i32, i32
  }
  func.func @transform_11(%arg0: i32) -> (i32, i32) {
    %c0_i32 = arith.constant 0 : i32
    %c0_i32_0 = arith.constant 0 : i32
    %c0_i32_1 = arith.constant 0 : i32
    return %c0_i32, %c0_i32_0 : i32, i32
  }
  func.func @transform_12(%arg0: i32) -> (i32, i32) {
    %c0_i32 = arith.constant 0 : i32
    %c0_i32_0 = arith.constant 0 : i32
    %c0_i32_1 = arith.constant 0 : i32
    return %c0_i32, %c0_i32_0 : i32, i32
  }
}

</mosaic_0001>

<llo_original>
// kernel: _lambda_.3
$region0: #{_lambda_.3}
  #allocation0 [shape = 'u32[]', space=smem, size = 0x4, offset = 0x4, fixed_abs, tag = 'smem constant byte address 0x4 - core index']
  #allocation1 [shape = 'u32[144,128]{1,0:T(1,128)}', space=vmem, size = 0x12000, scoped, tag = 'internal scratch']
  %s0 = inlined_call_operand.vmem [shape: f32[4,272], index: 0, kind: input, shape index: {}]
  %s1 = inlined_call_operand.hbm [shape: f32[272,288], index: 1, kind: input, shape index: {}]
  %s2 = inlined_call_operand.hbm [shape: f32[272,384], index: 2, kind: input, shape index: {}]
  %s3 = inlined_call_operand.vmem [shape: f32[4,288], index: 3, kind: output, shape index: {0}]
  %s4 = inlined_call_operand.vmem [shape: f32[4,384], index: 4, kind: output, shape index: {1}]
  %5 = xla_tuple %s3, %s4
  %s6 = sld [smem:[#allocation0]]
  $region38: #{_lambda_.3} parent=0
    _
  %s8 = ssub.s32 1, %s6
  %s9 = scalar_select 0, %s8, %s6
  $region1: #{_lambda_.3} parent=0
    #allocation2 [shape = 'u8[417792]{0}', space=vmem, size = 0x66000, scoped, tag = 'input window, operand 1, single buffered']
    #allocation3 [shape = 's32[1]{0}', space=sflag, size = 0x4, scoped, tag = 'scoped memory for _lambda_.3']
    #allocation4 [shape = 'u8[417792]{0}', space=vmem, size = 0x66000, scoped, tag = 'input window, operand 2, single buffered']
    #allocation5 [shape = 's32[1]{0}', space=sflag, size = 0x4, scoped, tag = 'scoped memory for _lambda_.3']
    %10 = vsyncpa [#allocation3], 0
    %11 = vsyncpa [#allocation5], 0
    // Predicated region
    $region2: #{_lambda_.3} parent=1 // pred_check
      _
    $region3: #{_lambda_.3} parent=1 // pred_check_branch
      %13 = sbr.rel (0) target = $region5
    $region4: #{_lambda_.3} parent=1 // pred_region
      _
    $region5: #{_lambda_.3} parent=1 // pred_fallthru
      _
    // Predicated region
    $region6: #{_lambda_.3} parent=1 // pred_check
      _
    $region7: #{_lambda_.3} parent=1 // pred_check_branch
      %15 = sbr.rel (0) target = $region9
    $region8: #{_lambda_.3} parent=1 // pred_region
      %s17 = ssub.s32 13056, 13056
      %18 = vsyncadd [#allocation3], %s17
      %s19 = sshll.u32 [#allocation2], 4
      %s20 = int_to_ptr.vmem [resolvable:$true] %s19
      %25 = dma.hbm_to_vmem [thread:$0]  %s1, 13056, %s20, [#allocation3], 384, 384, 24
    $region9: #{_lambda_.3} parent=1 // pred_fallthru
      _
    // Predicated region
    $region10: #{_lambda_.3} parent=1 // pred_check
      _
    $region11: #{_lambda_.3} parent=1 // pred_check_branch
      %27 = sbr.rel (0) target = $region13
    $region12: #{_lambda_.3} parent=1 // pred_region
      %s29 = ssub.s32 13056, 13056
      %30 = vsyncadd [#allocation5], %s29
      %s31 = sshll.u32 [#allocation4], 4
      %s32 = int_to_ptr.vmem [resolvable:$true] %s31
      %37 = dma.hbm_to_vmem [thread:$0]  %s2, 13056, %s32, [#allocation5], 384, 384, 24
    $region13: #{_lambda_.3} parent=1 // pred_fallthru
      _
    // Predicated region
    $region14: #{_lambda_.3} parent=1 // pred_check
      _
    $region15: #{_lambda_.3} parent=1 // pred_check_branch
      %39 = sbr.rel (0) target = $region17
    $region16: #{_lambda_.3} parent=1 // pred_region
      %40 = dma.done [#allocation3], 13056
    $region17: #{_lambda_.3} parent=1 // pred_fallthru
      _
    // Predicated region
    $region18: #{_lambda_.3} parent=1 // pred_check
      _
    $region19: #{_lambda_.3} parent=1 // pred_check_branch
      %42 = sbr.rel (0) target = $region21
    $region20: #{_lambda_.3} parent=1 // pred_region
      %43 = dma.done [#allocation5], 13056
    $region21: #{_lambda_.3} parent=1 // pred_fallthru
      _
    %v44 = vld [vmem:[%s0] sm:$0xff]
    %v45 = vld [vmem:[%s0 + $0x8] sm:$0xf]
    %v46 = vld [vmem:[#allocation2] sm:$0xff]
    %v47 = vld [vmem:[#allocation2 + $0x8] sm:$0xff]
    %v48 = vld [vmem:[#allocation2 + $0x10] sm:$0xff]
    %v49 = vld [vmem:[#allocation2 + $0x18] sm:$0xff]
    %v50 = vld [vmem:[#allocation2 + $0x20] sm:$0xff]
    %v51 = vld [vmem:[#allocation2 + $0x28] sm:$0xff]
    %v52 = vld [vmem:[#allocation2 + $0x30] sm:$0xff]
    %v53 = vld [vmem:[#allocation2 + $0x38] sm:$0xff]
    %v54 = vld [vmem:[#allocation2 + $0x40] sm:$0xff]
    %v55 = vld [vmem:[#allocation2 + $0x48] sm:$0xff]
    %v56 = vld [vmem:[#allocation2 + $0x50] sm:$0xff]
    %v57 = vld [vmem:[#allocation2 + $0x58] sm:$0xff]
    %v58 = vld [vmem:[#allocation2 + $0x60] sm:$0xff]
    %v59 = vld [vmem:[#allocation2 + $0x68] sm:$0xff]
    %v60 = vld [vmem:[#allocation2 + $0x70] sm:$0xff]
    %v61 = vld [vmem:[#allocation2 + $0x78] sm:$0xff]
    %v62 = vld [vmem:[#allocation2 + $0x80] sm:$0xff]
    %v63 = vld [vmem:[#allocation2 + $0x88] sm:$0xff]
    %v64 = vld [vmem:[#allocation2 + $0x90] sm:$0xff]
    %v65 = vld [vmem:[#allocation2 + $0x98] sm:$0xff]
    %v66 = vld [vmem:[#allocation2 + $0xa0] sm:$0xff]
    %v67 = vld [vmem:[#allocation2 + $0xa8] sm:$0xff]
    %v68 = vld [vmem:[#allocation2 + $0xb0] sm:$0xff]
    %v69 = vld [vmem:[#allocation2 + $0xb8] sm:$0xff]
    %v70 = vld [vmem:[#allocation2 + $0xc0] sm:$0xff]
    %v71 = vld [vmem:[#allocation2 + $0xc8] sm:$0xff]
    %v72 = vld [vmem:[#allocation2 + $0xd0] sm:$0xff]
    %v73 = vld [vmem:[#allocation2 + $0xd8] sm:$0xff]
    %v74 = vld [vmem:[#allocation2 + $0xe0] sm:$0xff]
    %v75 = vld [vmem:[#allocation2 + $0xe8] sm:$0xff]
    %v76 = vld [vmem:[#allocation2 + $0xf0] sm:$0xff]
    %v77 = vld [vmem:[#allocation2 + $0xf8] sm:$0xff]
    %v78 = vld [vmem:[#allocation2 + $0x100] sm:$0xff]
    %v79 = vld [vmem:[#allocation2 + $0x108] sm:$0xff]
    %v80 = vld [vmem:[#allocation2 + $0x110] sm:$0xff]
    %v81 = vld [vmem:[#allocation2 + $0x118] sm:$0xff]
    %v82 = vld [vmem:[#allocation2 + $0x120] sm:$0xff]
    %v83 = vld [vmem:[#allocation2 + $0x128] sm:$0xff]
    %v84 = vld [vmem:[#allocation2 + $0x130] sm:$0xff]
    %v85 = vld [vmem:[#allocation2 + $0x138] sm:$0xff]
    %v86 = vld [vmem:[#allocation2 + $0x140] sm:$0xff]
    %v87 = vld [vmem:[#allocation2 + $0x148] sm:$0xff]
    %v88 = vld [vmem:[#allocation2 + $0x150] sm:$0xff]
    %v89 = vld [vmem:[#allocation2 + $0x158] sm:$0xff]
    %v90 = vld [vmem:[#allocation2 + $0x160] sm:$0xff]
    %v91 = vld [vmem:[#allocation2 + $0x168] sm:$0xff]
    %v92 = vld [vmem:[#allocation2 + $0x170] sm:$0xff]
    %v93 = vld [vmem:[#allocation2 + $0x178] sm:$0xff]
    %v94 = vld [vmem:[#allocation2 + $0x180] sm:$0xff]
    %v95 = vld [vmem:[#allocation2 + $0x188] sm:$0xff]
    %v96 = vld [vmem:[#allocation2 + $0x190] sm:$0xff]
    %v97 = vld [vmem:[#allocation2 + $0x198] sm:$0xff]
    %v98 = vld [vmem:[#allocation2 + $0x1a0] sm:$0xff]
    %v99 = vld [vmem:[#allocation2 + $0x1a8] sm:$0xff]
    %v100 = vld [vmem:[#allocation2 + $0x1b0] sm:$0xff]
    %v101 = vld [vmem:[#allocation2 + $0x1b8] sm:$0xff]
    %v102 = vld [vmem:[#allocation2 + $0x1c0] sm:$0xff]
    %v103 = vld [vmem:[#allocation2 + $0x1c8] sm:$0xff]
    %v104 = vld [vmem:[#allocation2 + $0x1d0] sm:$0xff]
    %v105 = vld [vmem:[#allocation2 + $0x1d8] sm:$0xff]
    %v106 = vld [vmem:[#allocation2 + $0x1e0] sm:$0xff]
    %v107 = vld [vmem:[#allocation2 + $0x1e8] sm:$0xff]
    %v108 = vld [vmem:[#allocation2 + $0x1f0] sm:$0xff]
    %v109 = vld [vmem:[#allocation2 + $0x1f8] sm:$0xff]
    %v110 = vld [vmem:[#allocation2 + $0x200] sm:$0xff]
    %v111 = vld [vmem:[#allocation2 + $0x208] sm:$0xff]
    %v112 = vld [vmem:[#allocation2 + $0x210] sm:$0xff]
    %v113 = vld [vmem:[#allocation2 + $0x218] sm:$0xff]
    %v114 = vld [vmem:[#allocation2 + $0x220] sm:$0xff]
    %v115 = vld [vmem:[#allocation2 + $0x228] sm:$0xff]
    %v116 = vld [vmem:[#allocation2 + $0x230] sm:$0xff]
    %v117 = vld [vmem:[#allocation2 + $0x238] sm:$0xff]
    %v118 = vld [vmem:[#allocation2 + $0x240] sm:$0xff]
    %v119 = vld [vmem:[#allocation2 + $0x248] sm:$0xff]
    %v120 = vld [vmem:[#allocation2 + $0x250] sm:$0xff]
    %v121 = vld [vmem:[#allocation2 + $0x258] sm:$0xff]
    %v122 = vld [vmem:[#allocation2 + $0x260] sm:$0xff]
    %v123 = vld [vmem:[#allocation2 + $0x268] sm:$0xff]
    %v124 = vld [vmem:[#allocation2 + $0x270] sm:$0xff]
    %v125 = vld [vmem:[#allocation2 + $0x278] sm:$0xff]
    %v126 = vld [vmem:[#allocation2 + $0x280] sm:$0xff]
    %v127 = vld [vmem:[#allocation2 + $0x288] sm:$0xff]
    %v128 = vld [vmem:[#allocation2 + $0x290] sm:$0xff]
    %v129 = vld [vmem:[#allocation2 + $0x298] sm:$0xff]
    %v130 = vld [vmem:[#allocation2 + $0x2a0] sm:$0xff]
    %v131 = vld [vmem:[#allocation2 + $0x2a8] sm:$0xff]
    %v132 = vld [vmem:[#allocation2 + $0x2b0] sm:$0xff]
    %v133 = vld [vmem:[#allocation2 + $0x2b8] sm:$0xff]
    %v134 = vld [vmem:[#allocation2 + $0x2c0] sm:$0xff]
    %v135 = vld [vmem:[#allocation2 + $0x2c8] sm:$0xff]
    %v136 = vld [vmem:[#allocation2 + $0x2d0] sm:$0xff]
    %v137 = vld [vmem:[#allocation2 + $0x2d8] sm:$0xff]
    %v138 = vld [vmem:[#allocation2 + $0x2e0] sm:$0xff]
    %v139 = vld [vmem:[#allocation2 + $0x2e8] sm:$0xff]
    %v140 = vld [vmem:[#allocation2 + $0x2f0] sm:$0xff]
    %v141 = vld [vmem:[#allocation2 + $0x2f8] sm:$0xff]
    %v142 = vld [vmem:[#allocation2 + $0x300] sm:$0xff]
    %v143 = vld [vmem:[#allocation2 + $0x308] sm:$0xff]
    %v144 = vld [vmem:[#allocation2 + $0x310] sm:$0xff]
    %v145 = vld [vmem:[#allocation2 + $0x318] sm:$0xff]
    %v146 = vld [vmem:[#allocation2 + $0x320] sm:$0xff]
    %v147 = vld [vmem:[#allocation2 + $0x328] sm:$0xff]
    %v150 = vcombine.high %v44, %v44
    %vm152 = vcmask 130048
    %v153 = vsel %vm152, %v45, 0
    %155 = vmatprep.subr.mxu0 %v47
    %156 = vmatpush1.msra.mxu0 %v46
    %157 = vmatprep.subr.mxu0 %v50
    %158 = vmatpush1.msra.mxu0 %v49
    %159 = vmatprep.subr.mxu0 %v53
    %160 = vmatpush1.msra.mxu0 %v52
    %161 = vmatprep.subr.mxu0 %v56
    %162 = vmatpush1.msra.mxu0 %v55
    %163 = vmatprep.subr.mxu0 %v59
    %164 = vmatpush1.msra.mxu0 %v58
    %165 = vmatprep.subr.mxu0 %v62
    %166 = vmatpush1.msra.mxu0 %v61
    %167 = vmatprep.subr.mxu0 %v65
    %168 = vmatpush1.msra.mxu0 %v64
    %169 = vmatprep.subr.mxu0 %v68
    %170 = vmatpush1.msra.mxu0 %v67
    %171 = vmatprep.subr.mxu0 %v71
    %172 = vmatpush1.msra.mxu0 %v70
    %173 = vmatprep.subr.mxu0 %v74
    %174 = vmatpush1.msra.mxu0 %v73
    %175 = vmatprep.subr.mxu0 %v77
    %176 = vmatpush1.msra.mxu0 %v76
    %177 = vmatprep.subr.mxu0 %v80
    %178 = vmatpush1.msra.mxu0 %v79
    %179 = vmatprep.subr.mxu0 %v83
    %180 = vmatpush1.msra.mxu0 %v82
    %181 = vmatprep.subr.mxu0 %v86
    %182 = vmatpush1.msra.mxu0 %v85
    %183 = vmatprep.subr.mxu0 %v89
    %184 = vmatpush1.msra.mxu0 %v88
    %185 = vmatprep.subr.mxu0 %v92
    %186 = vmatpush1.msra.mxu0 %v91
    %187 = vmatprep.subr.mxu0 %v95
    %188 = vmatpush1.msra.mxu0 %v94
    %189 = vmatprep.subr.mxu0 %v98
    %190 = vmatpush1.msra.mxu0 %v97
    %191 = vmatprep.subr.mxu0 %v101
    %192 = vmatpush1.msra.mxu0 %v100
    %193 = vmatprep.subr.mxu0 %v104
    %194 = vmatpush1.msra.mxu0 %v103
    %195 = vmatprep.subr.mxu0 %v107
    %196 = vmatpush1.msra.mxu0 %v106
    %197 = vmatprep.subr.mxu0 %v110
    %198 = vmatpush1.msra.mxu0 %v109
    %199 = vmatprep.subr.mxu0 %v113
    %200 = vmatpush1.msra.mxu0 %v112
    %201 = vmatprep.subr.mxu0 %v116
    %202 = vmatpush1.msra.mxu0 %v115
    %203 = vmatprep.subr.mxu0 %v119
    %204 = vmatpush1.msra.mxu0 %v118
    %205 = vmatprep.subr.mxu0 %v122
    %206 = vmatpush1.msra.mxu0 %v121
    %207 = vmatprep.subr.mxu0 %v125
    %208 = vmatpush1.msra.mxu0 %v124
    %209 = vmatprep.subr.mxu0 %v128
    %210 = vmatpush1.msra.mxu0 %v127
    %211 = vmatprep.subr.mxu0 %v131
    %212 = vmatpush1.msra.mxu0 %v130
    %213 = vmatprep.subr.mxu0 %v134
    %214 = vmatpush1.msra.mxu0 %v133
    %215 = vmatprep.subr.mxu0 %v137
    %216 = vmatpush1.msra.mxu0 %v136
    %217 = vmatprep.subr.mxu0 %v140
    %218 = vmatpush1.msra.mxu0 %v139
    %219 = vmatprep.mubr.f32.mxu0 %v150
    %220 = vmatmul.mubr.f32.gmra.mrb[0].mxu0 %v44
    %v221 = vpop.f32.mrb[0].mxu0
    %v222 = vadd.f32 0.0, %v221
    %v223 = vpop.f32.mrb[0].mxu0
    %v224 = vadd.f32 0.0, %v223
    %225 = vdwg.mxu0
    %226 = vmatprep.subr.mxu0 %v143
    %227 = vmatpush1.msra.mxu0 %v142
    %228 = vmatprep.subr.mxu0 %v146
    %229 = vmatpush1.msra.mxu0 %v145
    %230 = vmatprep.subr.mxu0 0.0
    %231 = vmatpush1.msra.mxu0 0.0
    %232 = vmatprep.subr.mxu0 0.0
    %233 = vmatpush1.msra.mxu0 0.0
    %234 = vmatprep.subr.mxu0 0.0
    %235 = vmatpush1.msra.mxu0 0.0
    %236 = vmatprep.subr.mxu0 0.0
    %237 = vmatpush1.msra.mxu0 0.0
    %238 = vmatprep.subr.mxu0 0.0
    %239 = vmatpush1.msra.mxu0 0.0
    %240 = vmatprep.subr.mxu0 0.0
    %241 = vmatpush1.msra.mxu0 0.0
    %242 = vmatprep.subr.mxu0 0.0
    %243 = vmatpush1.msra.mxu0 0.0
    %244 = vmatprep.subr.mxu0 0.0
    %245 = vmatpush1.msra.mxu0 0.0
    %246 = vmatprep.subr.mxu0 0.0
    %247 = vmatpush1.msra.mxu0 0.0
    %248 = vmatprep.subr.mxu0 0.0
    %249 = vmatpush1.msra.mxu0 0.0
    %250 = vmatprep.subr.mxu0 0.0
    %251 = vmatpush1.msra.mxu0 0.0
    %252 = vmatprep.subr.mxu0 0.0
    %253 = vmatpush1.msra.mxu0 0.0
    %254 = vmatprep.subr.mxu0 0.0
    %255 = vmatpush1.msra.mxu0 0.0
    %256 = vmatprep.subr.mxu0 0.0
    %257 = vmatpush1.msra.mxu0 0.0
    %258 = vmatprep.subr.mxu0 0.0
    %259 = vmatpush1.msra.mxu0 0.0
    %260 = vmatprep.subr.mxu0 0.0
    %261 = vmatpush1.msra.mxu0 0.0
    %262 = vmatprep.subr.mxu0 0.0
    %263 = vmatpush1.msra.mxu0 0.0
    %264 = vmatprep.subr.mxu0 0.0
    %265 = vmatpush1.msra.mxu0 0.0
    %266 = vmatprep.subr.mxu0 0.0
    %267 = vmatpush1.msra.mxu0 0.0
    %268 = vmatprep.subr.mxu0 0.0
    %269 = vmatpush1.msra.mxu0 0.0
    %270 = vmatprep.subr.mxu0 0.0
    %271 = vmatpush1.msra.mxu0 0.0
    %272 = vmatprep.subr.mxu0 0.0
    %273 = vmatpush1.msra.mxu0 0.0
    %274 = vmatprep.subr.mxu0 0.0
    %275 = vmatpush1.msra.mxu0 0.0
    %276 = vmatprep.subr.mxu0 0.0
    %277 = vmatpush1.msra.mxu0 0.0
    %278 = vmatprep.subr.mxu0 0.0
    %279 = vmatpush1.msra.mxu0 0.0
    %280 = vmatprep.subr.mxu0 0.0
    %281 = vmatpush1.msra.mxu0 0.0
    %282 = vmatprep.subr.mxu0 0.0
    %283 = vmatpush1.msra.mxu0 0.0
    %284 = vmatprep.subr.mxu0 0.0
    %285 = vmatpush1.msra.mxu0 0.0
    %286 = vmatprep.subr.mxu0 0.0
    %287 = vmatpush1.msra.mxu0 0.0
    %288 = vmatprep.subr.mxu0 0.0
    %289 = vmatpush1.msra.mxu0 0.0
    %290 = vmatprep.mubr.f32.mxu0 0.0
    %291 = vmatmul.mubr.f32.gmra.mrb[0].mxu0 %v153
    %v292 = vpop.f32.mrb[0].mxu0
    %v293 = vadd.f32 %v222, %v292
    %v294 = vpop.f32.mrb[0].mxu0
    %v295 = vadd.f32 %v224, %v294
    %296 = vdwg.mxu0
    %297 = vmatprep.subr.mxu0 0.0
    %298 = vmatpush1.msra.mxu0 %v48
    %299 = vmatprep.subr.mxu0 0.0
    %300 = vmatpush1.msra.mxu0 %v51
    %301 = vmatprep.subr.mxu0 0.0
    %302 = vmatpush1.msra.mxu0 %v54
    %303 = vmatprep.subr.mxu0 0.0
    %304 = vmatpush1.msra.mxu0 %v57
    %305 = vmatprep.subr.mxu0 0.0
    %306 = vmatpush1.msra.mxu0 %v60
    %307 = vmatprep.subr.mxu0 0.0
    %308 = vmatpush1.msra.mxu0 %v63
    %309 = vmatprep.subr.mxu0 0.0
    %310 = vmatpush1.msra.mxu0 %v66
    %311 = vmatprep.subr.mxu0 0.0
    %312 = vmatpush1.msra.mxu0 %v69
    %313 = vmatprep.subr.mxu0 0.0
    %314 = vmatpush1.msra.mxu0 %v72
    %315 = vmatprep.subr.mxu0 0.0
    %316 = vmatpush1.msra.mxu0 %v75
    %317 = vmatprep.subr.mxu0 0.0
    %318 = vmatpush1.msra.mxu0 %v78
    %319 = vmatprep.subr.mxu0 0.0
    %320 = vmatpush1.msra.mxu0 %v81
    %321 = vmatprep.subr.mxu0 0.0
    %322 = vmatpush1.msra.mxu0 %v84
    %323 = vmatprep.subr.mxu0 0.0
    %324 = vmatpush1.msra.mxu0 %v87
    %325 = vmatprep.subr.mxu0 0.0
    %326 = vmatpush1.msra.mxu0 %v90
    %327 = vmatprep.subr.mxu0 0.0
    %328 = vmatpush1.msra.mxu0 %v93
    %329 = vmatprep.subr.mxu0 0.0
    %330 = vmatpush1.msra.mxu0 %v96
    %331 = vmatprep.subr.mxu0 0.0
    %332 = vmatpush1.msra.mxu0 %v99
    %333 = vmatprep.subr.mxu0 0.0
    %334 = vmatpush1.msra.mxu0 %v102
    %335 = vmatprep.subr.mxu0 0.0
    %336 = vmatpush1.msra.mxu0 %v105
    %337 = vmatprep.subr.mxu0 0.0
    %338 = vmatpush1.msra.mxu0 %v108
    %339 = vmatprep.subr.mxu0 0.0
    %340 = vmatpush1.msra.mxu0 %v111
    %341 = vmatprep.subr.mxu0 0.0
    %342 = vmatpush1.msra.mxu0 %v114
    %343 = vmatprep.subr.mxu0 0.0
    %344 = vmatpush1.msra.mxu0 %v117
    %345 = vmatprep.subr.mxu0 0.0
    %346 = vmatpush1.msra.mxu0 %v120
    %347 = vmatprep.subr.mxu0 0.0
    %348 = vmatpush1.msra.mxu0 %v123
    %349 = vmatprep.subr.mxu0 0.0
    %350 = vmatpush1.msra.mxu0 %v126
    %351 = vmatprep.subr.mxu0 0.0
    %352 = vmatpush1.msra.mxu0 %v129
    %353 = vmatprep.subr.mxu0 0.0
    %354 = vmatpush1.msra.mxu0 %v132
    %355 = vmatprep.subr.mxu0 0.0
    %356 = vmatpush1.msra.mxu0 %v135
    %357 = vmatprep.subr.mxu0 0.0
    %358 = vmatpush1.msra.mxu0 %v138
    %359 = vmatprep.subr.mxu0 0.0
    %360 = vmatpush1.msra.mxu0 %v141
    %361 = vmatprep.mubr.f32.mxu0 %v150
    %362 = vmatmul.mubr.f32.gmra.mrb[0].mxu0 %v44
    %v363 = vpop.f32.mrb[0].mxu0
    %v364 = vadd.f32 0.0, %v363
    %v365 = vpop.f32.mrb[0].mxu0
    %366 = vdwg.mxu0
    %367 = vmatprep.subr.mxu0 0.0
    %368 = vmatpush1.msra.mxu0 %v144
    %369 = vmatprep.subr.mxu0 0.0
    %370 = vmatpush1.msra.mxu0 %v147
    %371 = vmatprep.subr.mxu0 0.0
    %372 = vmatpush1.msra.mxu0 0.0
    %373 = vmatprep.subr.mxu0 0.0
    %374 = vmatpush1.msra.mxu0 0.0
    %375 = vmatprep.subr.mxu0 0.0
    %376 = vmatpush1.msra.mxu0 0.0
    %377 = vmatprep.subr.mxu0 0.0
    %378 = vmatpush1.msra.mxu0 0.0
    %379 = vmatprep.subr.mxu0 0.0
    %380 = vmatpush1.msra.mxu0 0.0
    %381 = vmatprep.subr.mxu0 0.0
    %382 = vmatpush1.msra.mxu0 0.0
    %383 = vmatprep.subr.mxu0 0.0
    %384 = vmatpush1.msra.mxu0 0.0
    %385 = vmatprep.subr.mxu0 0.0
    %386 = vmatpush1.msra.mxu0 0.0
    %387 = vmatprep.subr.mxu0 0.0
    %388 = vmatpush1.msra.mxu0 0.0
    %389 = vmatprep.subr.mxu0 0.0
    %390 = vmatpush1.msra.mxu0 0.0
    %391 = vmatprep.subr.mxu0 0.0
    %392 = vmatpush1.msra.mxu0 0.0
    %393 = vmatprep.subr.mxu0 0.0
    %394 = vmatpush1.msra.mxu0 0.0
    %395 = vmatprep.subr.mxu0 0.0
    %396 = vmatpush1.msra.mxu0 0.0
    %397 = vmatprep.subr.mxu0 0.0
    %398 = vmatpush1.msra.mxu0 0.0
    %399 = vmatprep.subr.mxu0 0.0
    %400 = vmatpush1.msra.mxu0 0.0
    %401 = vmatprep.subr.mxu0 0.0
    %402 = vmatpush1.msra.mxu0 0.0
    %403 = vmatprep.subr.mxu0 0.0
    %404 = vmatpush1.msra.mxu0 0.0
    %405 = vmatprep.subr.mxu0 0.0
    %406 = vmatpush1.msra.mxu0 0.0
    %407 = vmatprep.subr.mxu0 0.0
    %408 = vmatpush1.msra.mxu0 0.0
    %409 = vmatprep.subr.mxu0 0.0
    %410 = vmatpush1.msra.mxu0 0.0
    %411 = vmatprep.subr.mxu0 0.0
    %412 = vmatpush1.msra.mxu0 0.0
    %413 = vmatprep.subr.mxu0 0.0
    %414 = vmatpush1.msra.mxu0 0.0
    %415 = vmatprep.subr.mxu0 0.0
    %416 = vmatpush1.msra.mxu0 0.0
    %417 = vmatprep.subr.mxu0 0.0
    %418 = vmatpush1.msra.mxu0 0.0
    %419 = vmatprep.subr.mxu0 0.0
    %420 = vmatpush1.msra.mxu0 0.0
    %421 = vmatprep.subr.mxu0 0.0
    %422 = vmatpush1.msra.mxu0 0.0
    %423 = vmatprep.subr.mxu0 0.0
    %424 = vmatpush1.msra.mxu0 0.0
    %425 = vmatprep.subr.mxu0 0.0
    %426 = vmatpush1.msra.mxu0 0.0
    %427 = vmatprep.subr.mxu0 0.0
    %428 = vmatpush1.msra.mxu0 0.0
    %429 = vmatprep.subr.mxu0 0.0
    %430 = vmatpush1.msra.mxu0 0.0
    %431 = vmatprep.mubr.f32.mxu0 0.0
    %432 = vmatmul.mubr.f32.gmra.mrb[0].mxu0 %v153
    %v433 = vpop.f32.mrb[0].mxu0
    %v434 = vadd.f32 %v364, %v433
    %v435 = vpop.f32.mrb[0].mxu0
    %436 = vdwg.mxu0
    %v439 = vcombine.low %v293, %v295
    %441 = vst [vmem:[%s3] sm:$0xff] %v439
    %vm442 = vcmask 257024
    %443 = vst.msk [vmem:[%s3 + $0x8] sm:$0xf] %vm442, %v434
    %v444 = vld [vmem:[#allocation4] sm:$0xff]
    %v445 = vld [vmem:[#allocation4 + $0x8] sm:$0xff]
    %v446 = vld [vmem:[#allocation4 + $0x10] sm:$0xff]
    %v447 = vld [vmem:[#allocation4 + $0x18] sm:$0xff]
    %v448 = vld [vmem:[#allocation4 + $0x20] sm:$0xff]
    %v449 = vld [vmem:[#allocation4 + $0x28] sm:$0xff]
    %v450 = vld [vmem:[#allocation4 + $0x30] sm:$0xff]
    %v451 = vld [vmem:[#allocation4 + $0x38] sm:$0xff]
    %v452 = vld [vmem:[#allocation4 + $0x40] sm:$0xff]
    %v453 = vld [vmem:[#allocation4 + $0x48] sm:$0xff]
    %v454 = vld [vmem:[#allocation4 + $0x50] sm:$0xff]
    %v455 = vld [vmem:[#allocation4 + $0x58] sm:$0xff]
    %v456 = vld [vmem:[#allocation4 + $0x60] sm:$0xff]
    %v457 = vld [vmem:[#allocation4 + $0x68] sm:$0xff]
    %v458 = vld [vmem:[#allocation4 + $0x70] sm:$0xff]
    %v459 = vld [vmem:[#allocation4 + $0x78] sm:$0xff]
    %v460 = vld [vmem:[#allocation4 + $0x80] sm:$0xff]
    %v461 = vld [vmem:[#allocation4 + $0x88] sm:$0xff]
    %v462 = vld [vmem:[#allocation4 + $0x90] sm:$0xff]
    %v463 = vld [vmem:[#allocation4 + $0x98] sm:$0xff]
    %v464 = vld [vmem:[#allocation4 + $0xa0] sm:$0xff]
    %v465 = vld [vmem:[#allocation4 + $0xa8] sm:$0xff]
    %v466 = vld [vmem:[#allocation4 + $0xb0] sm:$0xff]
    %v467 = vld [vmem:[#allocation4 + $0xb8] sm:$0xff]
    %v468 = vld [vmem:[#allocation4 + $0xc0] sm:$0xff]
    %v469 = vld [vmem:[#allocation4 + $0xc8] sm:$0xff]
    %v470 = vld [vmem:[#allocation4 + $0xd0] sm:$0xff]
    %v471 = vld [vmem:[#allocation4 + $0xd8] sm:$0xff]
    %v472 = vld [vmem:[#allocation4 + $0xe0] sm:$0xff]
    %v473 = vld [vmem:[#allocation4 + $0xe8] sm:$0xff]
    %v474 = vld [vmem:[#allocation4 + $0xf0] sm:$0xff]
    %v475 = vld [vmem:[#allocation4 + $0xf8] sm:$0xff]
    %v476 = vld [vmem:[#allocation4 + $0x100] sm:$0xff]
    %v477 = vld [vmem:[#allocation4 + $0x108] sm:$0xff]
    %v478 = vld [vmem:[#allocation4 + $0x110] sm:$0xff]
    %v479 = vld [vmem:[#allocation4 + $0x118] sm:$0xff]
    %v480 = vld [vmem:[#allocation4 + $0x120] sm:$0xff]
    %v481 = vld [vmem:[#allocation4 + $0x128] sm:$0xff]
    %v482 = vld [vmem:[#allocation4 + $0x130] sm:$0xff]
    %v483 = vld [vmem:[#allocation4 + $0x138] sm:$0xff]
    %v484 = vld [vmem:[#allocation4 + $0x140] sm:$0xff]
    %v485 = vld [vmem:[#allocation4 + $0x148] sm:$0xff]
    %v486 = vld [vmem:[#allocation4 + $0x150] sm:$0xff]
    %v487 = vld [vmem:[#allocation4 + $0x158] sm:$0xff]
    %v488 = vld [vmem:[#allocation4 + $0x160] sm:$0xff]
    %v489 = vld [vmem:[#allocation4 + $0x168] sm:$0xff]
    %v490 = vld [vmem:[#allocation4 + $0x170] sm:$0xff]
    %v491 = vld [vmem:[#allocation4 + $0x178] sm:$0xff]
    %v492 = vld [vmem:[#allocation4 + $0x180] sm:$0xff]
    %v493 = vld [vmem:[#allocation4 + $0x188] sm:$0xff]
    %v494 = vld [vmem:[#allocation4 + $0x190] sm:$0xff]
    %v495 = vld [vmem:[#allocation4 + $0x198] sm:$0xff]
    %v496 = vld [vmem:[#allocation4 + $0x1a0] sm:$0xff]
    %v497 = vld [vmem:[#allocation4 + $0x1a8] sm:$0xff]
    %v498 = vld [vmem:[#allocation4 + $0x1b0] sm:$0xff]
    %v499 = vld [vmem:[#allocation4 + $0x1b8] sm:$0xff]
    %v500 = vld [vmem:[#allocation4 + $0x1c0] sm:$0xff]
    %v501 = vld [vmem:[#allocation4 + $0x1c8] sm:$0xff]
    %v502 = vld [vmem:[#allocation4 + $0x1d0] sm:$0xff]
    %v503 = vld [vmem:[#allocation4 + $0x1d8] sm:$0xff]
    %v504 = vld [vmem:[#allocation4 + $0x1e0] sm:$0xff]
    %v505 = vld [vmem:[#allocation4 + $0x1e8] sm:$0xff]
    %v506 = vld [vmem:[#allocation4 + $0x1f0] sm:$0xff]
    %v507 = vld [vmem:[#allocation4 + $0x1f8] sm:$0xff]
    %v508 = vld [vmem:[#allocation4 + $0x200] sm:$0xff]
    %v509 = vld [vmem:[#allocation4 + $0x208] sm:$0xff]
    %v510 = vld [vmem:[#allocation4 + $0x210] sm:$0xff]
    %v511 = vld [vmem:[#allocation4 + $0x218] sm:$0xff]
    %v512 = vld [vmem:[#allocation4 + $0x220] sm:$0xff]
    %v513 = vld [vmem:[#allocation4 + $0x228] sm:$0xff]
    %v514 = vld [vmem:[#allocation4 + $0x230] sm:$0xff]
    %v515 = vld [vmem:[#allocation4 + $0x238] sm:$0xff]
    %v516 = vld [vmem:[#allocation4 + $0x240] sm:$0xff]
    %v517 = vld [vmem:[#allocation4 + $0x248] sm:$0xff]
    %v518 = vld [vmem:[#allocation4 + $0x250] sm:$0xff]
    %v519 = vld [vmem:[#allocation4 + $0x258] sm:$0xff]
    %v520 = vld [vmem:[#allocation4 + $0x260] sm:$0xff]
    %v521 = vld [vmem:[#allocation4 + $0x268] sm:$0xff]
    %v522 = vld [vmem:[#allocation4 + $0x270] sm:$0xff]
    %v523 = vld [vmem:[#allocation4 + $0x278] sm:$0xff]
    %v524 = vld [vmem:[#allocation4 + $0x280] sm:$0xff]
    %v525 = vld [vmem:[#allocation4 + $0x288] sm:$0xff]
    %v526 = vld [vmem:[#allocation4 + $0x290] sm:$0xff]
    %v527 = vld [vmem:[#allocation4 + $0x298] sm:$0xff]
    %v528 = vld [vmem:[#allocation4 + $0x2a0] sm:$0xff]
    %v529 = vld [vmem:[#allocation4 + $0x2a8] sm:$0xff]
    %v530 = vld [vmem:[#allocation4 + $0x2b0] sm:$0xff]
    %v531 = vld [vmem:[#allocation4 + $0x2b8] sm:$0xff]
    %v532 = vld [vmem:[#allocation4 + $0x2c0] sm:$0xff]
    %v533 = vld [vmem:[#allocation4 + $0x2c8] sm:$0xff]
    %v534 = vld [vmem:[#allocation4 + $0x2d0] sm:$0xff]
    %v535 = vld [vmem:[#allocation4 + $0x2d8] sm:$0xff]
    %v536 = vld [vmem:[#allocation4 + $0x2e0] sm:$0xff]
    %v537 = vld [vmem:[#allocation4 + $0x2e8] sm:$0xff]
    %v538 = vld [vmem:[#allocation4 + $0x2f0] sm:$0xff]
    %v539 = vld [vmem:[#allocation4 + $0x2f8] sm:$0xff]
    %v540 = vld [vmem:[#allocation4 + $0x300] sm:$0xff]
    %v541 = vld [vmem:[#allocation4 + $0x308] sm:$0xff]
    %v542 = vld [vmem:[#allocation4 + $0x310] sm:$0xff]
    %v543 = vld [vmem:[#allocation4 + $0x318] sm:$0xff]
    %v544 = vld [vmem:[#allocation4 + $0x320] sm:$0xff]
    %v545 = vld [vmem:[#allocation4 + $0x328] sm:$0xff]
    %546 = vmatprep.subr.mxu0 %v445
    %547 = vmatpush1.msra.mxu0 %v444
    %548 = vmatprep.subr.mxu0 %v448
    %549 = vmatpush1.msra.mxu0 %v447
    %550 = vmatprep.subr.mxu0 %v451
    %551 = vmatpush1.msra.mxu0 %v450
    %552 = vmatprep.subr.mxu0 %v454
    %553 = vmatpush1.msra.mxu0 %v453
    %554 = vmatprep.subr.mxu0 %v457
    %555 = vmatpush1.msra.mxu0 %v456
    %556 = vmatprep.subr.mxu0 %v460
    %557 = vmatpush1.msra.mxu0 %v459
    %558 = vmatprep.subr.mxu0 %v463
    %559 = vmatpush1.msra.mxu0 %v462
    %560 = vmatprep.subr.mxu0 %v466
    %561 = vmatpush1.msra.mxu0 %v465
    %562 = vmatprep.subr.mxu0 %v469
    %563 = vmatpush1.msra.mxu0 %v468
    %564 = vmatprep.subr.mxu0 %v472
    %565 = vmatpush1.msra.mxu0 %v471
    %566 = vmatprep.subr.mxu0 %v475
    %567 = vmatpush1.msra.mxu0 %v474
    %568 = vmatprep.subr.mxu0 %v478
    %569 = vmatpush1.msra.mxu0 %v477
    %570 = vmatprep.subr.mxu0 %v481
    %571 = vmatpush1.msra.mxu0 %v480
    %572 = vmatprep.subr.mxu0 %v484
    %573 = vmatpush1.msra.mxu0 %v483
    %574 = vmatprep.subr.mxu0 %v487
    %575 = vmatpush1.msra.mxu0 %v486
    %576 = vmatprep.subr.mxu0 %v490
    %577 = vmatpush1.msra.mxu0 %v489
    %578 = vmatprep.subr.mxu0 %v493
    %579 = vmatpush1.msra.mxu0 %v492
    %580 = vmatprep.subr.mxu0 %v496
    %581 = vmatpush1.msra.mxu0 %v495
    %582 = vmatprep.subr.mxu0 %v499
    %583 = vmatpush1.msra.mxu0 %v498
    %584 = vmatprep.subr.mxu0 %v502
    %585 = vmatpush1.msra.mxu0 %v501
    %586 = vmatprep.subr.mxu0 %v505
    %587 = vmatpush1.msra.mxu0 %v504
    %588 = vmatprep.subr.mxu0 %v508
    %589 = vmatpush1.msra.mxu0 %v507
    %590 = vmatprep.subr.mxu0 %v511
    %591 = vmatpush1.msra.mxu0 %v510
    %592 = vmatprep.subr.mxu0 %v514
    %593 = vmatpush1.msra.mxu0 %v513
    %594 = vmatprep.subr.mxu0 %v517
    %595 = vmatpush1.msra.mxu0 %v516
    %596 = vmatprep.subr.mxu0 %v520
    %597 = vmatpush1.msra.mxu0 %v519
    %598 = vmatprep.subr.mxu0 %v523
    %599 = vmatpush1.msra.mxu0 %v522
    %600 = vmatprep.subr.mxu0 %v526
    %601 = vmatpush1.msra.mxu0 %v525
    %602 = vmatprep.subr.mxu0 %v529
    %603 = vmatpush1.msra.mxu0 %v528
    %604 = vmatprep.subr.mxu0 %v532
    %605 = vmatpush1.msra.mxu0 %v531
    %606 = vmatprep.subr.mxu0 %v535
    %607 = vmatpush1.msra.mxu0 %v534
    %608 = vmatprep.subr.mxu0 %v538
    %609 = vmatpush1.msra.mxu0 %v537
    %610 = vmatprep.mubr.f32.mxu0 %v150
    %611 = vmatmul.mubr.f32.gmra.mrb[0].mxu0 %v44
    %v612 = vpop.f32.mrb[0].mxu0
    %v613 = vadd.f32 0.0, %v612
    %v614 = vpop.f32.mrb[0].mxu0
    %v615 = vadd.f32 0.0, %v614
    %616 = vdwg.mxu0
    %617 = vmatprep.subr.mxu0 %v541
    %618 = vmatpush1.msra.mxu0 %v540
    %619 = vmatprep.subr.mxu0 %v544
    %620 = vmatpush1.msra.mxu0 %v543
    %621 = vmatprep.subr.mxu0 0.0
    %622 = vmatpush1.msra.mxu0 0.0
    %623 = vmatprep.subr.mxu0 0.0
    %624 = vmatpush1.msra.mxu0 0.0
    %625 = vmatprep.subr.mxu0 0.0
    %626 = vmatpush1.msra.mxu0 0.0
    %627 = vmatprep.subr.mxu0 0.0
    %628 = vmatpush1.msra.mxu0 0.0
    %629 = vmatprep.subr.mxu0 0.0
    %630 = vmatpush1.msra.mxu0 0.0
    %631 = vmatprep.subr.mxu0 0.0
    %632 = vmatpush1.msra.mxu0 0.0
    %633 = vmatprep.subr.mxu0 0.0
    %634 = vmatpush1.msra.mxu0 0.0
    %635 = vmatprep.subr.mxu0 0.0
    %636 = vmatpush1.msra.mxu0 0.0
    %637 = vmatprep.subr.mxu0 0.0
    %638 = vmatpush1.msra.mxu0 0.0
    %639 = vmatprep.subr.mxu0 0.0
    %640 = vmatpush1.msra.mxu0 0.0
    %641 = vmatprep.subr.mxu0 0.0
    %642 = vmatpush1.msra.mxu0 0.0
    %643 = vmatprep.subr.mxu0 0.0
    %644 = vmatpush1.msra.mxu0 0.0
    %645 = vmatprep.subr.mxu0 0.0
    %646 = vmatpush1.msra.mxu0 0.0
    %647 = vmatprep.subr.mxu0 0.0
    %648 = vmatpush1.msra.mxu0 0.0
    %649 = vmatprep.subr.mxu0 0.0
    %650 = vmatpush1.msra.mxu0 0.0
    %651 = vmatprep.subr.mxu0 0.0
    %652 = vmatpush1.msra.mxu0 0.0
    %653 = vmatprep.subr.mxu0 0.0
    %654 = vmatpush1.msra.mxu0 0.0
    %655 = vmatprep.subr.mxu0 0.0
    %656 = vmatpush1.msra.mxu0 0.0
    %657 = vmatprep.subr.mxu0 0.0
    %658 = vmatpush1.msra.mxu0 0.0
    %659 = vmatprep.subr.mxu0 0.0
    %660 = vmatpush1.msra.mxu0 0.0
    %661 = vmatprep.subr.mxu0 0.0
    %662 = vmatpush1.msra.mxu0 0.0
    %663 = vmatprep.subr.mxu0 0.0
    %664 = vmatpush1.msra.mxu0 0.0
    %665 = vmatprep.subr.mxu0 0.0
    %666 = vmatpush1.msra.mxu0 0.0
    %667 = vmatprep.subr.mxu0 0.0
    %668 = vmatpush1.msra.mxu0 0.0
    %669 = vmatprep.subr.mxu0 0.0
    %670 = vmatpush1.msra.mxu0 0.0
    %671 = vmatprep.subr.mxu0 0.0
    %672 = vmatpush1.msra.mxu0 0.0
    %673 = vmatprep.subr.mxu0 0.0
    %674 = vmatpush1.msra.mxu0 0.0
    %675 = vmatprep.subr.mxu0 0.0
    %676 = vmatpush1.msra.mxu0 0.0
    %677 = vmatprep.subr.mxu0 0.0
    %678 = vmatpush1.msra.mxu0 0.0
    %679 = vmatprep.subr.mxu0 0.0
    %680 = vmatpush1.msra.mxu0 0.0
    %681 = vmatprep.mubr.f32.mxu0 0.0
    %682 = vmatmul.mubr.f32.gmra.mrb[0].mxu0 %v153
    %v683 = vpop.f32.mrb[0].mxu0
    %v684 = vadd.f32 %v613, %v683
    %v685 = vpop.f32.mrb[0].mxu0
    %v686 = vadd.f32 %v615, %v685
    %687 = vdwg.mxu0
    %688 = vmatprep.subr.mxu0 0.0
    %689 = vmatpush1.msra.mxu0 %v446
    %690 = vmatprep.subr.mxu0 0.0
    %691 = vmatpush1.msra.mxu0 %v449
    %692 = vmatprep.subr.mxu0 0.0
    %693 = vmatpush1.msra.mxu0 %v452
    %694 = vmatprep.subr.mxu0 0.0
    %695 = vmatpush1.msra.mxu0 %v455
    %696 = vmatprep.subr.mxu0 0.0
    %697 = vmatpush1.msra.mxu0 %v458
    %698 = vmatprep.subr.mxu0 0.0
    %699 = vmatpush1.msra.mxu0 %v461
    %700 = vmatprep.subr.mxu0 0.0
    %701 = vmatpush1.msra.mxu0 %v464
    %702 = vmatprep.subr.mxu0 0.0
    %703 = vmatpush1.msra.mxu0 %v467
    %704 = vmatprep.subr.mxu0 0.0
    %705 = vmatpush1.msra.mxu0 %v470
    %706 = vmatprep.subr.mxu0 0.0
    %707 = vmatpush1.msra.mxu0 %v473
    %708 = vmatprep.subr.mxu0 0.0
    %709 = vmatpush1.msra.mxu0 %v476
    %710 = vmatprep.subr.mxu0 0.0
    %711 = vmatpush1.msra.mxu0 %v479
    %712 = vmatprep.subr.mxu0 0.0
    %713 = vmatpush1.msra.mxu0 %v482
    %714 = vmatprep.subr.mxu0 0.0
    %715 = vmatpush1.msra.mxu0 %v485
    %716 = vmatprep.subr.mxu0 0.0
    %717 = vmatpush1.msra.mxu0 %v488
    %718 = vmatprep.subr.mxu0 0.0
    %719 = vmatpush1.msra.mxu0 %v491
    %720 = vmatprep.subr.mxu0 0.0
    %721 = vmatpush1.msra.mxu0 %v494
    %722 = vmatprep.subr.mxu0 0.0
    %723 = vmatpush1.msra.mxu0 %v497
    %724 = vmatprep.subr.mxu0 0.0
    %725 = vmatpush1.msra.mxu0 %v500
    %726 = vmatprep.subr.mxu0 0.0
    %727 = vmatpush1.msra.mxu0 %v503
    %728 = vmatprep.subr.mxu0 0.0
    %729 = vmatpush1.msra.mxu0 %v506
    %730 = vmatprep.subr.mxu0 0.0
    %731 = vmatpush1.msra.mxu0 %v509
    %732 = vmatprep.subr.mxu0 0.0
    %733 = vmatpush1.msra.mxu0 %v512
    %734 = vmatprep.subr.mxu0 0.0
    %735 = vmatpush1.msra.mxu0 %v515
    %736 = vmatprep.subr.mxu0 0.0
    %737 = vmatpush1.msra.mxu0 %v518
    %738 = vmatprep.subr.mxu0 0.0
    %739 = vmatpush1.msra.mxu0 %v521
    %740 = vmatprep.subr.mxu0 0.0
    %741 = vmatpush1.msra.mxu0 %v524
    %742 = vmatprep.subr.mxu0 0.0
    %743 = vmatpush1.msra.mxu0 %v527
    %744 = vmatprep.subr.mxu0 0.0
    %745 = vmatpush1.msra.mxu0 %v530
    %746 = vmatprep.subr.mxu0 0.0
    %747 = vmatpush1.msra.mxu0 %v533
    %748 = vmatprep.subr.mxu0 0.0
    %749 = vmatpush1.msra.mxu0 %v536
    %750 = vmatprep.subr.mxu0 0.0
    %751 = vmatpush1.msra.mxu0 %v539
    %752 = vmatprep.mubr.f32.mxu0 %v150
    %753 = vmatmul.mubr.f32.gmra.mrb[0].mxu0 %v44
    %v754 = vpop.f32.mrb[0].mxu0
    %v755 = vadd.f32 0.0, %v754
    %v756 = vpop.f32.mrb[0].mxu0
    %757 = vdwg.mxu0
    %758 = vmatprep.subr.mxu0 0.0
    %759 = vmatpush1.msra.mxu0 %v542
    %760 = vmatprep.subr.mxu0 0.0
    %761 = vmatpush1.msra.mxu0 %v545
    %762 = vmatprep.subr.mxu0 0.0
    %763 = vmatpush1.msra.mxu0 0.0
    %764 = vmatprep.subr.mxu0 0.0
    %765 = vmatpush1.msra.mxu0 0.0
    %766 = vmatprep.subr.mxu0 0.0
    %767 = vmatpush1.msra.mxu0 0.0
    %768 = vmatprep.subr.mxu0 0.0
    %769 = vmatpush1.msra.mxu0 0.0
    %770 = vmatprep.subr.mxu0 0.0
    %771 = vmatpush1.msra.mxu0 0.0
    %772 = vmatprep.subr.mxu0 0.0
    %773 = vmatpush1.msra.mxu0 0.0
    %774 = vmatprep.subr.mxu0 0.0
    %775 = vmatpush1.msra.mxu0 0.0
    %776 = vmatprep.subr.mxu0 0.0
    %777 = vmatpush1.msra.mxu0 0.0
    %778 = vmatprep.subr.mxu0 0.0
    %779 = vmatpush1.msra.mxu0 0.0
    %780 = vmatprep.subr.mxu0 0.0
    %781 = vmatpush1.msra.mxu0 0.0
    %782 = vmatprep.subr.mxu0 0.0
    %783 = vmatpush1.msra.mxu0 0.0
    %784 = vmatprep.subr.mxu0 0.0
    %785 = vmatpush1.msra.mxu0 0.0
    %786 = vmatprep.subr.mxu0 0.0
    %787 = vmatpush1.msra.mxu0 0.0
    %788 = vmatprep.subr.mxu0 0.0
    %789 = vmatpush1.msra.mxu0 0.0
    %790 = vmatprep.subr.mxu0 0.0
    %791 = vmatpush1.msra.mxu0 0.0
    %792 = vmatprep.subr.mxu0 0.0
    %793 = vmatpush1.msra.mxu0 0.0
    %794 = vmatprep.subr.mxu0 0.0
    %795 = vmatpush1.msra.mxu0 0.0
    %796 = vmatprep.subr.mxu0 0.0
    %797 = vmatpush1.msra.mxu0 0.0
    %798 = vmatprep.subr.mxu0 0.0
    %799 = vmatpush1.msra.mxu0 0.0
    %800 = vmatprep.subr.mxu0 0.0
    %801 = vmatpush1.msra.mxu0 0.0
    %802 = vmatprep.subr.mxu0 0.0
    %803 = vmatpush1.msra.mxu0 0.0
    %804 = vmatprep.subr.mxu0 0.0
    %805 = vmatpush1.msra.mxu0 0.0
    %806 = vmatprep.subr.mxu0 0.0
    %807 = vmatpush1.msra.mxu0 0.0
    %808 = vmatprep.subr.mxu0 0.0
    %809 = vmatpush1.msra.mxu0 0.0
    %810 = vmatprep.subr.mxu0 0.0
    %811 = vmatpush1.msra.mxu0 0.0
    %812 = vmatprep.subr.mxu0 0.0
    %813 = vmatpush1.msra.mxu0 0.0
    %814 = vmatprep.subr.mxu0 0.0
    %815 = vmatpush1.msra.mxu0 0.0
    %816 = vmatprep.subr.mxu0 0.0
    %817 = vmatpush1.msra.mxu0 0.0
    %818 = vmatprep.subr.mxu0 0.0
    %819 = vmatpush1.msra.mxu0 0.0
    %820 = vmatprep.subr.mxu0 0.0
    %821 = vmatpush1.msra.mxu0 0.0
    %822 = vmatprep.mubr.f32.mxu0 0.0
    %823 = vmatmul.mubr.f32.gmra.mrb[0].mxu0 %v153
    %v824 = vpop.f32.mrb[0].mxu0
    %v825 = vadd.f32 %v755, %v824
    %v826 = vpop.f32.mrb[0].mxu0
    %827 = vdwg.mxu0
    %v830 = vcombine.low %v684, %v686
    %832 = vst [vmem:[%s4] sm:$0xff] %v830
    %833 = vst [vmem:[%s4 + $0x8] sm:$0xf] %v825
    // Predicated region
    $region22: #{_lambda_.3} parent=1 // pred_check
      _
    $region23: #{_lambda_.3} parent=1 // pred_check_branch
      %835 = sbr.rel (0) target = $region25
    $region24: #{_lambda_.3} parent=1 // pred_region
      _
    $region25: #{_lambda_.3} parent=1 // pred_fallthru
      _
    // Predicated region
    $region26: #{_lambda_.3} parent=1 // pred_check
      _
    $region27: #{_lambda_.3} parent=1 // pred_check_branch
      %837 = sbr.rel (0) target = $region29
    $region28: #{_lambda_.3} parent=1 // pred_region
      _
    $region29: #{_lambda_.3} parent=1 // pred_fallthru
      _
    // Predicated region
    $region30: #{_lambda_.3} parent=1 // pred_check
      _
    $region31: #{_lambda_.3} parent=1 // pred_check_branch
      %839 = sbr.rel (0) target = $region33
    $region32: #{_lambda_.3} parent=1 // pred_region
      _
    $region33: #{_lambda_.3} parent=1 // pred_fallthru
      _
    // Predicated region
    $region34: #{_lambda_.3} parent=1 // pred_check
      _
    $region35: #{_lambda_.3} parent=1 // pred_check_branch
      %841 = sbr.rel (0) target = $region37
    $region36: #{_lambda_.3} parent=1 // pred_region
      _
    $region37: #{_lambda_.3} parent=1 // pred_fallthru
      _
    %842 = vsyncpa [#allocation3], 1
    %843 = vsyncpa [#allocation5], 1

// kernel: _lambda_.4
$region0: #{_lambda_.4}
  #allocation0 [shape = 'u32[]', space=smem, size = 0x4, offset = 0x4, fixed_abs, tag = 'smem constant byte address 0x4 - core index']
  #allocation1 [shape = 'u32[144,128]{1,0:T(1,128)}', space=vmem, size = 0x12000, scoped, tag = 'internal scratch']
  %s0 = inlined_call_operand.vmem [shape: f32[4,2,2,72], index: 0, kind: input, shape index: {}]
  %s1 = inlined_call_operand.vmem [shape: f32[2,64,65], index: 1, kind: input, shape index: {}]
  %s2 = inlined_call_operand.hbm [shape: f32[2,32,97], index: 2, kind: input, shape index: {}]
  %s3 = inlined_call_operand.hbm [shape: f32[2,128,257], index: 3, kind: input, shape index: {}]
  %s4 = inlined_call_operand.vmem [shape: f32[2,64,193], index: 4, kind: input, shape index: {}]
  %s5 = inlined_call_operand.vmem [shape: f32[2,128,513], index: 5, kind: input, shape index: {}]
  %s6 = inlined_call_operand.hbm [shape: f32[2,64,193], index: 6, kind: input, shape index: {}]
  %s7 = inlined_call_operand.vmem [shape: f32[2,4,193], index: 7, kind: input, shape index: {}]
  %s8 = inlined_call_operand.vmem [shape: f32[82,41], index: 8, kind: input, shape index: {}]
  %s9 = inlined_call_operand.vmem [shape: f32[2,32,70], index: 9, kind: output, shape index: {0}]
  %s10 = inlined_call_operand.vmem [shape: f32[2,64,76], index: 10, kind: output, shape index: {1}]
  %s11 = inlined_call_operand.vmem [shape: f32[2,64,41], index: 11, kind: output, shape index: {2}]
  %s12 = inlined_call_operand.vmem [shape: f32[2,4,41], index: 12, kind: output, shape index: {3}]
  %13 = xla_tuple %s9, %s10, %s11, %s12
  %s14 = sld [smem:[#allocation0]]
  $region146: #{_lambda_.4} parent=0
    _
  %s16 = ssub.s32 1, %s14
  %s17 = scalar_select 0, %s16, %s14
  $region1: #{_lambda_.4} parent=0
    #allocation2 [shape = 'u8[8192]{0}', space=vmem, size = 0x2000, scoped, tag = 'input window, operand 0']
    #allocation3 [shape = 'u8[32768]{0}', space=vmem, size = 0x8000, scoped, tag = 'input window, operand 2']
    #allocation4 [shape = 's32[2]{0}', space=sflag, size = 0x8, scoped, tag = 'scoped memory for _lambda_.4']
    #allocation5 [shape = 'u8[393216]{0}', space=vmem, size = 0x60000, scoped, tag = 'input window, operand 3']
    #allocation6 [shape = 's32[2]{0}', space=sflag, size = 0x8, scoped, tag = 'scoped memory for _lambda_.4']
    #allocation7 [shape = 'u8[131072]{0}', space=vmem, size = 0x20000, scoped, tag = 'input window, operand 6']
    %18 = vsyncpa [#allocation4], 0
    %s19 = scalar_lea.sflag [#allocation4], 1
    %20 = vsyncpa %s19, 0
    %21 = vsyncpa [#allocation6], 0
    %s22 = scalar_lea.sflag [#allocation6], 1
    %23 = vsyncpa %s22, 0
    loop: start=0, step=1, limit=4
    $region2: #{_lambda_.4} parent=1 // loop_pre_header
      _
    $region3: #{_lambda_.4} parent=1 // loop_header
      %s25 = sphi 0, %s29
      %p26 = scmp.ge.s32.totalorder %s25, 4
      %s35 = sphi 0, %s37
      %s38 = sphi 0, %s35
      %s39 = sphi 0, %s38
      %s55 = sphi 0, %s39
      %s61 = sphi 0, %s63
      %s64 = sphi 0, %s61
      %s65 = sphi 0, %s64
      %s81 = sphi 0, %s65
      %s87 = sphi 0, %s89
      %s90 = sphi 0, %s87
      %s91 = sphi 0, %s90
      %s107 = sphi 0, %s91
      %s113 = sphi 0, %s115
      %s116 = sphi 0, %s113
      %s117 = sphi 0, %s116
      %s133 = sphi 0, %s117
      %s139 = sphi 0, %s141
      %s142 = sphi 0, %s139
      %s143 = sphi 0, %s142
      %s159 = sphi 0, %s143
      %s165 = sphi 0, %s167
      %s168 = sphi 0, %s165
      %s169 = sphi 0, %s168
      %s185 = sphi 0, %s169
      %s191 = sphi 0, %s193
      %s194 = sphi 0, %s191
      %s195 = sphi 0, %s194
      %s211 = sphi 0, %s195
      %s217 = sphi 0, %s219
      %s220 = sphi 0, %s217
      %s221 = sphi 0, %s220
      %s237 = sphi 0, %s221
      %s241 = sphi 0, %s241
      %s243 = sphi 0, %s241
      %s244 = sphi 0, %s243
      %s258 = sphi 0, %s244
      %s264 = sphi 0, %s266
      %s267 = sphi 0, %s264
      %s268 = sphi 0, %s267
      %s284 = sphi 0, %s268
      %s290 = sphi 0, %s292
      %s293 = sphi 0, %s290
      %s294 = sphi 0, %s293
      %s310 = sphi 0, %s294
      %s316 = sphi 0, %s318
      %s319 = sphi 0, %s316
      %s320 = sphi 0, %s319
      %s336 = sphi 0, %s320
      %s342 = sphi 0, %s344
      %s345 = sphi 0, %s342
      %s346 = sphi 0, %s345
      %s362 = sphi 0, %s346
    $region4: #{_lambda_.4} parent=1 // loop_header_branch
      %28 = sbr.rel (%p26) target = $region8
    $region5: #{_lambda_.4} parent=1 // loop_body
      %s30 = ssub.s32 %s25, 1
      %s31 = ssub.s32 %s25, 2
      %s32 = sadd.s32 %s25, 1
      %s33 = ssub.s32 %s25, %s32
      %p34 = scmp.eq.s32.totalorder %s33, 0
      %s36 = sadd.s32 %s35, 1
      %s37 = scalar_select %p34, %s35, %s36
      %p40 = pneg %p34
      %p41 = scmp.eq.s32.totalorder %s25, 1
      %p42 = por %p40, %p41
      %p43 = scmp.ne.s32.totalorder %s35, %s38
      %p44 = scmp.eq.s32.totalorder %s25, 0
      %p45 = por %p43, %p44
      %p46 = scmp.ne.s32.totalorder %s35, %s38
      %p47 = scmp.eq.s32.totalorder %s30, 1
      %p48 = por %p46, %p47
      %p49 = scmp.ne.s32.totalorder %s38, %s39
      %p50 = scmp.eq.s32.totalorder %s30, 0
      %p51 = por %p49, %p50
      %p52 = scmp.ne.s32.totalorder %s38, %s39
      %p53 = scmp.eq.s32.totalorder %s31, 1
      %p54 = por %p52, %p53
      %p56 = scmp.ne.s32.totalorder %s39, %s55
      %p57 = scmp.eq.s32.totalorder %s31, 0
      %p58 = por %p56, %p57
      %s59 = ssub.s32 %s25, %s32
      %p60 = scmp.eq.s32.totalorder %s59, 0
      %s62 = sadd.s32 %s61, 1
      %s63 = scalar_select %p60, %s61, %s62
      %p66 = pneg %p60
      %p67 = scmp.eq.s32.totalorder %s25, 1
      %p68 = por %p66, %p67
      %p69 = scmp.ne.s32.totalorder %s61, %s64
      %p70 = scmp.eq.s32.totalorder %s25, 0
      %p71 = por %p69, %p70
      %p72 = scmp.ne.s32.totalorder %s61, %s64
      %p73 = scmp.eq.s32.totalorder %s30, 1
      %p74 = por %p72, %p73
      %p75 = scmp.ne.s32.totalorder %s64, %s65
      %p76 = scmp.eq.s32.totalorder %s30, 0
      %p77 = por %p75, %p76
      %p78 = scmp.ne.s32.totalorder %s64, %s65
      %p79 = scmp.eq.s32.totalorder %s31, 1
      %p80 = por %p78, %p79
      %p82 = scmp.ne.s32.totalorder %s65, %s81
      %p83 = scmp.eq.s32.totalorder %s31, 0
      %p84 = por %p82, %p83
      %s85 = ssub.s32 %s25, %s32
      %p86 = scmp.eq.s32.totalorder %s85, 0
      %s88 = sadd.s32 %s87, 1
      %s89 = scalar_select %p86, %s87, %s88
      %p92 = pneg %p86
      %p93 = scmp.eq.s32.totalorder %s25, 1
      %p94 = por %p92, %p93
      %p95 = scmp.ne.s32.totalorder %s87, %s90
      %p96 = scmp.eq.s32.totalorder %s25, 0
      %p97 = por %p95, %p96
      %p98 = scmp.ne.s32.totalorder %s87, %s90
      %p99 = scmp.eq.s32.totalorder %s30, 1
      %p100 = por %p98, %p99
      %p101 = scmp.ne.s32.totalorder %s90, %s91
      %p102 = scmp.eq.s32.totalorder %s30, 0
      %p103 = por %p101, %p102
      %p104 = scmp.ne.s32.totalorder %s90, %s91
      %p105 = scmp.eq.s32.totalorder %s31, 1
      %p106 = por %p104, %p105
      %p108 = scmp.ne.s32.totalorder %s91, %s107
      %p109 = scmp.eq.s32.totalorder %s31, 0
      %p110 = por %p108, %p109
      %s111 = ssub.s32 %s25, %s32
      %p112 = scmp.eq.s32.totalorder %s111, 0
      %s114 = sadd.s32 %s113, 1
      %s115 = scalar_select %p112, %s113, %s114
      %p118 = pneg %p112
      %p119 = scmp.eq.s32.totalorder %s25, 1
      %p120 = por %p118, %p119
      %p121 = scmp.ne.s32.totalorder %s113, %s116
      %p122 = scmp.eq.s32.totalorder %s25, 0
      %p123 = por %p121, %p122
      %p124 = scmp.ne.s32.totalorder %s113, %s116
      %p125 = scmp.eq.s32.totalorder %s30, 1
      %p126 = por %p124, %p125
      %p127 = scmp.ne.s32.totalorder %s116, %s117
      %p128 = scmp.eq.s32.totalorder %s30, 0
      %p129 = por %p127, %p128
      %p130 = scmp.ne.s32.totalorder %s116, %s117
      %p131 = scmp.eq.s32.totalorder %s31, 1
      %p132 = por %p130, %p131
      %p134 = scmp.ne.s32.totalorder %s117, %s133
      %p135 = scmp.eq.s32.totalorder %s31, 0
      %p136 = por %p134, %p135
      %s137 = ssub.s32 %s25, %s32
      %p138 = scmp.eq.s32.totalorder %s137, 0
      %s140 = sadd.s32 %s139, 1
      %s141 = scalar_select %p138, %s139, %s140
      %p144 = pneg %p138
      %p145 = scmp.eq.s32.totalorder %s25, 1
      %p146 = por %p144, %p145
      %p147 = scmp.ne.s32.totalorder %s139, %s142
      %p148 = scmp.eq.s32.totalorder %s25, 0
      %p149 = por %p147, %p148
      %p150 = scmp.ne.s32.totalorder %s139, %s142
      %p151 = scmp.eq.s32.totalorder %s30, 1
      %p152 = por %p150, %p151
      %p153 = scmp.ne.s32.totalorder %s142, %s143
      %p154 = scmp.eq.s32.totalorder %s30, 0
      %p155 = por %p153, %p154
      %p156 = scmp.ne.s32.totalorder %s142, %s143
      %p157 = scmp.eq.s32.totalorder %s31, 1
      %p158 = por %p156, %p157
      %p160 = scmp.ne.s32.totalorder %s143, %s159
      %p161 = scmp.eq.s32.totalorder %s31, 0
      %p162 = por %p160, %p161
      %s163 = ssub.s32 %s25, %s32
      %p164 = scmp.eq.s32.totalorder %s163, 0
      %s166 = sadd.s32 %s165, 1
      %s167 = scalar_select %p164, %s165, %s166
      %p170 = pneg %p164
      %p171 = scmp.eq.s32.totalorder %s25, 1
      %p172 = por %p170, %p171
      %p173 = scmp.ne.s32.totalorder %s165, %s168
      %p174 = scmp.eq.s32.totalorder %s25, 0
      %p175 = por %p173, %p174
      %p176 = scmp.ne.s32.totalorder %s165, %s168
      %p177 = scmp.eq.s32.totalorder %s30, 1
      %p178 = por %p176, %p177
      %p179 = scmp.ne.s32.totalorder %s168, %s169
      %p180 = scmp.eq.s32.totalorder %s30, 0
      %p181 = por %p179, %p180
      %p182 = scmp.ne.s32.totalorder %s168, %s169
      %p183 = scmp.eq.s32.totalorder %s31, 1
      %p184 = por %p182, %p183
      %p186 = scmp.ne.s32.totalorder %s169, %s185
      %p187 = scmp.eq.s32.totalorder %s31, 0
      %p188 = por %p186, %p187
      %s189 = ssub.s32 %s25, %s32
      %p190 = scmp.eq.s32.totalorder %s189, 0
      %s192 = sadd.s32 %s191, 1
      %s193 = scalar_select %p190, %s191, %s192
      %p196 = pneg %p190
      %p197 = scmp.eq.s32.totalorder %s25, 1
      %p198 = por %p196, %p197
      %p199 = scmp.ne.s32.totalorder %s191, %s194
      %p200 = scmp.eq.s32.totalorder %s25, 0
      %p201 = por %p199, %p200
      %p202 = scmp.ne.s32.totalorder %s191, %s194
      %p203 = scmp.eq.s32.totalorder %s30, 1
      %p204 = por %p202, %p203
      %p205 = scmp.ne.s32.totalorder %s194, %s195
      %p206 = scmp.eq.s32.totalorder %s30, 0
      %p207 = por %p205, %p206
      %p208 = scmp.ne.s32.totalorder %s194, %s195
      %p209 = scmp.eq.s32.totalorder %s31, 1
      %p210 = por %p208, %p209
      %p212 = scmp.ne.s32.totalorder %s195, %s211
      %p213 = scmp.eq.s32.totalorder %s31, 0
      %p214 = por %p212, %p213
      %s215 = ssub.s32 %s25, %s32
      %p216 = scmp.eq.s32.totalorder %s215, 0
      %s218 = sadd.s32 %s217, 1
      %s219 = scalar_select %p216, %s217, %s218
      %p222 = pneg %p216
      %p223 = scmp.eq.s32.totalorder %s25, 1
      %p224 = por %p222, %p223
      %p225 = scmp.ne.s32.totalorder %s217, %s220
      %p226 = scmp.eq.s32.totalorder %s25, 0
      %p227 = por %p225, %p226
      %p228 = scmp.ne.s32.totalorder %s217, %s220
      %p229 = scmp.eq.s32.totalorder %s30, 1
      %p230 = por %p228, %p229
      %p231 = scmp.ne.s32.totalorder %s220, %s221
      %p232 = scmp.eq.s32.totalorder %s30, 0
      %p233 = por %p231, %p232
      %p234 = scmp.ne.s32.totalorder %s220, %s221
      %p235 = scmp.eq.s32.totalorder %s31, 1
      %p236 = por %p234, %p235
      %p238 = scmp.ne.s32.totalorder %s221, %s237
      %p239 = scmp.eq.s32.totalorder %s31, 0
      %p240 = por %p238, %p239
      %s242 = sadd.s32 %s241, 1
      %p245 = scmp.eq.s32.totalorder %s25, 1
      %p246 = scmp.ne.s32.totalorder %s241, %s243
      %p247 = scmp.eq.s32.totalorder %s25, 0
      %p248 = por %p246, %p247
      %p249 = scmp.ne.s32.totalorder %s241, %s243
      %p250 = scmp.eq.s32.totalorder %s30, 1
      %p251 = por %p249, %p250
      %p252 = scmp.ne.s32.totalorder %s243, %s244
      %p253 = scmp.eq.s32.totalorder %s30, 0
      %p254 = por %p252, %p253
      %p255 = scmp.ne.s32.totalorder %s243, %s244
      %p256 = scmp.eq.s32.totalorder %s31, 1
      %p257 = por %p255, %p256
      %p259 = scmp.ne.s32.totalorder %s244, %s258
      %p260 = scmp.eq.s32.totalorder %s31, 0
      %p261 = por %p259, %p260
      %s262 = ssub.s32 %s25, %s32
      %p263 = scmp.eq.s32.totalorder %s262, 0
      %s265 = sadd.s32 %s264, 1
      %s266 = scalar_select %p263, %s264, %s265
      %p269 = pneg %p263
      %p270 = scmp.eq.s32.totalorder %s25, 1
      %p271 = por %p269, %p270
      %p272 = scmp.ne.s32.totalorder %s264, %s267
      %p273 = scmp.eq.s32.totalorder %s25, 0
      %p274 = por %p272, %p273
      %p275 = scmp.ne.s32.totalorder %s264, %s267
      %p276 = scmp.eq.s32.totalorder %s30, 1
      %p277 = por %p275, %p276
      %p278 = scmp.ne.s32.totalorder %s267, %s268
      %p279 = scmp.eq.s32.totalorder %s30, 0
      %p280 = por %p278, %p279
      %p281 = scmp.ne.s32.totalorder %s267, %s268
      %p282 = scmp.eq.s32.totalorder %s31, 1
      %p283 = por %p281, %p282
      %p285 = scmp.ne.s32.totalorder %s268, %s284
      %p286 = scmp.eq.s32.totalorder %s31, 0
      %p287 = por %p285, %p286
      %s288 = ssub.s32 %s25, %s32
      %p289 = scmp.eq.s32.totalorder %s288, 0
      %s291 = sadd.s32 %s290, 1
      %s292 = scalar_select %p289, %s290, %s291
      %p295 = pneg %p289
      %p296 = scmp.eq.s32.totalorder %s25, 1
      %p297 = por %p295, %p296
      %p298 = scmp.ne.s32.totalorder %s290, %s293
      %p299 = scmp.eq.s32.totalorder %s25, 0
      %p300 = por %p298, %p299
      %p301 = scmp.ne.s32.totalorder %s290, %s293
      %p302 = scmp.eq.s32.totalorder %s30, 1
      %p303 = por %p301, %p302
      %p304 = scmp.ne.s32.totalorder %s293, %s294
      %p305 = scmp.eq.s32.totalorder %s30, 0
      %p306 = por %p304, %p305
      %p307 = scmp.ne.s32.totalorder %s293, %s294
      %p308 = scmp.eq.s32.totalorder %s31, 1
      %p309 = por %p307, %p308
      %p311 = scmp.ne.s32.totalorder %s294, %s310
      %p312 = scmp.eq.s32.totalorder %s31, 0
      %p313 = por %p311, %p312
      %s314 = ssub.s32 %s25, %s32
      %p315 = scmp.eq.s32.totalorder %s314, 0
      %s317 = sadd.s32 %s316, 1
      %s318 = scalar_select %p315, %s316, %s317
      %p321 = pneg %p315
      %p322 = scmp.eq.s32.totalorder %s25, 1
      %p323 = por %p321, %p322
      %p324 = scmp.ne.s32.totalorder %s316, %s319
      %p325 = scmp.eq.s32.totalorder %s25, 0
      %p326 = por %p324, %p325
      %p327 = scmp.ne.s32.totalorder %s316, %s319
      %p328 = scmp.eq.s32.totalorder %s30, 1
      %p329 = por %p327, %p328
      %p330 = scmp.ne.s32.totalorder %s319, %s320
      %p331 = scmp.eq.s32.totalorder %s30, 0
      %p332 = por %p330, %p331
      %p333 = scmp.ne.s32.totalorder %s319, %s320
      %p334 = scmp.eq.s32.totalorder %s31, 1
      %p335 = por %p333, %p334
      %p337 = scmp.ne.s32.totalorder %s320, %s336
      %p338 = scmp.eq.s32.totalorder %s31, 0
      %p339 = por %p337, %p338
      %s340 = ssub.s32 %s25, %s32
      %p341 = scmp.eq.s32.totalorder %s340, 0
      %s343 = sadd.s32 %s342, 1
      %s344 = scalar_select %p341, %s342, %s343
      %p347 = pneg %p341
      %p348 = scmp.eq.s32.totalorder %s25, 1
      %p349 = por %p347, %p348
      %p350 = scmp.ne.s32.totalorder %s342, %s345
      %p351 = scmp.eq.s32.totalorder %s25, 0
      %p352 = por %p350, %p351
      %p353 = scmp.ne.s32.totalorder %s342, %s345
      %p354 = scmp.eq.s32.totalorder %s30, 1
      %p355 = por %p353, %p354
      %p356 = scmp.ne.s32.totalorder %s345, %s346
      %p357 = scmp.eq.s32.totalorder %s30, 0
      %p358 = por %p356, %p357
      %p359 = scmp.ne.s32.totalorder %s345, %s346
      %p360 = scmp.eq.s32.totalorder %s31, 1
      %p361 = por %p359, %p360
      %p363 = scmp.ne.s32.totalorder %s346, %s362
      %p364 = scmp.eq.s32.totalorder %s31, 0
      %p365 = por %p363, %p364
      %p366 = scmp.le.s32.totalorder 1, %s25
      %p367 = scmp.lt.s32.totalorder %s25, 3
      %p368 = pnand %p366, %p367
      %p369 = pneg %p368
      // Predicated region
      $region9: #{_lambda_.4} parent=5 // pred_check
        _
      $region10: #{_lambda_.4} parent=5 // pred_check_branch
        %371 = sbr.rel (%p368) target = $region12
      $region11: #{_lambda_.4} parent=5 // pred_region
        %s372 = ssub.s32 %s25, 1
        // Predicated region
        $region13: #{_lambda_.4} parent=11 // pred_check
          %p373 = pneg %p254
        $region14: #{_lambda_.4} parent=11 // pred_check_branch
          %375 = sbr.rel (%p373) target = $region16
        $region15: #{_lambda_.4} parent=11 // pred_region
          _
        $region16: #{_lambda_.4} parent=11 // pred_fallthru
          _
      $region12: #{_lambda_.4} parent=5 // pred_fallthru
        _
      %p376 = scmp.lt.s32.totalorder %s25, 2
      // Predicated region
      $region17: #{_lambda_.4} parent=5 // pred_check
        %p377 = pneg %p376
      $region18: #{_lambda_.4} parent=5 // pred_check_branch
        %379 = sbr.rel (%p377) target = $region20
      $region19: #{_lambda_.4} parent=5 // pred_region
        // Predicated region
        $region21: #{_lambda_.4} parent=19 // pred_check
          %p380 = pneg %p45
        $region22: #{_lambda_.4} parent=19 // pred_check_branch
          %382 = sbr.rel (%p380) target = $region24
        $region23: #{_lambda_.4} parent=19 // pred_region
          %s383 = sand.u32 %s35, 1
          %s384 = sand.u32 %s35, 1
          %s385 = smul.addr %s384, 8
          %s386 = scalar_lea.vmem [#allocation2], %s385
          %s387 = smul.addr %s25, 2
          %s388 = scalar_lea.vmem %s0, %s387
          // Predicated region
          $region25: #{_lambda_.4} parent=23 // pred_check
            _
          $region26: #{_lambda_.4} parent=23 // pred_check_branch
            %390 = sbr.rel (0) target = $region28
          $region27: #{_lambda_.4} parent=23 // pred_region
            // Predicated region
            $region29: #{_lambda_.4} parent=27 // pred_check
              _
            $region30: #{_lambda_.4} parent=27 // pred_check_branch
              %392 = sbr.rel target = $region32
            $region31: #{_lambda_.4} parent=27 // pred_region
              // Predicated region
              $region44: #{_lambda_.4} parent=31 // pred_check
                _
              $region45: #{_lambda_.4} parent=31 // pred_check_branch
                %413 = sbr.rel (0) target = $region47
              $region46: #{_lambda_.4} parent=31 // pred_region
                loop: start=0, step=1, limit=1
                $region48: #{_lambda_.4} parent=46 // loop_pre_header
                  _
                $region49: #{_lambda_.4} parent=46 // loop_header
                  %s415 = sphi 0, %s419
                  %p416 = scmp.ge.s32.totalorder %s415, 1
                  %s420 = sphi %s388, %s388
                  %s421 = sphi %s386, %s386
                $region50: #{_lambda_.4} parent=46 // loop_header_branch
                  %418 = sbr.rel (%p416) target = $region54
                $region51: #{_lambda_.4} parent=46 // loop_body
                  _
                $region52: #{_lambda_.4} parent=46 // loop_footer
                  %s419 = sadd.s32 1, %s415
                $region53: #{_lambda_.4} parent=46 // loop_footer_branch
                  %414 = sbr.rel target = $region49
                $region54: #{_lambda_.4} parent=46 // loop_exit
                  _
                loop: start=0, step=1, limit=1
                $region55: #{_lambda_.4} parent=46 // loop_pre_header
                  _
                $region56: #{_lambda_.4} parent=46 // loop_header
                  %s424 = sphi 0, %s428
                  %p425 = scmp.ge.s32.totalorder %s424, 1
                  %s429 = sphi %s388, %s388
                  %s430 = sphi %s386, %s386
                $region57: #{_lambda_.4} parent=46 // loop_header_branch
                  %427 = sbr.rel (%p425) target = $region61
                $region58: #{_lambda_.4} parent=46 // loop_body
                  %v431 = vld [vmem:[%s429] sm:$0x3]
                  %432 = vst [vmem:[%s430] sm:$0x3] %v431
                  %v433 = vld [vmem:[%s429 + $0x4] sm:$0x3]
                  %434 = vst [vmem:[%s430 + $0x2] sm:$0x3] %v433
                  %v435 = vld [vmem:[%s429 + $0x8] sm:$0x3]
                  %436 = vst [vmem:[%s430 + $0x4] sm:$0x3] %v435
                  %v437 = vld [vmem:[%s429 + $0xc] sm:$0x3]
                  %438 = vst [vmem:[%s430 + $0x6] sm:$0x3] %v437
                $region59: #{_lambda_.4} parent=46 // loop_footer
                  %s428 = sadd.s32 1, %s424
                $region60: #{_lambda_.4} parent=46 // loop_footer_branch
                  %423 = sbr.rel target = $region56
                $region61: #{_lambda_.4} parent=46 // loop_exit
                  _
              $region47: #{_lambda_.4} parent=31 // pred_fallthru
                _
            $region32: #{_lambda_.4} parent=27 // pred_fallthru
              _
            // Predicated region
            $region33: #{_lambda_.4} parent=27 // pred_check
              _
            $region34: #{_lambda_.4} parent=27 // pred_check_branch
              %394 = sbr.rel (0) target = $region36
            $region35: #{_lambda_.4} parent=27 // pred_region
              loop: start=0, step=1, limit=1
              $region37: #{_lambda_.4} parent=35 // loop_pre_header
                _
              $region38: #{_lambda_.4} parent=35 // loop_header
                %s397 = sphi 0, %s401
                %p398 = scmp.ge.s32.totalorder %s397, 1
                %s402 = sphi %s388, %s388
                %s403 = sphi %s386, %s386
              $region39: #{_lambda_.4} parent=35 // loop_header_branch
                %400 = sbr.rel (%p398) target = $region43
              $region40: #{_lambda_.4} parent=35 // loop_body
                %v404 = vld [vmem:[%s402] sm:$0x3]
                %405 = vst [vmem:[%s403] sm:$0x3] %v404
                %v406 = vld [vmem:[%s402 + $0x4] sm:$0x3]
                %407 = vst [vmem:[%s403 + $0x2] sm:$0x3] %v406
                %v408 = vld [vmem:[%s402 + $0x8] sm:$0x3]
                %409 = vst [vmem:[%s403 + $0x4] sm:$0x3] %v408
                %v410 = vld [vmem:[%s402 + $0xc] sm:$0x3]
                %411 = vst [vmem:[%s403 + $0x6] sm:$0x3] %v410
              $region41: #{_lambda_.4} parent=35 // loop_footer
                %s401 = sadd.s32 1, %s397
              $region42: #{_lambda_.4} parent=35 // loop_footer_branch
                %396 = sbr.rel target = $region38
              $region43: #{_lambda_.4} parent=35 // loop_exit
                _
            $region36: #{_lambda_.4} parent=27 // pred_fallthru
              _
          $region28: #{_lambda_.4} parent=23 // pred_fallthru
            _
          %439 = vnop
        $region24: #{_lambda_.4} parent=19 // pred_fallthru
          _
        // Predicated region
        $region62: #{_lambda_.4} parent=19 // pred_check
          %p440 = pneg %p71
        $region63: #{_lambda_.4} parent=19 // pred_check_branch
          %442 = sbr.rel (%p440) target = $region65
        $region64: #{_lambda_.4} parent=19 // pred_region
          %p443 = scmp.lt.s32.totalorder %s25, 1
          %s444 = scalar_select %p443, %s25, 1
          %s445 = smul.addr %s444, 8
          %s446 = smul.addr %s445, 8
          %s447 = scalar_lea.vmem %s1, %s446
        $region65: #{_lambda_.4} parent=19 // pred_fallthru
          _
        // Predicated region
        $region66: #{_lambda_.4} parent=19 // pred_check
          %p448 = pneg %p97
        $region67: #{_lambda_.4} parent=19 // pred_check_branch
          %450 = sbr.rel (%p448) target = $region69
        $region68: #{_lambda_.4} parent=19 // pred_region
          %s451 = sand.u32 %s87, 1
          %s452 = scalar_lea.sflag [#allocation4], %s451
          %s453 = sand.u32 %s87, 1
          %s454 = smul.addr %s453, 32
          %s455 = scalar_lea.vmem [#allocation3], %s454
          %s457 = ssub.s32 512, 512
          %458 = vsyncadd %s452, %s457
          %s459 = smul.addr %s25, 4
          %s460 = smul.addr %s459, 128
          %s461 = scalar_lea.hbm %s2, %s460
          %s462 = sshll.u32 %s455, 4
          %s463 = int_to_ptr.vmem [resolvable:$true] %s462
          %468 = dma.hbm_to_vmem [thread:$0]  %s461, 512, %s463, %s452, 128, 128, 8
        $region69: #{_lambda_.4} parent=19 // pred_fallthru
          _
        // Predicated region
        $region70: #{_lambda_.4} parent=19 // pred_check
          %p469 = pneg %p123
        $region71: #{_lambda_.4} parent=19 // pred_check_branch
          %471 = sbr.rel (%p469) target = $region73
        $region72: #{_lambda_.4} parent=19 // pred_region
          %s472 = sand.u32 %s25, 1
          %s473 = scalar_lea.sflag [#allocation6], %s472
          %s474 = sand.u32 %s113, 1
          %s475 = smul.addr %s474, 384
          %s476 = scalar_lea.vmem [#allocation5], %s475
          %s478 = ssub.s32 6144, 6144
          %479 = vsyncadd %s473, %s478
          %s480 = smul.addr %s25, 48
          %s481 = smul.addr %s480, 128
          %s482 = scalar_lea.hbm %s3, %s481
          %s483 = sshll.u32 %s476, 4
          %s484 = int_to_ptr.vmem [resolvable:$true] %s483
          %489 = dma.hbm_to_vmem [thread:$0]  %s482, 6144, %s484, %s473, 384, 384, 24
        $region73: #{_lambda_.4} parent=19 // pred_fallthru
          _
        // Predicated region
        $region74: #{_lambda_.4} parent=19 // pred_check
          %p490 = pneg %p149
        $region75: #{_lambda_.4} parent=19 // pred_check_branch
          %492 = sbr.rel (%p490) target = $region77
        $region76: #{_lambda_.4} parent=19 // pred_region
          %p493 = scmp.lt.s32.totalorder %s25, 1
          %s494 = scalar_select %p493, %s25, 1
          %s495 = smul.addr %s494, 16
          %s496 = smul.addr %s495, 8
          %s497 = scalar_lea.vmem %s4, %s496
        $region77: #{_lambda_.4} parent=19 // pred_fallthru
          _
        // Predicated region
        $region78: #{_lambda_.4} parent=19 // pred_check
          %p498 = pneg %p175
        $region79: #{_lambda_.4} parent=19 // pred_check_branch
          %500 = sbr.rel (%p498) target = $region81
        $region80: #{_lambda_.4} parent=19 // pred_region
          %p501 = scmp.lt.s32.totalorder %s25, 1
          %s502 = scalar_select %p501, %s25, 1
          %s503 = smul.addr %s502, 80
          %s504 = smul.addr %s503, 8
          %s505 = scalar_lea.vmem %s5, %s504
        $region81: #{_lambda_.4} parent=19 // pred_fallthru
          _
        // Predicated region
        $region82: #{_lambda_.4} parent=19 // pred_check
          %p506 = pneg %p201
        $region83: #{_lambda_.4} parent=19 // pred_check_branch
          %508 = sbr.rel (%p506) target = $region85
        $region84: #{_lambda_.4} parent=19 // pred_region
          %s509 = sand.u32 %s25, 1
          %s510 = scalar_lea.sflag [#allocation6], %s509
          %s511 = sand.u32 %s191, 1
          %s512 = smul.addr %s511, 128
          %s513 = scalar_lea.vmem [#allocation7], %s512
          %s515 = ssub.s32 2048, 2048
          %516 = vsyncadd %s510, %s515
          %s517 = smul.addr %s25, 16
          %s518 = smul.addr %s517, 128
          %s519 = scalar_lea.hbm %s6, %s518
          %s520 = sshll.u32 %s513, 4
          %s521 = int_to_ptr.vmem [resolvable:$true] %s520
          %526 = dma.hbm_to_vmem [thread:$0]  %s519, 2048, %s521, %s510, 256, 256, 16
        $region85: #{_lambda_.4} parent=19 // pred_fallthru
          _
        // Predicated region
        $region86: #{_lambda_.4} parent=19 // pred_check
          %p527 = pneg %p227
        $region87: #{_lambda_.4} parent=19 // pred_check_branch
          %529 = sbr.rel (%p527) target = $region89
        $region88: #{_lambda_.4} parent=19 // pred_region
          %p530 = scmp.lt.s32.totalorder %s25, 1
          %s531 = scalar_select %p530, %s25, 1
          %s532 = smul.addr %s531, 2
          %s533 = smul.addr %s532, 4
          %s534 = scalar_lea.vmem %s7, %s533
        $region89: #{_lambda_.4} parent=19 // pred_fallthru
          _
      $region20: #{_lambda_.4} parent=5 // pred_fallthru
        _
      %p535 = scmp.le.s32.totalorder 1, %s25
      %p536 = scmp.lt.s32.totalorder %s25, 3
      %p537 = pnand %p535, %p536
      %p538 = pneg %p537
      // Predicated region
      $region90: #{_lambda_.4} parent=5 // pred_check
        _
      $region91: #{_lambda_.4} parent=5 // pred_check_branch
        %540 = sbr.rel (%p537) target = $region93
      $region92: #{_lambda_.4} parent=5 // pred_region
        %s541 = ssub.s32 %s25, 1
        %s542 = sand.u32 %s38, 1
        %s543 = sand.u32 %s38, 1
        %s544 = smul.addr %s543, 8
        %s545 = scalar_lea.vmem [#allocation2], %s544
        // Predicated region
        $region94: #{_lambda_.4} parent=92 // pred_check
          %p546 = pneg %p51
        $region95: #{_lambda_.4} parent=92 // pred_check_branch
          %548 = sbr.rel (%p546) target = $region97
        $region96: #{_lambda_.4} parent=92 // pred_region
          _
        $region97: #{_lambda_.4} parent=92 // pred_fallthru
          _
        %s549 = sand.u32 %s90, 1
        %s550 = scalar_lea.sflag [#allocation4], %s549
        %s551 = sand.u32 %s90, 1
        %s552 = smul.addr %s551, 32
        %s553 = scalar_lea.vmem [#allocation3], %s552
        // Predicated region
        $region98: #{_lambda_.4} parent=92 // pred_check
          %p554 = pneg %p103
        $region99: #{_lambda_.4} parent=92 // pred_check_branch
          %556 = sbr.rel (%p554) target = $region101
        $region100: #{_lambda_.4} parent=92 // pred_region
          %557 = dma.done %s550, 512
        $region101: #{_lambda_.4} parent=92 // pred_fallthru
          _
        %s558 = sand.u32 %s30, 1
        %s559 = scalar_lea.sflag [#allocation6], %s558
        %s560 = sand.u32 %s116, 1
        %s561 = smul.addr %s560, 384
        %s562 = scalar_lea.vmem [#allocation5], %s561
        // Predicated region
        $region102: #{_lambda_.4} parent=92 // pred_check
          %p563 = pneg %p129
        $region103: #{_lambda_.4} parent=92 // pred_check_branch
          %565 = sbr.rel (%p563) target = $region105
        $region104: #{_lambda_.4} parent=92 // pred_region
          %566 = dma.done %s559, 6144
        $region105: #{_lambda_.4} parent=92 // pred_fallthru
          _
        %s567 = sand.u32 %s30, 1
        %s568 = scalar_lea.sflag [#allocation6], %s567
        %s569 = sand.u32 %s194, 1
        %s570 = smul.addr %s569, 128
        %s571 = scalar_lea.vmem [#allocation7], %s570
        // Predicated region
        $region106: #{_lambda_.4} parent=92 // pred_check
          %p572 = pneg %p207
        $region107: #{_lambda_.4} parent=92 // pred_check_branch
          %574 = sbr.rel (%p572) target = $region109
        $region108: #{_lambda_.4} parent=92 // pred_region
          %575 = dma.done %s568, 2048
        $region109: #{_lambda_.4} parent=92 // pred_fallthru
          _
        %s576 = sand.u32 %s38, 1
        %s577 = sand.u32 %s38, 1
        %s578 = smul.addr %s577, 8
        %s579 = scalar_lea.vmem [#allocation2], %s578
        %p580 = pneg %p51
        %p581 = pneg %p48
        %p582 = scmp.lt.s32.totalorder %s30, 1
        %s583 = scalar_select %p582, %s30, 1
        %s584 = smul.addr %s583, 8
        %s585 = smul.addr %s584, 8
        %s586 = scalar_lea.vmem %s1, %s585
        %p587 = pneg %p77
        %p588 = pneg %p74
        %s589 = sand.u32 %s90, 1
        %s590 = scalar_lea.sflag [#allocation4], %s589
        %s591 = sand.u32 %s90, 1
        %s592 = smul.addr %s591, 32
        %s593 = scalar_lea.vmem [#allocation3], %s592
        %p594 = pneg %p103
        %p595 = pneg %p100
        %s596 = sand.u32 %s30, 1
        %s597 = scalar_lea.sflag [#allocation6], %s596
        %s598 = sand.u32 %s116, 1
        %s599 = smul.addr %s598, 384
        %s600 = scalar_lea.vmem [#allocation5], %s599
        %p601 = pneg %p129
        %p602 = pneg %p126
        %p603 = scmp.lt.s32.totalorder %s30, 1
        %s604 = scalar_select %p603, %s30, 1
        %s605 = smul.addr %s604, 16
        %s606 = smul.addr %s605, 8
        %s607 = scalar_lea.vmem %s4, %s606
        %p608 = pneg %p155
        %p609 = pneg %p152
        %p610 = scmp.lt.s32.totalorder %s30, 1
        %s611 = scalar_select %p610, %s30, 1
        %s612 = smul.addr %s611, 80
        %s613 = smul.addr %s612, 8
        %s614 = scalar_lea.vmem %s5, %s613
        %p615 = pneg %p181
        %p616 = pneg %p178
        %s617 = sand.u32 %s30, 1
        %s618 = scalar_lea.sflag [#allocation6], %s617
        %s619 = sand.u32 %s194, 1
        %s620 = smul.addr %s619, 128
        %s621 = scalar_lea.vmem [#allocation7], %s620
        %p622 = pneg %p207
        %p623 = pneg %p204
        %p624 = scmp.lt.s32.totalorder %s30, 1
        %s625 = scalar_select %p624, %s30, 1
        %s626 = smul.addr %s625, 2
        %s627 = smul.addr %s626, 4
        %s628 = scalar_lea.vmem %s7, %s627
        %p629 = pneg %p233
        %p630 = pneg %p230
        %p631 = pneg %p254
        %p632 = pneg %p251
        %p633 = pneg %p280
        %p634 = pneg %p277
        %p635 = scmp.lt.s32.totalorder %s30, 1
        %s636 = scalar_select %p635, %s30, 1
        %s637 = smul.addr %s636, 4
        %s638 = smul.addr %s637, 8
        %s639 = scalar_lea.vmem %s9, %s638
        %p640 = pneg %p306
        %p641 = pneg %p303
        %p642 = scmp.lt.s32.totalorder %s30, 1
        %s643 = scalar_select %p642, %s30, 1
        %s644 = smul.addr %s643, 8
        %s645 = smul.addr %s644, 8
        %s646 = scalar_lea.vmem %s10, %s645
        %p647 = pneg %p332
        %p648 = pneg %p329
        %p649 = scmp.lt.s32.totalorder %s30, 1
        %s650 = scalar_select %p649, %s30, 1
        %s651 = smul.addr %s650, 8
        %s652 = smul.addr %s651, 8
        %s653 = scalar_lea.vmem %s11, %s652
        %p654 = pneg %p358
        %p655 = pneg %p355
        %p656 = scmp.lt.s32.totalorder %s30, 1
        %s657 = scalar_select %p656, %s30, 1
        %s658 = smul.addr %s657, 4
        %s659 = scalar_lea.vmem %s12, %s658
        %p660 = scmp.lt.s32.totalorder %s30, 1
        %s661 = scalar_select %p660, %s30, 1
        %s662 = smul.addr %s661, 8
        %s663 = smul.addr %s662, 8
        %s664 = scalar_lea.vmem %s1, %s663
        %p665 = scmp.lt.s32.totalorder %s30, 1
        %s666 = scalar_select %p665, %s30, 1
        %s667 = smul.addr %s666, 16
        %s668 = smul.addr %s667, 8
        %s669 = scalar_lea.vmem %s4, %s668
        %p670 = scmp.lt.s32.totalorder %s30, 1
        %s671 = scalar_select %p670, %s30, 1
        %s672 = smul.addr %s671, 80
        %s673 = smul.addr %s672, 8
        %s674 = scalar_lea.vmem %s5, %s673
        %p675 = scmp.lt.s32.totalorder %s30, 1
        %s676 = scalar_select %p675, %s30, 1
        %s677 = smul.addr %s676, 2
        %s678 = smul.addr %s677, 4
        %s679 = scalar_lea.vmem %s7, %s678
        %p680 = scmp.lt.s32.totalorder %s30, 1
        %s681 = scalar_select %p680, %s30, 1
        %s682 = smul.addr %s681, 4
        %s683 = smul.addr %s682, 8
        %s684 = scalar_lea.vmem %s9, %s683
        %p685 = scmp.lt.s32.totalorder %s30, 1
        %s686 = scalar_select %p685, %s30, 1
        %s687 = smul.addr %s686, 8
        %s688 = smul.addr %s687, 8
        %s689 = scalar_lea.vmem %s10, %s688
        %p690 = scmp.lt.s32.totalorder %s30, 1
        %s691 = scalar_select %p690, %s30, 1
        %s692 = smul.addr %s691, 8
        %s693 = smul.addr %s692, 8
        %s694 = scalar_lea.vmem %s11, %s693
        %p695 = scmp.lt.s32.totalorder %s30, 1
        %s696 = scalar_select %p695, %s30, 1
        %s697 = smul.addr %s696, 4
        %s698 = scalar_lea.vmem %s12, %s697
        %v699 = vld [vmem:[%s545] sm:$0x3]
        %v700 = vld [vmem:[%s545 + $0x2] sm:$0x3]
        %v701 = vld [vmem:[%s545 + $0x4] sm:$0x3]
        %v702 = vld [vmem:[%s545 + $0x6] sm:$0x3]
        %v707 = vrot.slane %v700, 7
        %vm708 = vcmask 1041409
        %v709 = vsel %vm708, %v707, %v699
        %v710 = vrot.slane %v701, 6
        %vm711 = vcmask 1042434
        %v712 = vsel %vm711, %v710, %v709
        %v713 = vrot.slane %v702, 5
        %vm714 = vcmask 1043459
        %v715 = vsel %vm714, %v713, %v712
        %v717 = vrot.slane %v699, 5
        %v718 = vrot.slane %v700, 4
        %vm719 = vcmask 1045509
        %v720 = vsel %vm719, %v718, %v717
        %v721 = vrot.slane %v701, 3
        %vm722 = vcmask 1046534
        %v723 = vsel %vm722, %v721, %v720
        %v724 = vrot.slane %v702, 2
        %vm725 = vcmask 1047559
        %v726 = vsel %vm725, %v724, %v723
        %728 = vrot.lane.b32.xlu0 %v715, 127
        %v729 = vpop.permute.xlu0 %728
        %731 = vrot.lane.b32.xlu0 %v726, 127
        %v732 = vpop.permute.xlu0 %731
        %734 = vrot.lane.b32.xlu0 %v715, 126
        %v735 = vpop.permute.xlu0 %734
        %737 = vrot.lane.b32.xlu0 %v726, 126
        %v738 = vpop.permute.xlu0 %737
        %740 = vrot.lane.b32.xlu0 %v715, 3
        %v741 = vpop.permute.xlu0 %740
        %743 = vrot.lane.b32.xlu0 %v726, 3
        %v744 = vpop.permute.xlu0 %743
        %746 = vrot.lane.b32.xlu0 %v715, 1
        %v747 = vpop.permute.xlu0 %746
        %749 = vrot.lane.b32.xlu0 %v726, 1
        %v750 = vpop.permute.xlu0 %749
        %752 = vrot.lane.b32.xlu0 %v715, 125
        %v753 = vpop.permute.xlu0 %752
        %755 = vrot.lane.b32.xlu0 %v726, 125
        %v756 = vpop.permute.xlu0 %755
        %758 = vrot.lane.b32.xlu0 %v715, 123
        %v759 = vpop.permute.xlu0 %758
        %761 = vrot.lane.b32.xlu0 %v726, 123
        %v762 = vpop.permute.xlu0 %761
        %vm764 = vcmask 1043456
        %v765 = vsel %vm764, %v715, %v726
        %v766 = vsel %vm764, %v729, %v732
        %v767 = vsel %vm764, %v735, %v738
        %v768 = vsel %vm764, %v741, %v744
        %v769 = vsel %vm764, %v747, %v750
        %v770 = vsel %vm764, %v753, %v756
        %v771 = vsel %vm764, %v759, %v762
        %v772 = vld [vmem:[%s664] sm:$0xff]
        %v773 = vld [vmem:[%s664 + $0x8] sm:$0xff]
        %v774 = vld [vmem:[%s664 + $0x10] sm:$0xff]
        %v775 = vld [vmem:[%s664 + $0x18] sm:$0xff]
        %v776 = vld [vmem:[%s664 + $0x20] sm:$0xff]
        %v777 = vld [vmem:[%s664 + $0x28] sm:$0xff]
        %v778 = vld [vmem:[%s664 + $0x30] sm:$0xff]
        %v779 = vld [vmem:[%s664 + $0x38] sm:$0xff]
        %788 = vrot.lane.b32.xlu0 %v765, 125
        %v789 = vpop.permute.xlu0 %788
        %790 = vrot.lane.b32.xlu0 %v766, 125
        %v791 = vpop.permute.xlu0 %790
        %792 = vrot.lane.b32.xlu0 %v767, 125
        %v793 = vpop.permute.xlu0 %792
        %794 = vrot.lane.b32.xlu0 %v768, 125
        %v795 = vpop.permute.xlu0 %794
        %796 = vrot.lane.b32.xlu0 %v769, 125
        %v797 = vpop.permute.xlu0 %796
        %798 = vrot.lane.b32.xlu0 %v770, 125
        %v799 = vpop.permute.xlu0 %798
        %800 = vrot.lane.b32.xlu0 %v771, 125
        %v801 = vpop.permute.xlu0 %800
        %802 = vrot.lane.b32.xlu0 1.0, 125
        %v803 = vpop.permute.xlu0 %802
        %vm811 = vcmask 531456
        %v813 = vsel %vm811, %v772, 0
        %v816 = vsel %vm811, %v773, 0
        %v819 = vsel %vm811, %v774, 0
        %v822 = vsel %vm811, %v775, 0
        %v825 = vsel %vm811, %v776, 0
        %v828 = vsel %vm811, %v777, 0
        %v831 = vsel %vm811, %v778, 0
        %v834 = vsel %vm811, %v779, 0
        %vm836 = vcmask 1040384
        %v837 = vsel %vm836, %v803, 0
        %839 = vmatprep.subr.mxu0 0.0
        %840 = vmatpush1.msra.mxu0 %v789
        %841 = vmatprep.subr.mxu0 0.0
        %842 = vmatpush1.msra.mxu0 %v791
        %843 = vmatprep.subr.mxu0 0.0
        %844 = vmatpush1.msra.mxu0 %v793
        %845 = vmatprep.subr.mxu0 0.0
        %846 = vmatpush1.msra.mxu0 %v795
        %847 = vmatprep.subr.mxu0 0.0
        %848 = vmatpush1.msra.mxu0 %v797
        %849 = vmatprep.subr.mxu0 0.0
        %850 = vmatpush1.msra.mxu0 %v791
        %851 = vmatprep.subr.mxu0 0.0
        %852 = vmatpush1.msra.mxu0 %v799
        %853 = vmatprep.subr.mxu0 0.0
        %854 = vmatpush1.msra.mxu0 %v801
        %855 = vmatprep.subr.mxu0 0.0
        %856 = vmatpush1.msra.mxu0 %v837
        %857 = vmatprep.subr.mxu0 0.0
        %858 = vmatpush1.msra.mxu0 0.0
        %859 = vmatprep.subr.mxu0 0.0
        %860 = vmatpush1.msra.mxu0 0.0
        %861 = vmatprep.subr.mxu0 0.0
        %862 = vmatpush1.msra.mxu0 0.0
        %863 = vmatprep.subr.mxu0 0.0
        %864 = vmatpush1.msra.mxu0 0.0
        %865 = vmatprep.subr.mxu0 0.0
        %866 = vmatpush1.msra.mxu0 0.0
        %867 = vmatprep.subr.mxu0 0.0
        %868 = vmatpush1.msra.mxu0 0.0
        %869 = vmatprep.subr.mxu0 0.0
        %870 = vmatpush1.msra.mxu0 0.0
        %871 = vmatprep.subr.mxu0 0.0
        %872 = vmatpush1.msra.mxu0 0.0
        %873 = vmatprep.subr.mxu0 0.0
        %874 = vmatpush1.msra.mxu0 0.0
        %875 = vmatprep.subr.mxu0 0.0
        %876 = vmatpush1.msra.mxu0 0.0
        %877 = vmatprep.subr.mxu0 0.0
        %878 = vmatpush1.msra.mxu0 0.0
        %879 = vmatprep.subr.mxu0 0.0
        %880 = vmatpush1.msra.mxu0 0.0
        %881 = vmatprep.subr.mxu0 0.0
        %882 = vmatpush1.msra.mxu0 0.0
        %883 = vmatprep.subr.mxu0 0.0
        %884 = vmatpush1.msra.mxu0 0.0
        %885 = vmatprep.subr.mxu0 0.0
        %886 = vmatpush1.msra.mxu0 0.0
        %887 = vmatprep.subr.mxu0 0.0
        %888 = vmatpush1.msra.mxu0 0.0
        %889 = vmatprep.subr.mxu0 0.0
        %890 = vmatpush1.msra.mxu0 0.0
        %891 = vmatprep.subr.mxu0 0.0
        %892 = vmatpush1.msra.mxu0 0.0
        %893 = vmatprep.subr.mxu0 0.0
        %894 = vmatpush1.msra.mxu0 0.0
        %895 = vmatprep.subr.mxu0 0.0
        %896 = vmatpush1.msra.mxu0 0.0
        %897 = vmatprep.subr.mxu0 0.0
        %898 = vmatpush1.msra.mxu0 0.0
        %899 = vmatprep.subr.mxu0 0.0
        %900 = vmatpush1.msra.mxu0 0.0
        %901 = vmatprep.subr.mxu0 0.0
        %902 = vmatpush1.msra.mxu0 0.0
        %903 = vmatprep.mubr.f32.mxu0 0.0
        %904 = vmatmul.mubr.f32.gmra.mrb[0].mxu0 %v813
        %v905 = vpop.f32.mrb[0].mxu0
        %v906 = vadd.f32 0.0, %v905
        %v907 = vpop.f32.mrb[0].mxu0
        %908 = vmatprep.mubr.f32.mxu0 0.0
        %909 = vmatmul.mubr.f32.gmra.mrb[0].mxu0 %v816
        %v910 = vpop.f32.mrb[0].mxu0
        %v911 = vadd.f32 0.0, %v910
        %v912 = vpop.f32.mrb[0].mxu0
        %913 = vmatprep.mubr.f32.mxu0 0.0
        %914 = vmatmul.mubr.f32.gmra.mrb[0].mxu0 %v819
        %v915 = vpop.f32.mrb[0].mxu0
        %v916 = vadd.f32 0.0, %v915
        %v917 = vpop.f32.mrb[0].mxu0
        %918 = vmatprep.mubr.f32.mxu0 0.0
        %919 = vmatmul.mubr.f32.gmra.mrb[0].mxu0 %v822
        %v920 = vpop.f32.mrb[0].mxu0
        %v921 = vadd.f32 0.0, %v920
        %v922 = vpop.f32.mrb[0].mxu0
        %923 = vmatprep.mubr.f32.mxu0 0.0
        %924 = vmatmul.mubr.f32.gmra.mrb[0].mxu0 %v825
        %v925 = vpop.f32.mrb[0].mxu0
        %v926 = vadd.f32 0.0, %v925
        %v927 = vpop.f32.mrb[0].mxu0
        %928 = vmatprep.mubr.f32.mxu0 0.0
        %929 = vmatmul.mubr.f32.gmra.mrb[0].mxu0 %v828
        %v930 = vpop.f32.mrb[0].mxu0
        %v931 = vadd.f32 0.0, %v930
        %v932 = vpop.f32.mrb[0].mxu0
        %933 = vmatprep.mubr.f32.mxu0 0.0
        %934 = vmatmul.mubr.f32.gmra.mrb[0].mxu0 %v831
        %v935 = vpop.f32.mrb[0].mxu0
        %v936 = vadd.f32 0.0, %v935
        %v937 = vpop.f32.mrb[0].mxu0
        %938 = vmatprep.mubr.f32.mxu0 0.0
        %939 = vmatmul.mubr.f32.gmra.mrb[0].mxu0 %v834
        %v940 = vpop.f32.mrb[0].mxu0
        %v941 = vadd.f32 0.0, %v940
        %v942 = vpop.f32.mrb[0].mxu0
        %943 = vdwg.mxu0
        %v944 = vmul.f32 %v906, 0.2
        %v945 = vmul.f32 %v911, 0.2
        %v946 = vmul.f32 %v916, 0.2
        %v947 = vmul.f32 %v921, 0.2
        %v948 = vmax.f32 %v906, %v944
        %v949 = vmax.f32 %v911, %v945
        %v950 = vmax.f32 %v916, %v946
        %v951 = vmax.f32 %v921, %v947
        %v952 = vmul.f32 %v926, 0.2
        %v953 = vmul.f32 %v931, 0.2
        %v954 = vmul.f32 %v936, 0.2
        %v955 = vmul.f32 %v941, 0.2
        %v956 = vmax.f32 %v926, %v952
        %v957 = vmax.f32 %v931, %v953
        %v958 = vmax.f32 %v936, %v954
        %v959 = vmax.f32 %v941, %v955
        %v960 = vadd.f32 %v948, %v956
        %v961 = vadd.f32 %v949, %v957
        %v962 = vadd.f32 %v950, %v958
        %v963 = vadd.f32 %v951, %v959
        %968 = vrot.lane.b32.xlu0 %v960, 4
        %v969 = vpop.permute.xlu0 %968
        %970 = vrot.lane.b32.xlu0 %v961, 4
        %v971 = vpop.permute.xlu0 %970
        %972 = vrot.lane.b32.xlu0 %v962, 4
        %v973 = vpop.permute.xlu0 %972
        %974 = vrot.lane.b32.xlu0 %v963, 4
        %v975 = vpop.permute.xlu0 %974
        %vm980 = vcmask 31744
        %v981 = vsel %vm980, 0.0, %v969
        %v982 = vsel %vm980, 0.0, %v971
        %v983 = vsel %vm980, 0.0, %v973
        %v984 = vsel %vm980, 0.0, %v975
        %vm985 = vcmask 556032
        %v986 = vsel %vm985, %v981, 0.0
        %v987 = vsel %vm985, %v982, 0.0
        %v988 = vsel %vm985, %v983, 0.0
        %v989 = vsel %vm985, %v984, 0.0
        %v990 = vld [vmem:[%s553] sm:$0xff]
        %v991 = vld [vmem:[%s553 + $0x8] sm:$0xff]
        %v992 = vld [vmem:[%s553 + $0x10] sm:$0xff]
        %v993 = vld [vmem:[%s553 + $0x18] sm:$0xff]
        %998 = vrot.lane.b32.xlu0 %v986, 127
        %v999 = vpop.permute.xlu0 %998
        %1000 = vrot.lane.b32.xlu0 %v987, 127
        %v1001 = vpop.permute.xlu0 %1000
        %1002 = vrot.lane.b32.xlu0 %v988, 127
        %v1003 = vpop.permute.xlu0 %1002
        %1004 = vrot.lane.b32.xlu0 %v989, 127
        %v1005 = vpop.permute.xlu0 %1004
        %1010 = vrot.lane.b32.xlu0 %v986, 126
        %v1011 = vpop.permute.xlu0 %1010
        %1012 = vrot.lane.b32.xlu0 %v987, 126
        %v1013 = vpop.permute.xlu0 %1012
        %1014 = vrot.lane.b32.xlu0 %v988, 126
        %v1015 = vpop.permute.xlu0 %1014
        %1016 = vrot.lane.b32.xlu0 %v989, 126
        %v1017 = vpop.permute.xlu0 %1016
        %vm1022 = vcmask 793600
        %v1024 = vsel %vm1022, %v990, 0
        %v1027 = vsel %vm1022, %v991, 0
        %v1030 = vsel %vm1022, %v992, 0
        %v1033 = vsel %vm1022, %v993, 0
        %v1035 = vsel %vm836, 1.0, 0
        %1037 = vmatprep.subr.mxu0 0.0
        %1038 = vmatpush1.msra.mxu0 %v986
        %1039 = vmatprep.subr.mxu0 0.0
        %1040 = vmatpush1.msra.mxu0 %v987
        %1041 = vmatprep.subr.mxu0 0.0
        %1042 = vmatpush1.msra.mxu0 %v988
        %1043 = vmatprep.subr.mxu0 0.0
        %1044 = vmatpush1.msra.mxu0 %v989
        %1045 = vmatprep.subr.mxu0 0.0
        %1046 = vmatpush1.msra.mxu0 %v999
        %1047 = vmatprep.subr.mxu0 0.0
        %1048 = vmatpush1.msra.mxu0 %v1001
        %1049 = vmatprep.subr.mxu0 0.0
        %1050 = vmatpush1.msra.mxu0 %v1003
        %1051 = vmatprep.subr.mxu0 0.0
        %1052 = vmatpush1.msra.mxu0 %v1005
        %1053 = vmatprep.subr.mxu0 0.0
        %1054 = vmatpush1.msra.mxu0 %v1011
        %1055 = vmatprep.subr.mxu0 0.0
        %1056 = vmatpush1.msra.mxu0 %v1013
        %1057 = vmatprep.subr.mxu0 0.0
        %1058 = vmatpush1.msra.mxu0 %v1015
        %1059 = vmatprep.subr.mxu0 0.0
        %1060 = vmatpush1.msra.mxu0 %v1017
        %1061 = vmatprep.subr.mxu0 0.0
        %1062 = vmatpush1.msra.mxu0 %v1035
        %1063 = vmatprep.subr.mxu0 0.0
        %1064 = vmatpush1.msra.mxu0 0.0
        %1065 = vmatprep.subr.mxu0 0.0
        %1066 = vmatpush1.msra.mxu0 0.0
        %1067 = vmatprep.subr.mxu0 0.0
        %1068 = vmatpush1.msra.mxu0 0.0
        %1069 = vmatprep.subr.mxu0 0.0
        %1070 = vmatpush1.msra.mxu0 0.0
        %1071 = vmatprep.subr.mxu0 0.0
        %1072 = vmatpush1.msra.mxu0 0.0
        %1073 = vmatprep.subr.mxu0 0.0
        %1074 = vmatpush1.msra.mxu0 0.0
        %1075 = vmatprep.subr.mxu0 0.0
        %1076 = vmatpush1.msra.mxu0 0.0
        %1077 = vmatprep.subr.mxu0 0.0
        %1078 = vmatpush1.msra.mxu0 0.0
        %1079 = vmatprep.subr.mxu0 0.0
        %1080 = vmatpush1.msra.mxu0 0.0
        %1081 = vmatprep.subr.mxu0 0.0
        %1082 = vmatpush1.msra.mxu0 0.0
        %1083 = vmatprep.subr.mxu0 0.0
        %1084 = vmatpush1.msra.mxu0 0.0
        %1085 = vmatprep.subr.mxu0 0.0
        %1086 = vmatpush1.msra.mxu0 0.0
        %1087 = vmatprep.subr.mxu0 0.0
        %1088 = vmatpush1.msra.mxu0 0.0
        %1089 = vmatprep.subr.mxu0 0.0
        %1090 = vmatpush1.msra.mxu0 0.0
        %1091 = vmatprep.subr.mxu0 0.0
        %1092 = vmatpush1.msra.mxu0 0.0
        %1093 = vmatprep.subr.mxu0 0.0
        %1094 = vmatpush1.msra.mxu0 0.0
        %1095 = vmatprep.subr.mxu0 0.0
        %1096 = vmatpush1.msra.mxu0 0.0
        %1097 = vmatprep.subr.mxu0 0.0
        %1098 = vmatpush1.msra.mxu0 0.0
        %1099 = vmatprep.subr.mxu0 0.0
        %1100 = vmatpush1.msra.mxu0 0.0
        %1101 = vmatprep.mubr.f32.mxu0 0.0
        %1102 = vmatmul.mubr.f32.gmra.mrb[0].mxu0 %v1024
        %v1103 = vpop.f32.mrb[0].mxu0
        %v1104 = vadd.f32 0.0, %v1103
        %v1105 = vpop.f32.mrb[0].mxu0
        %1106 = vmatprep.mubr.f32.mxu0 0.0
        %1107 = vmatmul.mubr.f32.gmra.mrb[0].mxu0 %v1027
        %v1108 = vpop.f32.mrb[0].mxu0
        %v1109 = vadd.f32 0.0, %v1108
        %v1110 = vpop.f32.mrb[0].mxu0
        %1111 = vmatprep.mubr.f32.mxu0 0.0
        %1112 = vmatmul.mubr.f32.gmra.mrb[0].mxu0 %v1030
        %v1113 = vpop.f32.mrb[0].mxu0
        %v1114 = vadd.f32 0.0, %v1113
        %v1115 = vpop.f32.mrb[0].mxu0
        %1116 = vmatprep.mubr.f32.mxu0 0.0
        %1117 = vmatmul.mubr.f32.gmra.mrb[0].mxu0 %v1033
        %v1118 = vpop.f32.mrb[0].mxu0
        %v1119 = vadd.f32 0.0, %v1118
        %v1120 = vpop.f32.mrb[0].mxu0
        %1121 = vdwg.mxu0
        %v1122 = vmul.f32 %v1104, 0.2
        %v1123 = vmul.f32 %v1109, 0.2
        %v1124 = vmul.f32 %v1114, 0.2
        %v1125 = vmul.f32 %v1119, 0.2
        %v1126 = vmax.f32 %v1104, %v1122
        %v1127 = vmax.f32 %v1109, %v1123
        %v1128 = vmax.f32 %v1114, %v1124
        %v1129 = vmax.f32 %v1119, %v1125
        %vm1130 = vcmask 572416
        %1131 = vst.msk [vmem:[%s684] sm:$0xff] %vm1130, %v1126
        %1132 = vst.msk [vmem:[%s684 + $0x8] sm:$0xff] %vm1130, %v1127
        %1133 = vst.msk [vmem:[%s684 + $0x10] sm:$0xff] %vm1130, %v1128
        %1134 = vst.msk [vmem:[%s684 + $0x18] sm:$0xff] %vm1130, %v1129
        %1139 = vrot.lane.b32.xlu0 %v1126, 4
        %v1140 = vpop.permute.xlu0 %1139
        %1141 = vrot.lane.b32.xlu0 %v1127, 4
        %v1142 = vpop.permute.xlu0 %1141
        %1143 = vrot.lane.b32.xlu0 %v1128, 4
        %v1144 = vpop.permute.xlu0 %1143
        %1145 = vrot.lane.b32.xlu0 %v1129, 4
        %v1146 = vpop.permute.xlu0 %1145
        %v1151 = vsel %vm980, 0.0, %v1140
        %v1152 = vsel %vm980, 0.0, %v1142
        %v1153 = vsel %vm980, 0.0, %v1144
        %v1154 = vsel %vm980, 0.0, %v1146
        %vm1155 = vcmask 605184
        %v1156 = vsel %vm1155, %v1151, 0.0
        %v1157 = vsel %vm1155, %v1152, 0.0
        %v1158 = vsel %vm1155, %v1153, 0.0
        %v1159 = vsel %vm1155, %v1154, 0.0
        %1164 = vrot.lane.b32.xlu0 %v1156, 127
        %v1165 = vpop.permute.xlu0 %1164
        %1166 = vrot.lane.b32.xlu0 %v1157, 127
        %v1167 = vpop.permute.xlu0 %1166
        %1168 = vrot.lane.b32.xlu0 %v1158, 127
        %v1169 = vpop.permute.xlu0 %1168
        %1170 = vrot.lane.b32.xlu0 %v1159, 127
        %v1171 = vpop.permute.xlu0 %1170
        %1172 = vrot.lane.b32.xlu0 %v1156, 126
        %v1173 = vpop.permute.xlu0 %1172
        %1174 = vrot.lane.b32.xlu0 %v1157, 126
        %v1175 = vpop.permute.xlu0 %1174
        %1176 = vrot.lane.b32.xlu0 %v1158, 126
        %v1177 = vpop.permute.xlu0 %1176
        %1178 = vrot.lane.b32.xlu0 %v1159, 126
        %v1179 = vpop.permute.xlu0 %1178
        %1180 = vrot.lane.b32.xlu0 %v1156, 3
        %v1181 = vpop.permute.xlu0 %1180
        %1182 = vrot.lane.b32.xlu0 %v1157, 3
        %v1183 = vpop.permute.xlu0 %1182
        %1184 = vrot.lane.b32.xlu0 %v1158, 3
        %v1185 = vpop.permute.xlu0 %1184
        %1186 = vrot.lane.b32.xlu0 %v1159, 3
        %v1187 = vpop.permute.xlu0 %1186
        %1188 = vrot.lane.b32.xlu0 %v1156, 1
        %v1189 = vpop.permute.xlu0 %1188
        %1190 = vrot.lane.b32.xlu0 %v1157, 1
        %v1191 = vpop.permute.xlu0 %1190
        %1192 = vrot.lane.b32.xlu0 %v1158, 1
        %v1193 = vpop.permute.xlu0 %1192
        %1194 = vrot.lane.b32.xlu0 %v1159, 1
        %v1195 = vpop.permute.xlu0 %1194
        %1196 = vrot.lane.b32.xlu0 %v1156, 125
        %v1197 = vpop.permute.xlu0 %1196
        %1198 = vrot.lane.b32.xlu0 %v1157, 125
        %v1199 = vpop.permute.xlu0 %1198
        %1200 = vrot.lane.b32.xlu0 %v1158, 125
        %v1201 = vpop.permute.xlu0 %1200
        %1202 = vrot.lane.b32.xlu0 %v1159, 125
        %v1203 = vpop.permute.xlu0 %1202
        %1204 = vrot.lane.b32.xlu0 %v1156, 123
        %v1205 = vpop.permute.xlu0 %1204
        %1206 = vrot.lane.b32.xlu0 %v1157, 123
        %v1207 = vpop.permute.xlu0 %1206
        %1208 = vrot.lane.b32.xlu0 %v1158, 123
        %v1209 = vpop.permute.xlu0 %1208
        %1210 = vrot.lane.b32.xlu0 %v1159, 123
        %v1211 = vpop.permute.xlu0 %1210
        %v1212 = vld [vmem:[%s562] sm:$0xff]
        %v1213 = vld [vmem:[%s562 + $0x8] sm:$0xff]
        %v1214 = vld [vmem:[%s562 + $0x10] sm:$0xff]
        %v1215 = vld [vmem:[%s562 + $0x18] sm:$0xff]
        %v1216 = vld [vmem:[%s562 + $0x20] sm:$0xff]
        %v1217 = vld [vmem:[%s562 + $0x28] sm:$0xff]
        %v1218 = vld [vmem:[%s562 + $0x30] sm:$0xff]
        %v1219 = vld [vmem:[%s562 + $0x38] sm:$0xff]
        %v1220 = vld [vmem:[%s562 + $0x40] sm:$0xff]
        %v1221 = vld [vmem:[%s562 + $0x48] sm:$0xff]
        %v1222 = vld [vmem:[%s562 + $0x50] sm:$0xff]
        %v1223 = vld [vmem:[%s562 + $0x58] sm:$0xff]
        %v1224 = vld [vmem:[%s562 + $0x60] sm:$0xff]
        %v1225 = vld [vmem:[%s562 + $0x68] sm:$0xff]
        %v1226 = vld [vmem:[%s562 + $0x70] sm:$0xff]
        %v1227 = vld [vmem:[%s562 + $0x78] sm:$0xff]
        %v1228 = vld [vmem:[%s562 + $0x80] sm:$0xff]
        %v1229 = vld [vmem:[%s562 + $0x88] sm:$0xff]
        %v1230 = vld [vmem:[%s562 + $0x90] sm:$0xff]
        %v1231 = vld [vmem:[%s562 + $0x98] sm:$0xff]
        %v1232 = vld [vmem:[%s562 + $0xa0] sm:$0xff]
        %v1233 = vld [vmem:[%s562 + $0xa8] sm:$0xff]
        %v1234 = vld [vmem:[%s562 + $0xb0] sm:$0xff]
        %v1235 = vld [vmem:[%s562 + $0xb8] sm:$0xff]
        %v1236 = vld [vmem:[%s562 + $0xc0] sm:$0xff]
        %v1237 = vld [vmem:[%s562 + $0xc8] sm:$0xff]
        %v1238 = vld [vmem:[%s562 + $0xd0] sm:$0xff]
        %v1239 = vld [vmem:[%s562 + $0xd8] sm:$0xff]
        %v1240 = vld [vmem:[%s562 + $0xe0] sm:$0xff]
        %v1241 = vld [vmem:[%s562 + $0xe8] sm:$0xff]
        %v1242 = vld [vmem:[%s562 + $0xf0] sm:$0xff]
        %v1243 = vld [vmem:[%s562 + $0xf8] sm:$0xff]
        %v1244 = vld [vmem:[%s562 + $0x100] sm:$0xff]
        %v1245 = vld [vmem:[%s562 + $0x108] sm:$0xff]
        %v1246 = vld [vmem:[%s562 + $0x110] sm:$0xff]
        %v1247 = vld [vmem:[%s562 + $0x118] sm:$0xff]
        %v1248 = vld [vmem:[%s562 + $0x120] sm:$0xff]
        %v1249 = vld [vmem:[%s562 + $0x128] sm:$0xff]
        %v1250 = vld [vmem:[%s562 + $0x130] sm:$0xff]
        %v1251 = vld [vmem:[%s562 + $0x138] sm:$0xff]
        %v1252 = vld [vmem:[%s562 + $0x140] sm:$0xff]
        %v1253 = vld [vmem:[%s562 + $0x148] sm:$0xff]
        %v1254 = vld [vmem:[%s562 + $0x150] sm:$0xff]
        %v1255 = vld [vmem:[%s562 + $0x158] sm:$0xff]
        %v1256 = vld [vmem:[%s562 + $0x160] sm:$0xff]
        %v1257 = vld [vmem:[%s562 + $0x168] sm:$0xff]
        %v1258 = vld [vmem:[%s562 + $0x170] sm:$0xff]
        %v1259 = vld [vmem:[%s562 + $0x178] sm:$0xff]
        %1260 = vrot.lane.b32.xlu0 %v1165, 125
        %v1261 = vpop.permute.xlu0 %1260
        %1262 = vrot.lane.b32.xlu0 %v1167, 125
        %v1263 = vpop.permute.xlu0 %1262
        %1264 = vrot.lane.b32.xlu0 %v1169, 125
        %v1265 = vpop.permute.xlu0 %1264
        %1266 = vrot.lane.b32.xlu0 %v1171, 125
        %v1267 = vpop.permute.xlu0 %1266
        %1268 = vrot.lane.b32.xlu0 %v1173, 125
        %v1269 = vpop.permute.xlu0 %1268
        %1270 = vrot.lane.b32.xlu0 %v1175, 125
        %v1271 = vpop.permute.xlu0 %1270
        %1272 = vrot.lane.b32.xlu0 %v1177, 125
        %v1273 = vpop.permute.xlu0 %1272
        %1274 = vrot.lane.b32.xlu0 %v1179, 125
        %v1275 = vpop.permute.xlu0 %1274
        %1276 = vrot.lane.b32.xlu0 %v1181, 125
        %v1277 = vpop.permute.xlu0 %1276
        %1278 = vrot.lane.b32.xlu0 %v1183, 125
        %v1279 = vpop.permute.xlu0 %1278
        %1280 = vrot.lane.b32.xlu0 %v1185, 125
        %v1281 = vpop.permute.xlu0 %1280
        %1282 = vrot.lane.b32.xlu0 %v1187, 125
        %v1283 = vpop.permute.xlu0 %1282
        %1284 = vrot.lane.b32.xlu0 %v1189, 125
        %v1285 = vpop.permute.xlu0 %1284
        %1286 = vrot.lane.b32.xlu0 %v1191, 125
        %v1287 = vpop.permute.xlu0 %1286
        %1288 = vrot.lane.b32.xlu0 %v1193, 125
        %v1289 = vpop.permute.xlu0 %1288
        %1290 = vrot.lane.b32.xlu0 %v1195, 125
        %v1291 = vpop.permute.xlu0 %1290
        %1292 = vrot.lane.b32.xlu0 %v1197, 125
        %v1293 = vpop.permute.xlu0 %1292
        %1294 = vrot.lane.b32.xlu0 %v1199, 125
        %v1295 = vpop.permute.xlu0 %1294
        %1296 = vrot.lane.b32.xlu0 %v1201, 125
        %v1297 = vpop.permute.xlu0 %1296
        %1298 = vrot.lane.b32.xlu0 %v1203, 125
        %v1299 = vpop.permute.xlu0 %1298
        %1300 = vrot.lane.b32.xlu0 %v1205, 125
        %v1301 = vpop.permute.xlu0 %1300
        %1302 = vrot.lane.b32.xlu0 %v1207, 125
        %v1303 = vpop.permute.xlu0 %1302
        %1304 = vrot.lane.b32.xlu0 %v1209, 125
        %v1305 = vpop.permute.xlu0 %1304
        %1306 = vrot.lane.b32.xlu0 %v1211, 125
        %v1307 = vpop.permute.xlu0 %1306
        %vm1336 = vcmask 7168
        %v1338 = vsel %vm1336, %v1214, 0
        %v1341 = vsel %vm1336, %v1217, 0
        %v1344 = vsel %vm1336, %v1220, 0
        %v1347 = vsel %vm1336, %v1223, 0
        %v1350 = vsel %vm1336, %v1226, 0
        %v1353 = vsel %vm1336, %v1229, 0
        %v1356 = vsel %vm1336, %v1232, 0
        %v1359 = vsel %vm1336, %v1235, 0
        %v1362 = vsel %vm1336, %v1238, 0
        %v1365 = vsel %vm1336, %v1241, 0
        %v1368 = vsel %vm1336, %v1244, 0
        %v1371 = vsel %vm1336, %v1247, 0
        %v1374 = vsel %vm1336, %v1250, 0
        %v1377 = vsel %vm1336, %v1253, 0
        %v1380 = vsel %vm1336, %v1256, 0
        %v1383 = vsel %vm1336, %v1259, 0
        %1385 = vmatprep.subr.mxu0 0.0
        %1386 = vmatpush1.msra.mxu0 %v1197
        %1387 = vmatprep.subr.mxu0 0.0
        %1388 = vmatpush1.msra.mxu0 %v1199
        %1389 = vmatprep.subr.mxu0 0.0
        %1390 = vmatpush1.msra.mxu0 %v1201
        %1391 = vmatprep.subr.mxu0 0.0
        %1392 = vmatpush1.msra.mxu0 %v1203
        %1393 = vmatprep.subr.mxu0 0.0
        %1394 = vmatpush1.msra.mxu0 %v1261
        %1395 = vmatprep.subr.mxu0 0.0
        %1396 = vmatpush1.msra.mxu0 %v1263
        %1397 = vmatprep.subr.mxu0 0.0
        %1398 = vmatpush1.msra.mxu0 %v1265
        %1399 = vmatprep.subr.mxu0 0.0
        %1400 = vmatpush1.msra.mxu0 %v1267
        %1401 = vmatprep.subr.mxu0 0.0
        %1402 = vmatpush1.msra.mxu0 %v1269
        %1403 = vmatprep.subr.mxu0 0.0
        %1404 = vmatpush1.msra.mxu0 %v1271
        %1405 = vmatprep.subr.mxu0 0.0
        %1406 = vmatpush1.msra.mxu0 %v1273
        %1407 = vmatprep.subr.mxu0 0.0
        %1408 = vmatpush1.msra.mxu0 %v1275
        %1409 = vmatprep.subr.mxu0 0.0
        %1410 = vmatpush1.msra.mxu0 %v1277
        %1411 = vmatprep.subr.mxu0 0.0
        %1412 = vmatpush1.msra.mxu0 %v1279
        %1413 = vmatprep.subr.mxu0 0.0
        %1414 = vmatpush1.msra.mxu0 %v1281
        %1415 = vmatprep.subr.mxu0 0.0
        %1416 = vmatpush1.msra.mxu0 %v1283
        %1417 = vmatprep.subr.mxu0 0.0
        %1418 = vmatpush1.msra.mxu0 %v1285
        %1419 = vmatprep.subr.mxu0 0.0
        %1420 = vmatpush1.msra.mxu0 %v1287
        %1421 = vmatprep.subr.mxu0 0.0
        %1422 = vmatpush1.msra.mxu0 %v1289
        %1423 = vmatprep.subr.mxu0 0.0
        %1424 = vmatpush1.msra.mxu0 %v1291
        %1425 = vmatprep.subr.mxu0 0.0
        %1426 = vmatpush1.msra.mxu0 %v1261
        %1427 = vmatprep.subr.mxu0 0.0
        %1428 = vmatpush1.msra.mxu0 %v1263
        %1429 = vmatprep.subr.mxu0 0.0
        %1430 = vmatpush1.msra.mxu0 %v1265
        %1431 = vmatprep.subr.mxu0 0.0
        %1432 = vmatpush1.msra.mxu0 %v1267
        %1433 = vmatprep.subr.mxu0 0.0
        %1434 = vmatpush1.msra.mxu0 %v1293
        %1435 = vmatprep.subr.mxu0 0.0
        %1436 = vmatpush1.msra.mxu0 %v1295
        %1437 = vmatprep.subr.mxu0 0.0
        %1438 = vmatpush1.msra.mxu0 %v1297
        %1439 = vmatprep.subr.mxu0 0.0
        %1440 = vmatpush1.msra.mxu0 %v1299
        %1441 = vmatprep.subr.mxu0 0.0
        %1442 = vmatpush1.msra.mxu0 %v1301
        %1443 = vmatprep.subr.mxu0 0.0
        %1444 = vmatpush1.msra.mxu0 %v1303
        %1445 = vmatprep.subr.mxu0 0.0
        %1446 = vmatpush1.msra.mxu0 %v1305
        %1447 = vmatprep.subr.mxu0 0.0
        %1448 = vmatpush1.msra.mxu0 %v1307
        %1449 = vmatprep.mubr.f32.mxu0 %v1213
        %1450 = vmatmul.mubr.f32.gmra.mrb[0].mxu0 %v1212
        %v1451 = vpop.f32.mrb[0].mxu0
        %v1452 = vadd.f32 0.0, %v1451
        %v1453 = vpop.f32.mrb[0].mxu0
        %1454 = vmatprep.mubr.f32.mxu0 %v1216
        %1455 = vmatmul.mubr.f32.gmra.mrb[0].mxu0 %v1215
        %v1456 = vpop.f32.mrb[0].mxu0
        %v1457 = vadd.f32 0.0, %v1456
        %v1458 = vpop.f32.mrb[0].mxu0
        %1459 = vmatprep.mubr.f32.mxu0 %v1219
        %1460 = vmatmul.mubr.f32.gmra.mrb[0].mxu0 %v1218
        %v1461 = vpop.f32.mrb[0].mxu0
        %v1462 = vadd.f32 0.0, %v1461
        %v1463 = vpop.f32.mrb[0].mxu0
        %1464 = vmatprep.mubr.f32.mxu0 %v1222
        %1465 = vmatmul.mubr.f32.gmra.mrb[0].mxu0 %v1221
        %v1466 = vpop.f32.mrb[0].mxu0
        %v1467 = vadd.f32 0.0, %v1466
        %v1468 = vpop.f32.mrb[0].mxu0
        %1469 = vmatprep.mubr.f32.mxu0 %v1225
        %1470 = vmatmul.mubr.f32.gmra.mrb[0].mxu0 %v1224
        %v1471 = vpop.f32.mrb[0].mxu0
        %v1472 = vadd.f32 0.0, %v1471
        %v1473 = vpop.f32.mrb[0].mxu0
        %1474 = vmatprep.mubr.f32.mxu0 %v1228
        %1475 = vmatmul.mubr.f32.gmra.mrb[0].mxu0 %v1227
        %v1476 = vpop.f32.mrb[0].mxu0
        %v1477 = vadd.f32 0.0, %v1476
        %v1478 = vpop.f32.mrb[0].mxu0
        %1479 = vmatprep.mubr.f32.mxu0 %v1231
        %1480 = vmatmul.mubr.f32.gmra.mrb[0].mxu0 %v1230
        %v1481 = vpop.f32.mrb[0].mxu0
        %v1482 = vadd.f32 0.0, %v1481
        %v1483 = vpop.f32.mrb[0].mxu0
        %1484 = vmatprep.mubr.f32.mxu0 %v1234
        %1485 = vmatmul.mubr.f32.gmra.mrb[0].mxu0 %v1233
        %v1486 = vpop.f32.mrb[0].mxu0
        %v1487 = vadd.f32 0.0, %v1486
        %v1488 = vpop.f32.mrb[0].mxu0
        %1489 = vmatprep.mubr.f32.mxu0 %v1237
        %1490 = vmatmul.mubr.f32.gmra.mrb[0].mxu0 %v1236
        %v1491 = vpop.f32.mrb[0].mxu0
        %v1492 = vadd.f32 0.0, %v1491
        %v1493 = vpop.f32.mrb[0].mxu0
        %1494 = vmatprep.mubr.f32.mxu0 %v1240
        %1495 = vmatmul.mubr.f32.gmra.mrb[0].mxu0 %v1239
        %v1496 = vpop.f32.mrb[0].mxu0
        %v1497 = vadd.f32 0.0, %v1496
        %v1498 = vpop.f32.mrb[0].mxu0
        %1499 = vmatprep.mubr.f32.mxu0 %v1243
        %1500 = vmatmul.mubr.f32.gmra.mrb[0].mxu0 %v1242
        %v1501 = vpop.f32.mrb[0].mxu0
        %v1502 = vadd.f32 0.0, %v1501
        %v1503 = vpop.f32.mrb[0].mxu0
        %1504 = vmatprep.mubr.f32.mxu0 %v1246
        %1505 = vmatmul.mubr.f32.gmra.mrb[0].mxu0 %v1245
        %v1506 = vpop.f32.mrb[0].mxu0
        %v1507 = vadd.f32 0.0, %v1506
        %v1508 = vpop.f32.mrb[0].mxu0
        %1509 = vmatprep.mubr.f32.mxu0 %v1249
        %1510 = vmatmul.mubr.f32.gmra.mrb[0].mxu0 %v1248
        %v1511 = vpop.f32.mrb[0].mxu0
        %v1512 = vadd.f32 0.0, %v1511
        %v1513 = vpop.f32.mrb[0].mxu0
        %1514 = vmatprep.mubr.f32.mxu0 %v1252
        %1515 = vmatmul.mubr.f32.gmra.mrb[0].mxu0 %v1251
        %v1516 = vpop.f32.mrb[0].mxu0
        %v1517 = vadd.f32 0.0, %v1516
        %v1518 = vpop.f32.mrb[0].mxu0
        %1519 = vmatprep.mubr.f32.mxu0 %v1255
        %1520 = vmatmul.mubr.f32.gmra.mrb[0].mxu0 %v1254
        %v1521 = vpop.f32.mrb[0].mxu0
        %v1522 = vadd.f32 0.0, %v1521
        %v1523 = vpop.f32.mrb[0].mxu0
        %1524 = vmatprep.mubr.f32.mxu0 %v1258
        %1525 = vmatmul.mubr.f32.gmra.mrb[0].mxu0 %v1257
        %v1526 = vpop.f32.mrb[0].mxu0
        %v1527 = vadd.f32 0.0, %v1526
        %v1528 = vpop.f32.mrb[0].mxu0
        %1529 = vdwg.mxu0
        %1530 = vmatprep.subr.mxu0 0.0
        %1531 = vmatpush1.msra.mxu0 %v837
        %1532 = vmatprep.subr.mxu0 0.0
        %1533 = vmatpush1.msra.mxu0 0.0
        %1534 = vmatprep.subr.mxu0 0.0
        %1535 = vmatpush1.msra.mxu0 0.0
        %1536 = vmatprep.subr.mxu0 0.0
        %1537 = vmatpush1.msra.mxu0 0.0
        %1538 = vmatprep.subr.mxu0 0.0
        %1539 = vmatpush1.msra.mxu0 0.0
        %1540 = vmatprep.subr.mxu0 0.0
        %1541 = vmatpush1.msra.mxu0 0.0
        %1542 = vmatprep.subr.mxu0 0.0
        %1543 = vmatpush1.msra.mxu0 0.0
        %1544 = vmatprep.subr.mxu0 0.0
        %1545 = vmatpush1.msra.mxu0 0.0
        %1546 = vmatprep.subr.mxu0 0.0
        %1547 = vmatpush1.msra.mxu0 0.0
        %1548 = vmatprep.subr.mxu0 0.0
        %1549 = vmatpush1.msra.mxu0 0.0
        %1550 = vmatprep.subr.mxu0 0.0
        %1551 = vmatpush1.msra.mxu0 0.0
        %1552 = vmatprep.subr.mxu0 0.0
        %1553 = vmatpush1.msra.mxu0 0.0
        %1554 = vmatprep.subr.mxu0 0.0
        %1555 = vmatpush1.msra.mxu0 0.0
        %1556 = vmatprep.subr.mxu0 0.0
        %1557 = vmatpush1.msra.mxu0 0.0
        %1558 = vmatprep.subr.mxu0 0.0
        %1559 = vmatpush1.msra.mxu0 0.0
        %1560 = vmatprep.subr.mxu0 0.0
        %1561 = vmatpush1.msra.mxu0 0.0
        %1562 = vmatprep.subr.mxu0 0.0
        %1563 = vmatpush1.msra.mxu0 0.0
        %1564 = vmatprep.subr.mxu0 0.0
        %1565 = vmatpush1.msra.mxu0 0.0
        %1566 = vmatprep.subr.mxu0 0.0
        %1567 = vmatpush1.msra.mxu0 0.0
        %1568 = vmatprep.subr.mxu0 0.0
        %1569 = vmatpush1.msra.mxu0 0.0
        %1570 = vmatprep.subr.mxu0 0.0
        %1571 = vmatpush1.msra.mxu0 0.0
        %1572 = vmatprep.subr.mxu0 0.0
        %1573 = vmatpush1.msra.mxu0 0.0
        %1574 = vmatprep.subr.mxu0 0.0
        %1575 = vmatpush1.msra.mxu0 0.0
        %1576 = vmatprep.subr.mxu0 0.0
        %1577 = vmatpush1.msra.mxu0 0.0
        %1578 = vmatprep.subr.mxu0 0.0
        %1579 = vmatpush1.msra.mxu0 0.0
        %1580 = vmatprep.subr.mxu0 0.0
        %1581 = vmatpush1.msra.mxu0 0.0
        %1582 = vmatprep.subr.mxu0 0.0
        %1583 = vmatpush1.msra.mxu0 0.0
        %1584 = vmatprep.subr.mxu0 0.0
        %1585 = vmatpush1.msra.mxu0 0.0
        %1586 = vmatprep.subr.mxu0 0.0
        %1587 = vmatpush1.msra.mxu0 0.0
        %1588 = vmatprep.subr.mxu0 0.0
        %1589 = vmatpush1.msra.mxu0 0.0
        %1590 = vmatprep.subr.mxu0 0.0
        %1591 = vmatpush1.msra.mxu0 0.0
        %1592 = vmatprep.subr.mxu0 0.0
        %1593 = vmatpush1.msra.mxu0 0.0
        %1594 = vmatprep.mubr.f32.mxu0 0.0
        %1595 = vmatmul.mubr.f32.gmra.mrb[0].mxu0 %v1338
        %v1596 = vpop.f32.mrb[0].mxu0
        %v1597 = vadd.f32 %v1452, %v1596
        %v1598 = vpop.f32.mrb[0].mxu0
        %1599 = vmatprep.mubr.f32.mxu0 0.0
        %1600 = vmatmul.mubr.f32.gmra.mrb[0].mxu0 %v1341
        %v1601 = vpop.f32.mrb[0].mxu0
        %v1602 = vadd.f32 %v1457, %v1601
        %v1603 = vpop.f32.mrb[0].mxu0
        %1604 = vmatprep.mubr.f32.mxu0 0.0
        %1605 = vmatmul.mubr.f32.gmra.mrb[0].mxu0 %v1344
        %v1606 = vpop.f32.mrb[0].mxu0
        %v1607 = vadd.f32 %v1462, %v1606
        %v1608 = vpop.f32.mrb[0].mxu0
        %1609 = vmatprep.mubr.f32.mxu0 0.0
        %1610 = vmatmul.mubr.f32.gmra.mrb[0].mxu0 %v1347
        %v1611 = vpop.f32.mrb[0].mxu0
        %v1612 = vadd.f32 %v1467, %v1611
        %v1613 = vpop.f32.mrb[0].mxu0
        %1614 = vmatprep.mubr.f32.mxu0 0.0
        %1615 = vmatmul.mubr.f32.gmra.mrb[0].mxu0 %v1350
        %v1616 = vpop.f32.mrb[0].mxu0
        %v1617 = vadd.f32 %v1472, %v1616
        %v1618 = vpop.f32.mrb[0].mxu0
        %1619 = vmatprep.mubr.f32.mxu0 0.0
        %1620 = vmatmul.mubr.f32.gmra.mrb[0].mxu0 %v1353
        %v1621 = vpop.f32.mrb[0].mxu0
        %v1622 = vadd.f32 %v1477, %v1621
        %v1623 = vpop.f32.mrb[0].mxu0
        %1624 = vmatprep.mubr.f32.mxu0 0.0
        %1625 = vmatmul.mubr.f32.gmra.mrb[0].mxu0 %v1356
        %v1626 = vpop.f32.mrb[0].mxu0
        %v1627 = vadd.f32 %v1482, %v1626
        %v1628 = vpop.f32.mrb[0].mxu0
        %1629 = vmatprep.mubr.f32.mxu0 0.0
        %1630 = vmatmul.mubr.f32.gmra.mrb[0].mxu0 %v1359
        %v1631 = vpop.f32.mrb[0].mxu0
        %v1632 = vadd.f32 %v1487, %v1631
        %v1633 = vpop.f32.mrb[0].mxu0
        %1634 = vmatprep.mubr.f32.mxu0 0.0
        %1635 = vmatmul.mubr.f32.gmra.mrb[0].mxu0 %v1362
        %v1636 = vpop.f32.mrb[0].mxu0
        %v1637 = vadd.f32 %v1492, %v1636
        %v1638 = vpop.f32.mrb[0].mxu0
        %1639 = vmatprep.mubr.f32.mxu0 0.0
        %1640 = vmatmul.mubr.f32.gmra.mrb[0].mxu0 %v1365
        %v1641 = vpop.f32.mrb[0].mxu0
        %v1642 = vadd.f32 %v1497, %v1641
        %v1643 = vpop.f32.mrb[0].mxu0
        %1644 = vmatprep.mubr.f32.mxu0 0.0
        %1645 = vmatmul.mubr.f32.gmra.mrb[0].mxu0 %v1368
        %v1646 = vpop.f32.mrb[0].mxu0
        %v1647 = vadd.f32 %v1502, %v1646
        %v1648 = vpop.f32.mrb[0].mxu0
        %1649 = vmatprep.mubr.f32.mxu0 0.0
        %1650 = vmatmul.mubr.f32.gmra.mrb[0].mxu0 %v1371
        %v1651 = vpop.f32.mrb[0].mxu0
        %v1652 = vadd.f32 %v1507, %v1651
        %v1653 = vpop.f32.mrb[0].mxu0
        %1654 = vmatprep.mubr.f32.mxu0 0.0
        %1655 = vmatmul.mubr.f32.gmra.mrb[0].mxu0 %v1374
        %v1656 = vpop.f32.mrb[0].mxu0
        %v1657 = vadd.f32 %v1512, %v1656
        %v1658 = vpop.f32.mrb[0].mxu0
        %1659 = vmatprep.mubr.f32.mxu0 0.0
        %1660 = vmatmul.mubr.f32.gmra.mrb[0].mxu0 %v1377
        %v1661 = vpop.f32.mrb[0].mxu0
        %v1662 = vadd.f32 %v1517, %v1661
        %v1663 = vpop.f32.mrb[0].mxu0
        %1664 = vmatprep.mubr.f32.mxu0 0.0
        %1665 = vmatmul.mubr.f32.gmra.mrb[0].mxu0 %v1380
        %v1666 = vpop.f32.mrb[0].mxu0
        %v1667 = vadd.f32 %v1522, %v1666
        %v1668 = vpop.f32.mrb[0].mxu0
        %1669 = vmatprep.mubr.f32.mxu0 0.0
        %1670 = vmatmul.mubr.f32.gmra.mrb[0].mxu0 %v1383
        %v1671 = vpop.f32.mrb[0].mxu0
        %v1672 = vadd.f32 %v1527, %v1671
        %v1673 = vpop.f32.mrb[0].mxu0
        %1674 = vdwg.mxu0
        %v1675 = vmul.f32 %v1597, 0.2
        %v1676 = vmul.f32 %v1602, 0.2
        %v1677 = vmul.f32 %v1607, 0.2
        %v1678 = vmul.f32 %v1612, 0.2
        %v1679 = vmul.f32 %v1617, 0.2
        %v1680 = vmul.f32 %v1622, 0.2
        %v1681 = vmul.f32 %v1627, 0.2
        %v1682 = vmul.f32 %v1632, 0.2
        %v1683 = vmax.f32 %v1597, %v1675
        %v1684 = vmax.f32 %v1602, %v1676
        %v1685 = vmax.f32 %v1607, %v1677
        %v1686 = vmax.f32 %v1612, %v1678
        %v1687 = vmax.f32 %v1617, %v1679
        %v1688 = vmax.f32 %v1622, %v1680
        %v1689 = vmax.f32 %v1627, %v1681
        %v1690 = vmax.f32 %v1632, %v1682
        %v1691 = vmul.f32 %v1637, 0.2
        %v1692 = vmul.f32 %v1642, 0.2
        %v1693 = vmul.f32 %v1647, 0.2
        %v1694 = vmul.f32 %v1652, 0.2
        %v1695 = vmul.f32 %v1657, 0.2
        %v1696 = vmul.f32 %v1662, 0.2
        %v1697 = vmul.f32 %v1667, 0.2
        %v1698 = vmul.f32 %v1672, 0.2
        %v1699 = vmax.f32 %v1637, %v1691
        %v1700 = vmax.f32 %v1642, %v1692
        %v1701 = vmax.f32 %v1647, %v1693
        %v1702 = vmax.f32 %v1652, %v1694
        %v1703 = vmax.f32 %v1657, %v1695
        %v1704 = vmax.f32 %v1662, %v1696
        %v1705 = vmax.f32 %v1667, %v1697
        %v1706 = vmax.f32 %v1672, %v1698
        %v1707 = vadd.f32 %v1683, %v1699
        %v1708 = vadd.f32 %v1684, %v1700
        %v1709 = vadd.f32 %v1685, %v1701
        %v1710 = vadd.f32 %v1686, %v1702
        %v1711 = vadd.f32 %v1687, %v1703
        %v1712 = vadd.f32 %v1688, %v1704
        %v1713 = vadd.f32 %v1689, %v1705
        %v1714 = vadd.f32 %v1690, %v1706
        %1723 = vrot.lane.b32.xlu0 %v1707, 4
        %v1724 = vpop.permute.xlu0 %1723
        %1725 = vrot.lane.b32.xlu0 %v1708, 4
        %v1726 = vpop.permute.xlu0 %1725
        %1727 = vrot.lane.b32.xlu0 %v1709, 4
        %v1728 = vpop.permute.xlu0 %1727
        %1729 = vrot.lane.b32.xlu0 %v1710, 4
        %v1730 = vpop.permute.xlu0 %1729
        %1731 = vrot.lane.b32.xlu0 %v1711, 4
        %v1732 = vpop.permute.xlu0 %1731
        %1733 = vrot.lane.b32.xlu0 %v1712, 4
        %v1734 = vpop.permute.xlu0 %1733
        %1735 = vrot.lane.b32.xlu0 %v1713, 4
        %v1736 = vpop.permute.xlu0 %1735
        %1737 = vrot.lane.b32.xlu0 %v1714, 4
        %v1738 = vpop.permute.xlu0 %1737
        %v1747 = vsel %vm980, 0.0, %v1724
        %v1748 = vsel %vm980, 0.0, %v1726
        %v1749 = vsel %vm980, 0.0, %v1728
        %v1750 = vsel %vm980, 0.0, %v1730
        %v1751 = vsel %vm980, 0.0, %v1732
        %v1752 = vsel %vm980, 0.0, %v1734
        %v1753 = vsel %vm980, 0.0, %v1736
        %v1754 = vsel %vm980, 0.0, %v1738
        %v1755 = vsel %vm1155, %v1747, 0.0
        %v1756 = vsel %vm1155, %v1748, 0.0
        %v1757 = vsel %vm1155, %v1749, 0.0
        %v1758 = vsel %vm1155, %v1750, 0.0
        %v1759 = vsel %vm1155, %v1751, 0.0
        %v1760 = vsel %vm1155, %v1752, 0.0
        %v1761 = vsel %vm1155, %v1753, 0.0
        %v1762 = vsel %vm1155, %v1754, 0.0
        %v1763 = vld [vmem:[%s669] sm:$0xff]
        %v1764 = vld [vmem:[%s669 + $0x8] sm:$0xff]
        %v1765 = vld [vmem:[%s669 + $0x10] sm:$0xff]
        %v1766 = vld [vmem:[%s669 + $0x18] sm:$0xff]
        %v1767 = vld [vmem:[%s669 + $0x20] sm:$0xff]
        %v1768 = vld [vmem:[%s669 + $0x28] sm:$0xff]
        %v1769 = vld [vmem:[%s669 + $0x30] sm:$0xff]
        %v1770 = vld [vmem:[%s669 + $0x38] sm:$0xff]
        %v1771 = vld [vmem:[%s669 + $0x40] sm:$0xff]
        %v1772 = vld [vmem:[%s669 + $0x48] sm:$0xff]
        %v1773 = vld [vmem:[%s669 + $0x50] sm:$0xff]
        %v1774 = vld [vmem:[%s669 + $0x58] sm:$0xff]
        %v1775 = vld [vmem:[%s669 + $0x60] sm:$0xff]
        %v1776 = vld [vmem:[%s669 + $0x68] sm:$0xff]
        %v1777 = vld [vmem:[%s669 + $0x70] sm:$0xff]
        %v1778 = vld [vmem:[%s669 + $0x78] sm:$0xff]
        %1787 = vrot.lane.b32.xlu0 %v1755, 127
        %v1788 = vpop.permute.xlu0 %1787
        %1789 = vrot.lane.b32.xlu0 %v1756, 127
        %v1790 = vpop.permute.xlu0 %1789
        %1791 = vrot.lane.b32.xlu0 %v1757, 127
        %v1792 = vpop.permute.xlu0 %1791
        %1793 = vrot.lane.b32.xlu0 %v1758, 127
        %v1794 = vpop.permute.xlu0 %1793
        %1795 = vrot.lane.b32.xlu0 %v1759, 127
        %v1796 = vpop.permute.xlu0 %1795
        %1797 = vrot.lane.b32.xlu0 %v1760, 127
        %v1798 = vpop.permute.xlu0 %1797
        %1799 = vrot.lane.b32.xlu0 %v1761, 127
        %v1800 = vpop.permute.xlu0 %1799
        %1801 = vrot.lane.b32.xlu0 %v1762, 127
        %v1802 = vpop.permute.xlu0 %1801
        %1811 = vrot.lane.b32.xlu0 %v1755, 126
        %v1812 = vpop.permute.xlu0 %1811
        %1813 = vrot.lane.b32.xlu0 %v1756, 126
        %v1814 = vpop.permute.xlu0 %1813
        %1815 = vrot.lane.b32.xlu0 %v1757, 126
        %v1816 = vpop.permute.xlu0 %1815
        %1817 = vrot.lane.b32.xlu0 %v1758, 126
        %v1818 = vpop.permute.xlu0 %1817
        %1819 = vrot.lane.b32.xlu0 %v1759, 126
        %v1820 = vpop.permute.xlu0 %1819
        %1821 = vrot.lane.b32.xlu0 %v1760, 126
        %v1822 = vpop.permute.xlu0 %1821
        %1823 = vrot.lane.b32.xlu0 %v1761, 126
        %v1824 = vpop.permute.xlu0 %1823
        %1825 = vrot.lane.b32.xlu0 %v1762, 126
        %v1826 = vpop.permute.xlu0 %1825
        %v1836 = vsel %vm811, %v1764, 0
        %v1839 = vsel %vm811, %v1766, 0
        %v1842 = vsel %vm811, %v1768, 0
        %v1845 = vsel %vm811, %v1770, 0
        %v1848 = vsel %vm811, %v1772, 0
        %v1851 = vsel %vm811, %v1774, 0
        %v1854 = vsel %vm811, %v1776, 0
        %v1857 = vsel %vm811, %v1778, 0
        %1859 = vmatprep.subr.mxu0 0.0
        %1860 = vmatpush1.msra.mxu0 %v1755
        %1861 = vmatprep.subr.mxu0 0.0
        %1862 = vmatpush1.msra.mxu0 %v1756
        %1863 = vmatprep.subr.mxu0 0.0
        %1864 = vmatpush1.msra.mxu0 %v1757
        %1865 = vmatprep.subr.mxu0 0.0
        %1866 = vmatpush1.msra.mxu0 %v1758
        %1867 = vmatprep.subr.mxu0 0.0
        %1868 = vmatpush1.msra.mxu0 %v1759
        %1869 = vmatprep.subr.mxu0 0.0
        %1870 = vmatpush1.msra.mxu0 %v1760
        %1871 = vmatprep.subr.mxu0 0.0
        %1872 = vmatpush1.msra.mxu0 %v1761
        %1873 = vmatprep.subr.mxu0 0.0
        %1874 = vmatpush1.msra.mxu0 %v1762
        %1875 = vmatprep.subr.mxu0 0.0
        %1876 = vmatpush1.msra.mxu0 %v1788
        %1877 = vmatprep.subr.mxu0 0.0
        %1878 = vmatpush1.msra.mxu0 %v1790
        %1879 = vmatprep.subr.mxu0 0.0
        %1880 = vmatpush1.msra.mxu0 %v1792
        %1881 = vmatprep.subr.mxu0 0.0
        %1882 = vmatpush1.msra.mxu0 %v1794
        %1883 = vmatprep.subr.mxu0 0.0
        %1884 = vmatpush1.msra.mxu0 %v1796
        %1885 = vmatprep.subr.mxu0 0.0
        %1886 = vmatpush1.msra.mxu0 %v1798
        %1887 = vmatprep.subr.mxu0 0.0
        %1888 = vmatpush1.msra.mxu0 %v1800
        %1889 = vmatprep.subr.mxu0 0.0
        %1890 = vmatpush1.msra.mxu0 %v1802
        %1891 = vmatprep.subr.mxu0 0.0
        %1892 = vmatpush1.msra.mxu0 %v1812
        %1893 = vmatprep.subr.mxu0 0.0
        %1894 = vmatpush1.msra.mxu0 %v1814
        %1895 = vmatprep.subr.mxu0 0.0
        %1896 = vmatpush1.msra.mxu0 %v1816
        %1897 = vmatprep.subr.mxu0 0.0
        %1898 = vmatpush1.msra.mxu0 %v1818
        %1899 = vmatprep.subr.mxu0 0.0
        %1900 = vmatpush1.msra.mxu0 %v1820
        %1901 = vmatprep.subr.mxu0 0.0
        %1902 = vmatpush1.msra.mxu0 %v1822
        %1903 = vmatprep.subr.mxu0 0.0
        %1904 = vmatpush1.msra.mxu0 %v1824
        %1905 = vmatprep.subr.mxu0 0.0
        %1906 = vmatpush1.msra.mxu0 %v1826
        %1907 = vmatprep.subr.mxu0 0.0
        %1908 = vmatpush1.msra.mxu0 %v1035
        %1909 = vmatprep.subr.mxu0 0.0
        %1910 = vmatpush1.msra.mxu0 0.0
        %1911 = vmatprep.subr.mxu0 0.0
        %1912 = vmatpush1.msra.mxu0 0.0
        %1913 = vmatprep.subr.mxu0 0.0
        %1914 = vmatpush1.msra.mxu0 0.0
        %1915 = vmatprep.subr.mxu0 0.0
        %1916 = vmatpush1.msra.mxu0 0.0
        %1917 = vmatprep.subr.mxu0 0.0
        %1918 = vmatpush1.msra.mxu0 0.0
        %1919 = vmatprep.subr.mxu0 0.0
        %1920 = vmatpush1.msra.mxu0 0.0
        %1921 = vmatprep.subr.mxu0 0.0
        %1922 = vmatpush1.msra.mxu0 0.0
        %1923 = vmatprep.mubr.f32.mxu0 %v1836
        %1924 = vmatmul.mubr.f32.gmra.mrb[0].mxu0 %v1763
        %v1925 = vpop.f32.mrb[0].mxu0
        %v1926 = vadd.f32 0.0, %v1925
        %v1927 = vpop.f32.mrb[0].mxu0
        %1928 = vmatprep.mubr.f32.mxu0 %v1839
        %1929 = vmatmul.mubr.f32.gmra.mrb[0].mxu0 %v1765
        %v1930 = vpop.f32.mrb[0].mxu0
        %v1931 = vadd.f32 0.0, %v1930
        %v1932 = vpop.f32.mrb[0].mxu0
        %1933 = vmatprep.mubr.f32.mxu0 %v1842
        %1934 = vmatmul.mubr.f32.gmra.mrb[0].mxu0 %v1767
        %v1935 = vpop.f32.mrb[0].mxu0
        %v1936 = vadd.f32 0.0, %v1935
        %v1937 = vpop.f32.mrb[0].mxu0
        %1938 = vmatprep.mubr.f32.mxu0 %v1845
        %1939 = vmatmul.mubr.f32.gmra.mrb[0].mxu0 %v1769
        %v1940 = vpop.f32.mrb[0].mxu0
        %v1941 = vadd.f32 0.0, %v1940
        %v1942 = vpop.f32.mrb[0].mxu0
        %1943 = vmatprep.mubr.f32.mxu0 %v1848
        %1944 = vmatmul.mubr.f32.gmra.mrb[0].mxu0 %v1771
        %v1945 = vpop.f32.mrb[0].mxu0
        %v1946 = vadd.f32 0.0, %v1945
        %v1947 = vpop.f32.mrb[0].mxu0
        %1948 = vmatprep.mubr.f32.mxu0 %v1851
        %1949 = vmatmul.mubr.f32.gmra.mrb[0].mxu0 %v1773
        %v1950 = vpop.f32.mrb[0].mxu0
        %v1951 = vadd.f32 0.0, %v1950
        %v1952 = vpop.f32.mrb[0].mxu0
        %1953 = vmatprep.mubr.f32.mxu0 %v1854
        %1954 = vmatmul.mubr.f32.gmra.mrb[0].mxu0 %v1775
        %v1955 = vpop.f32.mrb[0].mxu0
        %v1956 = vadd.f32 0.0, %v1955
        %v1957 = vpop.f32.mrb[0].mxu0
        %1958 = vmatprep.mubr.f32.mxu0 %v1857
        %1959 = vmatmul.mubr.f32.gmra.mrb[0].mxu0 %v1777
        %v1960 = vpop.f32.mrb[0].mxu0
        %v1961 = vadd.f32 0.0, %v1960
        %v1962 = vpop.f32.mrb[0].mxu0
        %1963 = vdwg.mxu0
        %v1964 = vmul.f32 %v1926, 0.2
        %v1965 = vmul.f32 %v1931, 0.2
        %v1966 = vmul.f32 %v1936, 0.2
        %v1967 = vmul.f32 %v1941, 0.2
        %v1968 = vmul.f32 %v1946, 0.2
        %v1969 = vmul.f32 %v1951, 0.2
        %v1970 = vmul.f32 %v1956, 0.2
        %v1971 = vmul.f32 %v1961, 0.2
        %v1972 = vmax.f32 %v1926, %v1964
        %v1973 = vmax.f32 %v1931, %v1965
        %v1974 = vmax.f32 %v1936, %v1966
        %v1975 = vmax.f32 %v1941, %v1967
        %v1976 = vmax.f32 %v1946, %v1968
        %v1977 = vmax.f32 %v1951, %v1969
        %v1978 = vmax.f32 %v1956, %v1970
        %v1979 = vmax.f32 %v1961, %v1971
        %vm1980 = vcmask 621568
        %1981 = vst.msk [vmem:[%s689] sm:$0xff] %vm1980, %v1972
        %1982 = vst.msk [vmem:[%s689 + $0x8] sm:$0xff] %vm1980, %v1973
        %1983 = vst.msk [vmem:[%s689 + $0x10] sm:$0xff] %vm1980, %v1974
        %1984 = vst.msk [vmem:[%s689 + $0x18] sm:$0xff] %vm1980, %v1975
        %1985 = vst.msk [vmem:[%s689 + $0x20] sm:$0xff] %vm1980, %v1976
        %1986 = vst.msk [vmem:[%s689 + $0x28] sm:$0xff] %vm1980, %v1977
        %1987 = vst.msk [vmem:[%s689 + $0x30] sm:$0xff] %vm1980, %v1978
        %1988 = vst.msk [vmem:[%s689 + $0x38] sm:$0xff] %vm1980, %v1979
        %1997 = vrot.lane.b32.xlu0 %v1972, 4
        %v1998 = vpop.permute.xlu0 %1997
        %1999 = vrot.lane.b32.xlu0 %v1973, 4
        %v2000 = vpop.permute.xlu0 %1999
        %2001 = vrot.lane.b32.xlu0 %v1974, 4
        %v2002 = vpop.permute.xlu0 %2001
        %2003 = vrot.lane.b32.xlu0 %v1975, 4
        %v2004 = vpop.permute.xlu0 %2003
        %2005 = vrot.lane.b32.xlu0 %v1976, 4
        %v2006 = vpop.permute.xlu0 %2005
        %2007 = vrot.lane.b32.xlu0 %v1977, 4
        %v2008 = vpop.permute.xlu0 %2007
        %2009 = vrot.lane.b32.xlu0 %v1978, 4
        %v2010 = vpop.permute.xlu0 %2009
        %2011 = vrot.lane.b32.xlu0 %v1979, 4
        %v2012 = vpop.permute.xlu0 %2011
        %v2021 = vsel %vm980, 0.0, %v1998
        %v2022 = vsel %vm980, 0.0, %v2000
        %v2023 = vsel %vm980, 0.0, %v2002
        %v2024 = vsel %vm980, 0.0, %v2004
        %v2025 = vsel %vm980, 0.0, %v2006
        %v2026 = vsel %vm980, 0.0, %v2008
        %v2027 = vsel %vm980, 0.0, %v2010
        %v2028 = vsel %vm980, 0.0, %v2012
        %vm2029 = vcmask 654336
        %v2030 = vsel %vm2029, %v2021, 0.0
        %v2031 = vsel %vm2029, %v2022, 0.0
        %v2032 = vsel %vm2029, %v2023, 0.0
        %v2033 = vsel %vm2029, %v2024, 0.0
        %v2034 = vsel %vm2029, %v2025, 0.0
        %v2035 = vsel %vm2029, %v2026, 0.0
        %v2036 = vsel %vm2029, %v2027, 0.0
        %v2037 = vsel %vm2029, %v2028, 0.0
        %2046 = vrot.lane.b32.xlu0 %v2030, 127
        %v2047 = vpop.permute.xlu0 %2046
        %2048 = vrot.lane.b32.xlu0 %v2031, 127
        %v2049 = vpop.permute.xlu0 %2048
        %2050 = vrot.lane.b32.xlu0 %v2032, 127
        %v2051 = vpop.permute.xlu0 %2050
        %2052 = vrot.lane.b32.xlu0 %v2033, 127
        %v2053 = vpop.permute.xlu0 %2052
        %2054 = vrot.lane.b32.xlu0 %v2034, 127
        %v2055 = vpop.permute.xlu0 %2054
        %2056 = vrot.lane.b32.xlu0 %v2035, 127
        %v2057 = vpop.permute.xlu0 %2056
        %2058 = vrot.lane.b32.xlu0 %v2036, 127
        %v2059 = vpop.permute.xlu0 %2058
        %2060 = vrot.lane.b32.xlu0 %v2037, 127
        %v2061 = vpop.permute.xlu0 %2060
        %2062 = vrot.lane.b32.xlu0 %v2030, 126
        %v2063 = vpop.permute.xlu0 %2062
        %2064 = vrot.lane.b32.xlu0 %v2031, 126
        %v2065 = vpop.permute.xlu0 %2064
        %2066 = vrot.lane.b32.xlu0 %v2032, 126
        %v2067 = vpop.permute.xlu0 %2066
        %2068 = vrot.lane.b32.xlu0 %v2033, 126
        %v2069 = vpop.permute.xlu0 %2068
        %2070 = vrot.lane.b32.xlu0 %v2034, 126
        %v2071 = vpop.permute.xlu0 %2070
        %2072 = vrot.lane.b32.xlu0 %v2035, 126
        %v2073 = vpop.permute.xlu0 %2072
        %2074 = vrot.lane.b32.xlu0 %v2036, 126
        %v2075 = vpop.permute.xlu0 %2074
        %2076 = vrot.lane.b32.xlu0 %v2037, 126
        %v2077 = vpop.permute.xlu0 %2076
        %2078 = vrot.lane.b32.xlu0 %v2030, 3
        %v2079 = vpop.permute.xlu0 %2078
        %2080 = vrot.lane.b32.xlu0 %v2031, 3
        %v2081 = vpop.permute.xlu0 %2080
        %2082 = vrot.lane.b32.xlu0 %v2032, 3
        %v2083 = vpop.permute.xlu0 %2082
        %2084 = vrot.lane.b32.xlu0 %v2033, 3
        %v2085 = vpop.permute.xlu0 %2084
        %2086 = vrot.lane.b32.xlu0 %v2034, 3
        %v2087 = vpop.permute.xlu0 %2086
        %2088 = vrot.lane.b32.xlu0 %v2035, 3
        %v2089 = vpop.permute.xlu0 %2088
        %2090 = vrot.lane.b32.xlu0 %v2036, 3
        %v2091 = vpop.permute.xlu0 %2090
        %2092 = vrot.lane.b32.xlu0 %v2037, 3
        %v2093 = vpop.permute.xlu0 %2092
        %2094 = vrot.lane.b32.xlu0 %v2030, 1
        %v2095 = vpop.permute.xlu0 %2094
        %2096 = vrot.lane.b32.xlu0 %v2031, 1
        %v2097 = vpop.permute.xlu0 %2096
        %2098 = vrot.lane.b32.xlu0 %v2032, 1
        %v2099 = vpop.permute.xlu0 %2098
        %2100 = vrot.lane.b32.xlu0 %v2033, 1
        %v2101 = vpop.permute.xlu0 %2100
        %2102 = vrot.lane.b32.xlu0 %v2034, 1
        %v2103 = vpop.permute.xlu0 %2102
        %2104 = vrot.lane.b32.xlu0 %v2035, 1
        %v2105 = vpop.permute.xlu0 %2104
        %2106 = vrot.lane.b32.xlu0 %v2036, 1
        %v2107 = vpop.permute.xlu0 %2106
        %2108 = vrot.lane.b32.xlu0 %v2037, 1
        %v2109 = vpop.permute.xlu0 %2108
        %2110 = vrot.lane.b32.xlu0 %v2030, 125
        %v2111 = vpop.permute.xlu0 %2110
        %2112 = vrot.lane.b32.xlu0 %v2031, 125
        %v2113 = vpop.permute.xlu0 %2112
        %2114 = vrot.lane.b32.xlu0 %v2032, 125
        %v2115 = vpop.permute.xlu0 %2114
        %2116 = vrot.lane.b32.xlu0 %v2033, 125
        %v2117 = vpop.permute.xlu0 %2116
        %2118 = vrot.lane.b32.xlu0 %v2034, 125
        %v2119 = vpop.permute.xlu0 %2118
        %2120 = vrot.lane.b32.xlu0 %v2035, 125
        %v2121 = vpop.permute.xlu0 %2120
        %2122 = vrot.lane.b32.xlu0 %v2036, 125
        %v2123 = vpop.permute.xlu0 %2122
        %2124 = vrot.lane.b32.xlu0 %v2037, 125
        %v2125 = vpop.permute.xlu0 %2124
        %2126 = vrot.lane.b32.xlu0 %v2030, 123
        %v2127 = vpop.permute.xlu0 %2126
        %2128 = vrot.lane.b32.xlu0 %v2031, 123
        %v2129 = vpop.permute.xlu0 %2128
        %2130 = vrot.lane.b32.xlu0 %v2032, 123
        %v2131 = vpop.permute.xlu0 %2130
        %2132 = vrot.lane.b32.xlu0 %v2033, 123
        %v2133 = vpop.permute.xlu0 %2132
        %2134 = vrot.lane.b32.xlu0 %v2034, 123
        %v2135 = vpop.permute.xlu0 %2134
        %2136 = vrot.lane.b32.xlu0 %v2035, 123
        %v2137 = vpop.permute.xlu0 %2136
        %2138 = vrot.lane.b32.xlu0 %v2036, 123
        %v2139 = vpop.permute.xlu0 %2138
        %2140 = vrot.lane.b32.xlu0 %v2037, 123
        %v2141 = vpop.permute.xlu0 %2140
        %v2142 = vld [vmem:[%s674] sm:$0xff]
        %v2143 = vld [vmem:[%s674 + $0x8] sm:$0xff]
        %v2144 = vld [vmem:[%s674 + $0x10] sm:$0xff]
        %v2145 = vld [vmem:[%s674 + $0x18] sm:$0xff]
        %v2146 = vld [vmem:[%s674 + $0x20] sm:$0xff]
        %v2147 = vld [vmem:[%s674 + $0x28] sm:$0xff]
        %v2148 = vld [vmem:[%s674 + $0x30] sm:$0xff]
        %v2149 = vld [vmem:[%s674 + $0x38] sm:$0xff]
        %v2150 = vld [vmem:[%s674 + $0x40] sm:$0xff]
        %v2151 = vld [vmem:[%s674 + $0x48] sm:$0xff]
        %v2152 = vld [vmem:[%s674 + $0x50] sm:$0xff]
        %v2153 = vld [vmem:[%s674 + $0x58] sm:$0xff]
        %v2154 = vld [vmem:[%s674 + $0x60] sm:$0xff]
        %v2155 = vld [vmem:[%s674 + $0x68] sm:$0xff]
        %v2156 = vld [vmem:[%s674 + $0x70] sm:$0xff]
        %v2157 = vld [vmem:[%s674 + $0x78] sm:$0xff]
        %v2158 = vld [vmem:[%s674 + $0x80] sm:$0xff]
        %v2159 = vld [vmem:[%s674 + $0x88] sm:$0xff]
        %v2160 = vld [vmem:[%s674 + $0x90] sm:$0xff]
        %v2161 = vld [vmem:[%s674 + $0x98] sm:$0xff]
        %v2162 = vld [vmem:[%s674 + $0xa0] sm:$0xff]
        %v2163 = vld [vmem:[%s674 + $0xa8] sm:$0xff]
        %v2164 = vld [vmem:[%s674 + $0xb0] sm:$0xff]
        %v2165 = vld [vmem:[%s674 + $0xb8] sm:$0xff]
        %v2166 = vld [vmem:[%s674 + $0xc0] sm:$0xff]
        %v2167 = vld [vmem:[%s674 + $0xc8] sm:$0xff]
        %v2168 = vld [vmem:[%s674 + $0xd0] sm:$0xff]
        %v2169 = vld [vmem:[%s674 + $0xd8] sm:$0xff]
        %v2170 = vld [vmem:[%s674 + $0xe0] sm:$0xff]
        %v2171 = vld [vmem:[%s674 + $0xe8] sm:$0xff]
        %v2172 = vld [vmem:[%s674 + $0xf0] sm:$0xff]
        %v2173 = vld [vmem:[%s674 + $0xf8] sm:$0xff]
        %v2174 = vld [vmem:[%s674 + $0x100] sm:$0xff]
        %v2175 = vld [vmem:[%s674 + $0x108] sm:$0xff]
        %v2176 = vld [vmem:[%s674 + $0x110] sm:$0xff]
        %v2177 = vld [vmem:[%s674 + $0x118] sm:$0xff]
        %v2178 = vld [vmem:[%s674 + $0x120] sm:$0xff]
        %v2179 = vld [vmem:[%s674 + $0x128] sm:$0xff]
        %v2180 = vld [vmem:[%s674 + $0x130] sm:$0xff]
        %v2181 = vld [vmem:[%s674 + $0x138] sm:$0xff]
        %v2182 = vld [vmem:[%s674 + $0x140] sm:$0xff]
        %v2183 = vld [vmem:[%s674 + $0x148] sm:$0xff]
        %v2184 = vld [vmem:[%s674 + $0x150] sm:$0xff]
        %v2185 = vld [vmem:[%s674 + $0x158] sm:$0xff]
        %v2186 = vld [vmem:[%s674 + $0x160] sm:$0xff]
        %v2187 = vld [vmem:[%s674 + $0x168] sm:$0xff]
        %v2188 = vld [vmem:[%s674 + $0x170] sm:$0xff]
        %v2189 = vld [vmem:[%s674 + $0x178] sm:$0xff]
        %v2190 = vld [vmem:[%s674 + $0x180] sm:$0xff]
        %v2191 = vld [vmem:[%s674 + $0x188] sm:$0xff]
        %v2192 = vld [vmem:[%s674 + $0x190] sm:$0xff]
        %v2193 = vld [vmem:[%s674 + $0x198] sm:$0xff]
        %v2194 = vld [vmem:[%s674 + $0x1a0] sm:$0xff]
        %v2195 = vld [vmem:[%s674 + $0x1a8] sm:$0xff]
        %v2196 = vld [vmem:[%s674 + $0x1b0] sm:$0xff]
        %v2197 = vld [vmem:[%s674 + $0x1b8] sm:$0xff]
        %v2198 = vld [vmem:[%s674 + $0x1c0] sm:$0xff]
        %v2199 = vld [vmem:[%s674 + $0x1c8] sm:$0xff]
        %v2200 = vld [vmem:[%s674 + $0x1d0] sm:$0xff]
        %v2201 = vld [vmem:[%s674 + $0x1d8] sm:$0xff]
        %v2202 = vld [vmem:[%s674 + $0x1e0] sm:$0xff]
        %v2203 = vld [vmem:[%s674 + $0x1e8] sm:$0xff]
        %v2204 = vld [vmem:[%s674 + $0x1f0] sm:$0xff]
        %v2205 = vld [vmem:[%s674 + $0x1f8] sm:$0xff]
        %v2206 = vld [vmem:[%s674 + $0x200] sm:$0xff]
        %v2207 = vld [vmem:[%s674 + $0x208] sm:$0xff]
        %v2208 = vld [vmem:[%s674 + $0x210] sm:$0xff]
        %v2209 = vld [vmem:[%s674 + $0x218] sm:$0xff]
        %v2210 = vld [vmem:[%s674 + $0x220] sm:$0xff]
        %v2211 = vld [vmem:[%s674 + $0x228] sm:$0xff]
        %v2212 = vld [vmem:[%s674 + $0x230] sm:$0xff]
        %v2213 = vld [vmem:[%s674 + $0x238] sm:$0xff]
        %v2214 = vld [vmem:[%s674 + $0x240] sm:$0xff]
        %v2215 = vld [vmem:[%s674 + $0x248] sm:$0xff]
        %v2216 = vld [vmem:[%s674 + $0x250] sm:$0xff]
        %v2217 = vld [vmem:[%s674 + $0x258] sm:$0xff]
        %v2218 = vld [vmem:[%s674 + $0x260] sm:$0xff]
        %v2219 = vld [vmem:[%s674 + $0x268] sm:$0xff]
        %v2220 = vld [vmem:[%s674 + $0x270] sm:$0xff]
        %v2221 = vld [vmem:[%s674 + $0x278] sm:$0xff]
        %2222 = vrot.lane.b32.xlu0 %v2047, 125
        %v2223 = vpop.permute.xlu0 %2222
        %2224 = vrot.lane.b32.xlu0 %v2049, 125
        %v2225 = vpop.permute.xlu0 %2224
        %2226 = vrot.lane.b32.xlu0 %v2051, 125
        %v2227 = vpop.permute.xlu0 %2226
        %2228 = vrot.lane.b32.xlu0 %v2053, 125
        %v2229 = vpop.permute.xlu0 %2228
        %2230 = vrot.lane.b32.xlu0 %v2055, 125
        %v2231 = vpop.permute.xlu0 %2230
        %2232 = vrot.lane.b32.xlu0 %v2057, 125
        %v2233 = vpop.permute.xlu0 %2232
        %2234 = vrot.lane.b32.xlu0 %v2059, 125
        %v2235 = vpop.permute.xlu0 %2234
        %2236 = vrot.lane.b32.xlu0 %v2061, 125
        %v2237 = vpop.permute.xlu0 %2236
        %2238 = vrot.lane.b32.xlu0 %v2063, 125
        %v2239 = vpop.permute.xlu0 %2238
        %2240 = vrot.lane.b32.xlu0 %v2065, 125
        %v2241 = vpop.permute.xlu0 %2240
        %2242 = vrot.lane.b32.xlu0 %v2067, 125
        %v2243 = vpop.permute.xlu0 %2242
        %2244 = vrot.lane.b32.xlu0 %v2069, 125
        %v2245 = vpop.permute.xlu0 %2244
        %2246 = vrot.lane.b32.xlu0 %v2071, 125
        %v2247 = vpop.permute.xlu0 %2246
        %2248 = vrot.lane.b32.xlu0 %v2073, 125
        %v2249 = vpop.permute.xlu0 %2248
        %2250 = vrot.lane.b32.xlu0 %v2075, 125
        %v2251 = vpop.permute.xlu0 %2250
        %2252 = vrot.lane.b32.xlu0 %v2077, 125
        %v2253 = vpop.permute.xlu0 %2252
        %2254 = vrot.lane.b32.xlu0 %v2079, 125
        %v2255 = vpop.permute.xlu0 %2254
        %2256 = vrot.lane.b32.xlu0 %v2081, 125
        %v2257 = vpop.permute.xlu0 %2256
        %2258 = vrot.lane.b32.xlu0 %v2083, 125
        %v2259 = vpop.permute.xlu0 %2258
        %2260 = vrot.lane.b32.xlu0 %v2085, 125
        %v2261 = vpop.permute.xlu0 %2260
        %2262 = vrot.lane.b32.xlu0 %v2087, 125
        %v2263 = vpop.permute.xlu0 %2262
        %2264 = vrot.lane.b32.xlu0 %v2089, 125
        %v2265 = vpop.permute.xlu0 %2264
        %2266 = vrot.lane.b32.xlu0 %v2091, 125
        %v2267 = vpop.permute.xlu0 %2266
        %2268 = vrot.lane.b32.xlu0 %v2093, 125
        %v2269 = vpop.permute.xlu0 %2268
        %2270 = vrot.lane.b32.xlu0 %v2095, 125
        %v2271 = vpop.permute.xlu0 %2270
        %2272 = vrot.lane.b32.xlu0 %v2097, 125
        %v2273 = vpop.permute.xlu0 %2272
        %2274 = vrot.lane.b32.xlu0 %v2099, 125
        %v2275 = vpop.permute.xlu0 %2274
        %2276 = vrot.lane.b32.xlu0 %v2101, 125
        %v2277 = vpop.permute.xlu0 %2276
        %2278 = vrot.lane.b32.xlu0 %v2103, 125
        %v2279 = vpop.permute.xlu0 %2278
        %2280 = vrot.lane.b32.xlu0 %v2105, 125
        %v2281 = vpop.permute.xlu0 %2280
        %2282 = vrot.lane.b32.xlu0 %v2107, 125
        %v2283 = vpop.permute.xlu0 %2282
        %2284 = vrot.lane.b32.xlu0 %v2109, 125
        %v2285 = vpop.permute.xlu0 %2284
        %2286 = vrot.lane.b32.xlu0 %v2111, 125
        %v2287 = vpop.permute.xlu0 %2286
        %2288 = vrot.lane.b32.xlu0 %v2113, 125
        %v2289 = vpop.permute.xlu0 %2288
        %2290 = vrot.lane.b32.xlu0 %v2115, 125
        %v2291 = vpop.permute.xlu0 %2290
        %2292 = vrot.lane.b32.xlu0 %v2117, 125
        %v2293 = vpop.permute.xlu0 %2292
        %2294 = vrot.lane.b32.xlu0 %v2119, 125
        %v2295 = vpop.permute.xlu0 %2294
        %2296 = vrot.lane.b32.xlu0 %v2121, 125
        %v2297 = vpop.permute.xlu0 %2296
        %2298 = vrot.lane.b32.xlu0 %v2123, 125
        %v2299 = vpop.permute.xlu0 %2298
        %2300 = vrot.lane.b32.xlu0 %v2125, 125
        %v2301 = vpop.permute.xlu0 %2300
        %2302 = vrot.lane.b32.xlu0 %v2127, 125
        %v2303 = vpop.permute.xlu0 %2302
        %2304 = vrot.lane.b32.xlu0 %v2129, 125
        %v2305 = vpop.permute.xlu0 %2304
        %2306 = vrot.lane.b32.xlu0 %v2131, 125
        %v2307 = vpop.permute.xlu0 %2306
        %2308 = vrot.lane.b32.xlu0 %v2133, 125
        %v2309 = vpop.permute.xlu0 %2308
        %2310 = vrot.lane.b32.xlu0 %v2135, 125
        %v2311 = vpop.permute.xlu0 %2310
        %2312 = vrot.lane.b32.xlu0 %v2137, 125
        %v2313 = vpop.permute.xlu0 %2312
        %2314 = vrot.lane.b32.xlu0 %v2139, 125
        %v2315 = vpop.permute.xlu0 %2314
        %2316 = vrot.lane.b32.xlu0 %v2141, 125
        %v2317 = vpop.permute.xlu0 %2316
        %v2375 = vsel %vm1336, %v2146, 0
        %v2378 = vsel %vm1336, %v2151, 0
        %v2381 = vsel %vm1336, %v2156, 0
        %v2384 = vsel %vm1336, %v2161, 0
        %v2387 = vsel %vm1336, %v2166, 0
        %v2390 = vsel %vm1336, %v2171, 0
        %v2393 = vsel %vm1336, %v2176, 0
        %v2396 = vsel %vm1336, %v2181, 0
        %v2399 = vsel %vm1336, %v2186, 0
        %v2402 = vsel %vm1336, %v2191, 0
        %v2405 = vsel %vm1336, %v2196, 0
        %v2408 = vsel %vm1336, %v2201, 0
        %v2411 = vsel %vm1336, %v2206, 0
        %v2414 = vsel %vm1336, %v2211, 0
        %v2417 = vsel %vm1336, %v2216, 0
        %v2420 = vsel %vm1336, %v2221, 0
        %2422 = vmatprep.subr.mxu0 0.0
        %2423 = vmatpush1.msra.mxu0 %v2111
        %2424 = vmatprep.subr.mxu0 0.0
        %2425 = vmatpush1.msra.mxu0 %v2113
        %2426 = vmatprep.subr.mxu0 0.0
        %2427 = vmatpush1.msra.mxu0 %v2115
        %2428 = vmatprep.subr.mxu0 0.0
        %2429 = vmatpush1.msra.mxu0 %v2117
        %2430 = vmatprep.subr.mxu0 0.0
        %2431 = vmatpush1.msra.mxu0 %v2119
        %2432 = vmatprep.subr.mxu0 0.0
        %2433 = vmatpush1.msra.mxu0 %v2121
        %2434 = vmatprep.subr.mxu0 0.0
        %2435 = vmatpush1.msra.mxu0 %v2123
        %2436 = vmatprep.subr.mxu0 0.0
        %2437 = vmatpush1.msra.mxu0 %v2125
        %2438 = vmatprep.subr.mxu0 0.0
        %2439 = vmatpush1.msra.mxu0 %v2223
        %2440 = vmatprep.subr.mxu0 0.0
        %2441 = vmatpush1.msra.mxu0 %v2225
        %2442 = vmatprep.subr.mxu0 0.0
        %2443 = vmatpush1.msra.mxu0 %v2227
        %2444 = vmatprep.subr.mxu0 0.0
        %2445 = vmatpush1.msra.mxu0 %v2229
        %2446 = vmatprep.subr.mxu0 0.0
        %2447 = vmatpush1.msra.mxu0 %v2231
        %2448 = vmatprep.subr.mxu0 0.0
        %2449 = vmatpush1.msra.mxu0 %v2233
        %2450 = vmatprep.subr.mxu0 0.0
        %2451 = vmatpush1.msra.mxu0 %v2235
        %2452 = vmatprep.subr.mxu0 0.0
        %2453 = vmatpush1.msra.mxu0 %v2237
        %2454 = vmatprep.subr.mxu0 0.0
        %2455 = vmatpush1.msra.mxu0 %v2239
        %2456 = vmatprep.subr.mxu0 0.0
        %2457 = vmatpush1.msra.mxu0 %v2241
        %2458 = vmatprep.subr.mxu0 0.0
        %2459 = vmatpush1.msra.mxu0 %v2243
        %2460 = vmatprep.subr.mxu0 0.0
        %2461 = vmatpush1.msra.mxu0 %v2245
        %2462 = vmatprep.subr.mxu0 0.0
        %2463 = vmatpush1.msra.mxu0 %v2247
        %2464 = vmatprep.subr.mxu0 0.0
        %2465 = vmatpush1.msra.mxu0 %v2249
        %2466 = vmatprep.subr.mxu0 0.0
        %2467 = vmatpush1.msra.mxu0 %v2251
        %2468 = vmatprep.subr.mxu0 0.0
        %2469 = vmatpush1.msra.mxu0 %v2253
        %2470 = vmatprep.subr.mxu0 0.0
        %2471 = vmatpush1.msra.mxu0 %v2255
        %2472 = vmatprep.subr.mxu0 0.0
        %2473 = vmatpush1.msra.mxu0 %v2257
        %2474 = vmatprep.subr.mxu0 0.0
        %2475 = vmatpush1.msra.mxu0 %v2259
        %2476 = vmatprep.subr.mxu0 0.0
        %2477 = vmatpush1.msra.mxu0 %v2261
        %2478 = vmatprep.subr.mxu0 0.0
        %2479 = vmatpush1.msra.mxu0 %v2263
        %2480 = vmatprep.subr.mxu0 0.0
        %2481 = vmatpush1.msra.mxu0 %v2265
        %2482 = vmatprep.subr.mxu0 0.0
        %2483 = vmatpush1.msra.mxu0 %v2267
        %2484 = vmatprep.subr.mxu0 0.0
        %2485 = vmatpush1.msra.mxu0 %v2269
        %2486 = vmatprep.mubr.f32.mxu0 %v2143
        %2487 = vmatmul.mubr.f32.gmra.mrb[0].mxu0 %v2142
        %v2488 = vpop.f32.mrb[0].mxu0
        %v2489 = vadd.f32 0.0, %v2488
        %v2490 = vpop.f32.mrb[0].mxu0
        %2491 = vmatprep.mubr.f32.mxu0 %v2148
        %2492 = vmatmul.mubr.f32.gmra.mrb[0].mxu0 %v2147
        %v2493 = vpop.f32.mrb[0].mxu0
        %v2494 = vadd.f32 0.0, %v2493
        %v2495 = vpop.f32.mrb[0].mxu0
        %2496 = vmatprep.mubr.f32.mxu0 %v2153
        %2497 = vmatmul.mubr.f32.gmra.mrb[0].mxu0 %v2152
        %v2498 = vpop.f32.mrb[0].mxu0
        %v2499 = vadd.f32 0.0, %v2498
        %v2500 = vpop.f32.mrb[0].mxu0
        %2501 = vmatprep.mubr.f32.mxu0 %v2158
        %2502 = vmatmul.mubr.f32.gmra.mrb[0].mxu0 %v2157
        %v2503 = vpop.f32.mrb[0].mxu0
        %v2504 = vadd.f32 0.0, %v2503
        %v2505 = vpop.f32.mrb[0].mxu0
        %2506 = vmatprep.mubr.f32.mxu0 %v2163
        %2507 = vmatmul.mubr.f32.gmra.mrb[0].mxu0 %v2162
        %v2508 = vpop.f32.mrb[0].mxu0
        %v2509 = vadd.f32 0.0, %v2508
        %v2510 = vpop.f32.mrb[0].mxu0
        %2511 = vmatprep.mubr.f32.mxu0 %v2168
        %2512 = vmatmul.mubr.f32.gmra.mrb[0].mxu0 %v2167
        %v2513 = vpop.f32.mrb[0].mxu0
        %v2514 = vadd.f32 0.0, %v2513
        %v2515 = vpop.f32.mrb[0].mxu0
        %2516 = vmatprep.mubr.f32.mxu0 %v2173
        %2517 = vmatmul.mubr.f32.gmra.mrb[0].mxu0 %v2172
        %v2518 = vpop.f32.mrb[0].mxu0
        %v2519 = vadd.f32 0.0, %v2518
        %v2520 = vpop.f32.mrb[0].mxu0
        %2521 = vmatprep.mubr.f32.mxu0 %v2178
        %2522 = vmatmul.mubr.f32.gmra.mrb[0].mxu0 %v2177
        %v2523 = vpop.f32.mrb[0].mxu0
        %v2524 = vadd.f32 0.0, %v2523
        %v2525 = vpop.f32.mrb[0].mxu0
        %2526 = vmatprep.mubr.f32.mxu0 %v2183
        %2527 = vmatmul.mubr.f32.gmra.mrb[0].mxu0 %v2182
        %v2528 = vpop.f32.mrb[0].mxu0
        %v2529 = vadd.f32 0.0, %v2528
        %v2530 = vpop.f32.mrb[0].mxu0
        %2531 = vmatprep.mubr.f32.mxu0 %v2188
        %2532 = vmatmul.mubr.f32.gmra.mrb[0].mxu0 %v2187
        %v2533 = vpop.f32.mrb[0].mxu0
        %v2534 = vadd.f32 0.0, %v2533
        %v2535 = vpop.f32.mrb[0].mxu0
        %2536 = vmatprep.mubr.f32.mxu0 %v2193
        %2537 = vmatmul.mubr.f32.gmra.mrb[0].mxu0 %v2192
        %v2538 = vpop.f32.mrb[0].mxu0
        %v2539 = vadd.f32 0.0, %v2538
        %v2540 = vpop.f32.mrb[0].mxu0
        %2541 = vmatprep.mubr.f32.mxu0 %v2198
        %2542 = vmatmul.mubr.f32.gmra.mrb[0].mxu0 %v2197
        %v2543 = vpop.f32.mrb[0].mxu0
        %v2544 = vadd.f32 0.0, %v2543
        %v2545 = vpop.f32.mrb[0].mxu0
        %2546 = vmatprep.mubr.f32.mxu0 %v2203
        %2547 = vmatmul.mubr.f32.gmra.mrb[0].mxu0 %v2202
        %v2548 = vpop.f32.mrb[0].mxu0
        %v2549 = vadd.f32 0.0, %v2548
        %v2550 = vpop.f32.mrb[0].mxu0
        %2551 = vmatprep.mubr.f32.mxu0 %v2208
        %2552 = vmatmul.mubr.f32.gmra.mrb[0].mxu0 %v2207
        %v2553 = vpop.f32.mrb[0].mxu0
        %v2554 = vadd.f32 0.0, %v2553
        %v2555 = vpop.f32.mrb[0].mxu0
        %2556 = vmatprep.mubr.f32.mxu0 %v2213
        %2557 = vmatmul.mubr.f32.gmra.mrb[0].mxu0 %v2212
        %v2558 = vpop.f32.mrb[0].mxu0
        %v2559 = vadd.f32 0.0, %v2558
        %v2560 = vpop.f32.mrb[0].mxu0
        %2561 = vmatprep.mubr.f32.mxu0 %v2218
        %2562 = vmatmul.mubr.f32.gmra.mrb[0].mxu0 %v2217
        %v2563 = vpop.f32.mrb[0].mxu0
        %v2564 = vadd.f32 0.0, %v2563
        %v2565 = vpop.f32.mrb[0].mxu0
        %2566 = vdwg.mxu0
        %2567 = vmatprep.subr.mxu0 0.0
        %2568 = vmatpush1.msra.mxu0 %v2271
        %2569 = vmatprep.subr.mxu0 0.0
        %2570 = vmatpush1.msra.mxu0 %v2273
        %2571 = vmatprep.subr.mxu0 0.0
        %2572 = vmatpush1.msra.mxu0 %v2275
        %2573 = vmatprep.subr.mxu0 0.0
        %2574 = vmatpush1.msra.mxu0 %v2277
        %2575 = vmatprep.subr.mxu0 0.0
        %2576 = vmatpush1.msra.mxu0 %v2279
        %2577 = vmatprep.subr.mxu0 0.0
        %2578 = vmatpush1.msra.mxu0 %v2281
        %2579 = vmatprep.subr.mxu0 0.0
        %2580 = vmatpush1.msra.mxu0 %v2283
        %2581 = vmatprep.subr.mxu0 0.0
        %2582 = vmatpush1.msra.mxu0 %v2285
        %2583 = vmatprep.subr.mxu0 0.0
        %2584 = vmatpush1.msra.mxu0 %v2223
        %2585 = vmatprep.subr.mxu0 0.0
        %2586 = vmatpush1.msra.mxu0 %v2225
        %2587 = vmatprep.subr.mxu0 0.0
        %2588 = vmatpush1.msra.mxu0 %v2227
        %2589 = vmatprep.subr.mxu0 0.0
        %2590 = vmatpush1.msra.mxu0 %v2229
        %2591 = vmatprep.subr.mxu0 0.0
        %2592 = vmatpush1.msra.mxu0 %v2231
        %2593 = vmatprep.subr.mxu0 0.0
        %2594 = vmatpush1.msra.mxu0 %v2233
        %2595 = vmatprep.subr.mxu0 0.0
        %2596 = vmatpush1.msra.mxu0 %v2235
        %2597 = vmatprep.subr.mxu0 0.0
        %2598 = vmatpush1.msra.mxu0 %v2237
        %2599 = vmatprep.subr.mxu0 0.0
        %2600 = vmatpush1.msra.mxu0 %v2287
        %2601 = vmatprep.subr.mxu0 0.0
        %2602 = vmatpush1.msra.mxu0 %v2289
        %2603 = vmatprep.subr.mxu0 0.0
        %2604 = vmatpush1.msra.mxu0 %v2291
        %2605 = vmatprep.subr.mxu0 0.0
        %2606 = vmatpush1.msra.mxu0 %v2293
        %2607 = vmatprep.subr.mxu0 0.0
        %2608 = vmatpush1.msra.mxu0 %v2295
        %2609 = vmatprep.subr.mxu0 0.0
        %2610 = vmatpush1.msra.mxu0 %v2297
        %2611 = vmatprep.subr.mxu0 0.0
        %2612 = vmatpush1.msra.mxu0 %v2299
        %2613 = vmatprep.subr.mxu0 0.0
        %2614 = vmatpush1.msra.mxu0 %v2301
        %2615 = vmatprep.subr.mxu0 0.0
        %2616 = vmatpush1.msra.mxu0 %v2303
        %2617 = vmatprep.subr.mxu0 0.0
        %2618 = vmatpush1.msra.mxu0 %v2305
        %2619 = vmatprep.subr.mxu0 0.0
        %2620 = vmatpush1.msra.mxu0 %v2307
        %2621 = vmatprep.subr.mxu0 0.0
        %2622 = vmatpush1.msra.mxu0 %v2309
        %2623 = vmatprep.subr.mxu0 0.0
        %2624 = vmatpush1.msra.mxu0 %v2311
        %2625 = vmatprep.subr.mxu0 0.0
        %2626 = vmatpush1.msra.mxu0 %v2313
        %2627 = vmatprep.subr.mxu0 0.0
        %2628 = vmatpush1.msra.mxu0 %v2315
        %2629 = vmatprep.subr.mxu0 0.0
        %2630 = vmatpush1.msra.mxu0 %v2317
        %2631 = vmatprep.mubr.f32.mxu0 %v2145
        %2632 = vmatmul.mubr.f32.gmra.mrb[0].mxu0 %v2144
        %v2633 = vpop.f32.mrb[0].mxu0
        %v2634 = vadd.f32 %v2489, %v2633
        %v2635 = vpop.f32.mrb[0].mxu0
        %2636 = vmatprep.mubr.f32.mxu0 %v2150
        %2637 = vmatmul.mubr.f32.gmra.mrb[0].mxu0 %v2149
        %v2638 = vpop.f32.mrb[0].mxu0
        %v2639 = vadd.f32 %v2494, %v2638
        %v2640 = vpop.f32.mrb[0].mxu0
        %2641 = vmatprep.mubr.f32.mxu0 %v2155
        %2642 = vmatmul.mubr.f32.gmra.mrb[0].mxu0 %v2154
        %v2643 = vpop.f32.mrb[0].mxu0
        %v2644 = vadd.f32 %v2499, %v2643
        %v2645 = vpop.f32.mrb[0].mxu0
        %2646 = vmatprep.mubr.f32.mxu0 %v2160
        %2647 = vmatmul.mubr.f32.gmra.mrb[0].mxu0 %v2159
        %v2648 = vpop.f32.mrb[0].mxu0
        %v2649 = vadd.f32 %v2504, %v2648
        %v2650 = vpop.f32.mrb[0].mxu0
        %2651 = vmatprep.mubr.f32.mxu0 %v2165
        %2652 = vmatmul.mubr.f32.gmra.mrb[0].mxu0 %v2164
        %v2653 = vpop.f32.mrb[0].mxu0
        %v2654 = vadd.f32 %v2509, %v2653
        %v2655 = vpop.f32.mrb[0].mxu0
        %2656 = vmatprep.mubr.f32.mxu0 %v2170
        %2657 = vmatmul.mubr.f32.gmra.mrb[0].mxu0 %v2169
        %v2658 = vpop.f32.mrb[0].mxu0
        %v2659 = vadd.f32 %v2514, %v2658
        %v2660 = vpop.f32.mrb[0].mxu0
        %2661 = vmatprep.mubr.f32.mxu0 %v2175
        %2662 = vmatmul.mubr.f32.gmra.mrb[0].mxu0 %v2174
        %v2663 = vpop.f32.mrb[0].mxu0
        %v2664 = vadd.f32 %v2519, %v2663
        %v2665 = vpop.f32.mrb[0].mxu0
        %2666 = vmatprep.mubr.f32.mxu0 %v2180
        %2667 = vmatmul.mubr.f32.gmra.mrb[0].mxu0 %v2179
        %v2668 = vpop.f32.mrb[0].mxu0
        %v2669 = vadd.f32 %v2524, %v2668
        %v2670 = vpop.f32.mrb[0].mxu0
        %2671 = vmatprep.mubr.f32.mxu0 %v2185
        %2672 = vmatmul.mubr.f32.gmra.mrb[0].mxu0 %v2184
        %v2673 = vpop.f32.mrb[0].mxu0
        %v2674 = vadd.f32 %v2529, %v2673
        %v2675 = vpop.f32.mrb[0].mxu0
        %2676 = vmatprep.mubr.f32.mxu0 %v2190
        %2677 = vmatmul.mubr.f32.gmra.mrb[0].mxu0 %v2189
        %v2678 = vpop.f32.mrb[0].mxu0
        %v2679 = vadd.f32 %v2534, %v2678
        %v2680 = vpop.f32.mrb[0].mxu0
        %2681 = vmatprep.mubr.f32.mxu0 %v2195
        %2682 = vmatmul.mubr.f32.gmra.mrb[0].mxu0 %v2194
        %v2683 = vpop.f32.mrb[0].mxu0
        %v2684 = vadd.f32 %v2539, %v2683
        %v2685 = vpop.f32.mrb[0].mxu0
        %2686 = vmatprep.mubr.f32.mxu0 %v2200
        %2687 = vmatmul.mubr.f32.gmra.mrb[0].mxu0 %v2199
        %v2688 = vpop.f32.mrb[0].mxu0
        %v2689 = vadd.f32 %v2544, %v2688
        %v2690 = vpop.f32.mrb[0].mxu0
        %2691 = vmatprep.mubr.f32.mxu0 %v2205
        %2692 = vmatmul.mubr.f32.gmra.mrb[0].mxu0 %v2204
        %v2693 = vpop.f32.mrb[0].mxu0
        %v2694 = vadd.f32 %v2549, %v2693
        %v2695 = vpop.f32.mrb[0].mxu0
        %2696 = vmatprep.mubr.f32.mxu0 %v2210
        %2697 = vmatmul.mubr.f32.gmra.mrb[0].mxu0 %v2209
        %v2698 = vpop.f32.mrb[0].mxu0
        %v2699 = vadd.f32 %v2554, %v2698
        %v2700 = vpop.f32.mrb[0].mxu0
        %2701 = vmatprep.mubr.f32.mxu0 %v2215
        %2702 = vmatmul.mubr.f32.gmra.mrb[0].mxu0 %v2214
        %v2703 = vpop.f32.mrb[0].mxu0
        %v2704 = vadd.f32 %v2559, %v2703
        %v2705 = vpop.f32.mrb[0].mxu0
        %2706 = vmatprep.mubr.f32.mxu0 %v2220
        %2707 = vmatmul.mubr.f32.gmra.mrb[0].mxu0 %v2219
        %v2708 = vpop.f32.mrb[0].mxu0
        %v2709 = vadd.f32 %v2564, %v2708
        %v2710 = vpop.f32.mrb[0].mxu0
        %2711 = vdwg.mxu0
        %2712 = vmatprep.subr.mxu0 0.0
        %2713 = vmatpush1.msra.mxu0 %v837
        %2714 = vmatprep.subr.mxu0 0.0
        %2715 = vmatpush1.msra.mxu0 0.0
        %2716 = vmatprep.subr.mxu0 0.0
        %2717 = vmatpush1.msra.mxu0 0.0
        %2718 = vmatprep.subr.mxu0 0.0
        %2719 = vmatpush1.msra.mxu0 0.0
        %2720 = vmatprep.subr.mxu0 0.0
        %2721 = vmatpush1.msra.mxu0 0.0
        %2722 = vmatprep.subr.mxu0 0.0
        %2723 = vmatpush1.msra.mxu0 0.0
        %2724 = vmatprep.subr.mxu0 0.0
        %2725 = vmatpush1.msra.mxu0 0.0
        %2726 = vmatprep.subr.mxu0 0.0
        %2727 = vmatpush1.msra.mxu0 0.0
        %2728 = vmatprep.subr.mxu0 0.0
        %2729 = vmatpush1.msra.mxu0 0.0
        %2730 = vmatprep.subr.mxu0 0.0
        %2731 = vmatpush1.msra.mxu0 0.0
        %2732 = vmatprep.subr.mxu0 0.0
        %2733 = vmatpush1.msra.mxu0 0.0
        %2734 = vmatprep.subr.mxu0 0.0
        %2735 = vmatpush1.msra.mxu0 0.0
        %2736 = vmatprep.subr.mxu0 0.0
        %2737 = vmatpush1.msra.mxu0 0.0
        %2738 = vmatprep.subr.mxu0 0.0
        %2739 = vmatpush1.msra.mxu0 0.0
        %2740 = vmatprep.subr.mxu0 0.0
        %2741 = vmatpush1.msra.mxu0 0.0
        %2742 = vmatprep.subr.mxu0 0.0
        %2743 = vmatpush1.msra.mxu0 0.0
        %2744 = vmatprep.subr.mxu0 0.0
        %2745 = vmatpush1.msra.mxu0 0.0
        %2746 = vmatprep.subr.mxu0 0.0
        %2747 = vmatpush1.msra.mxu0 0.0
        %2748 = vmatprep.subr.mxu0 0.0
        %2749 = vmatpush1.msra.mxu0 0.0
        %2750 = vmatprep.subr.mxu0 0.0
        %2751 = vmatpush1.msra.mxu0 0.0
        %2752 = vmatprep.subr.mxu0 0.0
        %2753 = vmatpush1.msra.mxu0 0.0
        %2754 = vmatprep.subr.mxu0 0.0
        %2755 = vmatpush1.msra.mxu0 0.0
        %2756 = vmatprep.subr.mxu0 0.0
        %2757 = vmatpush1.msra.mxu0 0.0
        %2758 = vmatprep.subr.mxu0 0.0
        %2759 = vmatpush1.msra.mxu0 0.0
        %2760 = vmatprep.subr.mxu0 0.0
        %2761 = vmatpush1.msra.mxu0 0.0
        %2762 = vmatprep.subr.mxu0 0.0
        %2763 = vmatpush1.msra.mxu0 0.0
        %2764 = vmatprep.subr.mxu0 0.0
        %2765 = vmatpush1.msra.mxu0 0.0
        %2766 = vmatprep.subr.mxu0 0.0
        %2767 = vmatpush1.msra.mxu0 0.0
        %2768 = vmatprep.subr.mxu0 0.0
        %2769 = vmatpush1.msra.mxu0 0.0
        %2770 = vmatprep.subr.mxu0 0.0
        %2771 = vmatpush1.msra.mxu0 0.0
        %2772 = vmatprep.subr.mxu0 0.0
        %2773 = vmatpush1.msra.mxu0 0.0
        %2774 = vmatprep.subr.mxu0 0.0
        %2775 = vmatpush1.msra.mxu0 0.0
        %2776 = vmatprep.mubr.f32.mxu0 0.0
        %2777 = vmatmul.mubr.f32.gmra.mrb[0].mxu0 %v2375
        %v2778 = vpop.f32.mrb[0].mxu0
        %v2779 = vadd.f32 %v2634, %v2778
        %v2780 = vpop.f32.mrb[0].mxu0
        %2781 = vmatprep.mubr.f32.mxu0 0.0
        %2782 = vmatmul.mubr.f32.gmra.mrb[0].mxu0 %v2378
        %v2783 = vpop.f32.mrb[0].mxu0
        %v2784 = vadd.f32 %v2639, %v2783
        %v2785 = vpop.f32.mrb[0].mxu0
        %2786 = vmatprep.mubr.f32.mxu0 0.0
        %2787 = vmatmul.mubr.f32.gmra.mrb[0].mxu0 %v2381
        %v2788 = vpop.f32.mrb[0].mxu0
        %v2789 = vadd.f32 %v2644, %v2788
        %v2790 = vpop.f32.mrb[0].mxu0
        %2791 = vmatprep.mubr.f32.mxu0 0.0
        %2792 = vmatmul.mubr.f32.gmra.mrb[0].mxu0 %v2384
        %v2793 = vpop.f32.mrb[0].mxu0
        %v2794 = vadd.f32 %v2649, %v2793
        %v2795 = vpop.f32.mrb[0].mxu0
        %2796 = vmatprep.mubr.f32.mxu0 0.0
        %2797 = vmatmul.mubr.f32.gmra.mrb[0].mxu0 %v2387
        %v2798 = vpop.f32.mrb[0].mxu0
        %v2799 = vadd.f32 %v2654, %v2798
        %v2800 = vpop.f32.mrb[0].mxu0
        %2801 = vmatprep.mubr.f32.mxu0 0.0
        %2802 = vmatmul.mubr.f32.gmra.mrb[0].mxu0 %v2390
        %v2803 = vpop.f32.mrb[0].mxu0
        %v2804 = vadd.f32 %v2659, %v2803
        %v2805 = vpop.f32.mrb[0].mxu0
        %2806 = vmatprep.mubr.f32.mxu0 0.0
        %2807 = vmatmul.mubr.f32.gmra.mrb[0].mxu0 %v2393
        %v2808 = vpop.f32.mrb[0].mxu0
        %v2809 = vadd.f32 %v2664, %v2808
        %v2810 = vpop.f32.mrb[0].mxu0
        %2811 = vmatprep.mubr.f32.mxu0 0.0
        %2812 = vmatmul.mubr.f32.gmra.mrb[0].mxu0 %v2396
        %v2813 = vpop.f32.mrb[0].mxu0
        %v2814 = vadd.f32 %v2669, %v2813
        %v2815 = vpop.f32.mrb[0].mxu0
        %2816 = vmatprep.mubr.f32.mxu0 0.0
        %2817 = vmatmul.mubr.f32.gmra.mrb[0].mxu0 %v2399
        %v2818 = vpop.f32.mrb[0].mxu0
        %v2819 = vadd.f32 %v2674, %v2818
        %v2820 = vpop.f32.mrb[0].mxu0
        %2821 = vmatprep.mubr.f32.mxu0 0.0
        %2822 = vmatmul.mubr.f32.gmra.mrb[0].mxu0 %v2402
        %v2823 = vpop.f32.mrb[0].mxu0
        %v2824 = vadd.f32 %v2679, %v2823
        %v2825 = vpop.f32.mrb[0].mxu0
        %2826 = vmatprep.mubr.f32.mxu0 0.0
        %2827 = vmatmul.mubr.f32.gmra.mrb[0].mxu0 %v2405
        %v2828 = vpop.f32.mrb[0].mxu0
        %v2829 = vadd.f32 %v2684, %v2828
        %v2830 = vpop.f32.mrb[0].mxu0
        %2831 = vmatprep.mubr.f32.mxu0 0.0
        %2832 = vmatmul.mubr.f32.gmra.mrb[0].mxu0 %v2408
        %v2833 = vpop.f32.mrb[0].mxu0
        %v2834 = vadd.f32 %v2689, %v2833
        %v2835 = vpop.f32.mrb[0].mxu0
        %2836 = vmatprep.mubr.f32.mxu0 0.0
        %2837 = vmatmul.mubr.f32.gmra.mrb[0].mxu0 %v2411
        %v2838 = vpop.f32.mrb[0].mxu0
        %v2839 = vadd.f32 %v2694, %v2838
        %v2840 = vpop.f32.mrb[0].mxu0
        %2841 = vmatprep.mubr.f32.mxu0 0.0
        %2842 = vmatmul.mubr.f32.gmra.mrb[0].mxu0 %v2414
        %v2843 = vpop.f32.mrb[0].mxu0
        %v2844 = vadd.f32 %v2699, %v2843
        %v2845 = vpop.f32.mrb[0].mxu0
        %2846 = vmatprep.mubr.f32.mxu0 0.0
        %2847 = vmatmul.mubr.f32.gmra.mrb[0].mxu0 %v2417
        %v2848 = vpop.f32.mrb[0].mxu0
        %v2849 = vadd.f32 %v2704, %v2848
        %v2850 = vpop.f32.mrb[0].mxu0
        %2851 = vmatprep.mubr.f32.mxu0 0.0
        %2852 = vmatmul.mubr.f32.gmra.mrb[0].mxu0 %v2420
        %v2853 = vpop.f32.mrb[0].mxu0
        %v2854 = vadd.f32 %v2709, %v2853
        %v2855 = vpop.f32.mrb[0].mxu0
        %2856 = vdwg.mxu0
        %v2857 = vmul.f32 %v2779, 0.2
        %v2858 = vmul.f32 %v2784, 0.2
        %v2859 = vmul.f32 %v2789, 0.2
        %v2860 = vmul.f32 %v2794, 0.2
        %v2861 = vmul.f32 %v2799, 0.2
        %v2862 = vmul.f32 %v2804, 0.2
        %v2863 = vmul.f32 %v2809, 0.2
        %v2864 = vmul.f32 %v2814, 0.2
        %v2865 = vmax.f32 %v2779, %v2857
        %v2866 = vmax.f32 %v2784, %v2858
        %v2867 = vmax.f32 %v2789, %v2859
        %v2868 = vmax.f32 %v2794, %v2860
        %v2869 = vmax.f32 %v2799, %v2861
        %v2870 = vmax.f32 %v2804, %v2862
        %v2871 = vmax.f32 %v2809, %v2863
        %v2872 = vmax.f32 %v2814, %v2864
        %v2873 = vmul.f32 %v2819, 0.2
        %v2874 = vmul.f32 %v2824, 0.2
        %v2875 = vmul.f32 %v2829, 0.2
        %v2876 = vmul.f32 %v2834, 0.2
        %v2877 = vmul.f32 %v2839, 0.2
        %v2878 = vmul.f32 %v2844, 0.2
        %v2879 = vmul.f32 %v2849, 0.2
        %v2880 = vmul.f32 %v2854, 0.2
        %v2881 = vmax.f32 %v2819, %v2873
        %v2882 = vmax.f32 %v2824, %v2874
        %v2883 = vmax.f32 %v2829, %v2875
        %v2884 = vmax.f32 %v2834, %v2876
        %v2885 = vmax.f32 %v2839, %v2877
        %v2886 = vmax.f32 %v2844, %v2878
        %v2887 = vmax.f32 %v2849, %v2879
        %v2888 = vmax.f32 %v2854, %v2880
        %v2889 = vadd.f32 %v2865, %v2881
        %v2890 = vadd.f32 %v2866, %v2882
        %v2891 = vadd.f32 %v2867, %v2883
        %v2892 = vadd.f32 %v2868, %v2884
        %v2893 = vadd.f32 %v2869, %v2885
        %v2894 = vadd.f32 %v2870, %v2886
        %v2895 = vadd.f32 %v2871, %v2887
        %v2896 = vadd.f32 %v2872, %v2888
        %2905 = vrot.lane.b32.xlu0 %v2889, 4
        %v2906 = vpop.permute.xlu0 %2905
        %2907 = vrot.lane.b32.xlu0 %v2890, 4
        %v2908 = vpop.permute.xlu0 %2907
        %2909 = vrot.lane.b32.xlu0 %v2891, 4
        %v2910 = vpop.permute.xlu0 %2909
        %2911 = vrot.lane.b32.xlu0 %v2892, 4
        %v2912 = vpop.permute.xlu0 %2911
        %2913 = vrot.lane.b32.xlu0 %v2893, 4
        %v2914 = vpop.permute.xlu0 %2913
        %2915 = vrot.lane.b32.xlu0 %v2894, 4
        %v2916 = vpop.permute.xlu0 %2915
        %2917 = vrot.lane.b32.xlu0 %v2895, 4
        %v2918 = vpop.permute.xlu0 %2917
        %2919 = vrot.lane.b32.xlu0 %v2896, 4
        %v2920 = vpop.permute.xlu0 %2919
        %v2929 = vsel %vm980, 0.0, %v2906
        %v2930 = vsel %vm980, 0.0, %v2908
        %v2931 = vsel %vm980, 0.0, %v2910
        %v2932 = vsel %vm980, 0.0, %v2912
        %v2933 = vsel %vm980, 0.0, %v2914
        %v2934 = vsel %vm980, 0.0, %v2916
        %v2935 = vsel %vm980, 0.0, %v2918
        %v2936 = vsel %vm980, 0.0, %v2920
        %v2937 = vsel %vm2029, %v2929, 0.0
        %v2938 = vsel %vm2029, %v2930, 0.0
        %v2939 = vsel %vm2029, %v2931, 0.0
        %v2940 = vsel %vm2029, %v2932, 0.0
        %v2941 = vsel %vm2029, %v2933, 0.0
        %v2942 = vsel %vm2029, %v2934, 0.0
        %v2943 = vsel %vm2029, %v2935, 0.0
        %v2944 = vsel %vm2029, %v2936, 0.0
        %v2945 = vld [vmem:[%s571] sm:$0xff]
        %v2946 = vld [vmem:[%s571 + $0x8] sm:$0xff]
        %v2947 = vld [vmem:[%s571 + $0x10] sm:$0xff]
        %v2948 = vld [vmem:[%s571 + $0x18] sm:$0xff]
        %v2949 = vld [vmem:[%s571 + $0x20] sm:$0xff]
        %v2950 = vld [vmem:[%s571 + $0x28] sm:$0xff]
        %v2951 = vld [vmem:[%s571 + $0x30] sm:$0xff]
        %v2952 = vld [vmem:[%s571 + $0x38] sm:$0xff]
        %v2953 = vld [vmem:[%s571 + $0x40] sm:$0xff]
        %v2954 = vld [vmem:[%s571 + $0x48] sm:$0xff]
        %v2955 = vld [vmem:[%s571 + $0x50] sm:$0xff]
        %v2956 = vld [vmem:[%s571 + $0x58] sm:$0xff]
        %v2957 = vld [vmem:[%s571 + $0x60] sm:$0xff]
        %v2958 = vld [vmem:[%s571 + $0x68] sm:$0xff]
        %v2959 = vld [vmem:[%s571 + $0x70] sm:$0xff]
        %v2960 = vld [vmem:[%s571 + $0x78] sm:$0xff]
        %2969 = vrot.lane.b32.xlu0 %v2937, 127
        %v2970 = vpop.permute.xlu0 %2969
        %2971 = vrot.lane.b32.xlu0 %v2938, 127
        %v2972 = vpop.permute.xlu0 %2971
        %2973 = vrot.lane.b32.xlu0 %v2939, 127
        %v2974 = vpop.permute.xlu0 %2973
        %2975 = vrot.lane.b32.xlu0 %v2940, 127
        %v2976 = vpop.permute.xlu0 %2975
        %2977 = vrot.lane.b32.xlu0 %v2941, 127
        %v2978 = vpop.permute.xlu0 %2977
        %2979 = vrot.lane.b32.xlu0 %v2942, 127
        %v2980 = vpop.permute.xlu0 %2979
        %2981 = vrot.lane.b32.xlu0 %v2943, 127
        %v2982 = vpop.permute.xlu0 %2981
        %2983 = vrot.lane.b32.xlu0 %v2944, 127
        %v2984 = vpop.permute.xlu0 %2983
        %2993 = vrot.lane.b32.xlu0 %v2937, 126
        %v2994 = vpop.permute.xlu0 %2993
        %2995 = vrot.lane.b32.xlu0 %v2938, 126
        %v2996 = vpop.permute.xlu0 %2995
        %2997 = vrot.lane.b32.xlu0 %v2939, 126
        %v2998 = vpop.permute.xlu0 %2997
        %2999 = vrot.lane.b32.xlu0 %v2940, 126
        %v3000 = vpop.permute.xlu0 %2999
        %3001 = vrot.lane.b32.xlu0 %v2941, 126
        %v3002 = vpop.permute.xlu0 %3001
        %3003 = vrot.lane.b32.xlu0 %v2942, 126
        %v3004 = vpop.permute.xlu0 %3003
        %3005 = vrot.lane.b32.xlu0 %v2943, 126
        %v3006 = vpop.permute.xlu0 %3005
        %3007 = vrot.lane.b32.xlu0 %v2944, 126
        %v3008 = vpop.permute.xlu0 %3007
        %v3018 = vsel %vm811, %v2946, 0
        %v3021 = vsel %vm811, %v2948, 0
        %v3024 = vsel %vm811, %v2950, 0
        %v3027 = vsel %vm811, %v2952, 0
        %v3030 = vsel %vm811, %v2954, 0
        %v3033 = vsel %vm811, %v2956, 0
        %v3036 = vsel %vm811, %v2958, 0
        %v3039 = vsel %vm811, %v2960, 0
        %3041 = vmatprep.subr.mxu0 0.0
        %3042 = vmatpush1.msra.mxu0 %v2937
        %3043 = vmatprep.subr.mxu0 0.0
        %3044 = vmatpush1.msra.mxu0 %v2938
        %3045 = vmatprep.subr.mxu0 0.0
        %3046 = vmatpush1.msra.mxu0 %v2939
        %3047 = vmatprep.subr.mxu0 0.0
        %3048 = vmatpush1.msra.mxu0 %v2940
        %3049 = vmatprep.subr.mxu0 0.0
        %3050 = vmatpush1.msra.mxu0 %v2941
        %3051 = vmatprep.subr.mxu0 0.0
        %3052 = vmatpush1.msra.mxu0 %v2942
        %3053 = vmatprep.subr.mxu0 0.0
        %3054 = vmatpush1.msra.mxu0 %v2943
        %3055 = vmatprep.subr.mxu0 0.0
        %3056 = vmatpush1.msra.mxu0 %v2944
        %3057 = vmatprep.subr.mxu0 0.0
        %3058 = vmatpush1.msra.mxu0 %v2970
        %3059 = vmatprep.subr.mxu0 0.0
        %3060 = vmatpush1.msra.mxu0 %v2972
        %3061 = vmatprep.subr.mxu0 0.0
        %3062 = vmatpush1.msra.mxu0 %v2974
        %3063 = vmatprep.subr.mxu0 0.0
        %3064 = vmatpush1.msra.mxu0 %v2976
        %3065 = vmatprep.subr.mxu0 0.0
        %3066 = vmatpush1.msra.mxu0 %v2978
        %3067 = vmatprep.subr.mxu0 0.0
        %3068 = vmatpush1.msra.mxu0 %v2980
        %3069 = vmatprep.subr.mxu0 0.0
        %3070 = vmatpush1.msra.mxu0 %v2982
        %3071 = vmatprep.subr.mxu0 0.0
        %3072 = vmatpush1.msra.mxu0 %v2984
        %3073 = vmatprep.subr.mxu0 0.0
        %3074 = vmatpush1.msra.mxu0 %v2994
        %3075 = vmatprep.subr.mxu0 0.0
        %3076 = vmatpush1.msra.mxu0 %v2996
        %3077 = vmatprep.subr.mxu0 0.0
        %3078 = vmatpush1.msra.mxu0 %v2998
        %3079 = vmatprep.subr.mxu0 0.0
        %3080 = vmatpush1.msra.mxu0 %v3000
        %3081 = vmatprep.subr.mxu0 0.0
        %3082 = vmatpush1.msra.mxu0 %v3002
        %3083 = vmatprep.subr.mxu0 0.0
        %3084 = vmatpush1.msra.mxu0 %v3004
        %3085 = vmatprep.subr.mxu0 0.0
        %3086 = vmatpush1.msra.mxu0 %v3006
        %3087 = vmatprep.subr.mxu0 0.0
        %3088 = vmatpush1.msra.mxu0 %v3008
        %3089 = vmatprep.subr.mxu0 0.0
        %3090 = vmatpush1.msra.mxu0 %v1035
        %3091 = vmatprep.subr.mxu0 0.0
        %3092 = vmatpush1.msra.mxu0 0.0
        %3093 = vmatprep.subr.mxu0 0.0
        %3094 = vmatpush1.msra.mxu0 0.0
        %3095 = vmatprep.subr.mxu0 0.0
        %3096 = vmatpush1.msra.mxu0 0.0
        %3097 = vmatprep.subr.mxu0 0.0
        %3098 = vmatpush1.msra.mxu0 0.0
        %3099 = vmatprep.subr.mxu0 0.0
        %3100 = vmatpush1.msra.mxu0 0.0
        %3101 = vmatprep.subr.mxu0 0.0
        %3102 = vmatpush1.msra.mxu0 0.0
        %3103 = vmatprep.subr.mxu0 0.0
        %3104 = vmatpush1.msra.mxu0 0.0
        %3105 = vmatprep.mubr.f32.mxu0 %v3018
        %3106 = vmatmul.mubr.f32.gmra.mrb[0].mxu0 %v2945
        %v3107 = vpop.f32.mrb[0].mxu0
        %v3108 = vadd.f32 0.0, %v3107
        %v3109 = vpop.f32.mrb[0].mxu0
        %3110 = vmatprep.mubr.f32.mxu0 %v3021
        %3111 = vmatmul.mubr.f32.gmra.mrb[0].mxu0 %v2947
        %v3112 = vpop.f32.mrb[0].mxu0
        %v3113 = vadd.f32 0.0, %v3112
        %v3114 = vpop.f32.mrb[0].mxu0
        %3115 = vmatprep.mubr.f32.mxu0 %v3024
        %3116 = vmatmul.mubr.f32.gmra.mrb[0].mxu0 %v2949
        %v3117 = vpop.f32.mrb[0].mxu0
        %v3118 = vadd.f32 0.0, %v3117
        %v3119 = vpop.f32.mrb[0].mxu0
        %3120 = vmatprep.mubr.f32.mxu0 %v3027
        %3121 = vmatmul.mubr.f32.gmra.mrb[0].mxu0 %v2951
        %v3122 = vpop.f32.mrb[0].mxu0
        %v3123 = vadd.f32 0.0, %v3122
        %v3124 = vpop.f32.mrb[0].mxu0
        %3125 = vmatprep.mubr.f32.mxu0 %v3030
        %3126 = vmatmul.mubr.f32.gmra.mrb[0].mxu0 %v2953
        %v3127 = vpop.f32.mrb[0].mxu0
        %v3128 = vadd.f32 0.0, %v3127
        %v3129 = vpop.f32.mrb[0].mxu0
        %3130 = vmatprep.mubr.f32.mxu0 %v3033
        %3131 = vmatmul.mubr.f32.gmra.mrb[0].mxu0 %v2955
        %v3132 = vpop.f32.mrb[0].mxu0
        %v3133 = vadd.f32 0.0, %v3132
        %v3134 = vpop.f32.mrb[0].mxu0
        %3135 = vmatprep.mubr.f32.mxu0 %v3036
        %3136 = vmatmul.mubr.f32.gmra.mrb[0].mxu0 %v2957
        %v3137 = vpop.f32.mrb[0].mxu0
        %v3138 = vadd.f32 0.0, %v3137
        %v3139 = vpop.f32.mrb[0].mxu0
        %3140 = vmatprep.mubr.f32.mxu0 %v3039
        %3141 = vmatmul.mubr.f32.gmra.mrb[0].mxu0 %v2959
        %v3142 = vpop.f32.mrb[0].mxu0
        %v3143 = vadd.f32 0.0, %v3142
        %v3144 = vpop.f32.mrb[0].mxu0
        %3145 = vdwg.mxu0
        %v3146 = vld [vmem:[%s8] sm:$0xff]
        %v3147 = vld [vmem:[%s8 + $0x8] sm:$0xff]
        %v3148 = vld [vmem:[%s8 + $0x10] sm:$0xff]
        %v3149 = vld [vmem:[%s8 + $0x18] sm:$0xff]
        %v3150 = vld [vmem:[%s8 + $0x20] sm:$0xff]
        %v3151 = vld [vmem:[%s8 + $0x28] sm:$0xff]
        %v3152 = vld [vmem:[%s8 + $0x30] sm:$0xff]
        %v3153 = vld [vmem:[%s8 + $0x38] sm:$0xff]
        %v3154 = vld [vmem:[%s8 + $0x40] sm:$0xff]
        %v3155 = vld [vmem:[%s8 + $0x48] sm:$0xff]
        %v3156 = vld [vmem:[%s8 + $0x50] sm:$0x3]
        %vm3157 = vcmask 670720
        %v3159 = vsel %vm3157, %v3108, 0
        %v3162 = vsel %vm3157, %v3113, 0
        %v3165 = vsel %vm3157, %v3118, 0
        %v3168 = vsel %vm3157, %v3123, 0
        %v3171 = vsel %vm3157, %v3128, 0
        %v3174 = vsel %vm3157, %v3133, 0
        %v3177 = vsel %vm3157, %v3138, 0
        %v3180 = vsel %vm3157, %v3143, 0
        %vm3182 = vcmask 1041408
        %v3184 = vsel %vm3182, %v3156, 0
        %3186 = vmatprep.subr.mxu0 0.0
        %3187 = vmatpush1.msra.mxu0 %v3146
        %3188 = vmatprep.subr.mxu0 0.0
        %3189 = vmatpush1.msra.mxu0 %v3147
        %3190 = vmatprep.subr.mxu0 0.0
        %3191 = vmatpush1.msra.mxu0 %v3148
        %3192 = vmatprep.subr.mxu0 0.0
        %3193 = vmatpush1.msra.mxu0 %v3149
        %3194 = vmatprep.subr.mxu0 0.0
        %3195 = vmatpush1.msra.mxu0 %v3150
        %3196 = vmatprep.subr.mxu0 0.0
        %3197 = vmatpush1.msra.mxu0 %v3151
        %3198 = vmatprep.subr.mxu0 0.0
        %3199 = vmatpush1.msra.mxu0 %v3152
        %3200 = vmatprep.subr.mxu0 0.0
        %3201 = vmatpush1.msra.mxu0 %v3153
        %3202 = vmatprep.subr.mxu0 0.0
        %3203 = vmatpush1.msra.mxu0 %v3154
        %3204 = vmatprep.subr.mxu0 0.0
        %3205 = vmatpush1.msra.mxu0 %v3155
        %3206 = vmatprep.subr.mxu0 0.0
        %3207 = vmatpush1.msra.mxu0 %v3184
        %3208 = vmatprep.subr.mxu0 0.0
        %3209 = vmatpush1.msra.mxu0 0.0
        %3210 = vmatprep.subr.mxu0 0.0
        %3211 = vmatpush1.msra.mxu0 0.0
        %3212 = vmatprep.subr.mxu0 0.0
        %3213 = vmatpush1.msra.mxu0 0.0
        %3214 = vmatprep.subr.mxu0 0.0
        %3215 = vmatpush1.msra.mxu0 0.0
        %3216 = vmatprep.subr.mxu0 0.0
        %3217 = vmatpush1.msra.mxu0 0.0
        %3218 = vmatprep.subr.mxu0 0.0
        %3219 = vmatpush1.msra.mxu0 0.0
        %3220 = vmatprep.subr.mxu0 0.0
        %3221 = vmatpush1.msra.mxu0 0.0
        %3222 = vmatprep.subr.mxu0 0.0
        %3223 = vmatpush1.msra.mxu0 0.0
        %3224 = vmatprep.subr.mxu0 0.0
        %3225 = vmatpush1.msra.mxu0 0.0
        %3226 = vmatprep.subr.mxu0 0.0
        %3227 = vmatpush1.msra.mxu0 0.0
        %3228 = vmatprep.subr.mxu0 0.0
        %3229 = vmatpush1.msra.mxu0 0.0
        %3230 = vmatprep.subr.mxu0 0.0
        %3231 = vmatpush1.msra.mxu0 0.0
        %3232 = vmatprep.subr.mxu0 0.0
        %3233 = vmatpush1.msra.mxu0 0.0
        %3234 = vmatprep.subr.mxu0 0.0
        %3235 = vmatpush1.msra.mxu0 0.0
        %3236 = vmatprep.subr.mxu0 0.0
        %3237 = vmatpush1.msra.mxu0 0.0
        %3238 = vmatprep.subr.mxu0 0.0
        %3239 = vmatpush1.msra.mxu0 0.0
        %3240 = vmatprep.subr.mxu0 0.0
        %3241 = vmatpush1.msra.mxu0 0.0
        %3242 = vmatprep.subr.mxu0 0.0
        %3243 = vmatpush1.msra.mxu0 0.0
        %3244 = vmatprep.subr.mxu0 0.0
        %3245 = vmatpush1.msra.mxu0 0.0
        %3246 = vmatprep.subr.mxu0 0.0
        %3247 = vmatpush1.msra.mxu0 0.0
        %3248 = vmatprep.subr.mxu0 0.0
        %3249 = vmatpush1.msra.mxu0 0.0
        %3250 = vmatprep.mubr.f32.mxu0 0.0
        %3251 = vmatmul.mubr.f32.gmra.mrb[0].mxu0 %v3159
        %v3252 = vpop.f32.mrb[0].mxu0
        %v3253 = vadd.f32 0.0, %v3252
        %v3254 = vpop.f32.mrb[0].mxu0
        %3255 = vmatprep.mubr.f32.mxu0 0.0
        %3256 = vmatmul.mubr.f32.gmra.mrb[0].mxu0 %v3162
        %v3257 = vpop.f32.mrb[0].mxu0
        %v3258 = vadd.f32 0.0, %v3257
        %v3259 = vpop.f32.mrb[0].mxu0
        %3260 = vmatprep.mubr.f32.mxu0 0.0
        %3261 = vmatmul.mubr.f32.gmra.mrb[0].mxu0 %v3165
        %v3262 = vpop.f32.mrb[0].mxu0
        %v3263 = vadd.f32 0.0, %v3262
        %v3264 = vpop.f32.mrb[0].mxu0
        %3265 = vmatprep.mubr.f32.mxu0 0.0
        %3266 = vmatmul.mubr.f32.gmra.mrb[0].mxu0 %v3168
        %v3267 = vpop.f32.mrb[0].mxu0
        %v3268 = vadd.f32 0.0, %v3267
        %v3269 = vpop.f32.mrb[0].mxu0
        %3270 = vmatprep.mubr.f32.mxu0 0.0
        %3271 = vmatmul.mubr.f32.gmra.mrb[0].mxu0 %v3171
        %v3272 = vpop.f32.mrb[0].mxu0
        %v3273 = vadd.f32 0.0, %v3272
        %v3274 = vpop.f32.mrb[0].mxu0
        %3275 = vmatprep.mubr.f32.mxu0 0.0
        %3276 = vmatmul.mubr.f32.gmra.mrb[0].mxu0 %v3174
        %v3277 = vpop.f32.mrb[0].mxu0
        %v3278 = vadd.f32 0.0, %v3277
        %v3279 = vpop.f32.mrb[0].mxu0
        %3280 = vmatprep.mubr.f32.mxu0 0.0
        %3281 = vmatmul.mubr.f32.gmra.mrb[0].mxu0 %v3177
        %v3282 = vpop.f32.mrb[0].mxu0
        %v3283 = vadd.f32 0.0, %v3282
        %v3284 = vpop.f32.mrb[0].mxu0
        %3285 = vmatprep.mubr.f32.mxu0 0.0
        %3286 = vmatmul.mubr.f32.gmra.mrb[0].mxu0 %v3180
        %v3287 = vpop.f32.mrb[0].mxu0
        %v3288 = vadd.f32 0.0, %v3287
        %v3289 = vpop.f32.mrb[0].mxu0
        %3290 = vdwg.mxu0
        %v3291 = vmul.f32 %v3253, 0.2
        %v3292 = vmul.f32 %v3258, 0.2
        %v3293 = vmul.f32 %v3263, 0.2
        %v3294 = vmul.f32 %v3268, 0.2
        %v3295 = vmul.f32 %v3273, 0.2
        %v3296 = vmul.f32 %v3278, 0.2
        %v3297 = vmul.f32 %v3283, 0.2
        %v3298 = vmul.f32 %v3288, 0.2
        %v3299 = vmax.f32 %v3253, %v3291
        %v3300 = vmax.f32 %v3258, %v3292
        %v3301 = vmax.f32 %v3263, %v3293
        %v3302 = vmax.f32 %v3268, %v3294
        %v3303 = vmax.f32 %v3273, %v3295
        %v3304 = vmax.f32 %v3278, %v3296
        %v3305 = vmax.f32 %v3283, %v3297
        %v3306 = vmax.f32 %v3288, %v3298
        %vm3307 = vcmask 334848
        %3308 = vst.msk [vmem:[%s694] sm:$0xff] %vm3307, %v3299
        %3309 = vst.msk [vmem:[%s694 + $0x8] sm:$0xff] %vm3307, %v3300
        %3310 = vst.msk [vmem:[%s694 + $0x10] sm:$0xff] %vm3307, %v3301
        %3311 = vst.msk [vmem:[%s694 + $0x18] sm:$0xff] %vm3307, %v3302
        %3312 = vst.msk [vmem:[%s694 + $0x20] sm:$0xff] %vm3307, %v3303
        %3313 = vst.msk [vmem:[%s694 + $0x28] sm:$0xff] %vm3307, %v3304
        %3314 = vst.msk [vmem:[%s694 + $0x30] sm:$0xff] %vm3307, %v3305
        %3315 = vst.msk [vmem:[%s694 + $0x38] sm:$0xff] %vm3307, %v3306
        %3324 = vrot.lane.b32.xlu0 %v3299, 1
        %v3325 = vpop.permute.xlu0 %3324
        %3326 = vrot.lane.b32.xlu0 %v3300, 1
        %v3327 = vpop.permute.xlu0 %3326
        %3328 = vrot.lane.b32.xlu0 %v3301, 1
        %v3329 = vpop.permute.xlu0 %3328
        %3330 = vrot.lane.b32.xlu0 %v3302, 1
        %v3331 = vpop.permute.xlu0 %3330
        %3332 = vrot.lane.b32.xlu0 %v3303, 1
        %v3333 = vpop.permute.xlu0 %3332
        %3334 = vrot.lane.b32.xlu0 %v3304, 1
        %v3335 = vpop.permute.xlu0 %3334
        %3336 = vrot.lane.b32.xlu0 %v3305, 1
        %v3337 = vpop.permute.xlu0 %3336
        %3338 = vrot.lane.b32.xlu0 %v3306, 1
        %v3339 = vpop.permute.xlu0 %3338
        %v3348 = vsel %vm1336, 0.0, %v3325
        %v3349 = vsel %vm1336, 0.0, %v3327
        %v3350 = vsel %vm1336, 0.0, %v3329
        %v3351 = vsel %vm1336, 0.0, %v3331
        %v3352 = vsel %vm1336, 0.0, %v3333
        %v3353 = vsel %vm1336, 0.0, %v3335
        %v3354 = vsel %vm1336, 0.0, %v3337
        %v3355 = vsel %vm1336, 0.0, %v3339
        %vm3356 = vcmask 343040
        %v3357 = vsel %vm3356, %v3348, 0.0
        %v3358 = vsel %vm3356, %v3349, 0.0
        %v3359 = vsel %vm3356, %v3350, 0.0
        %v3360 = vsel %vm3356, %v3351, 0.0
        %v3361 = vsel %vm3356, %v3352, 0.0
        %v3362 = vsel %vm3356, %v3353, 0.0
        %v3363 = vsel %vm3356, %v3354, 0.0
        %v3364 = vsel %vm3356, %v3355, 0.0
        %v3365 = vld [vmem:[%s679] sm:$0xff]
        %3374 = vrot.lane.b32.xlu0 %v3357, 127
        %v3375 = vpop.permute.xlu0 %3374
        %3376 = vrot.lane.b32.xlu0 %v3358, 127
        %v3377 = vpop.permute.xlu0 %3376
        %3378 = vrot.lane.b32.xlu0 %v3359, 127
        %v3379 = vpop.permute.xlu0 %3378
        %3380 = vrot.lane.b32.xlu0 %v3360, 127
        %v3381 = vpop.permute.xlu0 %3380
        %3382 = vrot.lane.b32.xlu0 %v3361, 127
        %v3383 = vpop.permute.xlu0 %3382
        %3384 = vrot.lane.b32.xlu0 %v3362, 127
        %v3385 = vpop.permute.xlu0 %3384
        %3386 = vrot.lane.b32.xlu0 %v3363, 127
        %v3387 = vpop.permute.xlu0 %3386
        %3388 = vrot.lane.b32.xlu0 %v3364, 127
        %v3389 = vpop.permute.xlu0 %3388
        %3398 = vrot.lane.b32.xlu0 %v3357, 126
        %v3399 = vpop.permute.xlu0 %3398
        %3400 = vrot.lane.b32.xlu0 %v3358, 126
        %v3401 = vpop.permute.xlu0 %3400
        %3402 = vrot.lane.b32.xlu0 %v3359, 126
        %v3403 = vpop.permute.xlu0 %3402
        %3404 = vrot.lane.b32.xlu0 %v3360, 126
        %v3405 = vpop.permute.xlu0 %3404
        %3406 = vrot.lane.b32.xlu0 %v3361, 126
        %v3407 = vpop.permute.xlu0 %3406
        %3408 = vrot.lane.b32.xlu0 %v3362, 126
        %v3409 = vpop.permute.xlu0 %3408
        %3410 = vrot.lane.b32.xlu0 %v3363, 126
        %v3411 = vpop.permute.xlu0 %3410
        %3412 = vrot.lane.b32.xlu0 %v3364, 126
        %v3413 = vpop.permute.xlu0 %3412
        %v3423 = vcombine.high %v3365, %v3365
        %v3424 = vsel %vm811, %v3423, 0
        %3426 = vmatprep.subr.mxu0 0.0
        %3427 = vmatpush1.msra.mxu0 %v3357
        %3428 = vmatprep.subr.mxu0 0.0
        %3429 = vmatpush1.msra.mxu0 %v3358
        %3430 = vmatprep.subr.mxu0 0.0
        %3431 = vmatpush1.msra.mxu0 %v3359
        %3432 = vmatprep.subr.mxu0 0.0
        %3433 = vmatpush1.msra.mxu0 %v3360
        %3434 = vmatprep.subr.mxu0 0.0
        %3435 = vmatpush1.msra.mxu0 %v3361
        %3436 = vmatprep.subr.mxu0 0.0
        %3437 = vmatpush1.msra.mxu0 %v3362
        %3438 = vmatprep.subr.mxu0 0.0
        %3439 = vmatpush1.msra.mxu0 %v3363
        %3440 = vmatprep.subr.mxu0 0.0
        %3441 = vmatpush1.msra.mxu0 %v3364
        %3442 = vmatprep.subr.mxu0 0.0
        %3443 = vmatpush1.msra.mxu0 %v3375
        %3444 = vmatprep.subr.mxu0 0.0
        %3445 = vmatpush1.msra.mxu0 %v3377
        %3446 = vmatprep.subr.mxu0 0.0
        %3447 = vmatpush1.msra.mxu0 %v3379
        %3448 = vmatprep.subr.mxu0 0.0
        %3449 = vmatpush1.msra.mxu0 %v3381
        %3450 = vmatprep.subr.mxu0 0.0
        %3451 = vmatpush1.msra.mxu0 %v3383
        %3452 = vmatprep.subr.mxu0 0.0
        %3453 = vmatpush1.msra.mxu0 %v3385
        %3454 = vmatprep.subr.mxu0 0.0
        %3455 = vmatpush1.msra.mxu0 %v3387
        %3456 = vmatprep.subr.mxu0 0.0
        %3457 = vmatpush1.msra.mxu0 %v3389
        %3458 = vmatprep.subr.mxu0 0.0
        %3459 = vmatpush1.msra.mxu0 %v3399
        %3460 = vmatprep.subr.mxu0 0.0
        %3461 = vmatpush1.msra.mxu0 %v3401
        %3462 = vmatprep.subr.mxu0 0.0
        %3463 = vmatpush1.msra.mxu0 %v3403
        %3464 = vmatprep.subr.mxu0 0.0
        %3465 = vmatpush1.msra.mxu0 %v3405
        %3466 = vmatprep.subr.mxu0 0.0
        %3467 = vmatpush1.msra.mxu0 %v3407
        %3468 = vmatprep.subr.mxu0 0.0
        %3469 = vmatpush1.msra.mxu0 %v3409
        %3470 = vmatprep.subr.mxu0 0.0
        %3471 = vmatpush1.msra.mxu0 %v3411
        %3472 = vmatprep.subr.mxu0 0.0
        %3473 = vmatpush1.msra.mxu0 %v3413
        %3474 = vmatprep.subr.mxu0 0.0
        %3475 = vmatpush1.msra.mxu0 %v1035
        %3476 = vmatprep.subr.mxu0 0.0
        %3477 = vmatpush1.msra.mxu0 0.0
        %3478 = vmatprep.subr.mxu0 0.0
        %3479 = vmatpush1.msra.mxu0 0.0
        %3480 = vmatprep.subr.mxu0 0.0
        %3481 = vmatpush1.msra.mxu0 0.0
        %3482 = vmatprep.subr.mxu0 0.0
        %3483 = vmatpush1.msra.mxu0 0.0
        %3484 = vmatprep.subr.mxu0 0.0
        %3485 = vmatpush1.msra.mxu0 0.0
        %3486 = vmatprep.subr.mxu0 0.0
        %3487 = vmatpush1.msra.mxu0 0.0
        %3488 = vmatprep.subr.mxu0 0.0
        %3489 = vmatpush1.msra.mxu0 0.0
        %3490 = vmatprep.mubr.f32.mxu0 %v3424
        %3491 = vmatmul.mubr.f32.gmra.mrb[0].mxu0 %v3365
        %v3492 = vpop.f32.mrb[0].mxu0
        %v3493 = vadd.f32 0.0, %v3492
        %v3494 = vpop.f32.mrb[0].mxu0
        %3495 = vdwg.mxu0
        %vm3496 = vcmask 330752
        %3497 = vst.msk [vmem:[%s698] sm:$0xf] %vm3496, %v3493
        %p3498 = scmp.lt.s32.totalorder %s30, 1
        %s3499 = scalar_select %p3498, %s30, 1
        %s3500 = smul.addr %s3499, 4
        %s3501 = smul.addr %s3500, 8
        %s3502 = scalar_lea.vmem %s9, %s3501
        %p3503 = scmp.lt.s32.totalorder %s30, 1
        %s3504 = scalar_select %p3503, %s30, 1
        %s3505 = smul.addr %s3504, 8
        %s3506 = smul.addr %s3505, 8
        %s3507 = scalar_lea.vmem %s10, %s3506
        %p3508 = scmp.lt.s32.totalorder %s30, 1
        %s3509 = scalar_select %p3508, %s30, 1
        %s3510 = smul.addr %s3509, 8
        %s3511 = smul.addr %s3510, 8
        %s3512 = scalar_lea.vmem %s11, %s3511
        %p3513 = scmp.lt.s32.totalorder %s30, 1
        %s3514 = scalar_select %p3513, %s30, 1
        %s3515 = smul.addr %s3514, 4
        %s3516 = scalar_lea.vmem %s12, %s3515
        // Predicated region
        $region110: #{_lambda_.4} parent=92 // pred_check
          %p3517 = pneg %p277
        $region111: #{_lambda_.4} parent=92 // pred_check_branch
          %3519 = sbr.rel (%p3517) target = $region113
        $region112: #{_lambda_.4} parent=92 // pred_region
          _
        $region113: #{_lambda_.4} parent=92 // pred_fallthru
          _
        // Predicated region
        $region114: #{_lambda_.4} parent=92 // pred_check
          %p3520 = pneg %p303
        $region115: #{_lambda_.4} parent=92 // pred_check_branch
          %3522 = sbr.rel (%p3520) target = $region117
        $region116: #{_lambda_.4} parent=92 // pred_region
          _
        $region117: #{_lambda_.4} parent=92 // pred_fallthru
          _
        // Predicated region
        $region118: #{_lambda_.4} parent=92 // pred_check
          %p3523 = pneg %p329
        $region119: #{_lambda_.4} parent=92 // pred_check_branch
          %3525 = sbr.rel (%p3523) target = $region121
        $region120: #{_lambda_.4} parent=92 // pred_region
          _
        $region121: #{_lambda_.4} parent=92 // pred_fallthru
          _
        // Predicated region
        $region122: #{_lambda_.4} parent=92 // pred_check
          %p3526 = pneg %p355
        $region123: #{_lambda_.4} parent=92 // pred_check_branch
          %3528 = sbr.rel (%p3526) target = $region125
        $region124: #{_lambda_.4} parent=92 // pred_region
          _
        $region125: #{_lambda_.4} parent=92 // pred_fallthru
          _
      $region93: #{_lambda_.4} parent=5 // pred_fallthru
        _
      %p3529 = scmp.le.s32.totalorder 2, %s25
      // Predicated region
      $region126: #{_lambda_.4} parent=5 // pred_check
        %p3530 = pneg %p3529
      $region127: #{_lambda_.4} parent=5 // pred_check_branch
        %3532 = sbr.rel (%p3530) target = $region129
      $region128: #{_lambda_.4} parent=5 // pred_region
        %s3533 = ssub.s32 %s25, 2
        // Predicated region
        $region130: #{_lambda_.4} parent=128 // pred_check
          %p3534 = pneg %p283
        $region131: #{_lambda_.4} parent=128 // pred_check_branch
          %3536 = sbr.rel (%p3534) target = $region133
        $region132: #{_lambda_.4} parent=128 // pred_region
          %p3537 = scmp.lt.s32.totalorder %s31, 1
          %s3538 = scalar_select %p3537, %s31, 1
          %s3539 = smul.addr %s3538, 4
          %s3540 = smul.addr %s3539, 8
          %s3541 = scalar_lea.vmem %s9, %s3540
        $region133: #{_lambda_.4} parent=128 // pred_fallthru
          _
        // Predicated region
        $region134: #{_lambda_.4} parent=128 // pred_check
          %p3542 = pneg %p309
        $region135: #{_lambda_.4} parent=128 // pred_check_branch
          %3544 = sbr.rel (%p3542) target = $region137
        $region136: #{_lambda_.4} parent=128 // pred_region
          %p3545 = scmp.lt.s32.totalorder %s31, 1
          %s3546 = scalar_select %p3545, %s31, 1
          %s3547 = smul.addr %s3546, 8
          %s3548 = smul.addr %s3547, 8
          %s3549 = scalar_lea.vmem %s10, %s3548
        $region137: #{_lambda_.4} parent=128 // pred_fallthru
          _
        // Predicated region
        $region138: #{_lambda_.4} parent=128 // pred_check
          %p3550 = pneg %p335
        $region139: #{_lambda_.4} parent=128 // pred_check_branch
          %3552 = sbr.rel (%p3550) target = $region141
        $region140: #{_lambda_.4} parent=128 // pred_region
          %p3553 = scmp.lt.s32.totalorder %s31, 1
          %s3554 = scalar_select %p3553, %s31, 1
          %s3555 = smul.addr %s3554, 8
          %s3556 = smul.addr %s3555, 8
          %s3557 = scalar_lea.vmem %s11, %s3556
        $region141: #{_lambda_.4} parent=128 // pred_fallthru
          _
        // Predicated region
        $region142: #{_lambda_.4} parent=128 // pred_check
          %p3558 = pneg %p361
        $region143: #{_lambda_.4} parent=128 // pred_check_branch
          %3560 = sbr.rel (%p3558) target = $region145
        $region144: #{_lambda_.4} parent=128 // pred_region
          %p3561 = scmp.lt.s32.totalorder %s31, 1
          %s3562 = scalar_select %p3561, %s31, 1
          %s3563 = smul.addr %s3562, 4
          %s3564 = scalar_lea.vmem %s12, %s3563
        $region145: #{_lambda_.4} parent=128 // pred_fallthru
          _
      $region129: #{_lambda_.4} parent=5 // pred_fallthru
        _
    $region6: #{_lambda_.4} parent=1 // loop_footer
      %s29 = sadd.s32 1, %s25
    $region7: #{_lambda_.4} parent=1 // loop_footer_branch
      %24 = sbr.rel target = $region3
    $region8: #{_lambda_.4} parent=1 // loop_exit
      _
    %3565 = vsyncpa [#allocation4], 1
    %s3566 = scalar_lea.sflag [#allocation4], 1
    %3567 = vsyncpa %s3566, 1
    %3568 = vsyncpa [#allocation6], 1
    %s3569 = scalar_lea.sflag [#allocation6], 1
    %3570 = vsyncpa %s3569, 1

// kernel: _lambda_.5
$region0: #{_lambda_.5}
  #allocation0 [shape = 'u32[]', space=smem, size = 0x4, offset = 0x4, fixed_abs, tag = 'smem constant byte address 0x4 - core index']
  #allocation1 [shape = 'u32[144,128]{1,0:T(1,128)}', space=vmem, size = 0x12000, scoped, tag = 'internal scratch']
  %s0 = inlined_call_operand.vmem [shape: f32[64,24], index: 0, kind: input, shape index: {}]
  %s1 = inlined_call_operand.vmem [shape: f32[64,513], index: 1, kind: input, shape index: {}]
  %s2 = inlined_call_operand.vmem [shape: f32[32,97], index: 2, kind: input, shape index: {}]
  %s3 = inlined_call_operand.vmem [shape: f32[128,257], index: 3, kind: input, shape index: {}]
  %s4 = inlined_call_operand.vmem [shape: f32[64,193], index: 4, kind: input, shape index: {}]
  %s5 = inlined_call_operand.vmem [shape: f32[128,513], index: 5, kind: input, shape index: {}]
  %s6 = inlined_call_operand.vmem [shape: f32[64,193], index: 6, kind: input, shape index: {}]
  %s7 = inlined_call_operand.vmem [shape: f32[4,193], index: 7, kind: input, shape index: {}]
  %s8 = inlined_call_operand.vmem [shape: f32[34,17], index: 8, kind: input, shape index: {}]
  %s9 = inlined_call_operand.vmem [shape: f32[32,22], index: 9, kind: output, shape index: {0}]
  %s10 = inlined_call_operand.vmem [shape: f32[64,28], index: 10, kind: output, shape index: {1}]
  %s11 = inlined_call_operand.vmem [shape: f32[64,17], index: 11, kind: output, shape index: {2}]
  %s12 = inlined_call_operand.vmem [shape: f32[4,17], index: 12, kind: output, shape index: {3}]
  %13 = xla_tuple %s9, %s10, %s11, %s12
  %s14 = sld [smem:[#allocation0]]
  $region70: #{_lambda_.5} parent=0
    _
  %s16 = ssub.s32 1, %s14
  %s17 = scalar_select 0, %s16, %s14
  // Predicated region
  $region2: #{_lambda_.5} parent=0 // pred_check
    _
  $region3: #{_lambda_.5} parent=0 // pred_check_branch
    %19 = sbr.rel (0) target = $region5
  $region4: #{_lambda_.5} parent=0 // pred_region
    _
  $region5: #{_lambda_.5} parent=0 // pred_fallthru
    _
  // Predicated region
  $region6: #{_lambda_.5} parent=0 // pred_check
    _
  $region7: #{_lambda_.5} parent=0 // pred_check_branch
    %21 = sbr.rel (0) target = $region9
  $region8: #{_lambda_.5} parent=0 // pred_region
    _
  $region9: #{_lambda_.5} parent=0 // pred_fallthru
    _
  // Predicated region
  $region10: #{_lambda_.5} parent=0 // pred_check
    _
  $region11: #{_lambda_.5} parent=0 // pred_check_branch
    %23 = sbr.rel (0) target = $region13
  $region12: #{_lambda_.5} parent=0 // pred_region
    _
  $region13: #{_lambda_.5} parent=0 // pred_fallthru
    _
  // Predicated region
  $region14: #{_lambda_.5} parent=0 // pred_check
    _
  $region15: #{_lambda_.5} parent=0 // pred_check_branch
    %25 = sbr.rel (0) target = $region17
  $region16: #{_lambda_.5} parent=0 // pred_region
    _
  $region17: #{_lambda_.5} parent=0 // pred_fallthru
    _
  // Predicated region
  $region18: #{_lambda_.5} parent=0 // pred_check
    _
  $region19: #{_lambda_.5} parent=0 // pred_check_branch
    %27 = sbr.rel (0) target = $region21
  $region20: #{_lambda_.5} parent=0 // pred_region
    _
  $region21: #{_lambda_.5} parent=0 // pred_fallthru
    _
  // Predicated region
  $region22: #{_lambda_.5} parent=0 // pred_check
    _
  $region23: #{_lambda_.5} parent=0 // pred_check_branch
    %29 = sbr.rel (0) target = $region25
  $region24: #{_lambda_.5} parent=0 // pred_region
    _
  $region25: #{_lambda_.5} parent=0 // pred_fallthru
    _
  // Predicated region
  $region26: #{_lambda_.5} parent=0 // pred_check
    _
  $region27: #{_lambda_.5} parent=0 // pred_check_branch
    %31 = sbr.rel (0) target = $region29
  $region28: #{_lambda_.5} parent=0 // pred_region
    _
  $region29: #{_lambda_.5} parent=0 // pred_fallthru
    _
  // Predicated region
  $region30: #{_lambda_.5} parent=0 // pred_check
    _
  $region31: #{_lambda_.5} parent=0 // pred_check_branch
    %33 = sbr.rel (0) target = $region33
  $region32: #{_lambda_.5} parent=0 // pred_region
    _
  $region33: #{_lambda_.5} parent=0 // pred_fallthru
    _
  // Predicated region
  $region34: #{_lambda_.5} parent=0 // pred_check
    _
  $region35: #{_lambda_.5} parent=0 // pred_check_branch
    %35 = sbr.rel (0) target = $region37
  $region36: #{_lambda_.5} parent=0 // pred_region
    _
  $region37: #{_lambda_.5} parent=0 // pred_fallthru
    _
  %v36 = vld [vmem:[%s0] sm:$0xff]
  %v37 = vld [vmem:[%s0 + $0x8] sm:$0xff]
  %v38 = vld [vmem:[%s0 + $0x10] sm:$0xff]
  %v39 = vld [vmem:[%s0 + $0x18] sm:$0xff]
  %v40 = vld [vmem:[%s0 + $0x20] sm:$0xff]
  %v41 = vld [vmem:[%s0 + $0x28] sm:$0xff]
  %v42 = vld [vmem:[%s0 + $0x30] sm:$0xff]
  %v43 = vld [vmem:[%s0 + $0x38] sm:$0xff]
  %52 = vrot.lane.b32.xlu0 %v36, 127
  %v53 = vpop.permute.xlu0 %52
  %54 = vrot.lane.b32.xlu0 %v37, 127
  %v55 = vpop.permute.xlu0 %54
  %56 = vrot.lane.b32.xlu0 %v38, 127
  %v57 = vpop.permute.xlu0 %56
  %58 = vrot.lane.b32.xlu0 %v39, 127
  %v59 = vpop.permute.xlu0 %58
  %60 = vrot.lane.b32.xlu0 %v40, 127
  %v61 = vpop.permute.xlu0 %60
  %62 = vrot.lane.b32.xlu0 %v41, 127
  %v63 = vpop.permute.xlu0 %62
  %64 = vrot.lane.b32.xlu0 %v42, 127
  %v65 = vpop.permute.xlu0 %64
  %66 = vrot.lane.b32.xlu0 %v43, 127
  %v67 = vpop.permute.xlu0 %66
  %68 = vrot.lane.b32.xlu0 %v36, 126
  %v69 = vpop.permute.xlu0 %68
  %70 = vrot.lane.b32.xlu0 %v37, 126
  %v71 = vpop.permute.xlu0 %70
  %72 = vrot.lane.b32.xlu0 %v38, 126
  %v73 = vpop.permute.xlu0 %72
  %74 = vrot.lane.b32.xlu0 %v39, 126
  %v75 = vpop.permute.xlu0 %74
  %76 = vrot.lane.b32.xlu0 %v40, 126
  %v77 = vpop.permute.xlu0 %76
  %78 = vrot.lane.b32.xlu0 %v41, 126
  %v79 = vpop.permute.xlu0 %78
  %80 = vrot.lane.b32.xlu0 %v42, 126
  %v81 = vpop.permute.xlu0 %80
  %82 = vrot.lane.b32.xlu0 %v43, 126
  %v83 = vpop.permute.xlu0 %82
  %84 = vrot.lane.b32.xlu0 %v36, 3
  %v85 = vpop.permute.xlu0 %84
  %86 = vrot.lane.b32.xlu0 %v37, 3
  %v87 = vpop.permute.xlu0 %86
  %88 = vrot.lane.b32.xlu0 %v38, 3
  %v89 = vpop.permute.xlu0 %88
  %90 = vrot.lane.b32.xlu0 %v39, 3
  %v91 = vpop.permute.xlu0 %90
  %92 = vrot.lane.b32.xlu0 %v40, 3
  %v93 = vpop.permute.xlu0 %92
  %94 = vrot.lane.b32.xlu0 %v41, 3
  %v95 = vpop.permute.xlu0 %94
  %96 = vrot.lane.b32.xlu0 %v42, 3
  %v97 = vpop.permute.xlu0 %96
  %98 = vrot.lane.b32.xlu0 %v43, 3
  %v99 = vpop.permute.xlu0 %98
  %100 = vrot.lane.b32.xlu0 %v36, 1
  %v101 = vpop.permute.xlu0 %100
  %102 = vrot.lane.b32.xlu0 %v37, 1
  %v103 = vpop.permute.xlu0 %102
  %104 = vrot.lane.b32.xlu0 %v38, 1
  %v105 = vpop.permute.xlu0 %104
  %106 = vrot.lane.b32.xlu0 %v39, 1
  %v107 = vpop.permute.xlu0 %106
  %108 = vrot.lane.b32.xlu0 %v40, 1
  %v109 = vpop.permute.xlu0 %108
  %110 = vrot.lane.b32.xlu0 %v41, 1
  %v111 = vpop.permute.xlu0 %110
  %112 = vrot.lane.b32.xlu0 %v42, 1
  %v113 = vpop.permute.xlu0 %112
  %114 = vrot.lane.b32.xlu0 %v43, 1
  %v115 = vpop.permute.xlu0 %114
  %116 = vrot.lane.b32.xlu0 %v36, 125
  %v117 = vpop.permute.xlu0 %116
  %118 = vrot.lane.b32.xlu0 %v37, 125
  %v119 = vpop.permute.xlu0 %118
  %120 = vrot.lane.b32.xlu0 %v38, 125
  %v121 = vpop.permute.xlu0 %120
  %122 = vrot.lane.b32.xlu0 %v39, 125
  %v123 = vpop.permute.xlu0 %122
  %124 = vrot.lane.b32.xlu0 %v40, 125
  %v125 = vpop.permute.xlu0 %124
  %126 = vrot.lane.b32.xlu0 %v41, 125
  %v127 = vpop.permute.xlu0 %126
  %128 = vrot.lane.b32.xlu0 %v42, 125
  %v129 = vpop.permute.xlu0 %128
  %130 = vrot.lane.b32.xlu0 %v43, 125
  %v131 = vpop.permute.xlu0 %130
  %132 = vrot.lane.b32.xlu0 %v36, 123
  %v133 = vpop.permute.xlu0 %132
  %134 = vrot.lane.b32.xlu0 %v37, 123
  %v135 = vpop.permute.xlu0 %134
  %136 = vrot.lane.b32.xlu0 %v38, 123
  %v137 = vpop.permute.xlu0 %136
  %138 = vrot.lane.b32.xlu0 %v39, 123
  %v139 = vpop.permute.xlu0 %138
  %140 = vrot.lane.b32.xlu0 %v40, 123
  %v141 = vpop.permute.xlu0 %140
  %142 = vrot.lane.b32.xlu0 %v41, 123
  %v143 = vpop.permute.xlu0 %142
  %144 = vrot.lane.b32.xlu0 %v42, 123
  %v145 = vpop.permute.xlu0 %144
  %146 = vrot.lane.b32.xlu0 %v43, 123
  %v147 = vpop.permute.xlu0 %146
  %v148 = vld [vmem:[%s1] sm:$0xff]
  %v149 = vld [vmem:[%s1 + $0x8] sm:$0xff]
  %v150 = vld [vmem:[%s1 + $0x10] sm:$0xff]
  %v151 = vld [vmem:[%s1 + $0x18] sm:$0xff]
  %v152 = vld [vmem:[%s1 + $0x20] sm:$0xff]
  %v153 = vld [vmem:[%s1 + $0x28] sm:$0xff]
  %v154 = vld [vmem:[%s1 + $0x30] sm:$0xff]
  %v155 = vld [vmem:[%s1 + $0x38] sm:$0xff]
  %v156 = vld [vmem:[%s1 + $0x40] sm:$0xff]
  %v157 = vld [vmem:[%s1 + $0x48] sm:$0xff]
  %v158 = vld [vmem:[%s1 + $0x50] sm:$0xff]
  %v159 = vld [vmem:[%s1 + $0x58] sm:$0xff]
  %v160 = vld [vmem:[%s1 + $0x60] sm:$0xff]
  %v161 = vld [vmem:[%s1 + $0x68] sm:$0xff]
  %v162 = vld [vmem:[%s1 + $0x70] sm:$0xff]
  %v163 = vld [vmem:[%s1 + $0x78] sm:$0xff]
  %v164 = vld [vmem:[%s1 + $0x80] sm:$0xff]
  %v165 = vld [vmem:[%s1 + $0x88] sm:$0xff]
  %v166 = vld [vmem:[%s1 + $0x90] sm:$0xff]
  %v167 = vld [vmem:[%s1 + $0x98] sm:$0xff]
  %v168 = vld [vmem:[%s1 + $0xa0] sm:$0xff]
  %v169 = vld [vmem:[%s1 + $0xa8] sm:$0xff]
  %v170 = vld [vmem:[%s1 + $0xb0] sm:$0xff]
  %v171 = vld [vmem:[%s1 + $0xb8] sm:$0xff]
  %v172 = vld [vmem:[%s1 + $0xc0] sm:$0xff]
  %v173 = vld [vmem:[%s1 + $0xc8] sm:$0xff]
  %v174 = vld [vmem:[%s1 + $0xd0] sm:$0xff]
  %v175 = vld [vmem:[%s1 + $0xd8] sm:$0xff]
  %v176 = vld [vmem:[%s1 + $0xe0] sm:$0xff]
  %v177 = vld [vmem:[%s1 + $0xe8] sm:$0xff]
  %v178 = vld [vmem:[%s1 + $0xf0] sm:$0xff]
  %v179 = vld [vmem:[%s1 + $0xf8] sm:$0xff]
  %v180 = vld [vmem:[%s1 + $0x100] sm:$0xff]
  %v181 = vld [vmem:[%s1 + $0x108] sm:$0xff]
  %v182 = vld [vmem:[%s1 + $0x110] sm:$0xff]
  %v183 = vld [vmem:[%s1 + $0x118] sm:$0xff]
  %v184 = vld [vmem:[%s1 + $0x120] sm:$0xff]
  %v185 = vld [vmem:[%s1 + $0x128] sm:$0xff]
  %v186 = vld [vmem:[%s1 + $0x130] sm:$0xff]
  %v187 = vld [vmem:[%s1 + $0x138] sm:$0xff]
  %189 = vrot.lane.b32.xlu0 %v53, 125
  %v190 = vpop.permute.xlu0 %189
  %191 = vrot.lane.b32.xlu0 %v55, 125
  %v192 = vpop.permute.xlu0 %191
  %193 = vrot.lane.b32.xlu0 %v57, 125
  %v194 = vpop.permute.xlu0 %193
  %195 = vrot.lane.b32.xlu0 %v59, 125
  %v196 = vpop.permute.xlu0 %195
  %197 = vrot.lane.b32.xlu0 %v61, 125
  %v198 = vpop.permute.xlu0 %197
  %199 = vrot.lane.b32.xlu0 %v63, 125
  %v200 = vpop.permute.xlu0 %199
  %201 = vrot.lane.b32.xlu0 %v65, 125
  %v202 = vpop.permute.xlu0 %201
  %203 = vrot.lane.b32.xlu0 %v67, 125
  %v204 = vpop.permute.xlu0 %203
  %205 = vrot.lane.b32.xlu0 %v69, 125
  %v206 = vpop.permute.xlu0 %205
  %207 = vrot.lane.b32.xlu0 %v71, 125
  %v208 = vpop.permute.xlu0 %207
  %209 = vrot.lane.b32.xlu0 %v73, 125
  %v210 = vpop.permute.xlu0 %209
  %211 = vrot.lane.b32.xlu0 %v75, 125
  %v212 = vpop.permute.xlu0 %211
  %213 = vrot.lane.b32.xlu0 %v77, 125
  %v214 = vpop.permute.xlu0 %213
  %215 = vrot.lane.b32.xlu0 %v79, 125
  %v216 = vpop.permute.xlu0 %215
  %217 = vrot.lane.b32.xlu0 %v81, 125
  %v218 = vpop.permute.xlu0 %217
  %219 = vrot.lane.b32.xlu0 %v83, 125
  %v220 = vpop.permute.xlu0 %219
  %221 = vrot.lane.b32.xlu0 %v85, 125
  %v222 = vpop.permute.xlu0 %221
  %223 = vrot.lane.b32.xlu0 %v87, 125
  %v224 = vpop.permute.xlu0 %223
  %225 = vrot.lane.b32.xlu0 %v89, 125
  %v226 = vpop.permute.xlu0 %225
  %227 = vrot.lane.b32.xlu0 %v91, 125
  %v228 = vpop.permute.xlu0 %227
  %229 = vrot.lane.b32.xlu0 %v93, 125
  %v230 = vpop.permute.xlu0 %229
  %231 = vrot.lane.b32.xlu0 %v95, 125
  %v232 = vpop.permute.xlu0 %231
  %233 = vrot.lane.b32.xlu0 %v97, 125
  %v234 = vpop.permute.xlu0 %233
  %235 = vrot.lane.b32.xlu0 %v99, 125
  %v236 = vpop.permute.xlu0 %235
  %237 = vrot.lane.b32.xlu0 %v101, 125
  %v238 = vpop.permute.xlu0 %237
  %239 = vrot.lane.b32.xlu0 %v103, 125
  %v240 = vpop.permute.xlu0 %239
  %241 = vrot.lane.b32.xlu0 %v105, 125
  %v242 = vpop.permute.xlu0 %241
  %243 = vrot.lane.b32.xlu0 %v107, 125
  %v244 = vpop.permute.xlu0 %243
  %245 = vrot.lane.b32.xlu0 %v109, 125
  %v246 = vpop.permute.xlu0 %245
  %247 = vrot.lane.b32.xlu0 %v111, 125
  %v248 = vpop.permute.xlu0 %247
  %249 = vrot.lane.b32.xlu0 %v113, 125
  %v250 = vpop.permute.xlu0 %249
  %251 = vrot.lane.b32.xlu0 %v115, 125
  %v252 = vpop.permute.xlu0 %251
  %253 = vrot.lane.b32.xlu0 %v117, 125
  %v254 = vpop.permute.xlu0 %253
  %255 = vrot.lane.b32.xlu0 %v119, 125
  %v256 = vpop.permute.xlu0 %255
  %257 = vrot.lane.b32.xlu0 %v121, 125
  %v258 = vpop.permute.xlu0 %257
  %259 = vrot.lane.b32.xlu0 %v123, 125
  %v260 = vpop.permute.xlu0 %259
  %261 = vrot.lane.b32.xlu0 %v125, 125
  %v262 = vpop.permute.xlu0 %261
  %263 = vrot.lane.b32.xlu0 %v127, 125
  %v264 = vpop.permute.xlu0 %263
  %265 = vrot.lane.b32.xlu0 %v129, 125
  %v266 = vpop.permute.xlu0 %265
  %267 = vrot.lane.b32.xlu0 %v131, 125
  %v268 = vpop.permute.xlu0 %267
  %269 = vrot.lane.b32.xlu0 %v133, 125
  %v270 = vpop.permute.xlu0 %269
  %271 = vrot.lane.b32.xlu0 %v135, 125
  %v272 = vpop.permute.xlu0 %271
  %273 = vrot.lane.b32.xlu0 %v137, 125
  %v274 = vpop.permute.xlu0 %273
  %275 = vrot.lane.b32.xlu0 %v139, 125
  %v276 = vpop.permute.xlu0 %275
  %277 = vrot.lane.b32.xlu0 %v141, 125
  %v278 = vpop.permute.xlu0 %277
  %279 = vrot.lane.b32.xlu0 %v143, 125
  %v280 = vpop.permute.xlu0 %279
  %281 = vrot.lane.b32.xlu0 %v145, 125
  %v282 = vpop.permute.xlu0 %281
  %283 = vrot.lane.b32.xlu0 %v147, 125
  %v284 = vpop.permute.xlu0 %283
  %285 = vrot.lane.b32.xlu0 1.0, 125
  %v286 = vpop.permute.xlu0 %285
  %vm343 = vcmask 7168
  %v345 = vsel %vm343, %v152, 0
  %v348 = vsel %vm343, %v157, 0
  %v351 = vsel %vm343, %v162, 0
  %v354 = vsel %vm343, %v167, 0
  %v357 = vsel %vm343, %v172, 0
  %v360 = vsel %vm343, %v177, 0
  %v363 = vsel %vm343, %v182, 0
  %v366 = vsel %vm343, %v187, 0
  %vm368 = vcmask 1040384
  %v369 = vsel %vm368, %v286, 0
  %371 = vmatprep.subr.mxu0 0.0
  %372 = vmatpush1.msra.mxu0 %v117
  %373 = vmatprep.subr.mxu0 0.0
  %374 = vmatpush1.msra.mxu0 %v119
  %375 = vmatprep.subr.mxu0 0.0
  %376 = vmatpush1.msra.mxu0 %v121
  %377 = vmatprep.subr.mxu0 0.0
  %378 = vmatpush1.msra.mxu0 %v123
  %379 = vmatprep.subr.mxu0 0.0
  %380 = vmatpush1.msra.mxu0 %v125
  %381 = vmatprep.subr.mxu0 0.0
  %382 = vmatpush1.msra.mxu0 %v127
  %383 = vmatprep.subr.mxu0 0.0
  %384 = vmatpush1.msra.mxu0 %v129
  %385 = vmatprep.subr.mxu0 0.0
  %386 = vmatpush1.msra.mxu0 %v131
  %387 = vmatprep.subr.mxu0 0.0
  %388 = vmatpush1.msra.mxu0 %v190
  %389 = vmatprep.subr.mxu0 0.0
  %390 = vmatpush1.msra.mxu0 %v192
  %391 = vmatprep.subr.mxu0 0.0
  %392 = vmatpush1.msra.mxu0 %v194
  %393 = vmatprep.subr.mxu0 0.0
  %394 = vmatpush1.msra.mxu0 %v196
  %395 = vmatprep.subr.mxu0 0.0
  %396 = vmatpush1.msra.mxu0 %v198
  %397 = vmatprep.subr.mxu0 0.0
  %398 = vmatpush1.msra.mxu0 %v200
  %399 = vmatprep.subr.mxu0 0.0
  %400 = vmatpush1.msra.mxu0 %v202
  %401 = vmatprep.subr.mxu0 0.0
  %402 = vmatpush1.msra.mxu0 %v204
  %403 = vmatprep.subr.mxu0 0.0
  %404 = vmatpush1.msra.mxu0 %v206
  %405 = vmatprep.subr.mxu0 0.0
  %406 = vmatpush1.msra.mxu0 %v208
  %407 = vmatprep.subr.mxu0 0.0
  %408 = vmatpush1.msra.mxu0 %v210
  %409 = vmatprep.subr.mxu0 0.0
  %410 = vmatpush1.msra.mxu0 %v212
  %411 = vmatprep.subr.mxu0 0.0
  %412 = vmatpush1.msra.mxu0 %v214
  %413 = vmatprep.subr.mxu0 0.0
  %414 = vmatpush1.msra.mxu0 %v216
  %415 = vmatprep.subr.mxu0 0.0
  %416 = vmatpush1.msra.mxu0 %v218
  %417 = vmatprep.subr.mxu0 0.0
  %418 = vmatpush1.msra.mxu0 %v220
  %419 = vmatprep.subr.mxu0 0.0
  %420 = vmatpush1.msra.mxu0 %v222
  %421 = vmatprep.subr.mxu0 0.0
  %422 = vmatpush1.msra.mxu0 %v224
  %423 = vmatprep.subr.mxu0 0.0
  %424 = vmatpush1.msra.mxu0 %v226
  %425 = vmatprep.subr.mxu0 0.0
  %426 = vmatpush1.msra.mxu0 %v228
  %427 = vmatprep.subr.mxu0 0.0
  %428 = vmatpush1.msra.mxu0 %v230
  %429 = vmatprep.subr.mxu0 0.0
  %430 = vmatpush1.msra.mxu0 %v232
  %431 = vmatprep.subr.mxu0 0.0
  %432 = vmatpush1.msra.mxu0 %v234
  %433 = vmatprep.subr.mxu0 0.0
  %434 = vmatpush1.msra.mxu0 %v236
  %435 = vmatprep.mubr.f32.mxu0 %v149
  %436 = vmatmul.mubr.f32.gmra.mrb[0].mxu0 %v148
  %v437 = vpop.f32.mrb[0].mxu0
  %v438 = vadd.f32 0.0, %v437
  %v439 = vpop.f32.mrb[0].mxu0
  %440 = vmatprep.mubr.f32.mxu0 %v154
  %441 = vmatmul.mubr.f32.gmra.mrb[0].mxu0 %v153
  %v442 = vpop.f32.mrb[0].mxu0
  %v443 = vadd.f32 0.0, %v442
  %v444 = vpop.f32.mrb[0].mxu0
  %445 = vmatprep.mubr.f32.mxu0 %v159
  %446 = vmatmul.mubr.f32.gmra.mrb[0].mxu0 %v158
  %v447 = vpop.f32.mrb[0].mxu0
  %v448 = vadd.f32 0.0, %v447
  %v449 = vpop.f32.mrb[0].mxu0
  %450 = vmatprep.mubr.f32.mxu0 %v164
  %451 = vmatmul.mubr.f32.gmra.mrb[0].mxu0 %v163
  %v452 = vpop.f32.mrb[0].mxu0
  %v453 = vadd.f32 0.0, %v452
  %v454 = vpop.f32.mrb[0].mxu0
  %455 = vmatprep.mubr.f32.mxu0 %v169
  %456 = vmatmul.mubr.f32.gmra.mrb[0].mxu0 %v168
  %v457 = vpop.f32.mrb[0].mxu0
  %v458 = vadd.f32 0.0, %v457
  %v459 = vpop.f32.mrb[0].mxu0
  %460 = vmatprep.mubr.f32.mxu0 %v174
  %461 = vmatmul.mubr.f32.gmra.mrb[0].mxu0 %v173
  %v462 = vpop.f32.mrb[0].mxu0
  %v463 = vadd.f32 0.0, %v462
  %v464 = vpop.f32.mrb[0].mxu0
  %465 = vmatprep.mubr.f32.mxu0 %v179
  %466 = vmatmul.mubr.f32.gmra.mrb[0].mxu0 %v178
  %v467 = vpop.f32.mrb[0].mxu0
  %v468 = vadd.f32 0.0, %v467
  %v469 = vpop.f32.mrb[0].mxu0
  %470 = vmatprep.mubr.f32.mxu0 %v184
  %471 = vmatmul.mubr.f32.gmra.mrb[0].mxu0 %v183
  %v472 = vpop.f32.mrb[0].mxu0
  %v473 = vadd.f32 0.0, %v472
  %v474 = vpop.f32.mrb[0].mxu0
  %475 = vdwg.mxu0
  %476 = vmatprep.subr.mxu0 0.0
  %477 = vmatpush1.msra.mxu0 %v238
  %478 = vmatprep.subr.mxu0 0.0
  %479 = vmatpush1.msra.mxu0 %v240
  %480 = vmatprep.subr.mxu0 0.0
  %481 = vmatpush1.msra.mxu0 %v242
  %482 = vmatprep.subr.mxu0 0.0
  %483 = vmatpush1.msra.mxu0 %v244
  %484 = vmatprep.subr.mxu0 0.0
  %485 = vmatpush1.msra.mxu0 %v246
  %486 = vmatprep.subr.mxu0 0.0
  %487 = vmatpush1.msra.mxu0 %v248
  %488 = vmatprep.subr.mxu0 0.0
  %489 = vmatpush1.msra.mxu0 %v250
  %490 = vmatprep.subr.mxu0 0.0
  %491 = vmatpush1.msra.mxu0 %v252
  %492 = vmatprep.subr.mxu0 0.0
  %493 = vmatpush1.msra.mxu0 %v190
  %494 = vmatprep.subr.mxu0 0.0
  %495 = vmatpush1.msra.mxu0 %v192
  %496 = vmatprep.subr.mxu0 0.0
  %497 = vmatpush1.msra.mxu0 %v194
  %498 = vmatprep.subr.mxu0 0.0
  %499 = vmatpush1.msra.mxu0 %v196
  %500 = vmatprep.subr.mxu0 0.0
  %501 = vmatpush1.msra.mxu0 %v198
  %502 = vmatprep.subr.mxu0 0.0
  %503 = vmatpush1.msra.mxu0 %v200
  %504 = vmatprep.subr.mxu0 0.0
  %505 = vmatpush1.msra.mxu0 %v202
  %506 = vmatprep.subr.mxu0 0.0
  %507 = vmatpush1.msra.mxu0 %v204
  %508 = vmatprep.subr.mxu0 0.0
  %509 = vmatpush1.msra.mxu0 %v254
  %510 = vmatprep.subr.mxu0 0.0
  %511 = vmatpush1.msra.mxu0 %v256
  %512 = vmatprep.subr.mxu0 0.0
  %513 = vmatpush1.msra.mxu0 %v258
  %514 = vmatprep.subr.mxu0 0.0
  %515 = vmatpush1.msra.mxu0 %v260
  %516 = vmatprep.subr.mxu0 0.0
  %517 = vmatpush1.msra.mxu0 %v262
  %518 = vmatprep.subr.mxu0 0.0
  %519 = vmatpush1.msra.mxu0 %v264
  %520 = vmatprep.subr.mxu0 0.0
  %521 = vmatpush1.msra.mxu0 %v266
  %522 = vmatprep.subr.mxu0 0.0
  %523 = vmatpush1.msra.mxu0 %v268
  %524 = vmatprep.subr.mxu0 0.0
  %525 = vmatpush1.msra.mxu0 %v270
  %526 = vmatprep.subr.mxu0 0.0
  %527 = vmatpush1.msra.mxu0 %v272
  %528 = vmatprep.subr.mxu0 0.0
  %529 = vmatpush1.msra.mxu0 %v274
  %530 = vmatprep.subr.mxu0 0.0
  %531 = vmatpush1.msra.mxu0 %v276
  %532 = vmatprep.subr.mxu0 0.0
  %533 = vmatpush1.msra.mxu0 %v278
  %534 = vmatprep.subr.mxu0 0.0
  %535 = vmatpush1.msra.mxu0 %v280
  %536 = vmatprep.subr.mxu0 0.0
  %537 = vmatpush1.msra.mxu0 %v282
  %538 = vmatprep.subr.mxu0 0.0
  %539 = vmatpush1.msra.mxu0 %v284
  %540 = vmatprep.mubr.f32.mxu0 %v151
  %541 = vmatmul.mubr.f32.gmra.mrb[0].mxu0 %v150
  %v542 = vpop.f32.mrb[0].mxu0
  %v543 = vadd.f32 %v438, %v542
  %v544 = vpop.f32.mrb[0].mxu0
  %545 = vmatprep.mubr.f32.mxu0 %v156
  %546 = vmatmul.mubr.f32.gmra.mrb[0].mxu0 %v155
  %v547 = vpop.f32.mrb[0].mxu0
  %v548 = vadd.f32 %v443, %v547
  %v549 = vpop.f32.mrb[0].mxu0
  %550 = vmatprep.mubr.f32.mxu0 %v161
  %551 = vmatmul.mubr.f32.gmra.mrb[0].mxu0 %v160
  %v552 = vpop.f32.mrb[0].mxu0
  %v553 = vadd.f32 %v448, %v552
  %v554 = vpop.f32.mrb[0].mxu0
  %555 = vmatprep.mubr.f32.mxu0 %v166
  %556 = vmatmul.mubr.f32.gmra.mrb[0].mxu0 %v165
  %v557 = vpop.f32.mrb[0].mxu0
  %v558 = vadd.f32 %v453, %v557
  %v559 = vpop.f32.mrb[0].mxu0
  %560 = vmatprep.mubr.f32.mxu0 %v171
  %561 = vmatmul.mubr.f32.gmra.mrb[0].mxu0 %v170
  %v562 = vpop.f32.mrb[0].mxu0
  %v563 = vadd.f32 %v458, %v562
  %v564 = vpop.f32.mrb[0].mxu0
  %565 = vmatprep.mubr.f32.mxu0 %v176
  %566 = vmatmul.mubr.f32.gmra.mrb[0].mxu0 %v175
  %v567 = vpop.f32.mrb[0].mxu0
  %v568 = vadd.f32 %v463, %v567
  %v569 = vpop.f32.mrb[0].mxu0
  %570 = vmatprep.mubr.f32.mxu0 %v181
  %571 = vmatmul.mubr.f32.gmra.mrb[0].mxu0 %v180
  %v572 = vpop.f32.mrb[0].mxu0
  %v573 = vadd.f32 %v468, %v572
  %v574 = vpop.f32.mrb[0].mxu0
  %575 = vmatprep.mubr.f32.mxu0 %v186
  %576 = vmatmul.mubr.f32.gmra.mrb[0].mxu0 %v185
  %v577 = vpop.f32.mrb[0].mxu0
  %v578 = vadd.f32 %v473, %v577
  %v579 = vpop.f32.mrb[0].mxu0
  %580 = vdwg.mxu0
  %581 = vmatprep.subr.mxu0 0.0
  %582 = vmatpush1.msra.mxu0 %v369
  %583 = vmatprep.subr.mxu0 0.0
  %584 = vmatpush1.msra.mxu0 0.0
  %585 = vmatprep.subr.mxu0 0.0
  %586 = vmatpush1.msra.mxu0 0.0
  %587 = vmatprep.subr.mxu0 0.0
  %588 = vmatpush1.msra.mxu0 0.0
  %589 = vmatprep.subr.mxu0 0.0
  %590 = vmatpush1.msra.mxu0 0.0
  %591 = vmatprep.subr.mxu0 0.0
  %592 = vmatpush1.msra.mxu0 0.0
  %593 = vmatprep.subr.mxu0 0.0
  %594 = vmatpush1.msra.mxu0 0.0
  %595 = vmatprep.subr.mxu0 0.0
  %596 = vmatpush1.msra.mxu0 0.0
  %597 = vmatprep.subr.mxu0 0.0
  %598 = vmatpush1.msra.mxu0 0.0
  %599 = vmatprep.subr.mxu0 0.0
  %600 = vmatpush1.msra.mxu0 0.0
  %601 = vmatprep.subr.mxu0 0.0
  %602 = vmatpush1.msra.mxu0 0.0
  %603 = vmatprep.subr.mxu0 0.0
  %604 = vmatpush1.msra.mxu0 0.0
  %605 = vmatprep.subr.mxu0 0.0
  %606 = vmatpush1.msra.mxu0 0.0
  %607 = vmatprep.subr.mxu0 0.0
  %608 = vmatpush1.msra.mxu0 0.0
  %609 = vmatprep.subr.mxu0 0.0
  %610 = vmatpush1.msra.mxu0 0.0
  %611 = vmatprep.subr.mxu0 0.0
  %612 = vmatpush1.msra.mxu0 0.0
  %613 = vmatprep.subr.mxu0 0.0
  %614 = vmatpush1.msra.mxu0 0.0
  %615 = vmatprep.subr.mxu0 0.0
  %616 = vmatpush1.msra.mxu0 0.0
  %617 = vmatprep.subr.mxu0 0.0
  %618 = vmatpush1.msra.mxu0 0.0
  %619 = vmatprep.subr.mxu0 0.0
  %620 = vmatpush1.msra.mxu0 0.0
  %621 = vmatprep.subr.mxu0 0.0
  %622 = vmatpush1.msra.mxu0 0.0
  %623 = vmatprep.subr.mxu0 0.0
  %624 = vmatpush1.msra.mxu0 0.0
  %625 = vmatprep.subr.mxu0 0.0
  %626 = vmatpush1.msra.mxu0 0.0
  %627 = vmatprep.subr.mxu0 0.0
  %628 = vmatpush1.msra.mxu0 0.0
  %629 = vmatprep.subr.mxu0 0.0
  %630 = vmatpush1.msra.mxu0 0.0
  %631 = vmatprep.subr.mxu0 0.0
  %632 = vmatpush1.msra.mxu0 0.0
  %633 = vmatprep.subr.mxu0 0.0
  %634 = vmatpush1.msra.mxu0 0.0
  %635 = vmatprep.subr.mxu0 0.0
  %636 = vmatpush1.msra.mxu0 0.0
  %637 = vmatprep.subr.mxu0 0.0
  %638 = vmatpush1.msra.mxu0 0.0
  %639 = vmatprep.subr.mxu0 0.0
  %640 = vmatpush1.msra.mxu0 0.0
  %641 = vmatprep.subr.mxu0 0.0
  %642 = vmatpush1.msra.mxu0 0.0
  %643 = vmatprep.subr.mxu0 0.0
  %644 = vmatpush1.msra.mxu0 0.0
  %645 = vmatprep.mubr.f32.mxu0 0.0
  %646 = vmatmul.mubr.f32.gmra.mrb[0].mxu0 %v345
  %v647 = vpop.f32.mrb[0].mxu0
  %v648 = vadd.f32 %v543, %v647
  %v649 = vpop.f32.mrb[0].mxu0
  %650 = vmatprep.mubr.f32.mxu0 0.0
  %651 = vmatmul.mubr.f32.gmra.mrb[0].mxu0 %v348
  %v652 = vpop.f32.mrb[0].mxu0
  %v653 = vadd.f32 %v548, %v652
  %v654 = vpop.f32.mrb[0].mxu0
  %655 = vmatprep.mubr.f32.mxu0 0.0
  %656 = vmatmul.mubr.f32.gmra.mrb[0].mxu0 %v351
  %v657 = vpop.f32.mrb[0].mxu0
  %v658 = vadd.f32 %v553, %v657
  %v659 = vpop.f32.mrb[0].mxu0
  %660 = vmatprep.mubr.f32.mxu0 0.0
  %661 = vmatmul.mubr.f32.gmra.mrb[0].mxu0 %v354
  %v662 = vpop.f32.mrb[0].mxu0
  %v663 = vadd.f32 %v558, %v662
  %v664 = vpop.f32.mrb[0].mxu0
  %665 = vmatprep.mubr.f32.mxu0 0.0
  %666 = vmatmul.mubr.f32.gmra.mrb[0].mxu0 %v357
  %v667 = vpop.f32.mrb[0].mxu0
  %v668 = vadd.f32 %v563, %v667
  %v669 = vpop.f32.mrb[0].mxu0
  %670 = vmatprep.mubr.f32.mxu0 0.0
  %671 = vmatmul.mubr.f32.gmra.mrb[0].mxu0 %v360
  %v672 = vpop.f32.mrb[0].mxu0
  %v673 = vadd.f32 %v568, %v672
  %v674 = vpop.f32.mrb[0].mxu0
  %675 = vmatprep.mubr.f32.mxu0 0.0
  %676 = vmatmul.mubr.f32.gmra.mrb[0].mxu0 %v363
  %v677 = vpop.f32.mrb[0].mxu0
  %v678 = vadd.f32 %v573, %v677
  %v679 = vpop.f32.mrb[0].mxu0
  %680 = vmatprep.mubr.f32.mxu0 0.0
  %681 = vmatmul.mubr.f32.gmra.mrb[0].mxu0 %v366
  %v682 = vpop.f32.mrb[0].mxu0
  %v683 = vadd.f32 %v578, %v682
  %v684 = vpop.f32.mrb[0].mxu0
  %685 = vdwg.mxu0
  %v686 = vmul.f32 %v648, 0.2
  %v687 = vmul.f32 %v653, 0.2
  %v688 = vmul.f32 %v658, 0.2
  %v689 = vmul.f32 %v663, 0.2
  %v690 = vmax.f32 %v648, %v686
  %v691 = vmax.f32 %v653, %v687
  %v692 = vmax.f32 %v658, %v688
  %v693 = vmax.f32 %v663, %v689
  %v694 = vmul.f32 %v668, 0.2
  %v695 = vmul.f32 %v673, 0.2
  %v696 = vmul.f32 %v678, 0.2
  %v697 = vmul.f32 %v683, 0.2
  %v698 = vmax.f32 %v668, %v694
  %v699 = vmax.f32 %v673, %v695
  %v700 = vmax.f32 %v678, %v696
  %v701 = vmax.f32 %v683, %v697
  %v702 = vadd.f32 %v690, %v698
  %v703 = vadd.f32 %v691, %v699
  %v704 = vadd.f32 %v692, %v700
  %v705 = vadd.f32 %v693, %v701
  %710 = vrot.lane.b32.xlu0 %v702, 4
  %v711 = vpop.permute.xlu0 %710
  %712 = vrot.lane.b32.xlu0 %v703, 4
  %v713 = vpop.permute.xlu0 %712
  %714 = vrot.lane.b32.xlu0 %v704, 4
  %v715 = vpop.permute.xlu0 %714
  %716 = vrot.lane.b32.xlu0 %v705, 4
  %v717 = vpop.permute.xlu0 %716
  %vm722 = vcmask 31744
  %v723 = vsel %vm722, 0.0, %v711
  %v724 = vsel %vm722, 0.0, %v713
  %v725 = vsel %vm722, 0.0, %v715
  %v726 = vsel %vm722, 0.0, %v717
  %vm727 = vcmask 162816
  %v728 = vsel %vm727, %v723, 0.0
  %v729 = vsel %vm727, %v724, 0.0
  %v730 = vsel %vm727, %v725, 0.0
  %v731 = vsel %vm727, %v726, 0.0
  %v732 = vld [vmem:[%s2] sm:$0xff]
  %v733 = vld [vmem:[%s2 + $0x8] sm:$0xff]
  %v734 = vld [vmem:[%s2 + $0x10] sm:$0xff]
  %v735 = vld [vmem:[%s2 + $0x18] sm:$0xff]
  %740 = vrot.lane.b32.xlu0 %v728, 127
  %v741 = vpop.permute.xlu0 %740
  %742 = vrot.lane.b32.xlu0 %v729, 127
  %v743 = vpop.permute.xlu0 %742
  %744 = vrot.lane.b32.xlu0 %v730, 127
  %v745 = vpop.permute.xlu0 %744
  %746 = vrot.lane.b32.xlu0 %v731, 127
  %v747 = vpop.permute.xlu0 %746
  %752 = vrot.lane.b32.xlu0 %v728, 126
  %v753 = vpop.permute.xlu0 %752
  %754 = vrot.lane.b32.xlu0 %v729, 126
  %v755 = vpop.permute.xlu0 %754
  %756 = vrot.lane.b32.xlu0 %v730, 126
  %v757 = vpop.permute.xlu0 %756
  %758 = vrot.lane.b32.xlu0 %v731, 126
  %v759 = vpop.permute.xlu0 %758
  %vm764 = vcmask 793600
  %v766 = vsel %vm764, %v732, 0
  %v769 = vsel %vm764, %v733, 0
  %v772 = vsel %vm764, %v734, 0
  %v775 = vsel %vm764, %v735, 0
  %v777 = vsel %vm368, 1.0, 0
  %779 = vmatprep.subr.mxu0 0.0
  %780 = vmatpush1.msra.mxu0 %v728
  %781 = vmatprep.subr.mxu0 0.0
  %782 = vmatpush1.msra.mxu0 %v729
  %783 = vmatprep.subr.mxu0 0.0
  %784 = vmatpush1.msra.mxu0 %v730
  %785 = vmatprep.subr.mxu0 0.0
  %786 = vmatpush1.msra.mxu0 %v731
  %787 = vmatprep.subr.mxu0 0.0
  %788 = vmatpush1.msra.mxu0 %v741
  %789 = vmatprep.subr.mxu0 0.0
  %790 = vmatpush1.msra.mxu0 %v743
  %791 = vmatprep.subr.mxu0 0.0
  %792 = vmatpush1.msra.mxu0 %v745
  %793 = vmatprep.subr.mxu0 0.0
  %794 = vmatpush1.msra.mxu0 %v747
  %795 = vmatprep.subr.mxu0 0.0
  %796 = vmatpush1.msra.mxu0 %v753
  %797 = vmatprep.subr.mxu0 0.0
  %798 = vmatpush1.msra.mxu0 %v755
  %799 = vmatprep.subr.mxu0 0.0
  %800 = vmatpush1.msra.mxu0 %v757
  %801 = vmatprep.subr.mxu0 0.0
  %802 = vmatpush1.msra.mxu0 %v759
  %803 = vmatprep.subr.mxu0 0.0
  %804 = vmatpush1.msra.mxu0 %v777
  %805 = vmatprep.subr.mxu0 0.0
  %806 = vmatpush1.msra.mxu0 0.0
  %807 = vmatprep.subr.mxu0 0.0
  %808 = vmatpush1.msra.mxu0 0.0
  %809 = vmatprep.subr.mxu0 0.0
  %810 = vmatpush1.msra.mxu0 0.0
  %811 = vmatprep.subr.mxu0 0.0
  %812 = vmatpush1.msra.mxu0 0.0
  %813 = vmatprep.subr.mxu0 0.0
  %814 = vmatpush1.msra.mxu0 0.0
  %815 = vmatprep.subr.mxu0 0.0
  %816 = vmatpush1.msra.mxu0 0.0
  %817 = vmatprep.subr.mxu0 0.0
  %818 = vmatpush1.msra.mxu0 0.0
  %819 = vmatprep.subr.mxu0 0.0
  %820 = vmatpush1.msra.mxu0 0.0
  %821 = vmatprep.subr.mxu0 0.0
  %822 = vmatpush1.msra.mxu0 0.0
  %823 = vmatprep.subr.mxu0 0.0
  %824 = vmatpush1.msra.mxu0 0.0
  %825 = vmatprep.subr.mxu0 0.0
  %826 = vmatpush1.msra.mxu0 0.0
  %827 = vmatprep.subr.mxu0 0.0
  %828 = vmatpush1.msra.mxu0 0.0
  %829 = vmatprep.subr.mxu0 0.0
  %830 = vmatpush1.msra.mxu0 0.0
  %831 = vmatprep.subr.mxu0 0.0
  %832 = vmatpush1.msra.mxu0 0.0
  %833 = vmatprep.subr.mxu0 0.0
  %834 = vmatpush1.msra.mxu0 0.0
  %835 = vmatprep.subr.mxu0 0.0
  %836 = vmatpush1.msra.mxu0 0.0
  %837 = vmatprep.subr.mxu0 0.0
  %838 = vmatpush1.msra.mxu0 0.0
  %839 = vmatprep.subr.mxu0 0.0
  %840 = vmatpush1.msra.mxu0 0.0
  %841 = vmatprep.subr.mxu0 0.0
  %842 = vmatpush1.msra.mxu0 0.0
  %843 = vmatprep.mubr.f32.mxu0 0.0
  %844 = vmatmul.mubr.f32.gmra.mrb[0].mxu0 %v766
  %v845 = vpop.f32.mrb[0].mxu0
  %v846 = vadd.f32 0.0, %v845
  %v847 = vpop.f32.mrb[0].mxu0
  %848 = vmatprep.mubr.f32.mxu0 0.0
  %849 = vmatmul.mubr.f32.gmra.mrb[0].mxu0 %v769
  %v850 = vpop.f32.mrb[0].mxu0
  %v851 = vadd.f32 0.0, %v850
  %v852 = vpop.f32.mrb[0].mxu0
  %853 = vmatprep.mubr.f32.mxu0 0.0
  %854 = vmatmul.mubr.f32.gmra.mrb[0].mxu0 %v772
  %v855 = vpop.f32.mrb[0].mxu0
  %v856 = vadd.f32 0.0, %v855
  %v857 = vpop.f32.mrb[0].mxu0
  %858 = vmatprep.mubr.f32.mxu0 0.0
  %859 = vmatmul.mubr.f32.gmra.mrb[0].mxu0 %v775
  %v860 = vpop.f32.mrb[0].mxu0
  %v861 = vadd.f32 0.0, %v860
  %v862 = vpop.f32.mrb[0].mxu0
  %863 = vdwg.mxu0
  %v864 = vmul.f32 %v846, 0.2
  %v865 = vmul.f32 %v851, 0.2
  %v866 = vmul.f32 %v856, 0.2
  %v867 = vmul.f32 %v861, 0.2
  %v868 = vmax.f32 %v846, %v864
  %v869 = vmax.f32 %v851, %v865
  %v870 = vmax.f32 %v856, %v866
  %v871 = vmax.f32 %v861, %v867
  %vm872 = vcmask 179200
  %873 = vst.msk [vmem:[%s9] sm:$0xff] %vm872, %v868
  %874 = vst.msk [vmem:[%s9 + $0x8] sm:$0xff] %vm872, %v869
  %875 = vst.msk [vmem:[%s9 + $0x10] sm:$0xff] %vm872, %v870
  %876 = vst.msk [vmem:[%s9 + $0x18] sm:$0xff] %vm872, %v871
  %881 = vrot.lane.b32.xlu0 %v868, 4
  %v882 = vpop.permute.xlu0 %881
  %883 = vrot.lane.b32.xlu0 %v869, 4
  %v884 = vpop.permute.xlu0 %883
  %885 = vrot.lane.b32.xlu0 %v870, 4
  %v886 = vpop.permute.xlu0 %885
  %887 = vrot.lane.b32.xlu0 %v871, 4
  %v888 = vpop.permute.xlu0 %887
  %v893 = vsel %vm722, 0.0, %v882
  %v894 = vsel %vm722, 0.0, %v884
  %v895 = vsel %vm722, 0.0, %v886
  %v896 = vsel %vm722, 0.0, %v888
  %vm897 = vcmask 211968
  %v898 = vsel %vm897, %v893, 0.0
  %v899 = vsel %vm897, %v894, 0.0
  %v900 = vsel %vm897, %v895, 0.0
  %v901 = vsel %vm897, %v896, 0.0
  %906 = vrot.lane.b32.xlu0 %v898, 127
  %v907 = vpop.permute.xlu0 %906
  %908 = vrot.lane.b32.xlu0 %v899, 127
  %v909 = vpop.permute.xlu0 %908
  %910 = vrot.lane.b32.xlu0 %v900, 127
  %v911 = vpop.permute.xlu0 %910
  %912 = vrot.lane.b32.xlu0 %v901, 127
  %v913 = vpop.permute.xlu0 %912
  %914 = vrot.lane.b32.xlu0 %v898, 126
  %v915 = vpop.permute.xlu0 %914
  %916 = vrot.lane.b32.xlu0 %v899, 126
  %v917 = vpop.permute.xlu0 %916
  %918 = vrot.lane.b32.xlu0 %v900, 126
  %v919 = vpop.permute.xlu0 %918
  %920 = vrot.lane.b32.xlu0 %v901, 126
  %v921 = vpop.permute.xlu0 %920
  %922 = vrot.lane.b32.xlu0 %v898, 3
  %v923 = vpop.permute.xlu0 %922
  %924 = vrot.lane.b32.xlu0 %v899, 3
  %v925 = vpop.permute.xlu0 %924
  %926 = vrot.lane.b32.xlu0 %v900, 3
  %v927 = vpop.permute.xlu0 %926
  %928 = vrot.lane.b32.xlu0 %v901, 3
  %v929 = vpop.permute.xlu0 %928
  %930 = vrot.lane.b32.xlu0 %v898, 1
  %v931 = vpop.permute.xlu0 %930
  %932 = vrot.lane.b32.xlu0 %v899, 1
  %v933 = vpop.permute.xlu0 %932
  %934 = vrot.lane.b32.xlu0 %v900, 1
  %v935 = vpop.permute.xlu0 %934
  %936 = vrot.lane.b32.xlu0 %v901, 1
  %v937 = vpop.permute.xlu0 %936
  %938 = vrot.lane.b32.xlu0 %v898, 125
  %v939 = vpop.permute.xlu0 %938
  %940 = vrot.lane.b32.xlu0 %v899, 125
  %v941 = vpop.permute.xlu0 %940
  %942 = vrot.lane.b32.xlu0 %v900, 125
  %v943 = vpop.permute.xlu0 %942
  %944 = vrot.lane.b32.xlu0 %v901, 125
  %v945 = vpop.permute.xlu0 %944
  %946 = vrot.lane.b32.xlu0 %v898, 123
  %v947 = vpop.permute.xlu0 %946
  %948 = vrot.lane.b32.xlu0 %v899, 123
  %v949 = vpop.permute.xlu0 %948
  %950 = vrot.lane.b32.xlu0 %v900, 123
  %v951 = vpop.permute.xlu0 %950
  %952 = vrot.lane.b32.xlu0 %v901, 123
  %v953 = vpop.permute.xlu0 %952
  %v954 = vld [vmem:[%s3] sm:$0xff]
  %v955 = vld [vmem:[%s3 + $0x8] sm:$0xff]
  %v956 = vld [vmem:[%s3 + $0x10] sm:$0xff]
  %v957 = vld [vmem:[%s3 + $0x18] sm:$0xff]
  %v958 = vld [vmem:[%s3 + $0x20] sm:$0xff]
  %v959 = vld [vmem:[%s3 + $0x28] sm:$0xff]
  %v960 = vld [vmem:[%s3 + $0x30] sm:$0xff]
  %v961 = vld [vmem:[%s3 + $0x38] sm:$0xff]
  %v962 = vld [vmem:[%s3 + $0x40] sm:$0xff]
  %v963 = vld [vmem:[%s3 + $0x48] sm:$0xff]
  %v964 = vld [vmem:[%s3 + $0x50] sm:$0xff]
  %v965 = vld [vmem:[%s3 + $0x58] sm:$0xff]
  %v966 = vld [vmem:[%s3 + $0x60] sm:$0xff]
  %v967 = vld [vmem:[%s3 + $0x68] sm:$0xff]
  %v968 = vld [vmem:[%s3 + $0x70] sm:$0xff]
  %v969 = vld [vmem:[%s3 + $0x78] sm:$0xff]
  %v970 = vld [vmem:[%s3 + $0x80] sm:$0xff]
  %v971 = vld [vmem:[%s3 + $0x88] sm:$0xff]
  %v972 = vld [vmem:[%s3 + $0x90] sm:$0xff]
  %v973 = vld [vmem:[%s3 + $0x98] sm:$0xff]
  %v974 = vld [vmem:[%s3 + $0xa0] sm:$0xff]
  %v975 = vld [vmem:[%s3 + $0xa8] sm:$0xff]
  %v976 = vld [vmem:[%s3 + $0xb0] sm:$0xff]
  %v977 = vld [vmem:[%s3 + $0xb8] sm:$0xff]
  %v978 = vld [vmem:[%s3 + $0xc0] sm:$0xff]
  %v979 = vld [vmem:[%s3 + $0xc8] sm:$0xff]
  %v980 = vld [vmem:[%s3 + $0xd0] sm:$0xff]
  %v981 = vld [vmem:[%s3 + $0xd8] sm:$0xff]
  %v982 = vld [vmem:[%s3 + $0xe0] sm:$0xff]
  %v983 = vld [vmem:[%s3 + $0xe8] sm:$0xff]
  %v984 = vld [vmem:[%s3 + $0xf0] sm:$0xff]
  %v985 = vld [vmem:[%s3 + $0xf8] sm:$0xff]
  %v986 = vld [vmem:[%s3 + $0x100] sm:$0xff]
  %v987 = vld [vmem:[%s3 + $0x108] sm:$0xff]
  %v988 = vld [vmem:[%s3 + $0x110] sm:$0xff]
  %v989 = vld [vmem:[%s3 + $0x118] sm:$0xff]
  %v990 = vld [vmem:[%s3 + $0x120] sm:$0xff]
  %v991 = vld [vmem:[%s3 + $0x128] sm:$0xff]
  %v992 = vld [vmem:[%s3 + $0x130] sm:$0xff]
  %v993 = vld [vmem:[%s3 + $0x138] sm:$0xff]
  %v994 = vld [vmem:[%s3 + $0x140] sm:$0xff]
  %v995 = vld [vmem:[%s3 + $0x148] sm:$0xff]
  %v996 = vld [vmem:[%s3 + $0x150] sm:$0xff]
  %v997 = vld [vmem:[%s3 + $0x158] sm:$0xff]
  %v998 = vld [vmem:[%s3 + $0x160] sm:$0xff]
  %v999 = vld [vmem:[%s3 + $0x168] sm:$0xff]
  %v1000 = vld [vmem:[%s3 + $0x170] sm:$0xff]
  %v1001 = vld [vmem:[%s3 + $0x178] sm:$0xff]
  %1002 = vrot.lane.b32.xlu0 %v907, 125
  %v1003 = vpop.permute.xlu0 %1002
  %1004 = vrot.lane.b32.xlu0 %v909, 125
  %v1005 = vpop.permute.xlu0 %1004
  %1006 = vrot.lane.b32.xlu0 %v911, 125
  %v1007 = vpop.permute.xlu0 %1006
  %1008 = vrot.lane.b32.xlu0 %v913, 125
  %v1009 = vpop.permute.xlu0 %1008
  %1010 = vrot.lane.b32.xlu0 %v915, 125
  %v1011 = vpop.permute.xlu0 %1010
  %1012 = vrot.lane.b32.xlu0 %v917, 125
  %v1013 = vpop.permute.xlu0 %1012
  %1014 = vrot.lane.b32.xlu0 %v919, 125
  %v1015 = vpop.permute.xlu0 %1014
  %1016 = vrot.lane.b32.xlu0 %v921, 125
  %v1017 = vpop.permute.xlu0 %1016
  %1018 = vrot.lane.b32.xlu0 %v923, 125
  %v1019 = vpop.permute.xlu0 %1018
  %1020 = vrot.lane.b32.xlu0 %v925, 125
  %v1021 = vpop.permute.xlu0 %1020
  %1022 = vrot.lane.b32.xlu0 %v927, 125
  %v1023 = vpop.permute.xlu0 %1022
  %1024 = vrot.lane.b32.xlu0 %v929, 125
  %v1025 = vpop.permute.xlu0 %1024
  %1026 = vrot.lane.b32.xlu0 %v931, 125
  %v1027 = vpop.permute.xlu0 %1026
  %1028 = vrot.lane.b32.xlu0 %v933, 125
  %v1029 = vpop.permute.xlu0 %1028
  %1030 = vrot.lane.b32.xlu0 %v935, 125
  %v1031 = vpop.permute.xlu0 %1030
  %1032 = vrot.lane.b32.xlu0 %v937, 125
  %v1033 = vpop.permute.xlu0 %1032
  %1034 = vrot.lane.b32.xlu0 %v939, 125
  %v1035 = vpop.permute.xlu0 %1034
  %1036 = vrot.lane.b32.xlu0 %v941, 125
  %v1037 = vpop.permute.xlu0 %1036
  %1038 = vrot.lane.b32.xlu0 %v943, 125
  %v1039 = vpop.permute.xlu0 %1038
  %1040 = vrot.lane.b32.xlu0 %v945, 125
  %v1041 = vpop.permute.xlu0 %1040
  %1042 = vrot.lane.b32.xlu0 %v947, 125
  %v1043 = vpop.permute.xlu0 %1042
  %1044 = vrot.lane.b32.xlu0 %v949, 125
  %v1045 = vpop.permute.xlu0 %1044
  %1046 = vrot.lane.b32.xlu0 %v951, 125
  %v1047 = vpop.permute.xlu0 %1046
  %1048 = vrot.lane.b32.xlu0 %v953, 125
  %v1049 = vpop.permute.xlu0 %1048
  %v1079 = vsel %vm343, %v956, 0
  %v1082 = vsel %vm343, %v959, 0
  %v1085 = vsel %vm343, %v962, 0
  %v1088 = vsel %vm343, %v965, 0
  %v1091 = vsel %vm343, %v968, 0
  %v1094 = vsel %vm343, %v971, 0
  %v1097 = vsel %vm343, %v974, 0
  %v1100 = vsel %vm343, %v977, 0
  %v1103 = vsel %vm343, %v980, 0
  %v1106 = vsel %vm343, %v983, 0
  %v1109 = vsel %vm343, %v986, 0
  %v1112 = vsel %vm343, %v989, 0
  %v1115 = vsel %vm343, %v992, 0
  %v1118 = vsel %vm343, %v995, 0
  %v1121 = vsel %vm343, %v998, 0
  %v1124 = vsel %vm343, %v1001, 0
  %1126 = vmatprep.subr.mxu0 0.0
  %1127 = vmatpush1.msra.mxu0 %v939
  %1128 = vmatprep.subr.mxu0 0.0
  %1129 = vmatpush1.msra.mxu0 %v941
  %1130 = vmatprep.subr.mxu0 0.0
  %1131 = vmatpush1.msra.mxu0 %v943
  %1132 = vmatprep.subr.mxu0 0.0
  %1133 = vmatpush1.msra.mxu0 %v945
  %1134 = vmatprep.subr.mxu0 0.0
  %1135 = vmatpush1.msra.mxu0 %v1003
  %1136 = vmatprep.subr.mxu0 0.0
  %1137 = vmatpush1.msra.mxu0 %v1005
  %1138 = vmatprep.subr.mxu0 0.0
  %1139 = vmatpush1.msra.mxu0 %v1007
  %1140 = vmatprep.subr.mxu0 0.0
  %1141 = vmatpush1.msra.mxu0 %v1009
  %1142 = vmatprep.subr.mxu0 0.0
  %1143 = vmatpush1.msra.mxu0 %v1011
  %1144 = vmatprep.subr.mxu0 0.0
  %1145 = vmatpush1.msra.mxu0 %v1013
  %1146 = vmatprep.subr.mxu0 0.0
  %1147 = vmatpush1.msra.mxu0 %v1015
  %1148 = vmatprep.subr.mxu0 0.0
  %1149 = vmatpush1.msra.mxu0 %v1017
  %1150 = vmatprep.subr.mxu0 0.0
  %1151 = vmatpush1.msra.mxu0 %v1019
  %1152 = vmatprep.subr.mxu0 0.0
  %1153 = vmatpush1.msra.mxu0 %v1021
  %1154 = vmatprep.subr.mxu0 0.0
  %1155 = vmatpush1.msra.mxu0 %v1023
  %1156 = vmatprep.subr.mxu0 0.0
  %1157 = vmatpush1.msra.mxu0 %v1025
  %1158 = vmatprep.subr.mxu0 0.0
  %1159 = vmatpush1.msra.mxu0 %v1027
  %1160 = vmatprep.subr.mxu0 0.0
  %1161 = vmatpush1.msra.mxu0 %v1029
  %1162 = vmatprep.subr.mxu0 0.0
  %1163 = vmatpush1.msra.mxu0 %v1031
  %1164 = vmatprep.subr.mxu0 0.0
  %1165 = vmatpush1.msra.mxu0 %v1033
  %1166 = vmatprep.subr.mxu0 0.0
  %1167 = vmatpush1.msra.mxu0 %v1003
  %1168 = vmatprep.subr.mxu0 0.0
  %1169 = vmatpush1.msra.mxu0 %v1005
  %1170 = vmatprep.subr.mxu0 0.0
  %1171 = vmatpush1.msra.mxu0 %v1007
  %1172 = vmatprep.subr.mxu0 0.0
  %1173 = vmatpush1.msra.mxu0 %v1009
  %1174 = vmatprep.subr.mxu0 0.0
  %1175 = vmatpush1.msra.mxu0 %v1035
  %1176 = vmatprep.subr.mxu0 0.0
  %1177 = vmatpush1.msra.mxu0 %v1037
  %1178 = vmatprep.subr.mxu0 0.0
  %1179 = vmatpush1.msra.mxu0 %v1039
  %1180 = vmatprep.subr.mxu0 0.0
  %1181 = vmatpush1.msra.mxu0 %v1041
  %1182 = vmatprep.subr.mxu0 0.0
  %1183 = vmatpush1.msra.mxu0 %v1043
  %1184 = vmatprep.subr.mxu0 0.0
  %1185 = vmatpush1.msra.mxu0 %v1045
  %1186 = vmatprep.subr.mxu0 0.0
  %1187 = vmatpush1.msra.mxu0 %v1047
  %1188 = vmatprep.subr.mxu0 0.0
  %1189 = vmatpush1.msra.mxu0 %v1049
  %1190 = vmatprep.mubr.f32.mxu0 %v955
  %1191 = vmatmul.mubr.f32.gmra.mrb[0].mxu0 %v954
  %v1192 = vpop.f32.mrb[0].mxu0
  %v1193 = vadd.f32 0.0, %v1192
  %v1194 = vpop.f32.mrb[0].mxu0
  %1195 = vmatprep.mubr.f32.mxu0 %v958
  %1196 = vmatmul.mubr.f32.gmra.mrb[0].mxu0 %v957
  %v1197 = vpop.f32.mrb[0].mxu0
  %v1198 = vadd.f32 0.0, %v1197
  %v1199 = vpop.f32.mrb[0].mxu0
  %1200 = vmatprep.mubr.f32.mxu0 %v961
  %1201 = vmatmul.mubr.f32.gmra.mrb[0].mxu0 %v960
  %v1202 = vpop.f32.mrb[0].mxu0
  %v1203 = vadd.f32 0.0, %v1202
  %v1204 = vpop.f32.mrb[0].mxu0
  %1205 = vmatprep.mubr.f32.mxu0 %v964
  %1206 = vmatmul.mubr.f32.gmra.mrb[0].mxu0 %v963
  %v1207 = vpop.f32.mrb[0].mxu0
  %v1208 = vadd.f32 0.0, %v1207
  %v1209 = vpop.f32.mrb[0].mxu0
  %1210 = vmatprep.mubr.f32.mxu0 %v967
  %1211 = vmatmul.mubr.f32.gmra.mrb[0].mxu0 %v966
  %v1212 = vpop.f32.mrb[0].mxu0
  %v1213 = vadd.f32 0.0, %v1212
  %v1214 = vpop.f32.mrb[0].mxu0
  %1215 = vmatprep.mubr.f32.mxu0 %v970
  %1216 = vmatmul.mubr.f32.gmra.mrb[0].mxu0 %v969
  %v1217 = vpop.f32.mrb[0].mxu0
  %v1218 = vadd.f32 0.0, %v1217
  %v1219 = vpop.f32.mrb[0].mxu0
  %1220 = vmatprep.mubr.f32.mxu0 %v973
  %1221 = vmatmul.mubr.f32.gmra.mrb[0].mxu0 %v972
  %v1222 = vpop.f32.mrb[0].mxu0
  %v1223 = vadd.f32 0.0, %v1222
  %v1224 = vpop.f32.mrb[0].mxu0
  %1225 = vmatprep.mubr.f32.mxu0 %v976
  %1226 = vmatmul.mubr.f32.gmra.mrb[0].mxu0 %v975
  %v1227 = vpop.f32.mrb[0].mxu0
  %v1228 = vadd.f32 0.0, %v1227
  %v1229 = vpop.f32.mrb[0].mxu0
  %1230 = vmatprep.mubr.f32.mxu0 %v979
  %1231 = vmatmul.mubr.f32.gmra.mrb[0].mxu0 %v978
  %v1232 = vpop.f32.mrb[0].mxu0
  %v1233 = vadd.f32 0.0, %v1232
  %v1234 = vpop.f32.mrb[0].mxu0
  %1235 = vmatprep.mubr.f32.mxu0 %v982
  %1236 = vmatmul.mubr.f32.gmra.mrb[0].mxu0 %v981
  %v1237 = vpop.f32.mrb[0].mxu0
  %v1238 = vadd.f32 0.0, %v1237
  %v1239 = vpop.f32.mrb[0].mxu0
  %1240 = vmatprep.mubr.f32.mxu0 %v985
  %1241 = vmatmul.mubr.f32.gmra.mrb[0].mxu0 %v984
  %v1242 = vpop.f32.mrb[0].mxu0
  %v1243 = vadd.f32 0.0, %v1242
  %v1244 = vpop.f32.mrb[0].mxu0
  %1245 = vmatprep.mubr.f32.mxu0 %v988
  %1246 = vmatmul.mubr.f32.gmra.mrb[0].mxu0 %v987
  %v1247 = vpop.f32.mrb[0].mxu0
  %v1248 = vadd.f32 0.0, %v1247
  %v1249 = vpop.f32.mrb[0].mxu0
  %1250 = vmatprep.mubr.f32.mxu0 %v991
  %1251 = vmatmul.mubr.f32.gmra.mrb[0].mxu0 %v990
  %v1252 = vpop.f32.mrb[0].mxu0
  %v1253 = vadd.f32 0.0, %v1252
  %v1254 = vpop.f32.mrb[0].mxu0
  %1255 = vmatprep.mubr.f32.mxu0 %v994
  %1256 = vmatmul.mubr.f32.gmra.mrb[0].mxu0 %v993
  %v1257 = vpop.f32.mrb[0].mxu0
  %v1258 = vadd.f32 0.0, %v1257
  %v1259 = vpop.f32.mrb[0].mxu0
  %1260 = vmatprep.mubr.f32.mxu0 %v997
  %1261 = vmatmul.mubr.f32.gmra.mrb[0].mxu0 %v996
  %v1262 = vpop.f32.mrb[0].mxu0
  %v1263 = vadd.f32 0.0, %v1262
  %v1264 = vpop.f32.mrb[0].mxu0
  %1265 = vmatprep.mubr.f32.mxu0 %v1000
  %1266 = vmatmul.mubr.f32.gmra.mrb[0].mxu0 %v999
  %v1267 = vpop.f32.mrb[0].mxu0
  %v1268 = vadd.f32 0.0, %v1267
  %v1269 = vpop.f32.mrb[0].mxu0
  %1270 = vdwg.mxu0
  %1271 = vmatprep.subr.mxu0 0.0
  %1272 = vmatpush1.msra.mxu0 %v369
  %1273 = vmatprep.subr.mxu0 0.0
  %1274 = vmatpush1.msra.mxu0 0.0
  %1275 = vmatprep.subr.mxu0 0.0
  %1276 = vmatpush1.msra.mxu0 0.0
  %1277 = vmatprep.subr.mxu0 0.0
  %1278 = vmatpush1.msra.mxu0 0.0
  %1279 = vmatprep.subr.mxu0 0.0
  %1280 = vmatpush1.msra.mxu0 0.0
  %1281 = vmatprep.subr.mxu0 0.0
  %1282 = vmatpush1.msra.mxu0 0.0
  %1283 = vmatprep.subr.mxu0 0.0
  %1284 = vmatpush1.msra.mxu0 0.0
  %1285 = vmatprep.subr.mxu0 0.0
  %1286 = vmatpush1.msra.mxu0 0.0
  %1287 = vmatprep.subr.mxu0 0.0
  %1288 = vmatpush1.msra.mxu0 0.0
  %1289 = vmatprep.subr.mxu0 0.0
  %1290 = vmatpush1.msra.mxu0 0.0
  %1291 = vmatprep.subr.mxu0 0.0
  %1292 = vmatpush1.msra.mxu0 0.0
  %1293 = vmatprep.subr.mxu0 0.0
  %1294 = vmatpush1.msra.mxu0 0.0
  %1295 = vmatprep.subr.mxu0 0.0
  %1296 = vmatpush1.msra.mxu0 0.0
  %1297 = vmatprep.subr.mxu0 0.0
  %1298 = vmatpush1.msra.mxu0 0.0
  %1299 = vmatprep.subr.mxu0 0.0
  %1300 = vmatpush1.msra.mxu0 0.0
  %1301 = vmatprep.subr.mxu0 0.0
  %1302 = vmatpush1.msra.mxu0 0.0
  %1303 = vmatprep.subr.mxu0 0.0
  %1304 = vmatpush1.msra.mxu0 0.0
  %1305 = vmatprep.subr.mxu0 0.0
  %1306 = vmatpush1.msra.mxu0 0.0
  %1307 = vmatprep.subr.mxu0 0.0
  %1308 = vmatpush1.msra.mxu0 0.0
  %1309 = vmatprep.subr.mxu0 0.0
  %1310 = vmatpush1.msra.mxu0 0.0
  %1311 = vmatprep.subr.mxu0 0.0
  %1312 = vmatpush1.msra.mxu0 0.0
  %1313 = vmatprep.subr.mxu0 0.0
  %1314 = vmatpush1.msra.mxu0 0.0
  %1315 = vmatprep.subr.mxu0 0.0
  %1316 = vmatpush1.msra.mxu0 0.0
  %1317 = vmatprep.subr.mxu0 0.0
  %1318 = vmatpush1.msra.mxu0 0.0
  %1319 = vmatprep.subr.mxu0 0.0
  %1320 = vmatpush1.msra.mxu0 0.0
  %1321 = vmatprep.subr.mxu0 0.0
  %1322 = vmatpush1.msra.mxu0 0.0
  %1323 = vmatprep.subr.mxu0 0.0
  %1324 = vmatpush1.msra.mxu0 0.0
  %1325 = vmatprep.subr.mxu0 0.0
  %1326 = vmatpush1.msra.mxu0 0.0
  %1327 = vmatprep.subr.mxu0 0.0
  %1328 = vmatpush1.msra.mxu0 0.0
  %1329 = vmatprep.subr.mxu0 0.0
  %1330 = vmatpush1.msra.mxu0 0.0
  %1331 = vmatprep.subr.mxu0 0.0
  %1332 = vmatpush1.msra.mxu0 0.0
  %1333 = vmatprep.subr.mxu0 0.0
  %1334 = vmatpush1.msra.mxu0 0.0
  %1335 = vmatprep.mubr.f32.mxu0 0.0
  %1336 = vmatmul.mubr.f32.gmra.mrb[0].mxu0 %v1079
  %v1337 = vpop.f32.mrb[0].mxu0
  %v1338 = vadd.f32 %v1193, %v1337
  %v1339 = vpop.f32.mrb[0].mxu0
  %1340 = vmatprep.mubr.f32.mxu0 0.0
  %1341 = vmatmul.mubr.f32.gmra.mrb[0].mxu0 %v1082
  %v1342 = vpop.f32.mrb[0].mxu0
  %v1343 = vadd.f32 %v1198, %v1342
  %v1344 = vpop.f32.mrb[0].mxu0
  %1345 = vmatprep.mubr.f32.mxu0 0.0
  %1346 = vmatmul.mubr.f32.gmra.mrb[0].mxu0 %v1085
  %v1347 = vpop.f32.mrb[0].mxu0
  %v1348 = vadd.f32 %v1203, %v1347
  %v1349 = vpop.f32.mrb[0].mxu0
  %1350 = vmatprep.mubr.f32.mxu0 0.0
  %1351 = vmatmul.mubr.f32.gmra.mrb[0].mxu0 %v1088
  %v1352 = vpop.f32.mrb[0].mxu0
  %v1353 = vadd.f32 %v1208, %v1352
  %v1354 = vpop.f32.mrb[0].mxu0
  %1355 = vmatprep.mubr.f32.mxu0 0.0
  %1356 = vmatmul.mubr.f32.gmra.mrb[0].mxu0 %v1091
  %v1357 = vpop.f32.mrb[0].mxu0
  %v1358 = vadd.f32 %v1213, %v1357
  %v1359 = vpop.f32.mrb[0].mxu0
  %1360 = vmatprep.mubr.f32.mxu0 0.0
  %1361 = vmatmul.mubr.f32.gmra.mrb[0].mxu0 %v1094
  %v1362 = vpop.f32.mrb[0].mxu0
  %v1363 = vadd.f32 %v1218, %v1362
  %v1364 = vpop.f32.mrb[0].mxu0
  %1365 = vmatprep.mubr.f32.mxu0 0.0
  %1366 = vmatmul.mubr.f32.gmra.mrb[0].mxu0 %v1097
  %v1367 = vpop.f32.mrb[0].mxu0
  %v1368 = vadd.f32 %v1223, %v1367
  %v1369 = vpop.f32.mrb[0].mxu0
  %1370 = vmatprep.mubr.f32.mxu0 0.0
  %1371 = vmatmul.mubr.f32.gmra.mrb[0].mxu0 %v1100
  %v1372 = vpop.f32.mrb[0].mxu0
  %v1373 = vadd.f32 %v1228, %v1372
  %v1374 = vpop.f32.mrb[0].mxu0
  %1375 = vmatprep.mubr.f32.mxu0 0.0
  %1376 = vmatmul.mubr.f32.gmra.mrb[0].mxu0 %v1103
  %v1377 = vpop.f32.mrb[0].mxu0
  %v1378 = vadd.f32 %v1233, %v1377
  %v1379 = vpop.f32.mrb[0].mxu0
  %1380 = vmatprep.mubr.f32.mxu0 0.0
  %1381 = vmatmul.mubr.f32.gmra.mrb[0].mxu0 %v1106
  %v1382 = vpop.f32.mrb[0].mxu0
  %v1383 = vadd.f32 %v1238, %v1382
  %v1384 = vpop.f32.mrb[0].mxu0
  %1385 = vmatprep.mubr.f32.mxu0 0.0
  %1386 = vmatmul.mubr.f32.gmra.mrb[0].mxu0 %v1109
  %v1387 = vpop.f32.mrb[0].mxu0
  %v1388 = vadd.f32 %v1243, %v1387
  %v1389 = vpop.f32.mrb[0].mxu0
  %1390 = vmatprep.mubr.f32.mxu0 0.0
  %1391 = vmatmul.mubr.f32.gmra.mrb[0].mxu0 %v1112
  %v1392 = vpop.f32.mrb[0].mxu0
  %v1393 = vadd.f32 %v1248, %v1392
  %v1394 = vpop.f32.mrb[0].mxu0
  %1395 = vmatprep.mubr.f32.mxu0 0.0
  %1396 = vmatmul.mubr.f32.gmra.mrb[0].mxu0 %v1115
  %v1397 = vpop.f32.mrb[0].mxu0
  %v1398 = vadd.f32 %v1253, %v1397
  %v1399 = vpop.f32.mrb[0].mxu0
  %1400 = vmatprep.mubr.f32.mxu0 0.0
  %1401 = vmatmul.mubr.f32.gmra.mrb[0].mxu0 %v1118
  %v1402 = vpop.f32.mrb[0].mxu0
  %v1403 = vadd.f32 %v1258, %v1402
  %v1404 = vpop.f32.mrb[0].mxu0
  %1405 = vmatprep.mubr.f32.mxu0 0.0
  %1406 = vmatmul.mubr.f32.gmra.mrb[0].mxu0 %v1121
  %v1407 = vpop.f32.mrb[0].mxu0
  %v1408 = vadd.f32 %v1263, %v1407
  %v1409 = vpop.f32.mrb[0].mxu0
  %1410 = vmatprep.mubr.f32.mxu0 0.0
  %1411 = vmatmul.mubr.f32.gmra.mrb[0].mxu0 %v1124
  %v1412 = vpop.f32.mrb[0].mxu0
  %v1413 = vadd.f32 %v1268, %v1412
  %v1414 = vpop.f32.mrb[0].mxu0
  %1415 = vdwg.mxu0
  %v1416 = vmul.f32 %v1338, 0.2
  %v1417 = vmul.f32 %v1343, 0.2
  %v1418 = vmul.f32 %v1348, 0.2
  %v1419 = vmul.f32 %v1353, 0.2
  %v1420 = vmul.f32 %v1358, 0.2
  %v1421 = vmul.f32 %v1363, 0.2
  %v1422 = vmul.f32 %v1368, 0.2
  %v1423 = vmul.f32 %v1373, 0.2
  %v1424 = vmax.f32 %v1338, %v1416
  %v1425 = vmax.f32 %v1343, %v1417
  %v1426 = vmax.f32 %v1348, %v1418
  %v1427 = vmax.f32 %v1353, %v1419
  %v1428 = vmax.f32 %v1358, %v1420
  %v1429 = vmax.f32 %v1363, %v1421
  %v1430 = vmax.f32 %v1368, %v1422
  %v1431 = vmax.f32 %v1373, %v1423
  %v1432 = vmul.f32 %v1378, 0.2
  %v1433 = vmul.f32 %v1383, 0.2
  %v1434 = vmul.f32 %v1388, 0.2
  %v1435 = vmul.f32 %v1393, 0.2
  %v1436 = vmul.f32 %v1398, 0.2
  %v1437 = vmul.f32 %v1403, 0.2
  %v1438 = vmul.f32 %v1408, 0.2
  %v1439 = vmul.f32 %v1413, 0.2
  %v1440 = vmax.f32 %v1378, %v1432
  %v1441 = vmax.f32 %v1383, %v1433
  %v1442 = vmax.f32 %v1388, %v1434
  %v1443 = vmax.f32 %v1393, %v1435
  %v1444 = vmax.f32 %v1398, %v1436
  %v1445 = vmax.f32 %v1403, %v1437
  %v1446 = vmax.f32 %v1408, %v1438
  %v1447 = vmax.f32 %v1413, %v1439
  %v1448 = vadd.f32 %v1424, %v1440
  %v1449 = vadd.f32 %v1425, %v1441
  %v1450 = vadd.f32 %v1426, %v1442
  %v1451 = vadd.f32 %v1427, %v1443
  %v1452 = vadd.f32 %v1428, %v1444
  %v1453 = vadd.f32 %v1429, %v1445
  %v1454 = vadd.f32 %v1430, %v1446
  %v1455 = vadd.f32 %v1431, %v1447
  %1464 = vrot.lane.b32.xlu0 %v1448, 4
  %v1465 = vpop.permute.xlu0 %1464
  %1466 = vrot.lane.b32.xlu0 %v1449, 4
  %v1467 = vpop.permute.xlu0 %1466
  %1468 = vrot.lane.b32.xlu0 %v1450, 4
  %v1469 = vpop.permute.xlu0 %1468
  %1470 = vrot.lane.b32.xlu0 %v1451, 4
  %v1471 = vpop.permute.xlu0 %1470
  %1472 = vrot.lane.b32.xlu0 %v1452, 4
  %v1473 = vpop.permute.xlu0 %1472
  %1474 = vrot.lane.b32.xlu0 %v1453, 4
  %v1475 = vpop.permute.xlu0 %1474
  %1476 = vrot.lane.b32.xlu0 %v1454, 4
  %v1477 = vpop.permute.xlu0 %1476
  %1478 = vrot.lane.b32.xlu0 %v1455, 4
  %v1479 = vpop.permute.xlu0 %1478
  %v1488 = vsel %vm722, 0.0, %v1465
  %v1489 = vsel %vm722, 0.0, %v1467
  %v1490 = vsel %vm722, 0.0, %v1469
  %v1491 = vsel %vm722, 0.0, %v1471
  %v1492 = vsel %vm722, 0.0, %v1473
  %v1493 = vsel %vm722, 0.0, %v1475
  %v1494 = vsel %vm722, 0.0, %v1477
  %v1495 = vsel %vm722, 0.0, %v1479
  %v1496 = vsel %vm897, %v1488, 0.0
  %v1497 = vsel %vm897, %v1489, 0.0
  %v1498 = vsel %vm897, %v1490, 0.0
  %v1499 = vsel %vm897, %v1491, 0.0
  %v1500 = vsel %vm897, %v1492, 0.0
  %v1501 = vsel %vm897, %v1493, 0.0
  %v1502 = vsel %vm897, %v1494, 0.0
  %v1503 = vsel %vm897, %v1495, 0.0
  %v1504 = vld [vmem:[%s4] sm:$0xff]
  %v1505 = vld [vmem:[%s4 + $0x8] sm:$0xff]
  %v1506 = vld [vmem:[%s4 + $0x10] sm:$0xff]
  %v1507 = vld [vmem:[%s4 + $0x18] sm:$0xff]
  %v1508 = vld [vmem:[%s4 + $0x20] sm:$0xff]
  %v1509 = vld [vmem:[%s4 + $0x28] sm:$0xff]
  %v1510 = vld [vmem:[%s4 + $0x30] sm:$0xff]
  %v1511 = vld [vmem:[%s4 + $0x38] sm:$0xff]
  %v1512 = vld [vmem:[%s4 + $0x40] sm:$0xff]
  %v1513 = vld [vmem:[%s4 + $0x48] sm:$0xff]
  %v1514 = vld [vmem:[%s4 + $0x50] sm:$0xff]
  %v1515 = vld [vmem:[%s4 + $0x58] sm:$0xff]
  %v1516 = vld [vmem:[%s4 + $0x60] sm:$0xff]
  %v1517 = vld [vmem:[%s4 + $0x68] sm:$0xff]
  %v1518 = vld [vmem:[%s4 + $0x70] sm:$0xff]
  %v1519 = vld [vmem:[%s4 + $0x78] sm:$0xff]
  %1528 = vrot.lane.b32.xlu0 %v1496, 127
  %v1529 = vpop.permute.xlu0 %1528
  %1530 = vrot.lane.b32.xlu0 %v1497, 127
  %v1531 = vpop.permute.xlu0 %1530
  %1532 = vrot.lane.b32.xlu0 %v1498, 127
  %v1533 = vpop.permute.xlu0 %1532
  %1534 = vrot.lane.b32.xlu0 %v1499, 127
  %v1535 = vpop.permute.xlu0 %1534
  %1536 = vrot.lane.b32.xlu0 %v1500, 127
  %v1537 = vpop.permute.xlu0 %1536
  %1538 = vrot.lane.b32.xlu0 %v1501, 127
  %v1539 = vpop.permute.xlu0 %1538
  %1540 = vrot.lane.b32.xlu0 %v1502, 127
  %v1541 = vpop.permute.xlu0 %1540
  %1542 = vrot.lane.b32.xlu0 %v1503, 127
  %v1543 = vpop.permute.xlu0 %1542
  %1552 = vrot.lane.b32.xlu0 %v1496, 126
  %v1553 = vpop.permute.xlu0 %1552
  %1554 = vrot.lane.b32.xlu0 %v1497, 126
  %v1555 = vpop.permute.xlu0 %1554
  %1556 = vrot.lane.b32.xlu0 %v1498, 126
  %v1557 = vpop.permute.xlu0 %1556
  %1558 = vrot.lane.b32.xlu0 %v1499, 126
  %v1559 = vpop.permute.xlu0 %1558
  %1560 = vrot.lane.b32.xlu0 %v1500, 126
  %v1561 = vpop.permute.xlu0 %1560
  %1562 = vrot.lane.b32.xlu0 %v1501, 126
  %v1563 = vpop.permute.xlu0 %1562
  %1564 = vrot.lane.b32.xlu0 %v1502, 126
  %v1565 = vpop.permute.xlu0 %1564
  %1566 = vrot.lane.b32.xlu0 %v1503, 126
  %v1567 = vpop.permute.xlu0 %1566
  %vm1576 = vcmask 531456
  %v1578 = vsel %vm1576, %v1505, 0
  %v1581 = vsel %vm1576, %v1507, 0
  %v1584 = vsel %vm1576, %v1509, 0
  %v1587 = vsel %vm1576, %v1511, 0
  %v1590 = vsel %vm1576, %v1513, 0
  %v1593 = vsel %vm1576, %v1515, 0
  %v1596 = vsel %vm1576, %v1517, 0
  %v1599 = vsel %vm1576, %v1519, 0
  %1601 = vmatprep.subr.mxu0 0.0
  %1602 = vmatpush1.msra.mxu0 %v1496
  %1603 = vmatprep.subr.mxu0 0.0
  %1604 = vmatpush1.msra.mxu0 %v1497
  %1605 = vmatprep.subr.mxu0 0.0
  %1606 = vmatpush1.msra.mxu0 %v1498
  %1607 = vmatprep.subr.mxu0 0.0
  %1608 = vmatpush1.msra.mxu0 %v1499
  %1609 = vmatprep.subr.mxu0 0.0
  %1610 = vmatpush1.msra.mxu0 %v1500
  %1611 = vmatprep.subr.mxu0 0.0
  %1612 = vmatpush1.msra.mxu0 %v1501
  %1613 = vmatprep.subr.mxu0 0.0
  %1614 = vmatpush1.msra.mxu0 %v1502
  %1615 = vmatprep.subr.mxu0 0.0
  %1616 = vmatpush1.msra.mxu0 %v1503
  %1617 = vmatprep.subr.mxu0 0.0
  %1618 = vmatpush1.msra.mxu0 %v1529
  %1619 = vmatprep.subr.mxu0 0.0
  %1620 = vmatpush1.msra.mxu0 %v1531
  %1621 = vmatprep.subr.mxu0 0.0
  %1622 = vmatpush1.msra.mxu0 %v1533
  %1623 = vmatprep.subr.mxu0 0.0
  %1624 = vmatpush1.msra.mxu0 %v1535
  %1625 = vmatprep.subr.mxu0 0.0
  %1626 = vmatpush1.msra.mxu0 %v1537
  %1627 = vmatprep.subr.mxu0 0.0
  %1628 = vmatpush1.msra.mxu0 %v1539
  %1629 = vmatprep.subr.mxu0 0.0
  %1630 = vmatpush1.msra.mxu0 %v1541
  %1631 = vmatprep.subr.mxu0 0.0
  %1632 = vmatpush1.msra.mxu0 %v1543
  %1633 = vmatprep.subr.mxu0 0.0
  %1634 = vmatpush1.msra.mxu0 %v1553
  %1635 = vmatprep.subr.mxu0 0.0
  %1636 = vmatpush1.msra.mxu0 %v1555
  %1637 = vmatprep.subr.mxu0 0.0
  %1638 = vmatpush1.msra.mxu0 %v1557
  %1639 = vmatprep.subr.mxu0 0.0
  %1640 = vmatpush1.msra.mxu0 %v1559
  %1641 = vmatprep.subr.mxu0 0.0
  %1642 = vmatpush1.msra.mxu0 %v1561
  %1643 = vmatprep.subr.mxu0 0.0
  %1644 = vmatpush1.msra.mxu0 %v1563
  %1645 = vmatprep.subr.mxu0 0.0
  %1646 = vmatpush1.msra.mxu0 %v1565
  %1647 = vmatprep.subr.mxu0 0.0
  %1648 = vmatpush1.msra.mxu0 %v1567
  %1649 = vmatprep.subr.mxu0 0.0
  %1650 = vmatpush1.msra.mxu0 %v777
  %1651 = vmatprep.subr.mxu0 0.0
  %1652 = vmatpush1.msra.mxu0 0.0
  %1653 = vmatprep.subr.mxu0 0.0
  %1654 = vmatpush1.msra.mxu0 0.0
  %1655 = vmatprep.subr.mxu0 0.0
  %1656 = vmatpush1.msra.mxu0 0.0
  %1657 = vmatprep.subr.mxu0 0.0
  %1658 = vmatpush1.msra.mxu0 0.0
  %1659 = vmatprep.subr.mxu0 0.0
  %1660 = vmatpush1.msra.mxu0 0.0
  %1661 = vmatprep.subr.mxu0 0.0
  %1662 = vmatpush1.msra.mxu0 0.0
  %1663 = vmatprep.subr.mxu0 0.0
  %1664 = vmatpush1.msra.mxu0 0.0
  %1665 = vmatprep.mubr.f32.mxu0 %v1578
  %1666 = vmatmul.mubr.f32.gmra.mrb[0].mxu0 %v1504
  %v1667 = vpop.f32.mrb[0].mxu0
  %v1668 = vadd.f32 0.0, %v1667
  %v1669 = vpop.f32.mrb[0].mxu0
  %1670 = vmatprep.mubr.f32.mxu0 %v1581
  %1671 = vmatmul.mubr.f32.gmra.mrb[0].mxu0 %v1506
  %v1672 = vpop.f32.mrb[0].mxu0
  %v1673 = vadd.f32 0.0, %v1672
  %v1674 = vpop.f32.mrb[0].mxu0
  %1675 = vmatprep.mubr.f32.mxu0 %v1584
  %1676 = vmatmul.mubr.f32.gmra.mrb[0].mxu0 %v1508
  %v1677 = vpop.f32.mrb[0].mxu0
  %v1678 = vadd.f32 0.0, %v1677
  %v1679 = vpop.f32.mrb[0].mxu0
  %1680 = vmatprep.mubr.f32.mxu0 %v1587
  %1681 = vmatmul.mubr.f32.gmra.mrb[0].mxu0 %v1510
  %v1682 = vpop.f32.mrb[0].mxu0
  %v1683 = vadd.f32 0.0, %v1682
  %v1684 = vpop.f32.mrb[0].mxu0
  %1685 = vmatprep.mubr.f32.mxu0 %v1590
  %1686 = vmatmul.mubr.f32.gmra.mrb[0].mxu0 %v1512
  %v1687 = vpop.f32.mrb[0].mxu0
  %v1688 = vadd.f32 0.0, %v1687
  %v1689 = vpop.f32.mrb[0].mxu0
  %1690 = vmatprep.mubr.f32.mxu0 %v1593
  %1691 = vmatmul.mubr.f32.gmra.mrb[0].mxu0 %v1514
  %v1692 = vpop.f32.mrb[0].mxu0
  %v1693 = vadd.f32 0.0, %v1692
  %v1694 = vpop.f32.mrb[0].mxu0
  %1695 = vmatprep.mubr.f32.mxu0 %v1596
  %1696 = vmatmul.mubr.f32.gmra.mrb[0].mxu0 %v1516
  %v1697 = vpop.f32.mrb[0].mxu0
  %v1698 = vadd.f32 0.0, %v1697
  %v1699 = vpop.f32.mrb[0].mxu0
  %1700 = vmatprep.mubr.f32.mxu0 %v1599
  %1701 = vmatmul.mubr.f32.gmra.mrb[0].mxu0 %v1518
  %v1702 = vpop.f32.mrb[0].mxu0
  %v1703 = vadd.f32 0.0, %v1702
  %v1704 = vpop.f32.mrb[0].mxu0
  %1705 = vdwg.mxu0
  %v1706 = vmul.f32 %v1668, 0.2
  %v1707 = vmul.f32 %v1673, 0.2
  %v1708 = vmul.f32 %v1678, 0.2
  %v1709 = vmul.f32 %v1683, 0.2
  %v1710 = vmul.f32 %v1688, 0.2
  %v1711 = vmul.f32 %v1693, 0.2
  %v1712 = vmul.f32 %v1698, 0.2
  %v1713 = vmul.f32 %v1703, 0.2
  %v1714 = vmax.f32 %v1668, %v1706
  %v1715 = vmax.f32 %v1673, %v1707
  %v1716 = vmax.f32 %v1678, %v1708
  %v1717 = vmax.f32 %v1683, %v1709
  %v1718 = vmax.f32 %v1688, %v1710
  %v1719 = vmax.f32 %v1693, %v1711
  %v1720 = vmax.f32 %v1698, %v1712
  %v1721 = vmax.f32 %v1703, %v1713
  %vm1722 = vcmask 228352
  %1723 = vst.msk [vmem:[%s10] sm:$0xff] %vm1722, %v1714
  %1724 = vst.msk [vmem:[%s10 + $0x8] sm:$0xff] %vm1722, %v1715
  %1725 = vst.msk [vmem:[%s10 + $0x10] sm:$0xff] %vm1722, %v1716
  %1726 = vst.msk [vmem:[%s10 + $0x18] sm:$0xff] %vm1722, %v1717
  %1727 = vst.msk [vmem:[%s10 + $0x20] sm:$0xff] %vm1722, %v1718
  %1728 = vst.msk [vmem:[%s10 + $0x28] sm:$0xff] %vm1722, %v1719
  %1729 = vst.msk [vmem:[%s10 + $0x30] sm:$0xff] %vm1722, %v1720
  %1730 = vst.msk [vmem:[%s10 + $0x38] sm:$0xff] %vm1722, %v1721
  %1739 = vrot.lane.b32.xlu0 %v1714, 4
  %v1740 = vpop.permute.xlu0 %1739
  %1741 = vrot.lane.b32.xlu0 %v1715, 4
  %v1742 = vpop.permute.xlu0 %1741
  %1743 = vrot.lane.b32.xlu0 %v1716, 4
  %v1744 = vpop.permute.xlu0 %1743
  %1745 = vrot.lane.b32.xlu0 %v1717, 4
  %v1746 = vpop.permute.xlu0 %1745
  %1747 = vrot.lane.b32.xlu0 %v1718, 4
  %v1748 = vpop.permute.xlu0 %1747
  %1749 = vrot.lane.b32.xlu0 %v1719, 4
  %v1750 = vpop.permute.xlu0 %1749
  %1751 = vrot.lane.b32.xlu0 %v1720, 4
  %v1752 = vpop.permute.xlu0 %1751
  %1753 = vrot.lane.b32.xlu0 %v1721, 4
  %v1754 = vpop.permute.xlu0 %1753
  %v1763 = vsel %vm722, 0.0, %v1740
  %v1764 = vsel %vm722, 0.0, %v1742
  %v1765 = vsel %vm722, 0.0, %v1744
  %v1766 = vsel %vm722, 0.0, %v1746
  %v1767 = vsel %vm722, 0.0, %v1748
  %v1768 = vsel %vm722, 0.0, %v1750
  %v1769 = vsel %vm722, 0.0, %v1752
  %v1770 = vsel %vm722, 0.0, %v1754
  %vm1771 = vcmask 261120
  %v1772 = vsel %vm1771, %v1763, 0.0
  %v1773 = vsel %vm1771, %v1764, 0.0
  %v1774 = vsel %vm1771, %v1765, 0.0
  %v1775 = vsel %vm1771, %v1766, 0.0
  %v1776 = vsel %vm1771, %v1767, 0.0
  %v1777 = vsel %vm1771, %v1768, 0.0
  %v1778 = vsel %vm1771, %v1769, 0.0
  %v1779 = vsel %vm1771, %v1770, 0.0
  %1788 = vrot.lane.b32.xlu0 %v1772, 127
  %v1789 = vpop.permute.xlu0 %1788
  %1790 = vrot.lane.b32.xlu0 %v1773, 127
  %v1791 = vpop.permute.xlu0 %1790
  %1792 = vrot.lane.b32.xlu0 %v1774, 127
  %v1793 = vpop.permute.xlu0 %1792
  %1794 = vrot.lane.b32.xlu0 %v1775, 127
  %v1795 = vpop.permute.xlu0 %1794
  %1796 = vrot.lane.b32.xlu0 %v1776, 127
  %v1797 = vpop.permute.xlu0 %1796
  %1798 = vrot.lane.b32.xlu0 %v1777, 127
  %v1799 = vpop.permute.xlu0 %1798
  %1800 = vrot.lane.b32.xlu0 %v1778, 127
  %v1801 = vpop.permute.xlu0 %1800
  %1802 = vrot.lane.b32.xlu0 %v1779, 127
  %v1803 = vpop.permute.xlu0 %1802
  %1804 = vrot.lane.b32.xlu0 %v1772, 126
  %v1805 = vpop.permute.xlu0 %1804
  %1806 = vrot.lane.b32.xlu0 %v1773, 126
  %v1807 = vpop.permute.xlu0 %1806
  %1808 = vrot.lane.b32.xlu0 %v1774, 126
  %v1809 = vpop.permute.xlu0 %1808
  %1810 = vrot.lane.b32.xlu0 %v1775, 126
  %v1811 = vpop.permute.xlu0 %1810
  %1812 = vrot.lane.b32.xlu0 %v1776, 126
  %v1813 = vpop.permute.xlu0 %1812
  %1814 = vrot.lane.b32.xlu0 %v1777, 126
  %v1815 = vpop.permute.xlu0 %1814
  %1816 = vrot.lane.b32.xlu0 %v1778, 126
  %v1817 = vpop.permute.xlu0 %1816
  %1818 = vrot.lane.b32.xlu0 %v1779, 126
  %v1819 = vpop.permute.xlu0 %1818
  %1820 = vrot.lane.b32.xlu0 %v1772, 3
  %v1821 = vpop.permute.xlu0 %1820
  %1822 = vrot.lane.b32.xlu0 %v1773, 3
  %v1823 = vpop.permute.xlu0 %1822
  %1824 = vrot.lane.b32.xlu0 %v1774, 3
  %v1825 = vpop.permute.xlu0 %1824
  %1826 = vrot.lane.b32.xlu0 %v1775, 3
  %v1827 = vpop.permute.xlu0 %1826
  %1828 = vrot.lane.b32.xlu0 %v1776, 3
  %v1829 = vpop.permute.xlu0 %1828
  %1830 = vrot.lane.b32.xlu0 %v1777, 3
  %v1831 = vpop.permute.xlu0 %1830
  %1832 = vrot.lane.b32.xlu0 %v1778, 3
  %v1833 = vpop.permute.xlu0 %1832
  %1834 = vrot.lane.b32.xlu0 %v1779, 3
  %v1835 = vpop.permute.xlu0 %1834
  %1836 = vrot.lane.b32.xlu0 %v1772, 1
  %v1837 = vpop.permute.xlu0 %1836
  %1838 = vrot.lane.b32.xlu0 %v1773, 1
  %v1839 = vpop.permute.xlu0 %1838
  %1840 = vrot.lane.b32.xlu0 %v1774, 1
  %v1841 = vpop.permute.xlu0 %1840
  %1842 = vrot.lane.b32.xlu0 %v1775, 1
  %v1843 = vpop.permute.xlu0 %1842
  %1844 = vrot.lane.b32.xlu0 %v1776, 1
  %v1845 = vpop.permute.xlu0 %1844
  %1846 = vrot.lane.b32.xlu0 %v1777, 1
  %v1847 = vpop.permute.xlu0 %1846
  %1848 = vrot.lane.b32.xlu0 %v1778, 1
  %v1849 = vpop.permute.xlu0 %1848
  %1850 = vrot.lane.b32.xlu0 %v1779, 1
  %v1851 = vpop.permute.xlu0 %1850
  %1852 = vrot.lane.b32.xlu0 %v1772, 125
  %v1853 = vpop.permute.xlu0 %1852
  %1854 = vrot.lane.b32.xlu0 %v1773, 125
  %v1855 = vpop.permute.xlu0 %1854
  %1856 = vrot.lane.b32.xlu0 %v1774, 125
  %v1857 = vpop.permute.xlu0 %1856
  %1858 = vrot.lane.b32.xlu0 %v1775, 125
  %v1859 = vpop.permute.xlu0 %1858
  %1860 = vrot.lane.b32.xlu0 %v1776, 125
  %v1861 = vpop.permute.xlu0 %1860
  %1862 = vrot.lane.b32.xlu0 %v1777, 125
  %v1863 = vpop.permute.xlu0 %1862
  %1864 = vrot.lane.b32.xlu0 %v1778, 125
  %v1865 = vpop.permute.xlu0 %1864
  %1866 = vrot.lane.b32.xlu0 %v1779, 125
  %v1867 = vpop.permute.xlu0 %1866
  %1868 = vrot.lane.b32.xlu0 %v1772, 123
  %v1869 = vpop.permute.xlu0 %1868
  %1870 = vrot.lane.b32.xlu0 %v1773, 123
  %v1871 = vpop.permute.xlu0 %1870
  %1872 = vrot.lane.b32.xlu0 %v1774, 123
  %v1873 = vpop.permute.xlu0 %1872
  %1874 = vrot.lane.b32.xlu0 %v1775, 123
  %v1875 = vpop.permute.xlu0 %1874
  %1876 = vrot.lane.b32.xlu0 %v1776, 123
  %v1877 = vpop.permute.xlu0 %1876
  %1878 = vrot.lane.b32.xlu0 %v1777, 123
  %v1879 = vpop.permute.xlu0 %1878
  %1880 = vrot.lane.b32.xlu0 %v1778, 123
  %v1881 = vpop.permute.xlu0 %1880
  %1882 = vrot.lane.b32.xlu0 %v1779, 123
  %v1883 = vpop.permute.xlu0 %1882
  %v1884 = vld [vmem:[%s5] sm:$0xff]
  %v1885 = vld [vmem:[%s5 + $0x8] sm:$0xff]
  %v1886 = vld [vmem:[%s5 + $0x10] sm:$0xff]
  %v1887 = vld [vmem:[%s5 + $0x18] sm:$0xff]
  %v1888 = vld [vmem:[%s5 + $0x20] sm:$0xff]
  %v1889 = vld [vmem:[%s5 + $0x28] sm:$0xff]
  %v1890 = vld [vmem:[%s5 + $0x30] sm:$0xff]
  %v1891 = vld [vmem:[%s5 + $0x38] sm:$0xff]
  %v1892 = vld [vmem:[%s5 + $0x40] sm:$0xff]
  %v1893 = vld [vmem:[%s5 + $0x48] sm:$0xff]
  %v1894 = vld [vmem:[%s5 + $0x50] sm:$0xff]
  %v1895 = vld [vmem:[%s5 + $0x58] sm:$0xff]
  %v1896 = vld [vmem:[%s5 + $0x60] sm:$0xff]
  %v1897 = vld [vmem:[%s5 + $0x68] sm:$0xff]
  %v1898 = vld [vmem:[%s5 + $0x70] sm:$0xff]
  %v1899 = vld [vmem:[%s5 + $0x78] sm:$0xff]
  %v1900 = vld [vmem:[%s5 + $0x80] sm:$0xff]
  %v1901 = vld [vmem:[%s5 + $0x88] sm:$0xff]
  %v1902 = vld [vmem:[%s5 + $0x90] sm:$0xff]
  %v1903 = vld [vmem:[%s5 + $0x98] sm:$0xff]
  %v1904 = vld [vmem:[%s5 + $0xa0] sm:$0xff]
  %v1905 = vld [vmem:[%s5 + $0xa8] sm:$0xff]
  %v1906 = vld [vmem:[%s5 + $0xb0] sm:$0xff]
  %v1907 = vld [vmem:[%s5 + $0xb8] sm:$0xff]
  %v1908 = vld [vmem:[%s5 + $0xc0] sm:$0xff]
  %v1909 = vld [vmem:[%s5 + $0xc8] sm:$0xff]
  %v1910 = vld [vmem:[%s5 + $0xd0] sm:$0xff]
  %v1911 = vld [vmem:[%s5 + $0xd8] sm:$0xff]
  %v1912 = vld [vmem:[%s5 + $0xe0] sm:$0xff]
  %v1913 = vld [vmem:[%s5 + $0xe8] sm:$0xff]
  %v1914 = vld [vmem:[%s5 + $0xf0] sm:$0xff]
  %v1915 = vld [vmem:[%s5 + $0xf8] sm:$0xff]
  %v1916 = vld [vmem:[%s5 + $0x100] sm:$0xff]
  %v1917 = vld [vmem:[%s5 + $0x108] sm:$0xff]
  %v1918 = vld [vmem:[%s5 + $0x110] sm:$0xff]
  %v1919 = vld [vmem:[%s5 + $0x118] sm:$0xff]
  %v1920 = vld [vmem:[%s5 + $0x120] sm:$0xff]
  %v1921 = vld [vmem:[%s5 + $0x128] sm:$0xff]
  %v1922 = vld [vmem:[%s5 + $0x130] sm:$0xff]
  %v1923 = vld [vmem:[%s5 + $0x138] sm:$0xff]
  %v1924 = vld [vmem:[%s5 + $0x140] sm:$0xff]
  %v1925 = vld [vmem:[%s5 + $0x148] sm:$0xff]
  %v1926 = vld [vmem:[%s5 + $0x150] sm:$0xff]
  %v1927 = vld [vmem:[%s5 + $0x158] sm:$0xff]
  %v1928 = vld [vmem:[%s5 + $0x160] sm:$0xff]
  %v1929 = vld [vmem:[%s5 + $0x168] sm:$0xff]
  %v1930 = vld [vmem:[%s5 + $0x170] sm:$0xff]
  %v1931 = vld [vmem:[%s5 + $0x178] sm:$0xff]
  %v1932 = vld [vmem:[%s5 + $0x180] sm:$0xff]
  %v1933 = vld [vmem:[%s5 + $0x188] sm:$0xff]
  %v1934 = vld [vmem:[%s5 + $0x190] sm:$0xff]
  %v1935 = vld [vmem:[%s5 + $0x198] sm:$0xff]
  %v1936 = vld [vmem:[%s5 + $0x1a0] sm:$0xff]
  %v1937 = vld [vmem:[%s5 + $0x1a8] sm:$0xff]
  %v1938 = vld [vmem:[%s5 + $0x1b0] sm:$0xff]
  %v1939 = vld [vmem:[%s5 + $0x1b8] sm:$0xff]
  %v1940 = vld [vmem:[%s5 + $0x1c0] sm:$0xff]
  %v1941 = vld [vmem:[%s5 + $0x1c8] sm:$0xff]
  %v1942 = vld [vmem:[%s5 + $0x1d0] sm:$0xff]
  %v1943 = vld [vmem:[%s5 + $0x1d8] sm:$0xff]
  %v1944 = vld [vmem:[%s5 + $0x1e0] sm:$0xff]
  %v1945 = vld [vmem:[%s5 + $0x1e8] sm:$0xff]
  %v1946 = vld [vmem:[%s5 + $0x1f0] sm:$0xff]
  %v1947 = vld [vmem:[%s5 + $0x1f8] sm:$0xff]
  %v1948 = vld [vmem:[%s5 + $0x200] sm:$0xff]
  %v1949 = vld [vmem:[%s5 + $0x208] sm:$0xff]
  %v1950 = vld [vmem:[%s5 + $0x210] sm:$0xff]
  %v1951 = vld [vmem:[%s5 + $0x218] sm:$0xff]
  %v1952 = vld [vmem:[%s5 + $0x220] sm:$0xff]
  %v1953 = vld [vmem:[%s5 + $0x228] sm:$0xff]
  %v1954 = vld [vmem:[%s5 + $0x230] sm:$0xff]
  %v1955 = vld [vmem:[%s5 + $0x238] sm:$0xff]
  %v1956 = vld [vmem:[%s5 + $0x240] sm:$0xff]
  %v1957 = vld [vmem:[%s5 + $0x248] sm:$0xff]
  %v1958 = vld [vmem:[%s5 + $0x250] sm:$0xff]
  %v1959 = vld [vmem:[%s5 + $0x258] sm:$0xff]
  %v1960 = vld [vmem:[%s5 + $0x260] sm:$0xff]
  %v1961 = vld [vmem:[%s5 + $0x268] sm:$0xff]
  %v1962 = vld [vmem:[%s5 + $0x270] sm:$0xff]
  %v1963 = vld [vmem:[%s5 + $0x278] sm:$0xff]
  %1964 = vrot.lane.b32.xlu0 %v1789, 125
  %v1965 = vpop.permute.xlu0 %1964
  %1966 = vrot.lane.b32.xlu0 %v1791, 125
  %v1967 = vpop.permute.xlu0 %1966
  %1968 = vrot.lane.b32.xlu0 %v1793, 125
  %v1969 = vpop.permute.xlu0 %1968
  %1970 = vrot.lane.b32.xlu0 %v1795, 125
  %v1971 = vpop.permute.xlu0 %1970
  %1972 = vrot.lane.b32.xlu0 %v1797, 125
  %v1973 = vpop.permute.xlu0 %1972
  %1974 = vrot.lane.b32.xlu0 %v1799, 125
  %v1975 = vpop.permute.xlu0 %1974
  %1976 = vrot.lane.b32.xlu0 %v1801, 125
  %v1977 = vpop.permute.xlu0 %1976
  %1978 = vrot.lane.b32.xlu0 %v1803, 125
  %v1979 = vpop.permute.xlu0 %1978
  %1980 = vrot.lane.b32.xlu0 %v1805, 125
  %v1981 = vpop.permute.xlu0 %1980
  %1982 = vrot.lane.b32.xlu0 %v1807, 125
  %v1983 = vpop.permute.xlu0 %1982
  %1984 = vrot.lane.b32.xlu0 %v1809, 125
  %v1985 = vpop.permute.xlu0 %1984
  %1986 = vrot.lane.b32.xlu0 %v1811, 125
  %v1987 = vpop.permute.xlu0 %1986
  %1988 = vrot.lane.b32.xlu0 %v1813, 125
  %v1989 = vpop.permute.xlu0 %1988
  %1990 = vrot.lane.b32.xlu0 %v1815, 125
  %v1991 = vpop.permute.xlu0 %1990
  %1992 = vrot.lane.b32.xlu0 %v1817, 125
  %v1993 = vpop.permute.xlu0 %1992
  %1994 = vrot.lane.b32.xlu0 %v1819, 125
  %v1995 = vpop.permute.xlu0 %1994
  %1996 = vrot.lane.b32.xlu0 %v1821, 125
  %v1997 = vpop.permute.xlu0 %1996
  %1998 = vrot.lane.b32.xlu0 %v1823, 125
  %v1999 = vpop.permute.xlu0 %1998
  %2000 = vrot.lane.b32.xlu0 %v1825, 125
  %v2001 = vpop.permute.xlu0 %2000
  %2002 = vrot.lane.b32.xlu0 %v1827, 125
  %v2003 = vpop.permute.xlu0 %2002
  %2004 = vrot.lane.b32.xlu0 %v1829, 125
  %v2005 = vpop.permute.xlu0 %2004
  %2006 = vrot.lane.b32.xlu0 %v1831, 125
  %v2007 = vpop.permute.xlu0 %2006
  %2008 = vrot.lane.b32.xlu0 %v1833, 125
  %v2009 = vpop.permute.xlu0 %2008
  %2010 = vrot.lane.b32.xlu0 %v1835, 125
  %v2011 = vpop.permute.xlu0 %2010
  %2012 = vrot.lane.b32.xlu0 %v1837, 125
  %v2013 = vpop.permute.xlu0 %2012
  %2014 = vrot.lane.b32.xlu0 %v1839, 125
  %v2015 = vpop.permute.xlu0 %2014
  %2016 = vrot.lane.b32.xlu0 %v1841, 125
  %v2017 = vpop.permute.xlu0 %2016
  %2018 = vrot.lane.b32.xlu0 %v1843, 125
  %v2019 = vpop.permute.xlu0 %2018
  %2020 = vrot.lane.b32.xlu0 %v1845, 125
  %v2021 = vpop.permute.xlu0 %2020
  %2022 = vrot.lane.b32.xlu0 %v1847, 125
  %v2023 = vpop.permute.xlu0 %2022
  %2024 = vrot.lane.b32.xlu0 %v1849, 125
  %v2025 = vpop.permute.xlu0 %2024
  %2026 = vrot.lane.b32.xlu0 %v1851, 125
  %v2027 = vpop.permute.xlu0 %2026
  %2028 = vrot.lane.b32.xlu0 %v1853, 125
  %v2029 = vpop.permute.xlu0 %2028
  %2030 = vrot.lane.b32.xlu0 %v1855, 125
  %v2031 = vpop.permute.xlu0 %2030
  %2032 = vrot.lane.b32.xlu0 %v1857, 125
  %v2033 = vpop.permute.xlu0 %2032
  %2034 = vrot.lane.b32.xlu0 %v1859, 125
  %v2035 = vpop.permute.xlu0 %2034
  %2036 = vrot.lane.b32.xlu0 %v1861, 125
  %v2037 = vpop.permute.xlu0 %2036
  %2038 = vrot.lane.b32.xlu0 %v1863, 125
  %v2039 = vpop.permute.xlu0 %2038
  %2040 = vrot.lane.b32.xlu0 %v1865, 125
  %v2041 = vpop.permute.xlu0 %2040
  %2042 = vrot.lane.b32.xlu0 %v1867, 125
  %v2043 = vpop.permute.xlu0 %2042
  %2044 = vrot.lane.b32.xlu0 %v1869, 125
  %v2045 = vpop.permute.xlu0 %2044
  %2046 = vrot.lane.b32.xlu0 %v1871, 125
  %v2047 = vpop.permute.xlu0 %2046
  %2048 = vrot.lane.b32.xlu0 %v1873, 125
  %v2049 = vpop.permute.xlu0 %2048
  %2050 = vrot.lane.b32.xlu0 %v1875, 125
  %v2051 = vpop.permute.xlu0 %2050
  %2052 = vrot.lane.b32.xlu0 %v1877, 125
  %v2053 = vpop.permute.xlu0 %2052
  %2054 = vrot.lane.b32.xlu0 %v1879, 125
  %v2055 = vpop.permute.xlu0 %2054
  %2056 = vrot.lane.b32.xlu0 %v1881, 125
  %v2057 = vpop.permute.xlu0 %2056
  %2058 = vrot.lane.b32.xlu0 %v1883, 125
  %v2059 = vpop.permute.xlu0 %2058
  %v2117 = vsel %vm343, %v1888, 0
  %v2120 = vsel %vm343, %v1893, 0
  %v2123 = vsel %vm343, %v1898, 0
  %v2126 = vsel %vm343, %v1903, 0
  %v2129 = vsel %vm343, %v1908, 0
  %v2132 = vsel %vm343, %v1913, 0
  %v2135 = vsel %vm343, %v1918, 0
  %v2138 = vsel %vm343, %v1923, 0
  %v2141 = vsel %vm343, %v1928, 0
  %v2144 = vsel %vm343, %v1933, 0
  %v2147 = vsel %vm343, %v1938, 0
  %v2150 = vsel %vm343, %v1943, 0
  %v2153 = vsel %vm343, %v1948, 0
  %v2156 = vsel %vm343, %v1953, 0
  %v2159 = vsel %vm343, %v1958, 0
  %v2162 = vsel %vm343, %v1963, 0
  %2164 = vmatprep.subr.mxu0 0.0
  %2165 = vmatpush1.msra.mxu0 %v1853
  %2166 = vmatprep.subr.mxu0 0.0
  %2167 = vmatpush1.msra.mxu0 %v1855
  %2168 = vmatprep.subr.mxu0 0.0
  %2169 = vmatpush1.msra.mxu0 %v1857
  %2170 = vmatprep.subr.mxu0 0.0
  %2171 = vmatpush1.msra.mxu0 %v1859
  %2172 = vmatprep.subr.mxu0 0.0
  %2173 = vmatpush1.msra.mxu0 %v1861
  %2174 = vmatprep.subr.mxu0 0.0
  %2175 = vmatpush1.msra.mxu0 %v1863
  %2176 = vmatprep.subr.mxu0 0.0
  %2177 = vmatpush1.msra.mxu0 %v1865
  %2178 = vmatprep.subr.mxu0 0.0
  %2179 = vmatpush1.msra.mxu0 %v1867
  %2180 = vmatprep.subr.mxu0 0.0
  %2181 = vmatpush1.msra.mxu0 %v1965
  %2182 = vmatprep.subr.mxu0 0.0
  %2183 = vmatpush1.msra.mxu0 %v1967
  %2184 = vmatprep.subr.mxu0 0.0
  %2185 = vmatpush1.msra.mxu0 %v1969
  %2186 = vmatprep.subr.mxu0 0.0
  %2187 = vmatpush1.msra.mxu0 %v1971
  %2188 = vmatprep.subr.mxu0 0.0
  %2189 = vmatpush1.msra.mxu0 %v1973
  %2190 = vmatprep.subr.mxu0 0.0
  %2191 = vmatpush1.msra.mxu0 %v1975
  %2192 = vmatprep.subr.mxu0 0.0
  %2193 = vmatpush1.msra.mxu0 %v1977
  %2194 = vmatprep.subr.mxu0 0.0
  %2195 = vmatpush1.msra.mxu0 %v1979
  %2196 = vmatprep.subr.mxu0 0.0
  %2197 = vmatpush1.msra.mxu0 %v1981
  %2198 = vmatprep.subr.mxu0 0.0
  %2199 = vmatpush1.msra.mxu0 %v1983
  %2200 = vmatprep.subr.mxu0 0.0
  %2201 = vmatpush1.msra.mxu0 %v1985
  %2202 = vmatprep.subr.mxu0 0.0
  %2203 = vmatpush1.msra.mxu0 %v1987
  %2204 = vmatprep.subr.mxu0 0.0
  %2205 = vmatpush1.msra.mxu0 %v1989
  %2206 = vmatprep.subr.mxu0 0.0
  %2207 = vmatpush1.msra.mxu0 %v1991
  %2208 = vmatprep.subr.mxu0 0.0
  %2209 = vmatpush1.msra.mxu0 %v1993
  %2210 = vmatprep.subr.mxu0 0.0
  %2211 = vmatpush1.msra.mxu0 %v1995
  %2212 = vmatprep.subr.mxu0 0.0
  %2213 = vmatpush1.msra.mxu0 %v1997
  %2214 = vmatprep.subr.mxu0 0.0
  %2215 = vmatpush1.msra.mxu0 %v1999
  %2216 = vmatprep.subr.mxu0 0.0
  %2217 = vmatpush1.msra.mxu0 %v2001
  %2218 = vmatprep.subr.mxu0 0.0
  %2219 = vmatpush1.msra.mxu0 %v2003
  %2220 = vmatprep.subr.mxu0 0.0
  %2221 = vmatpush1.msra.mxu0 %v2005
  %2222 = vmatprep.subr.mxu0 0.0
  %2223 = vmatpush1.msra.mxu0 %v2007
  %2224 = vmatprep.subr.mxu0 0.0
  %2225 = vmatpush1.msra.mxu0 %v2009
  %2226 = vmatprep.subr.mxu0 0.0
  %2227 = vmatpush1.msra.mxu0 %v2011
  %2228 = vmatprep.mubr.f32.mxu0 %v1885
  %2229 = vmatmul.mubr.f32.gmra.mrb[0].mxu0 %v1884
  %v2230 = vpop.f32.mrb[0].mxu0
  %v2231 = vadd.f32 0.0, %v2230
  %v2232 = vpop.f32.mrb[0].mxu0
  %2233 = vmatprep.mubr.f32.mxu0 %v1890
  %2234 = vmatmul.mubr.f32.gmra.mrb[0].mxu0 %v1889
  %v2235 = vpop.f32.mrb[0].mxu0
  %v2236 = vadd.f32 0.0, %v2235
  %v2237 = vpop.f32.mrb[0].mxu0
  %2238 = vmatprep.mubr.f32.mxu0 %v1895
  %2239 = vmatmul.mubr.f32.gmra.mrb[0].mxu0 %v1894
  %v2240 = vpop.f32.mrb[0].mxu0
  %v2241 = vadd.f32 0.0, %v2240
  %v2242 = vpop.f32.mrb[0].mxu0
  %2243 = vmatprep.mubr.f32.mxu0 %v1900
  %2244 = vmatmul.mubr.f32.gmra.mrb[0].mxu0 %v1899
  %v2245 = vpop.f32.mrb[0].mxu0
  %v2246 = vadd.f32 0.0, %v2245
  %v2247 = vpop.f32.mrb[0].mxu0
  %2248 = vmatprep.mubr.f32.mxu0 %v1905
  %2249 = vmatmul.mubr.f32.gmra.mrb[0].mxu0 %v1904
  %v2250 = vpop.f32.mrb[0].mxu0
  %v2251 = vadd.f32 0.0, %v2250
  %v2252 = vpop.f32.mrb[0].mxu0
  %2253 = vmatprep.mubr.f32.mxu0 %v1910
  %2254 = vmatmul.mubr.f32.gmra.mrb[0].mxu0 %v1909
  %v2255 = vpop.f32.mrb[0].mxu0
  %v2256 = vadd.f32 0.0, %v2255
  %v2257 = vpop.f32.mrb[0].mxu0
  %2258 = vmatprep.mubr.f32.mxu0 %v1915
  %2259 = vmatmul.mubr.f32.gmra.mrb[0].mxu0 %v1914
  %v2260 = vpop.f32.mrb[0].mxu0
  %v2261 = vadd.f32 0.0, %v2260
  %v2262 = vpop.f32.mrb[0].mxu0
  %2263 = vmatprep.mubr.f32.mxu0 %v1920
  %2264 = vmatmul.mubr.f32.gmra.mrb[0].mxu0 %v1919
  %v2265 = vpop.f32.mrb[0].mxu0
  %v2266 = vadd.f32 0.0, %v2265
  %v2267 = vpop.f32.mrb[0].mxu0
  %2268 = vmatprep.mubr.f32.mxu0 %v1925
  %2269 = vmatmul.mubr.f32.gmra.mrb[0].mxu0 %v1924
  %v2270 = vpop.f32.mrb[0].mxu0
  %v2271 = vadd.f32 0.0, %v2270
  %v2272 = vpop.f32.mrb[0].mxu0
  %2273 = vmatprep.mubr.f32.mxu0 %v1930
  %2274 = vmatmul.mubr.f32.gmra.mrb[0].mxu0 %v1929
  %v2275 = vpop.f32.mrb[0].mxu0
  %v2276 = vadd.f32 0.0, %v2275
  %v2277 = vpop.f32.mrb[0].mxu0
  %2278 = vmatprep.mubr.f32.mxu0 %v1935
  %2279 = vmatmul.mubr.f32.gmra.mrb[0].mxu0 %v1934
  %v2280 = vpop.f32.mrb[0].mxu0
  %v2281 = vadd.f32 0.0, %v2280
  %v2282 = vpop.f32.mrb[0].mxu0
  %2283 = vmatprep.mubr.f32.mxu0 %v1940
  %2284 = vmatmul.mubr.f32.gmra.mrb[0].mxu0 %v1939
  %v2285 = vpop.f32.mrb[0].mxu0
  %v2286 = vadd.f32 0.0, %v2285
  %v2287 = vpop.f32.mrb[0].mxu0
  %2288 = vmatprep.mubr.f32.mxu0 %v1945
  %2289 = vmatmul.mubr.f32.gmra.mrb[0].mxu0 %v1944
  %v2290 = vpop.f32.mrb[0].mxu0
  %v2291 = vadd.f32 0.0, %v2290
  %v2292 = vpop.f32.mrb[0].mxu0
  %2293 = vmatprep.mubr.f32.mxu0 %v1950
  %2294 = vmatmul.mubr.f32.gmra.mrb[0].mxu0 %v1949
  %v2295 = vpop.f32.mrb[0].mxu0
  %v2296 = vadd.f32 0.0, %v2295
  %v2297 = vpop.f32.mrb[0].mxu0
  %2298 = vmatprep.mubr.f32.mxu0 %v1955
  %2299 = vmatmul.mubr.f32.gmra.mrb[0].mxu0 %v1954
  %v2300 = vpop.f32.mrb[0].mxu0
  %v2301 = vadd.f32 0.0, %v2300
  %v2302 = vpop.f32.mrb[0].mxu0
  %2303 = vmatprep.mubr.f32.mxu0 %v1960
  %2304 = vmatmul.mubr.f32.gmra.mrb[0].mxu0 %v1959
  %v2305 = vpop.f32.mrb[0].mxu0
  %v2306 = vadd.f32 0.0, %v2305
  %v2307 = vpop.f32.mrb[0].mxu0
  %2308 = vdwg.mxu0
  %2309 = vmatprep.subr.mxu0 0.0
  %2310 = vmatpush1.msra.mxu0 %v2013
  %2311 = vmatprep.subr.mxu0 0.0
  %2312 = vmatpush1.msra.mxu0 %v2015
  %2313 = vmatprep.subr.mxu0 0.0
  %2314 = vmatpush1.msra.mxu0 %v2017
  %2315 = vmatprep.subr.mxu0 0.0
  %2316 = vmatpush1.msra.mxu0 %v2019
  %2317 = vmatprep.subr.mxu0 0.0
  %2318 = vmatpush1.msra.mxu0 %v2021
  %2319 = vmatprep.subr.mxu0 0.0
  %2320 = vmatpush1.msra.mxu0 %v2023
  %2321 = vmatprep.subr.mxu0 0.0
  %2322 = vmatpush1.msra.mxu0 %v2025
  %2323 = vmatprep.subr.mxu0 0.0
  %2324 = vmatpush1.msra.mxu0 %v2027
  %2325 = vmatprep.subr.mxu0 0.0
  %2326 = vmatpush1.msra.mxu0 %v1965
  %2327 = vmatprep.subr.mxu0 0.0
  %2328 = vmatpush1.msra.mxu0 %v1967
  %2329 = vmatprep.subr.mxu0 0.0
  %2330 = vmatpush1.msra.mxu0 %v1969
  %2331 = vmatprep.subr.mxu0 0.0
  %2332 = vmatpush1.msra.mxu0 %v1971
  %2333 = vmatprep.subr.mxu0 0.0
  %2334 = vmatpush1.msra.mxu0 %v1973
  %2335 = vmatprep.subr.mxu0 0.0
  %2336 = vmatpush1.msra.mxu0 %v1975
  %2337 = vmatprep.subr.mxu0 0.0
  %2338 = vmatpush1.msra.mxu0 %v1977
  %2339 = vmatprep.subr.mxu0 0.0
  %2340 = vmatpush1.msra.mxu0 %v1979
  %2341 = vmatprep.subr.mxu0 0.0
  %2342 = vmatpush1.msra.mxu0 %v2029
  %2343 = vmatprep.subr.mxu0 0.0
  %2344 = vmatpush1.msra.mxu0 %v2031
  %2345 = vmatprep.subr.mxu0 0.0
  %2346 = vmatpush1.msra.mxu0 %v2033
  %2347 = vmatprep.subr.mxu0 0.0
  %2348 = vmatpush1.msra.mxu0 %v2035
  %2349 = vmatprep.subr.mxu0 0.0
  %2350 = vmatpush1.msra.mxu0 %v2037
  %2351 = vmatprep.subr.mxu0 0.0
  %2352 = vmatpush1.msra.mxu0 %v2039
  %2353 = vmatprep.subr.mxu0 0.0
  %2354 = vmatpush1.msra.mxu0 %v2041
  %2355 = vmatprep.subr.mxu0 0.0
  %2356 = vmatpush1.msra.mxu0 %v2043
  %2357 = vmatprep.subr.mxu0 0.0
  %2358 = vmatpush1.msra.mxu0 %v2045
  %2359 = vmatprep.subr.mxu0 0.0
  %2360 = vmatpush1.msra.mxu0 %v2047
  %2361 = vmatprep.subr.mxu0 0.0
  %2362 = vmatpush1.msra.mxu0 %v2049
  %2363 = vmatprep.subr.mxu0 0.0
  %2364 = vmatpush1.msra.mxu0 %v2051
  %2365 = vmatprep.subr.mxu0 0.0
  %2366 = vmatpush1.msra.mxu0 %v2053
  %2367 = vmatprep.subr.mxu0 0.0
  %2368 = vmatpush1.msra.mxu0 %v2055
  %2369 = vmatprep.subr.mxu0 0.0
  %2370 = vmatpush1.msra.mxu0 %v2057
  %2371 = vmatprep.subr.mxu0 0.0
  %2372 = vmatpush1.msra.mxu0 %v2059
  %2373 = vmatprep.mubr.f32.mxu0 %v1887
  %2374 = vmatmul.mubr.f32.gmra.mrb[0].mxu0 %v1886
  %v2375 = vpop.f32.mrb[0].mxu0
  %v2376 = vadd.f32 %v2231, %v2375
  %v2377 = vpop.f32.mrb[0].mxu0
  %2378 = vmatprep.mubr.f32.mxu0 %v1892
  %2379 = vmatmul.mubr.f32.gmra.mrb[0].mxu0 %v1891
  %v2380 = vpop.f32.mrb[0].mxu0
  %v2381 = vadd.f32 %v2236, %v2380
  %v2382 = vpop.f32.mrb[0].mxu0
  %2383 = vmatprep.mubr.f32.mxu0 %v1897
  %2384 = vmatmul.mubr.f32.gmra.mrb[0].mxu0 %v1896
  %v2385 = vpop.f32.mrb[0].mxu0
  %v2386 = vadd.f32 %v2241, %v2385
  %v2387 = vpop.f32.mrb[0].mxu0
  %2388 = vmatprep.mubr.f32.mxu0 %v1902
  %2389 = vmatmul.mubr.f32.gmra.mrb[0].mxu0 %v1901
  %v2390 = vpop.f32.mrb[0].mxu0
  %v2391 = vadd.f32 %v2246, %v2390
  %v2392 = vpop.f32.mrb[0].mxu0
  %2393 = vmatprep.mubr.f32.mxu0 %v1907
  %2394 = vmatmul.mubr.f32.gmra.mrb[0].mxu0 %v1906
  %v2395 = vpop.f32.mrb[0].mxu0
  %v2396 = vadd.f32 %v2251, %v2395
  %v2397 = vpop.f32.mrb[0].mxu0
  %2398 = vmatprep.mubr.f32.mxu0 %v1912
  %2399 = vmatmul.mubr.f32.gmra.mrb[0].mxu0 %v1911
  %v2400 = vpop.f32.mrb[0].mxu0
  %v2401 = vadd.f32 %v2256, %v2400
  %v2402 = vpop.f32.mrb[0].mxu0
  %2403 = vmatprep.mubr.f32.mxu0 %v1917
  %2404 = vmatmul.mubr.f32.gmra.mrb[0].mxu0 %v1916
  %v2405 = vpop.f32.mrb[0].mxu0
  %v2406 = vadd.f32 %v2261, %v2405
  %v2407 = vpop.f32.mrb[0].mxu0
  %2408 = vmatprep.mubr.f32.mxu0 %v1922
  %2409 = vmatmul.mubr.f32.gmra.mrb[0].mxu0 %v1921
  %v2410 = vpop.f32.mrb[0].mxu0
  %v2411 = vadd.f32 %v2266, %v2410
  %v2412 = vpop.f32.mrb[0].mxu0
  %2413 = vmatprep.mubr.f32.mxu0 %v1927
  %2414 = vmatmul.mubr.f32.gmra.mrb[0].mxu0 %v1926
  %v2415 = vpop.f32.mrb[0].mxu0
  %v2416 = vadd.f32 %v2271, %v2415
  %v2417 = vpop.f32.mrb[0].mxu0
  %2418 = vmatprep.mubr.f32.mxu0 %v1932
  %2419 = vmatmul.mubr.f32.gmra.mrb[0].mxu0 %v1931
  %v2420 = vpop.f32.mrb[0].mxu0
  %v2421 = vadd.f32 %v2276, %v2420
  %v2422 = vpop.f32.mrb[0].mxu0
  %2423 = vmatprep.mubr.f32.mxu0 %v1937
  %2424 = vmatmul.mubr.f32.gmra.mrb[0].mxu0 %v1936
  %v2425 = vpop.f32.mrb[0].mxu0
  %v2426 = vadd.f32 %v2281, %v2425
  %v2427 = vpop.f32.mrb[0].mxu0
  %2428 = vmatprep.mubr.f32.mxu0 %v1942
  %2429 = vmatmul.mubr.f32.gmra.mrb[0].mxu0 %v1941
  %v2430 = vpop.f32.mrb[0].mxu0
  %v2431 = vadd.f32 %v2286, %v2430
  %v2432 = vpop.f32.mrb[0].mxu0
  %2433 = vmatprep.mubr.f32.mxu0 %v1947
  %2434 = vmatmul.mubr.f32.gmra.mrb[0].mxu0 %v1946
  %v2435 = vpop.f32.mrb[0].mxu0
  %v2436 = vadd.f32 %v2291, %v2435
  %v2437 = vpop.f32.mrb[0].mxu0
  %2438 = vmatprep.mubr.f32.mxu0 %v1952
  %2439 = vmatmul.mubr.f32.gmra.mrb[0].mxu0 %v1951
  %v2440 = vpop.f32.mrb[0].mxu0
  %v2441 = vadd.f32 %v2296, %v2440
  %v2442 = vpop.f32.mrb[0].mxu0
  %2443 = vmatprep.mubr.f32.mxu0 %v1957
  %2444 = vmatmul.mubr.f32.gmra.mrb[0].mxu0 %v1956
  %v2445 = vpop.f32.mrb[0].mxu0
  %v2446 = vadd.f32 %v2301, %v2445
  %v2447 = vpop.f32.mrb[0].mxu0
  %2448 = vmatprep.mubr.f32.mxu0 %v1962
  %2449 = vmatmul.mubr.f32.gmra.mrb[0].mxu0 %v1961
  %v2450 = vpop.f32.mrb[0].mxu0
  %v2451 = vadd.f32 %v2306, %v2450
  %v2452 = vpop.f32.mrb[0].mxu0
  %2453 = vdwg.mxu0
  %2454 = vmatprep.subr.mxu0 0.0
  %2455 = vmatpush1.msra.mxu0 %v369
  %2456 = vmatprep.subr.mxu0 0.0
  %2457 = vmatpush1.msra.mxu0 0.0
  %2458 = vmatprep.subr.mxu0 0.0
  %2459 = vmatpush1.msra.mxu0 0.0
  %2460 = vmatprep.subr.mxu0 0.0
  %2461 = vmatpush1.msra.mxu0 0.0
  %2462 = vmatprep.subr.mxu0 0.0
  %2463 = vmatpush1.msra.mxu0 0.0
  %2464 = vmatprep.subr.mxu0 0.0
  %2465 = vmatpush1.msra.mxu0 0.0
  %2466 = vmatprep.subr.mxu0 0.0
  %2467 = vmatpush1.msra.mxu0 0.0
  %2468 = vmatprep.subr.mxu0 0.0
  %2469 = vmatpush1.msra.mxu0 0.0
  %2470 = vmatprep.subr.mxu0 0.0
  %2471 = vmatpush1.msra.mxu0 0.0
  %2472 = vmatprep.subr.mxu0 0.0
  %2473 = vmatpush1.msra.mxu0 0.0
  %2474 = vmatprep.subr.mxu0 0.0
  %2475 = vmatpush1.msra.mxu0 0.0
  %2476 = vmatprep.subr.mxu0 0.0
  %2477 = vmatpush1.msra.mxu0 0.0
  %2478 = vmatprep.subr.mxu0 0.0
  %2479 = vmatpush1.msra.mxu0 0.0
  %2480 = vmatprep.subr.mxu0 0.0
  %2481 = vmatpush1.msra.mxu0 0.0
  %2482 = vmatprep.subr.mxu0 0.0
  %2483 = vmatpush1.msra.mxu0 0.0
  %2484 = vmatprep.subr.mxu0 0.0
  %2485 = vmatpush1.msra.mxu0 0.0
  %2486 = vmatprep.subr.mxu0 0.0
  %2487 = vmatpush1.msra.mxu0 0.0
  %2488 = vmatprep.subr.mxu0 0.0
  %2489 = vmatpush1.msra.mxu0 0.0
  %2490 = vmatprep.subr.mxu0 0.0
  %2491 = vmatpush1.msra.mxu0 0.0
  %2492 = vmatprep.subr.mxu0 0.0
  %2493 = vmatpush1.msra.mxu0 0.0
  %2494 = vmatprep.subr.mxu0 0.0
  %2495 = vmatpush1.msra.mxu0 0.0
  %2496 = vmatprep.subr.mxu0 0.0
  %2497 = vmatpush1.msra.mxu0 0.0
  %2498 = vmatprep.subr.mxu0 0.0
  %2499 = vmatpush1.msra.mxu0 0.0
  %2500 = vmatprep.subr.mxu0 0.0
  %2501 = vmatpush1.msra.mxu0 0.0
  %2502 = vmatprep.subr.mxu0 0.0
  %2503 = vmatpush1.msra.mxu0 0.0
  %2504 = vmatprep.subr.mxu0 0.0
  %2505 = vmatpush1.msra.mxu0 0.0
  %2506 = vmatprep.subr.mxu0 0.0
  %2507 = vmatpush1.msra.mxu0 0.0
  %2508 = vmatprep.subr.mxu0 0.0
  %2509 = vmatpush1.msra.mxu0 0.0
  %2510 = vmatprep.subr.mxu0 0.0
  %2511 = vmatpush1.msra.mxu0 0.0
  %2512 = vmatprep.subr.mxu0 0.0
  %2513 = vmatpush1.msra.mxu0 0.0
  %2514 = vmatprep.subr.mxu0 0.0
  %2515 = vmatpush1.msra.mxu0 0.0
  %2516 = vmatprep.subr.mxu0 0.0
  %2517 = vmatpush1.msra.mxu0 0.0
  %2518 = vmatprep.mubr.f32.mxu0 0.0
  %2519 = vmatmul.mubr.f32.gmra.mrb[0].mxu0 %v2117
  %v2520 = vpop.f32.mrb[0].mxu0
  %v2521 = vadd.f32 %v2376, %v2520
  %v2522 = vpop.f32.mrb[0].mxu0
  %2523 = vmatprep.mubr.f32.mxu0 0.0
  %2524 = vmatmul.mubr.f32.gmra.mrb[0].mxu0 %v2120
  %v2525 = vpop.f32.mrb[0].mxu0
  %v2526 = vadd.f32 %v2381, %v2525
  %v2527 = vpop.f32.mrb[0].mxu0
  %2528 = vmatprep.mubr.f32.mxu0 0.0
  %2529 = vmatmul.mubr.f32.gmra.mrb[0].mxu0 %v2123
  %v2530 = vpop.f32.mrb[0].mxu0
  %v2531 = vadd.f32 %v2386, %v2530
  %v2532 = vpop.f32.mrb[0].mxu0
  %2533 = vmatprep.mubr.f32.mxu0 0.0
  %2534 = vmatmul.mubr.f32.gmra.mrb[0].mxu0 %v2126
  %v2535 = vpop.f32.mrb[0].mxu0
  %v2536 = vadd.f32 %v2391, %v2535
  %v2537 = vpop.f32.mrb[0].mxu0
  %2538 = vmatprep.mubr.f32.mxu0 0.0
  %2539 = vmatmul.mubr.f32.gmra.mrb[0].mxu0 %v2129
  %v2540 = vpop.f32.mrb[0].mxu0
  %v2541 = vadd.f32 %v2396, %v2540
  %v2542 = vpop.f32.mrb[0].mxu0
  %2543 = vmatprep.mubr.f32.mxu0 0.0
  %2544 = vmatmul.mubr.f32.gmra.mrb[0].mxu0 %v2132
  %v2545 = vpop.f32.mrb[0].mxu0
  %v2546 = vadd.f32 %v2401, %v2545
  %v2547 = vpop.f32.mrb[0].mxu0
  %2548 = vmatprep.mubr.f32.mxu0 0.0
  %2549 = vmatmul.mubr.f32.gmra.mrb[0].mxu0 %v2135
  %v2550 = vpop.f32.mrb[0].mxu0
  %v2551 = vadd.f32 %v2406, %v2550
  %v2552 = vpop.f32.mrb[0].mxu0
  %2553 = vmatprep.mubr.f32.mxu0 0.0
  %2554 = vmatmul.mubr.f32.gmra.mrb[0].mxu0 %v2138
  %v2555 = vpop.f32.mrb[0].mxu0
  %v2556 = vadd.f32 %v2411, %v2555
  %v2557 = vpop.f32.mrb[0].mxu0
  %2558 = vmatprep.mubr.f32.mxu0 0.0
  %2559 = vmatmul.mubr.f32.gmra.mrb[0].mxu0 %v2141
  %v2560 = vpop.f32.mrb[0].mxu0
  %v2561 = vadd.f32 %v2416, %v2560
  %v2562 = vpop.f32.mrb[0].mxu0
  %2563 = vmatprep.mubr.f32.mxu0 0.0
  %2564 = vmatmul.mubr.f32.gmra.mrb[0].mxu0 %v2144
  %v2565 = vpop.f32.mrb[0].mxu0
  %v2566 = vadd.f32 %v2421, %v2565
  %v2567 = vpop.f32.mrb[0].mxu0
  %2568 = vmatprep.mubr.f32.mxu0 0.0
  %2569 = vmatmul.mubr.f32.gmra.mrb[0].mxu0 %v2147
  %v2570 = vpop.f32.mrb[0].mxu0
  %v2571 = vadd.f32 %v2426, %v2570
  %v2572 = vpop.f32.mrb[0].mxu0
  %2573 = vmatprep.mubr.f32.mxu0 0.0
  %2574 = vmatmul.mubr.f32.gmra.mrb[0].mxu0 %v2150
  %v2575 = vpop.f32.mrb[0].mxu0
  %v2576 = vadd.f32 %v2431, %v2575
  %v2577 = vpop.f32.mrb[0].mxu0
  %2578 = vmatprep.mubr.f32.mxu0 0.0
  %2579 = vmatmul.mubr.f32.gmra.mrb[0].mxu0 %v2153
  %v2580 = vpop.f32.mrb[0].mxu0
  %v2581 = vadd.f32 %v2436, %v2580
  %v2582 = vpop.f32.mrb[0].mxu0
  %2583 = vmatprep.mubr.f32.mxu0 0.0
  %2584 = vmatmul.mubr.f32.gmra.mrb[0].mxu0 %v2156
  %v2585 = vpop.f32.mrb[0].mxu0
  %v2586 = vadd.f32 %v2441, %v2585
  %v2587 = vpop.f32.mrb[0].mxu0
  %2588 = vmatprep.mubr.f32.mxu0 0.0
  %2589 = vmatmul.mubr.f32.gmra.mrb[0].mxu0 %v2159
  %v2590 = vpop.f32.mrb[0].mxu0
  %v2591 = vadd.f32 %v2446, %v2590
  %v2592 = vpop.f32.mrb[0].mxu0
  %2593 = vmatprep.mubr.f32.mxu0 0.0
  %2594 = vmatmul.mubr.f32.gmra.mrb[0].mxu0 %v2162
  %v2595 = vpop.f32.mrb[0].mxu0
  %v2596 = vadd.f32 %v2451, %v2595
  %v2597 = vpop.f32.mrb[0].mxu0
  %2598 = vdwg.mxu0
  %v2599 = vmul.f32 %v2521, 0.2
  %v2600 = vmul.f32 %v2526, 0.2
  %v2601 = vmul.f32 %v2531, 0.2
  %v2602 = vmul.f32 %v2536, 0.2
  %v2603 = vmul.f32 %v2541, 0.2
  %v2604 = vmul.f32 %v2546, 0.2
  %v2605 = vmul.f32 %v2551, 0.2
  %v2606 = vmul.f32 %v2556, 0.2
  %v2607 = vmax.f32 %v2521, %v2599
  %v2608 = vmax.f32 %v2526, %v2600
  %v2609 = vmax.f32 %v2531, %v2601
  %v2610 = vmax.f32 %v2536, %v2602
  %v2611 = vmax.f32 %v2541, %v2603
  %v2612 = vmax.f32 %v2546, %v2604
  %v2613 = vmax.f32 %v2551, %v2605
  %v2614 = vmax.f32 %v2556, %v2606
  %v2615 = vmul.f32 %v2561, 0.2
  %v2616 = vmul.f32 %v2566, 0.2
  %v2617 = vmul.f32 %v2571, 0.2
  %v2618 = vmul.f32 %v2576, 0.2
  %v2619 = vmul.f32 %v2581, 0.2
  %v2620 = vmul.f32 %v2586, 0.2
  %v2621 = vmul.f32 %v2591, 0.2
  %v2622 = vmul.f32 %v2596, 0.2
  %v2623 = vmax.f32 %v2561, %v2615
  %v2624 = vmax.f32 %v2566, %v2616
  %v2625 = vmax.f32 %v2571, %v2617
  %v2626 = vmax.f32 %v2576, %v2618
  %v2627 = vmax.f32 %v2581, %v2619
  %v2628 = vmax.f32 %v2586, %v2620
  %v2629 = vmax.f32 %v2591, %v2621
  %v2630 = vmax.f32 %v2596, %v2622
  %v2631 = vadd.f32 %v2607, %v2623
  %v2632 = vadd.f32 %v2608, %v2624
  %v2633 = vadd.f32 %v2609, %v2625
  %v2634 = vadd.f32 %v2610, %v2626
  %v2635 = vadd.f32 %v2611, %v2627
  %v2636 = vadd.f32 %v2612, %v2628
  %v2637 = vadd.f32 %v2613, %v2629
  %v2638 = vadd.f32 %v2614, %v2630
  %2647 = vrot.lane.b32.xlu0 %v2631, 4
  %v2648 = vpop.permute.xlu0 %2647
  %2649 = vrot.lane.b32.xlu0 %v2632, 4
  %v2650 = vpop.permute.xlu0 %2649
  %2651 = vrot.lane.b32.xlu0 %v2633, 4
  %v2652 = vpop.permute.xlu0 %2651
  %2653 = vrot.lane.b32.xlu0 %v2634, 4
  %v2654 = vpop.permute.xlu0 %2653
  %2655 = vrot.lane.b32.xlu0 %v2635, 4
  %v2656 = vpop.permute.xlu0 %2655
  %2657 = vrot.lane.b32.xlu0 %v2636, 4
  %v2658 = vpop.permute.xlu0 %2657
  %2659 = vrot.lane.b32.xlu0 %v2637, 4
  %v2660 = vpop.permute.xlu0 %2659
  %2661 = vrot.lane.b32.xlu0 %v2638, 4
  %v2662 = vpop.permute.xlu0 %2661
  %v2671 = vsel %vm722, 0.0, %v2648
  %v2672 = vsel %vm722, 0.0, %v2650
  %v2673 = vsel %vm722, 0.0, %v2652
  %v2674 = vsel %vm722, 0.0, %v2654
  %v2675 = vsel %vm722, 0.0, %v2656
  %v2676 = vsel %vm722, 0.0, %v2658
  %v2677 = vsel %vm722, 0.0, %v2660
  %v2678 = vsel %vm722, 0.0, %v2662
  %v2679 = vsel %vm1771, %v2671, 0.0
  %v2680 = vsel %vm1771, %v2672, 0.0
  %v2681 = vsel %vm1771, %v2673, 0.0
  %v2682 = vsel %vm1771, %v2674, 0.0
  %v2683 = vsel %vm1771, %v2675, 0.0
  %v2684 = vsel %vm1771, %v2676, 0.0
  %v2685 = vsel %vm1771, %v2677, 0.0
  %v2686 = vsel %vm1771, %v2678, 0.0
  %v2687 = vld [vmem:[%s6] sm:$0xff]
  %v2688 = vld [vmem:[%s6 + $0x8] sm:$0xff]
  %v2689 = vld [vmem:[%s6 + $0x10] sm:$0xff]
  %v2690 = vld [vmem:[%s6 + $0x18] sm:$0xff]
  %v2691 = vld [vmem:[%s6 + $0x20] sm:$0xff]
  %v2692 = vld [vmem:[%s6 + $0x28] sm:$0xff]
  %v2693 = vld [vmem:[%s6 + $0x30] sm:$0xff]
  %v2694 = vld [vmem:[%s6 + $0x38] sm:$0xff]
  %v2695 = vld [vmem:[%s6 + $0x40] sm:$0xff]
  %v2696 = vld [vmem:[%s6 + $0x48] sm:$0xff]
  %v2697 = vld [vmem:[%s6 + $0x50] sm:$0xff]
  %v2698 = vld [vmem:[%s6 + $0x58] sm:$0xff]
  %v2699 = vld [vmem:[%s6 + $0x60] sm:$0xff]
  %v2700 = vld [vmem:[%s6 + $0x68] sm:$0xff]
  %v2701 = vld [vmem:[%s6 + $0x70] sm:$0xff]
  %v2702 = vld [vmem:[%s6 + $0x78] sm:$0xff]
  %2711 = vrot.lane.b32.xlu0 %v2679, 127
  %v2712 = vpop.permute.xlu0 %2711
  %2713 = vrot.lane.b32.xlu0 %v2680, 127
  %v2714 = vpop.permute.xlu0 %2713
  %2715 = vrot.lane.b32.xlu0 %v2681, 127
  %v2716 = vpop.permute.xlu0 %2715
  %2717 = vrot.lane.b32.xlu0 %v2682, 127
  %v2718 = vpop.permute.xlu0 %2717
  %2719 = vrot.lane.b32.xlu0 %v2683, 127
  %v2720 = vpop.permute.xlu0 %2719
  %2721 = vrot.lane.b32.xlu0 %v2684, 127
  %v2722 = vpop.permute.xlu0 %2721
  %2723 = vrot.lane.b32.xlu0 %v2685, 127
  %v2724 = vpop.permute.xlu0 %2723
  %2725 = vrot.lane.b32.xlu0 %v2686, 127
  %v2726 = vpop.permute.xlu0 %2725
  %2735 = vrot.lane.b32.xlu0 %v2679, 126
  %v2736 = vpop.permute.xlu0 %2735
  %2737 = vrot.lane.b32.xlu0 %v2680, 126
  %v2738 = vpop.permute.xlu0 %2737
  %2739 = vrot.lane.b32.xlu0 %v2681, 126
  %v2740 = vpop.permute.xlu0 %2739
  %2741 = vrot.lane.b32.xlu0 %v2682, 126
  %v2742 = vpop.permute.xlu0 %2741
  %2743 = vrot.lane.b32.xlu0 %v2683, 126
  %v2744 = vpop.permute.xlu0 %2743
  %2745 = vrot.lane.b32.xlu0 %v2684, 126
  %v2746 = vpop.permute.xlu0 %2745
  %2747 = vrot.lane.b32.xlu0 %v2685, 126
  %v2748 = vpop.permute.xlu0 %2747
  %2749 = vrot.lane.b32.xlu0 %v2686, 126
  %v2750 = vpop.permute.xlu0 %2749
  %v2760 = vsel %vm1576, %v2688, 0
  %v2763 = vsel %vm1576, %v2690, 0
  %v2766 = vsel %vm1576, %v2692, 0
  %v2769 = vsel %vm1576, %v2694, 0
  %v2772 = vsel %vm1576, %v2696, 0
  %v2775 = vsel %vm1576, %v2698, 0
  %v2778 = vsel %vm1576, %v2700, 0
  %v2781 = vsel %vm1576, %v2702, 0
  %2783 = vmatprep.subr.mxu0 0.0
  %2784 = vmatpush1.msra.mxu0 %v2679
  %2785 = vmatprep.subr.mxu0 0.0
  %2786 = vmatpush1.msra.mxu0 %v2680
  %2787 = vmatprep.subr.mxu0 0.0
  %2788 = vmatpush1.msra.mxu0 %v2681
  %2789 = vmatprep.subr.mxu0 0.0
  %2790 = vmatpush1.msra.mxu0 %v2682
  %2791 = vmatprep.subr.mxu0 0.0
  %2792 = vmatpush1.msra.mxu0 %v2683
  %2793 = vmatprep.subr.mxu0 0.0
  %2794 = vmatpush1.msra.mxu0 %v2684
  %2795 = vmatprep.subr.mxu0 0.0
  %2796 = vmatpush1.msra.mxu0 %v2685
  %2797 = vmatprep.subr.mxu0 0.0
  %2798 = vmatpush1.msra.mxu0 %v2686
  %2799 = vmatprep.subr.mxu0 0.0
  %2800 = vmatpush1.msra.mxu0 %v2712
  %2801 = vmatprep.subr.mxu0 0.0
  %2802 = vmatpush1.msra.mxu0 %v2714
  %2803 = vmatprep.subr.mxu0 0.0
  %2804 = vmatpush1.msra.mxu0 %v2716
  %2805 = vmatprep.subr.mxu0 0.0
  %2806 = vmatpush1.msra.mxu0 %v2718
  %2807 = vmatprep.subr.mxu0 0.0
  %2808 = vmatpush1.msra.mxu0 %v2720
  %2809 = vmatprep.subr.mxu0 0.0
  %2810 = vmatpush1.msra.mxu0 %v2722
  %2811 = vmatprep.subr.mxu0 0.0
  %2812 = vmatpush1.msra.mxu0 %v2724
  %2813 = vmatprep.subr.mxu0 0.0
  %2814 = vmatpush1.msra.mxu0 %v2726
  %2815 = vmatprep.subr.mxu0 0.0
  %2816 = vmatpush1.msra.mxu0 %v2736
  %2817 = vmatprep.subr.mxu0 0.0
  %2818 = vmatpush1.msra.mxu0 %v2738
  %2819 = vmatprep.subr.mxu0 0.0
  %2820 = vmatpush1.msra.mxu0 %v2740
  %2821 = vmatprep.subr.mxu0 0.0
  %2822 = vmatpush1.msra.mxu0 %v2742
  %2823 = vmatprep.subr.mxu0 0.0
  %2824 = vmatpush1.msra.mxu0 %v2744
  %2825 = vmatprep.subr.mxu0 0.0
  %2826 = vmatpush1.msra.mxu0 %v2746
  %2827 = vmatprep.subr.mxu0 0.0
  %2828 = vmatpush1.msra.mxu0 %v2748
  %2829 = vmatprep.subr.mxu0 0.0
  %2830 = vmatpush1.msra.mxu0 %v2750
  %2831 = vmatprep.subr.mxu0 0.0
  %2832 = vmatpush1.msra.mxu0 %v777
  %2833 = vmatprep.subr.mxu0 0.0
  %2834 = vmatpush1.msra.mxu0 0.0
  %2835 = vmatprep.subr.mxu0 0.0
  %2836 = vmatpush1.msra.mxu0 0.0
  %2837 = vmatprep.subr.mxu0 0.0
  %2838 = vmatpush1.msra.mxu0 0.0
  %2839 = vmatprep.subr.mxu0 0.0
  %2840 = vmatpush1.msra.mxu0 0.0
  %2841 = vmatprep.subr.mxu0 0.0
  %2842 = vmatpush1.msra.mxu0 0.0
  %2843 = vmatprep.subr.mxu0 0.0
  %2844 = vmatpush1.msra.mxu0 0.0
  %2845 = vmatprep.subr.mxu0 0.0
  %2846 = vmatpush1.msra.mxu0 0.0
  %2847 = vmatprep.mubr.f32.mxu0 %v2760
  %2848 = vmatmul.mubr.f32.gmra.mrb[0].mxu0 %v2687
  %v2849 = vpop.f32.mrb[0].mxu0
  %v2850 = vadd.f32 0.0, %v2849
  %v2851 = vpop.f32.mrb[0].mxu0
  %2852 = vmatprep.mubr.f32.mxu0 %v2763
  %2853 = vmatmul.mubr.f32.gmra.mrb[0].mxu0 %v2689
  %v2854 = vpop.f32.mrb[0].mxu0
  %v2855 = vadd.f32 0.0, %v2854
  %v2856 = vpop.f32.mrb[0].mxu0
  %2857 = vmatprep.mubr.f32.mxu0 %v2766
  %2858 = vmatmul.mubr.f32.gmra.mrb[0].mxu0 %v2691
  %v2859 = vpop.f32.mrb[0].mxu0
  %v2860 = vadd.f32 0.0, %v2859
  %v2861 = vpop.f32.mrb[0].mxu0
  %2862 = vmatprep.mubr.f32.mxu0 %v2769
  %2863 = vmatmul.mubr.f32.gmra.mrb[0].mxu0 %v2693
  %v2864 = vpop.f32.mrb[0].mxu0
  %v2865 = vadd.f32 0.0, %v2864
  %v2866 = vpop.f32.mrb[0].mxu0
  %2867 = vmatprep.mubr.f32.mxu0 %v2772
  %2868 = vmatmul.mubr.f32.gmra.mrb[0].mxu0 %v2695
  %v2869 = vpop.f32.mrb[0].mxu0
  %v2870 = vadd.f32 0.0, %v2869
  %v2871 = vpop.f32.mrb[0].mxu0
  %2872 = vmatprep.mubr.f32.mxu0 %v2775
  %2873 = vmatmul.mubr.f32.gmra.mrb[0].mxu0 %v2697
  %v2874 = vpop.f32.mrb[0].mxu0
  %v2875 = vadd.f32 0.0, %v2874
  %v2876 = vpop.f32.mrb[0].mxu0
  %2877 = vmatprep.mubr.f32.mxu0 %v2778
  %2878 = vmatmul.mubr.f32.gmra.mrb[0].mxu0 %v2699
  %v2879 = vpop.f32.mrb[0].mxu0
  %v2880 = vadd.f32 0.0, %v2879
  %v2881 = vpop.f32.mrb[0].mxu0
  %2882 = vmatprep.mubr.f32.mxu0 %v2781
  %2883 = vmatmul.mubr.f32.gmra.mrb[0].mxu0 %v2701
  %v2884 = vpop.f32.mrb[0].mxu0
  %v2885 = vadd.f32 0.0, %v2884
  %v2886 = vpop.f32.mrb[0].mxu0
  %2887 = vdwg.mxu0
  %v2888 = vld [vmem:[%s8] sm:$0xff]
  %v2889 = vld [vmem:[%s8 + $0x8] sm:$0xff]
  %v2890 = vld [vmem:[%s8 + $0x10] sm:$0xff]
  %v2891 = vld [vmem:[%s8 + $0x18] sm:$0xff]
  %v2892 = vld [vmem:[%s8 + $0x20] sm:$0x3]
  %vm2893 = vcmask 277504
  %v2895 = vsel %vm2893, %v2850, 0
  %v2898 = vsel %vm2893, %v2855, 0
  %v2901 = vsel %vm2893, %v2860, 0
  %v2904 = vsel %vm2893, %v2865, 0
  %v2907 = vsel %vm2893, %v2870, 0
  %v2910 = vsel %vm2893, %v2875, 0
  %v2913 = vsel %vm2893, %v2880, 0
  %v2916 = vsel %vm2893, %v2885, 0
  %vm2918 = vcmask 1041408
  %v2920 = vsel %vm2918, %v2892, 0
  %2922 = vmatprep.subr.mxu0 0.0
  %2923 = vmatpush1.msra.mxu0 %v2888
  %2924 = vmatprep.subr.mxu0 0.0
  %2925 = vmatpush1.msra.mxu0 %v2889
  %2926 = vmatprep.subr.mxu0 0.0
  %2927 = vmatpush1.msra.mxu0 %v2890
  %2928 = vmatprep.subr.mxu0 0.0
  %2929 = vmatpush1.msra.mxu0 %v2891
  %2930 = vmatprep.subr.mxu0 0.0
  %2931 = vmatpush1.msra.mxu0 %v2920
  %2932 = vmatprep.subr.mxu0 0.0
  %2933 = vmatpush1.msra.mxu0 0.0
  %2934 = vmatprep.subr.mxu0 0.0
  %2935 = vmatpush1.msra.mxu0 0.0
  %2936 = vmatprep.subr.mxu0 0.0
  %2937 = vmatpush1.msra.mxu0 0.0
  %2938 = vmatprep.subr.mxu0 0.0
  %2939 = vmatpush1.msra.mxu0 0.0
  %2940 = vmatprep.subr.mxu0 0.0
  %2941 = vmatpush1.msra.mxu0 0.0
  %2942 = vmatprep.subr.mxu0 0.0
  %2943 = vmatpush1.msra.mxu0 0.0
  %2944 = vmatprep.subr.mxu0 0.0
  %2945 = vmatpush1.msra.mxu0 0.0
  %2946 = vmatprep.subr.mxu0 0.0
  %2947 = vmatpush1.msra.mxu0 0.0
  %2948 = vmatprep.subr.mxu0 0.0
  %2949 = vmatpush1.msra.mxu0 0.0
  %2950 = vmatprep.subr.mxu0 0.0
  %2951 = vmatpush1.msra.mxu0 0.0
  %2952 = vmatprep.subr.mxu0 0.0
  %2953 = vmatpush1.msra.mxu0 0.0
  %2954 = vmatprep.subr.mxu0 0.0
  %2955 = vmatpush1.msra.mxu0 0.0
  %2956 = vmatprep.subr.mxu0 0.0
  %2957 = vmatpush1.msra.mxu0 0.0
  %2958 = vmatprep.subr.mxu0 0.0
  %2959 = vmatpush1.msra.mxu0 0.0
  %2960 = vmatprep.subr.mxu0 0.0
  %2961 = vmatpush1.msra.mxu0 0.0
  %2962 = vmatprep.subr.mxu0 0.0
  %2963 = vmatpush1.msra.mxu0 0.0
  %2964 = vmatprep.subr.mxu0 0.0
  %2965 = vmatpush1.msra.mxu0 0.0
  %2966 = vmatprep.subr.mxu0 0.0
  %2967 = vmatpush1.msra.mxu0 0.0
  %2968 = vmatprep.subr.mxu0 0.0
  %2969 = vmatpush1.msra.mxu0 0.0
  %2970 = vmatprep.subr.mxu0 0.0
  %2971 = vmatpush1.msra.mxu0 0.0
  %2972 = vmatprep.subr.mxu0 0.0
  %2973 = vmatpush1.msra.mxu0 0.0
  %2974 = vmatprep.subr.mxu0 0.0
  %2975 = vmatpush1.msra.mxu0 0.0
  %2976 = vmatprep.subr.mxu0 0.0
  %2977 = vmatpush1.msra.mxu0 0.0
  %2978 = vmatprep.subr.mxu0 0.0
  %2979 = vmatpush1.msra.mxu0 0.0
  %2980 = vmatprep.subr.mxu0 0.0
  %2981 = vmatpush1.msra.mxu0 0.0
  %2982 = vmatprep.subr.mxu0 0.0
  %2983 = vmatpush1.msra.mxu0 0.0
  %2984 = vmatprep.subr.mxu0 0.0
  %2985 = vmatpush1.msra.mxu0 0.0
  %2986 = vmatprep.mubr.f32.mxu0 0.0
  %2987 = vmatmul.mubr.f32.gmra.mrb[0].mxu0 %v2895
  %v2988 = vpop.f32.mrb[0].mxu0
  %v2989 = vadd.f32 0.0, %v2988
  %v2990 = vpop.f32.mrb[0].mxu0
  %2991 = vmatprep.mubr.f32.mxu0 0.0
  %2992 = vmatmul.mubr.f32.gmra.mrb[0].mxu0 %v2898
  %v2993 = vpop.f32.mrb[0].mxu0
  %v2994 = vadd.f32 0.0, %v2993
  %v2995 = vpop.f32.mrb[0].mxu0
  %2996 = vmatprep.mubr.f32.mxu0 0.0
  %2997 = vmatmul.mubr.f32.gmra.mrb[0].mxu0 %v2901
  %v2998 = vpop.f32.mrb[0].mxu0
  %v2999 = vadd.f32 0.0, %v2998
  %v3000 = vpop.f32.mrb[0].mxu0
  %3001 = vmatprep.mubr.f32.mxu0 0.0
  %3002 = vmatmul.mubr.f32.gmra.mrb[0].mxu0 %v2904
  %v3003 = vpop.f32.mrb[0].mxu0
  %v3004 = vadd.f32 0.0, %v3003
  %v3005 = vpop.f32.mrb[0].mxu0
  %3006 = vmatprep.mubr.f32.mxu0 0.0
  %3007 = vmatmul.mubr.f32.gmra.mrb[0].mxu0 %v2907
  %v3008 = vpop.f32.mrb[0].mxu0
  %v3009 = vadd.f32 0.0, %v3008
  %v3010 = vpop.f32.mrb[0].mxu0
  %3011 = vmatprep.mubr.f32.mxu0 0.0
  %3012 = vmatmul.mubr.f32.gmra.mrb[0].mxu0 %v2910
  %v3013 = vpop.f32.mrb[0].mxu0
  %v3014 = vadd.f32 0.0, %v3013
  %v3015 = vpop.f32.mrb[0].mxu0
  %3016 = vmatprep.mubr.f32.mxu0 0.0
  %3017 = vmatmul.mubr.f32.gmra.mrb[0].mxu0 %v2913
  %v3018 = vpop.f32.mrb[0].mxu0
  %v3019 = vadd.f32 0.0, %v3018
  %v3020 = vpop.f32.mrb[0].mxu0
  %3021 = vmatprep.mubr.f32.mxu0 0.0
  %3022 = vmatmul.mubr.f32.gmra.mrb[0].mxu0 %v2916
  %v3023 = vpop.f32.mrb[0].mxu0
  %v3024 = vadd.f32 0.0, %v3023
  %v3025 = vpop.f32.mrb[0].mxu0
  %3026 = vdwg.mxu0
  %v3027 = vmul.f32 %v2989, 0.2
  %v3028 = vmul.f32 %v2994, 0.2
  %v3029 = vmul.f32 %v2999, 0.2
  %v3030 = vmul.f32 %v3004, 0.2
  %v3031 = vmul.f32 %v3009, 0.2
  %v3032 = vmul.f32 %v3014, 0.2
  %v3033 = vmul.f32 %v3019, 0.2
  %v3034 = vmul.f32 %v3024, 0.2
  %v3035 = vmax.f32 %v2989, %v3027
  %v3036 = vmax.f32 %v2994, %v3028
  %v3037 = vmax.f32 %v2999, %v3029
  %v3038 = vmax.f32 %v3004, %v3030
  %v3039 = vmax.f32 %v3009, %v3031
  %v3040 = vmax.f32 %v3014, %v3032
  %v3041 = vmax.f32 %v3019, %v3033
  %v3042 = vmax.f32 %v3024, %v3034
  %vm3043 = vcmask 138240
  %3044 = vst.msk [vmem:[%s11] sm:$0xff] %vm3043, %v3035
  %3045 = vst.msk [vmem:[%s11 + $0x8] sm:$0xff] %vm3043, %v3036
  %3046 = vst.msk [vmem:[%s11 + $0x10] sm:$0xff] %vm3043, %v3037
  %3047 = vst.msk [vmem:[%s11 + $0x18] sm:$0xff] %vm3043, %v3038
  %3048 = vst.msk [vmem:[%s11 + $0x20] sm:$0xff] %vm3043, %v3039
  %3049 = vst.msk [vmem:[%s11 + $0x28] sm:$0xff] %vm3043, %v3040
  %3050 = vst.msk [vmem:[%s11 + $0x30] sm:$0xff] %vm3043, %v3041
  %3051 = vst.msk [vmem:[%s11 + $0x38] sm:$0xff] %vm3043, %v3042
  %3060 = vrot.lane.b32.xlu0 %v3035, 1
  %v3061 = vpop.permute.xlu0 %3060
  %3062 = vrot.lane.b32.xlu0 %v3036, 1
  %v3063 = vpop.permute.xlu0 %3062
  %3064 = vrot.lane.b32.xlu0 %v3037, 1
  %v3065 = vpop.permute.xlu0 %3064
  %3066 = vrot.lane.b32.xlu0 %v3038, 1
  %v3067 = vpop.permute.xlu0 %3066
  %3068 = vrot.lane.b32.xlu0 %v3039, 1
  %v3069 = vpop.permute.xlu0 %3068
  %3070 = vrot.lane.b32.xlu0 %v3040, 1
  %v3071 = vpop.permute.xlu0 %3070
  %3072 = vrot.lane.b32.xlu0 %v3041, 1
  %v3073 = vpop.permute.xlu0 %3072
  %3074 = vrot.lane.b32.xlu0 %v3042, 1
  %v3075 = vpop.permute.xlu0 %3074
  %v3084 = vsel %vm343, 0.0, %v3061
  %v3085 = vsel %vm343, 0.0, %v3063
  %v3086 = vsel %vm343, 0.0, %v3065
  %v3087 = vsel %vm343, 0.0, %v3067
  %v3088 = vsel %vm343, 0.0, %v3069
  %v3089 = vsel %vm343, 0.0, %v3071
  %v3090 = vsel %vm343, 0.0, %v3073
  %v3091 = vsel %vm343, 0.0, %v3075
  %vm3092 = vcmask 146432
  %v3093 = vsel %vm3092, %v3084, 0.0
  %v3094 = vsel %vm3092, %v3085, 0.0
  %v3095 = vsel %vm3092, %v3086, 0.0
  %v3096 = vsel %vm3092, %v3087, 0.0
  %v3097 = vsel %vm3092, %v3088, 0.0
  %v3098 = vsel %vm3092, %v3089, 0.0
  %v3099 = vsel %vm3092, %v3090, 0.0
  %v3100 = vsel %vm3092, %v3091, 0.0
  %v3101 = vld [vmem:[%s7] sm:$0xff]
  %3110 = vrot.lane.b32.xlu0 %v3093, 127
  %v3111 = vpop.permute.xlu0 %3110
  %3112 = vrot.lane.b32.xlu0 %v3094, 127
  %v3113 = vpop.permute.xlu0 %3112
  %3114 = vrot.lane.b32.xlu0 %v3095, 127
  %v3115 = vpop.permute.xlu0 %3114
  %3116 = vrot.lane.b32.xlu0 %v3096, 127
  %v3117 = vpop.permute.xlu0 %3116
  %3118 = vrot.lane.b32.xlu0 %v3097, 127
  %v3119 = vpop.permute.xlu0 %3118
  %3120 = vrot.lane.b32.xlu0 %v3098, 127
  %v3121 = vpop.permute.xlu0 %3120
  %3122 = vrot.lane.b32.xlu0 %v3099, 127
  %v3123 = vpop.permute.xlu0 %3122
  %3124 = vrot.lane.b32.xlu0 %v3100, 127
  %v3125 = vpop.permute.xlu0 %3124
  %3134 = vrot.lane.b32.xlu0 %v3093, 126
  %v3135 = vpop.permute.xlu0 %3134
  %3136 = vrot.lane.b32.xlu0 %v3094, 126
  %v3137 = vpop.permute.xlu0 %3136
  %3138 = vrot.lane.b32.xlu0 %v3095, 126
  %v3139 = vpop.permute.xlu0 %3138
  %3140 = vrot.lane.b32.xlu0 %v3096, 126
  %v3141 = vpop.permute.xlu0 %3140
  %3142 = vrot.lane.b32.xlu0 %v3097, 126
  %v3143 = vpop.permute.xlu0 %3142
  %3144 = vrot.lane.b32.xlu0 %v3098, 126
  %v3145 = vpop.permute.xlu0 %3144
  %3146 = vrot.lane.b32.xlu0 %v3099, 126
  %v3147 = vpop.permute.xlu0 %3146
  %3148 = vrot.lane.b32.xlu0 %v3100, 126
  %v3149 = vpop.permute.xlu0 %3148
  %v3159 = vcombine.high %v3101, %v3101
  %v3160 = vsel %vm1576, %v3159, 0
  %3162 = vmatprep.subr.mxu0 0.0
  %3163 = vmatpush1.msra.mxu0 %v3093
  %3164 = vmatprep.subr.mxu0 0.0
  %3165 = vmatpush1.msra.mxu0 %v3094
  %3166 = vmatprep.subr.mxu0 0.0
  %3167 = vmatpush1.msra.mxu0 %v3095
  %3168 = vmatprep.subr.mxu0 0.0
  %3169 = vmatpush1.msra.mxu0 %v3096
  %3170 = vmatprep.subr.mxu0 0.0
  %3171 = vmatpush1.msra.mxu0 %v3097
  %3172 = vmatprep.subr.mxu0 0.0
  %3173 = vmatpush1.msra.mxu0 %v3098
  %3174 = vmatprep.subr.mxu0 0.0
  %3175 = vmatpush1.msra.mxu0 %v3099
  %3176 = vmatprep.subr.mxu0 0.0
  %3177 = vmatpush1.msra.mxu0 %v3100
  %3178 = vmatprep.subr.mxu0 0.0
  %3179 = vmatpush1.msra.mxu0 %v3111
  %3180 = vmatprep.subr.mxu0 0.0
  %3181 = vmatpush1.msra.mxu0 %v3113
  %3182 = vmatprep.subr.mxu0 0.0
  %3183 = vmatpush1.msra.mxu0 %v3115
  %3184 = vmatprep.subr.mxu0 0.0
  %3185 = vmatpush1.msra.mxu0 %v3117
  %3186 = vmatprep.subr.mxu0 0.0
  %3187 = vmatpush1.msra.mxu0 %v3119
  %3188 = vmatprep.subr.mxu0 0.0
  %3189 = vmatpush1.msra.mxu0 %v3121
  %3190 = vmatprep.subr.mxu0 0.0
  %3191 = vmatpush1.msra.mxu0 %v3123
  %3192 = vmatprep.subr.mxu0 0.0
  %3193 = vmatpush1.msra.mxu0 %v3125
  %3194 = vmatprep.subr.mxu0 0.0
  %3195 = vmatpush1.msra.mxu0 %v3135
  %3196 = vmatprep.subr.mxu0 0.0
  %3197 = vmatpush1.msra.mxu0 %v3137
  %3198 = vmatprep.subr.mxu0 0.0
  %3199 = vmatpush1.msra.mxu0 %v3139
  %3200 = vmatprep.subr.mxu0 0.0
  %3201 = vmatpush1.msra.mxu0 %v3141
  %3202 = vmatprep.subr.mxu0 0.0
  %3203 = vmatpush1.msra.mxu0 %v3143
  %3204 = vmatprep.subr.mxu0 0.0
  %3205 = vmatpush1.msra.mxu0 %v3145
  %3206 = vmatprep.subr.mxu0 0.0
  %3207 = vmatpush1.msra.mxu0 %v3147
  %3208 = vmatprep.subr.mxu0 0.0
  %3209 = vmatpush1.msra.mxu0 %v3149
  %3210 = vmatprep.subr.mxu0 0.0
  %3211 = vmatpush1.msra.mxu0 %v777
  %3212 = vmatprep.subr.mxu0 0.0
  %3213 = vmatpush1.msra.mxu0 0.0
  %3214 = vmatprep.subr.mxu0 0.0
  %3215 = vmatpush1.msra.mxu0 0.0
  %3216 = vmatprep.subr.mxu0 0.0
  %3217 = vmatpush1.msra.mxu0 0.0
  %3218 = vmatprep.subr.mxu0 0.0
  %3219 = vmatpush1.msra.mxu0 0.0
  %3220 = vmatprep.subr.mxu0 0.0
  %3221 = vmatpush1.msra.mxu0 0.0
  %3222 = vmatprep.subr.mxu0 0.0
  %3223 = vmatpush1.msra.mxu0 0.0
  %3224 = vmatprep.subr.mxu0 0.0
  %3225 = vmatpush1.msra.mxu0 0.0
  %3226 = vmatprep.mubr.f32.mxu0 %v3160
  %3227 = vmatmul.mubr.f32.gmra.mrb[0].mxu0 %v3101
  %v3228 = vpop.f32.mrb[0].mxu0
  %v3229 = vadd.f32 0.0, %v3228
  %v3230 = vpop.f32.mrb[0].mxu0
  %3231 = vdwg.mxu0
  %vm3232 = vcmask 134144
  %3233 = vst.msk [vmem:[%s12] sm:$0xf] %vm3232, %v3229
  // Predicated region
  $region38: #{_lambda_.5} parent=0 // pred_check
    _
  $region39: #{_lambda_.5} parent=0 // pred_check_branch
    %3235 = sbr.rel (0) target = $region41
  $region40: #{_lambda_.5} parent=0 // pred_region
    _
  $region41: #{_lambda_.5} parent=0 // pred_fallthru
    _
  // Predicated region
  $region42: #{_lambda_.5} parent=0 // pred_check
    _
  $region43: #{_lambda_.5} parent=0 // pred_check_branch
    %3237 = sbr.rel (0) target = $region45
  $region44: #{_lambda_.5} parent=0 // pred_region
    _
  $region45: #{_lambda_.5} parent=0 // pred_fallthru
    _
  // Predicated region
  $region46: #{_lambda_.5} parent=0 // pred_check
    _
  $region47: #{_lambda_.5} parent=0 // pred_check_branch
    %3239 = sbr.rel (0) target = $region49
  $region48: #{_lambda_.5} parent=0 // pred_region
    _
  $region49: #{_lambda_.5} parent=0 // pred_fallthru
    _
  // Predicated region
  $region50: #{_lambda_.5} parent=0 // pred_check
    _
  $region51: #{_lambda_.5} parent=0 // pred_check_branch
    %3241 = sbr.rel (0) target = $region53
  $region52: #{_lambda_.5} parent=0 // pred_region
    _
  $region53: #{_lambda_.5} parent=0 // pred_fallthru
    _
  // Predicated region
  $region54: #{_lambda_.5} parent=0 // pred_check
    _
  $region55: #{_lambda_.5} parent=0 // pred_check_branch
    %3243 = sbr.rel (0) target = $region57
  $region56: #{_lambda_.5} parent=0 // pred_region
    _
  $region57: #{_lambda_.5} parent=0 // pred_fallthru
    _
  // Predicated region
  $region58: #{_lambda_.5} parent=0 // pred_check
    _
  $region59: #{_lambda_.5} parent=0 // pred_check_branch
    %3245 = sbr.rel (0) target = $region61
  $region60: #{_lambda_.5} parent=0 // pred_region
    _
  $region61: #{_lambda_.5} parent=0 // pred_fallthru
    _
  // Predicated region
  $region62: #{_lambda_.5} parent=0 // pred_check
    _
  $region63: #{_lambda_.5} parent=0 // pred_check_branch
    %3247 = sbr.rel (0) target = $region65
  $region64: #{_lambda_.5} parent=0 // pred_region
    _
  $region65: #{_lambda_.5} parent=0 // pred_fallthru
    _
  // Predicated region
  $region66: #{_lambda_.5} parent=0 // pred_check
    _
  $region67: #{_lambda_.5} parent=0 // pred_check_branch
    %3249 = sbr.rel (0) target = $region69
  $region68: #{_lambda_.5} parent=0 // pred_region
    _
  $region69: #{_lambda_.5} parent=0 // pred_fallthru
    _

</llo_original>
